<compile_context>
chip_gen: v6e
topology: v6e:2x2x1
jax: 0.10.0
libtpu: 0.0.40
codegen_flags: <defaults>
</compile_context>

<pallas_src>
import numpy as np
import jax
import jax.numpy as jnp
from jax.experimental import pallas as pl
from jax.experimental.pallas import tpu as pltpu

EPS = 1e-5


def _stn_kernel(x_ref,
                w1_ref, s1_ref, t1_ref,
                w2_ref, s2_ref, t2_ref,
                w3_ref, s3_ref, t3_ref,
                w4_ref, s4_ref, t4_ref,
                w5_ref, s5_ref, t5_ref,
                w6_ref, b6_ref, iden_ref,
                o_ref):
    Bt, N, k = x_ref.shape

    # Flatten the batch tile so the point-wise MLP is one big matmul:
    # (Bt*N, k) @ (k, 64) etc.  bf16 inputs, f32 accumulation.
    x = x_ref[...].reshape(Bt * N, k)

    # conv1 (1x1) + bn1 + relu
    h = jnp.dot(x, w1_ref[...], preferred_element_type=jnp.float32)
    h = jnp.maximum(h * s1_ref[...] + t1_ref[...], 0.0).astype(jnp.bfloat16)

    # conv2 (1x1) + bn2 + relu
    h = jnp.dot(h, w2_ref[...], preferred_element_type=jnp.float32)
    h = jnp.maximum(h * s2_ref[...] + t2_ref[...], 0.0).astype(jnp.bfloat16)

    # conv3 (1x1) + bn3 + relu (keep f32 for the max reduction)
    h = jnp.dot(h, w3_ref[...], preferred_element_type=jnp.float32)
    h = jnp.maximum(h * s3_ref[...] + t3_ref[...], 0.0)

    # global max-pool over points: (Bt, N, 1024) -> (Bt, 1024)
    g = jnp.max(h.reshape(Bt, N, -1), axis=1).astype(jnp.bfloat16)

    # fc1 + bn4 + relu : (Bt, 1024) @ (1024, 512)
    g = jnp.dot(g, w4_ref[...], preferred_element_type=jnp.float32)
    g = jnp.maximum(g * s4_ref[...] + t4_ref[...], 0.0).astype(jnp.bfloat16)

    # fc2 + bn5 + relu : (Bt, 512) @ (512, 256)
    g = jnp.dot(g, w5_ref[...], preferred_element_type=jnp.float32)
    g = jnp.maximum(g * s5_ref[...] + t5_ref[...], 0.0).astype(jnp.bfloat16)

    # fc3 + bias + flattened identity : (Bt, 256) @ (256, k*k)
    out = jnp.dot(g, w6_ref[...], preferred_element_type=jnp.float32)
    out = out + b6_ref[...] + iden_ref[...]

    o_ref[...] = out.astype(o_ref.dtype)   # (Bt, k*k), lane-dense output


def _fold_bn(bias, gamma, beta, mean, var):
    """Fold conv/fc bias + BN(eval) into per-channel scale / shift (f32 rows)."""
    scale = gamma / jnp.sqrt(var + EPS)
    shift = (bias - mean) * scale + beta
    return scale[None, :].astype(jnp.float32), shift[None, :].astype(jnp.float32)


def stnkd_forward(x_bkn, params, block_b=8):
    """x_bkn: (B, k, N) float32, PyTorch Conv1d layout. Returns (B, k, k)."""
    B, k, N = x_bkn.shape
    kk = k * k

    # Batch tile: either the full batch (small B) or 8 (divisible-by-8 block
    # so the output BlockSpec sublane dim satisfies the (8,128) rule).
    Bt = B if B <= block_b else block_b
    B_pad = ((B + Bt - 1) // Bt) * Bt

    # (B, k, N) -> (B, N, k): points on sublanes, channels on lanes. bf16 feed.
    x = jnp.transpose(x_bkn, (0, 2, 1)).astype(jnp.bfloat16)
    if B_pad != B:
        x = jnp.pad(x, ((0, B_pad - B), (0, 0), (0, 0)))

    # Weights: conv weights are (out, in, 1); linear weights are (out, in).
    # Cast to bf16 (halves the dominant weight DMA: w4=2 MiB, w6=4 MiB in f32).
    w1 = params["conv1_w"][:, :, 0].T.astype(jnp.bfloat16)   # (k, 64)
    w2 = params["conv2_w"][:, :, 0].T.astype(jnp.bfloat16)   # (64, 128)
    w3 = params["conv3_w"][:, :, 0].T.astype(jnp.bfloat16)   # (128, 1024)
    w4 = params["fc1_w"].T.astype(jnp.bfloat16)              # (1024, 512)
    w5 = params["fc2_w"].T.astype(jnp.bfloat16)              # (512, 256)
    w6 = params["fc3_w"].T.astype(jnp.bfloat16)              # (256, k*k)
    b6 = params["fc3_b"][None, :].astype(jnp.float32)        # (1, k*k)

    s1, t1 = _fold_bn(params["conv1_b"], *params["bn1"])
    s2, t2 = _fold_bn(params["conv2_b"], *params["bn2"])
    s3, t3 = _fold_bn(params["conv3_b"], *params["bn3"])
    s4, t4 = _fold_bn(params["fc1_b"], *params["bn4"])
    s5, t5 = _fold_bn(params["fc2_b"], *params["bn5"])

    iden = jnp.eye(k, dtype=jnp.float32).reshape(1, kk)

    def full2d(arr):
        r, c = arr.shape
        return pl.BlockSpec((r, c), lambda b: (0, 0))

    operands = (x,
                w1, s1, t1, w2, s2, t2, w3, s3, t3,
                w4, s4, t4, w5, s5, t5,
                w6, b6, iden)

    in_specs = [pl.BlockSpec((Bt, N, k), lambda b: (b, 0, 0))] + \
               [full2d(a) for a in operands[1:]]

    out = pl.pallas_call(
        _stn_kernel,
        out_shape=jax.ShapeDtypeStruct((B_pad, kk), jnp.float32),
        grid_spec=pltpu.PrefetchScalarGridSpec(
            num_scalar_prefetch=0,
            grid=(B_pad // Bt,),
            in_specs=in_specs,
            out_specs=pl.BlockSpec((Bt, kk), lambda b: (b, 0)),
        ),
        compiler_params=pltpu.CompilerParams(
            dimension_semantics=("parallel",),          # batch tiles independent
            vmem_limit_bytes=32 << 20,                  # safe on v7x (64 MiB phys)
        ),
    )(*operands)

    # TODO(synk): for production N (1024-2500), add a point-tile grid axis with
    # a running-max VMEM scratch so the (tile, 1024) activation stays bounded.
    return out[:B].reshape(B, k, k)


def stnkd_reference(x_bkn, params):
    """Pure-JAX f32 reference of the PyTorch forward (BN in eval mode)."""
    def bn(y, g, bta, m, v):  # y: (B, C, N) or (B, C)
        shp = (1, -1, 1) if y.ndim == 3 else (1, -1)
        return (y - m.reshape(shp)) / jnp.sqrt(v.reshape(shp) + EPS) * g.reshape(shp) + bta.reshape(shp)

    B, k, N = x_bkn.shape
    h = jnp.einsum("oc,bcn->bon", params["conv1_w"][:, :, 0], x_bkn) + params["conv1_b"][None, :, None]
    h = jax.nn.relu(bn(h, *params["bn1"]))
    h = jnp.einsum("oc,bcn->bon", params["conv2_w"][:, :, 0], h) + params["conv2_b"][None, :, None]
    h = jax.nn.relu(bn(h, *params["bn2"]))
    h = jnp.einsum("oc,bcn->bon", params["conv3_w"][:, :, 0], h) + params["conv3_b"][None, :, None]
    h = jax.nn.relu(bn(h, *params["bn3"]))
    g = jnp.max(h, axis=2)                                     # (B, 1024)
    g = jax.nn.relu(bn(g @ params["fc1_w"].T + params["fc1_b"], *params["bn4"]))
    g = jax.nn.relu(bn(g @ params["fc2_w"].T + params["fc2_b"], *params["bn5"]))
    out = g @ params["fc3_w"].T + params["fc3_b"]
    out = out + jnp.eye(k, dtype=jnp.float32).reshape(1, k * k)
    return out.reshape(B, k, k)


def make_params(key, k=64):
    dims = dict(c1=(64, k, 1), c2=(128, 64, 1), c3=(1024, 128, 1),
                f1=(512, 1024), f2=(256, 512), f3=(k * k, 256))
    keys = jax.random.split(key, 32)
    i = iter(range(32))

    def rnd(shape, scale=0.05):
        return scale * jax.random.normal(keys[next(i)], shape, dtype=jnp.float32)

    def bn_params(c):
        gamma = 1.0 + 0.1 * jax.random.normal(keys[next(i)], (c,), dtype=jnp.float32)
        beta = 0.1 * jax.random.normal(keys[next(i)], (c,), dtype=jnp.float32)
        mean = 0.1 * jax.random.normal(keys[next(i)], (c,), dtype=jnp.float32)
        var = 0.5 + jax.random.uniform(keys[next(i)], (c,), dtype=jnp.float32)
        return (gamma, beta, mean, var)

    return {
        "conv1_w": rnd(dims["c1"]), "conv1_b": rnd((64,)),
        "conv2_w": rnd(dims["c2"]), "conv2_b": rnd((128,)),
        "conv3_w": rnd(dims["c3"]), "conv3_b": rnd((1024,)),
        "fc1_w": rnd(dims["f1"]), "fc1_b": rnd((512,)),
        "fc2_w": rnd(dims["f2"]), "fc2_b": rnd((256,)),
        "fc3_w": rnd(dims["f3"]), "fc3_b": rnd((k * k,)),
        "bn1": bn_params(64), "bn2": bn_params(128), "bn3": bn_params(1024),
        "bn4": bn_params(512), "bn5": bn_params(256),
    }


if __name__ == "__main__":
    key = jax.random.PRNGKey(0)
    k, B, N = 64, 2, 16           # input: (batch=2, channels=k=64, points=16)
    pkey, xkey = jax.random.split(key)
    params = make_params(pkey, k=k)
    x = jax.random.normal(xkey, (B, k, N), dtype=jnp.float32)

    out = stnkd_forward(x, params)
    out = jax.block_until_ready(out)

    ref = jax.block_until_ready(stnkd_reference(x, params))
    # bf16 weights/activations (f32 accumulation) -> compare with loose tolerance.
    np.testing.assert_allclose(np.asarray(out), np.asarray(ref), rtol=5e-2, atol=5e-2)
    assert out.shape == (B, k, k)

    print("KERNEL_OK")
</pallas_src>

<mosaic_0001>
module attributes {stable_mosaic.version = 11 : i64} {
  func.func @_stn_kernel(%arg0: i32, %arg1: memref<2x16x64xbf16, #tpu.memory_space<vmem>>, %arg2: memref<64x64xbf16, #tpu.memory_space<vmem>>, %arg3: memref<1x64xf32, #tpu.memory_space<vmem>>, %arg4: memref<1x64xf32, #tpu.memory_space<vmem>>, %arg5: memref<64x128xbf16, #tpu.memory_space<vmem>>, %arg6: memref<1x128xf32, #tpu.memory_space<vmem>>, %arg7: memref<1x128xf32, #tpu.memory_space<vmem>>, %arg8: memref<128x1024xbf16, #tpu.memory_space<vmem>>, %arg9: memref<1x1024xf32, #tpu.memory_space<vmem>>, %arg10: memref<1x1024xf32, #tpu.memory_space<vmem>>, %arg11: memref<1024x512xbf16, #tpu.memory_space<vmem>>, %arg12: memref<1x512xf32, #tpu.memory_space<vmem>>, %arg13: memref<1x512xf32, #tpu.memory_space<vmem>>, %arg14: memref<512x256xbf16, #tpu.memory_space<vmem>>, %arg15: memref<1x256xf32, #tpu.memory_space<vmem>>, %arg16: memref<1x256xf32, #tpu.memory_space<vmem>>, %arg17: memref<256x4096xbf16, #tpu.memory_space<vmem>>, %arg18: memref<1x4096xf32, #tpu.memory_space<vmem>>, %arg19: memref<1x4096xf32, #tpu.memory_space<vmem>>, %arg20: memref<2x4096xf32, #tpu.memory_space<vmem>>) attributes {dimension_semantics = [#tpu.dimension_semantics<parallel>], iteration_bounds = array<i64: 1>, scalar_prefetch = 0 : i64, scratch_operands = 0 : i64, tpu.core_type = #tpu.core_type<tc>, window_params = [{transform_indices = @transform_0, window_bounds = array<i64: 2, 16, 64>}, {pipeline_mode = #tpu.pipeline_mode<synchronous>, transform_indices = @transform_1, window_bounds = array<i64: 64, 64>}, {pipeline_mode = #tpu.pipeline_mode<synchronous>, transform_indices = @transform_2, window_bounds = array<i64: 1, 64>}, {pipeline_mode = #tpu.pipeline_mode<synchronous>, transform_indices = @transform_3, window_bounds = array<i64: 1, 64>}, {pipeline_mode = #tpu.pipeline_mode<synchronous>, transform_indices = @transform_4, window_bounds = array<i64: 64, 128>}, {pipeline_mode = #tpu.pipeline_mode<synchronous>, transform_indices = @transform_5, window_bounds = array<i64: 1, 128>}, {pipeline_mode = #tpu.pipeline_mode<synchronous>, transform_indices = @transform_6, window_bounds = array<i64: 1, 128>}, {pipeline_mode = #tpu.pipeline_mode<synchronous>, transform_indices = @transform_7, window_bounds = array<i64: 128, 1024>}, {pipeline_mode = #tpu.pipeline_mode<synchronous>, transform_indices = @transform_8, window_bounds = array<i64: 1, 1024>}, {pipeline_mode = #tpu.pipeline_mode<synchronous>, transform_indices = @transform_9, window_bounds = array<i64: 1, 1024>}, {pipeline_mode = #tpu.pipeline_mode<synchronous>, transform_indices = @transform_10, window_bounds = array<i64: 1024, 512>}, {pipeline_mode = #tpu.pipeline_mode<synchronous>, transform_indices = @transform_11, window_bounds = array<i64: 1, 512>}, {pipeline_mode = #tpu.pipeline_mode<synchronous>, transform_indices = @transform_12, window_bounds = array<i64: 1, 512>}, {pipeline_mode = #tpu.pipeline_mode<synchronous>, transform_indices = @transform_13, window_bounds = array<i64: 512, 256>}, {pipeline_mode = #tpu.pipeline_mode<synchronous>, transform_indices = @transform_14, window_bounds = array<i64: 1, 256>}, {pipeline_mode = #tpu.pipeline_mode<synchronous>, transform_indices = @transform_15, window_bounds = array<i64: 1, 256>}, {pipeline_mode = #tpu.pipeline_mode<synchronous>, transform_indices = @transform_16, window_bounds = array<i64: 256, 4096>}, {pipeline_mode = #tpu.pipeline_mode<synchronous>, transform_indices = @transform_17, window_bounds = array<i64: 1, 4096>}, {pipeline_mode = #tpu.pipeline_mode<synchronous>, transform_indices = @transform_18, window_bounds = array<i64: 1, 4096>}, {transform_indices = @transform_19, window_bounds = array<i64: 2, 4096>}]} {
    %c0 = arith.constant 0 : index
    %c0_0 = arith.constant 0 : index
    %c0_1 = arith.constant 0 : index
    %0 = vector.load %arg1[%c0, %c0_0, %c0_1] : memref<2x16x64xbf16, #tpu.memory_space<vmem>>, vector<2x16x64xbf16>
    %1 = vector.shape_cast %0 : vector<2x16x64xbf16> to vector<32x64xbf16>
    %c0_2 = arith.constant 0 : index
    %c0_3 = arith.constant 0 : index
    %2 = vector.load %arg2[%c0_2, %c0_3] : memref<64x64xbf16, #tpu.memory_space<vmem>>, vector<64x64xbf16>
    %cst = arith.constant dense<0.000000e+00> : vector<32x64xf32>
    %3 = tpu.matmul %1, %2, %cst {dimension_numbers = #tpu.dot_dimension_numbers<[1], [0], [0], [1], [0, 0, 1, 1], [], []>} : vector<32x64xbf16>, vector<64x64xbf16>, vector<32x64xf32> -> vector<32x64xf32>
    %c0_4 = arith.constant 0 : index
    %c0_5 = arith.constant 0 : index
    %4 = vector.load %arg3[%c0_4, %c0_5] : memref<1x64xf32, #tpu.memory_space<vmem>>, vector<1x64xf32>
    %5 = vector.broadcast %4 : vector<1x64xf32> to vector<32x64xf32>
    %6 = arith.mulf %3, %5 : vector<32x64xf32>
    %c0_6 = arith.constant 0 : index
    %c0_7 = arith.constant 0 : index
    %7 = vector.load %arg4[%c0_6, %c0_7] : memref<1x64xf32, #tpu.memory_space<vmem>>, vector<1x64xf32>
    %8 = vector.broadcast %7 : vector<1x64xf32> to vector<32x64xf32>
    %9 = arith.addf %6, %8 : vector<32x64xf32>
    %cst_8 = arith.constant 0.000000e+00 : f32
    %10 = vector.broadcast %cst_8 : f32 to vector<32x64xf32>
    %11 = arith.maximumf %9, %10 : vector<32x64xf32>
    %12 = arith.truncf %11 : vector<32x64xf32> to vector<32x64xbf16>
    %c0_9 = arith.constant 0 : index
    %c0_10 = arith.constant 0 : index
    %13 = vector.load %arg5[%c0_9, %c0_10] : memref<64x128xbf16, #tpu.memory_space<vmem>>, vector<64x128xbf16>
    %cst_11 = arith.constant dense<0.000000e+00> : vector<32x128xf32>
    %14 = tpu.matmul %12, %13, %cst_11 {dimension_numbers = #tpu.dot_dimension_numbers<[1], [0], [0], [1], [0, 0, 1, 1], [], []>} : vector<32x64xbf16>, vector<64x128xbf16>, vector<32x128xf32> -> vector<32x128xf32>
    %c0_12 = arith.constant 0 : index
    %c0_13 = arith.constant 0 : index
    %15 = vector.load %arg6[%c0_12, %c0_13] : memref<1x128xf32, #tpu.memory_space<vmem>>, vector<1x128xf32>
    %16 = vector.broadcast %15 : vector<1x128xf32> to vector<32x128xf32>
    %17 = arith.mulf %14, %16 : vector<32x128xf32>
    %c0_14 = arith.constant 0 : index
    %c0_15 = arith.constant 0 : index
    %18 = vector.load %arg7[%c0_14, %c0_15] : memref<1x128xf32, #tpu.memory_space<vmem>>, vector<1x128xf32>
    %19 = vector.broadcast %18 : vector<1x128xf32> to vector<32x128xf32>
    %20 = arith.addf %17, %19 : vector<32x128xf32>
    %cst_16 = arith.constant 0.000000e+00 : f32
    %21 = vector.broadcast %cst_16 : f32 to vector<32x128xf32>
    %22 = arith.maximumf %20, %21 : vector<32x128xf32>
    %23 = arith.truncf %22 : vector<32x128xf32> to vector<32x128xbf16>
    %c0_17 = arith.constant 0 : index
    %c0_18 = arith.constant 0 : index
    %24 = vector.load %arg8[%c0_17, %c0_18] : memref<128x1024xbf16, #tpu.memory_space<vmem>>, vector<128x1024xbf16>
    %cst_19 = arith.constant dense<0.000000e+00> : vector<32x1024xf32>
    %25 = tpu.matmul %23, %24, %cst_19 {dimension_numbers = #tpu.dot_dimension_numbers<[1], [0], [0], [1], [0, 0, 1, 1], [], []>} : vector<32x128xbf16>, vector<128x1024xbf16>, vector<32x1024xf32> -> vector<32x1024xf32>
    %c0_20 = arith.constant 0 : index
    %c0_21 = arith.constant 0 : index
    %26 = vector.load %arg9[%c0_20, %c0_21] : memref<1x1024xf32, #tpu.memory_space<vmem>>, vector<1x1024xf32>
    %27 = vector.broadcast %26 : vector<1x1024xf32> to vector<32x1024xf32>
    %28 = arith.mulf %25, %27 : vector<32x1024xf32>
    %c0_22 = arith.constant 0 : index
    %c0_23 = arith.constant 0 : index
    %29 = vector.load %arg10[%c0_22, %c0_23] : memref<1x1024xf32, #tpu.memory_space<vmem>>, vector<1x1024xf32>
    %30 = vector.broadcast %29 : vector<1x1024xf32> to vector<32x1024xf32>
    %31 = arith.addf %28, %30 : vector<32x1024xf32>
    %cst_24 = arith.constant 0.000000e+00 : f32
    %32 = vector.broadcast %cst_24 : f32 to vector<32x1024xf32>
    %33 = arith.maximumf %31, %32 : vector<32x1024xf32>
    %34 = vector.shape_cast %33 : vector<32x1024xf32> to vector<2x16x1024xf32>
    %cst_25 = arith.constant dense<0xFF800000> : vector<2x1024xf32>
    %35 = vector.multi_reduction <maximumf>, %34, %cst_25 [1] : vector<2x16x1024xf32> to vector<2x1024xf32>
    %36 = arith.truncf %35 : vector<2x1024xf32> to vector<2x1024xbf16>
    %c0_26 = arith.constant 0 : index
    %c0_27 = arith.constant 0 : index
    %37 = vector.load %arg11[%c0_26, %c0_27] : memref<1024x512xbf16, #tpu.memory_space<vmem>>, vector<1024x512xbf16>
    %cst_28 = arith.constant dense<0.000000e+00> : vector<2x512xf32>
    %38 = tpu.matmul %36, %37, %cst_28 {dimension_numbers = #tpu.dot_dimension_numbers<[1], [0], [0], [1], [0, 0, 1, 1], [], []>} : vector<2x1024xbf16>, vector<1024x512xbf16>, vector<2x512xf32> -> vector<2x512xf32>
    %c0_29 = arith.constant 0 : index
    %c0_30 = arith.constant 0 : index
    %39 = vector.load %arg12[%c0_29, %c0_30] : memref<1x512xf32, #tpu.memory_space<vmem>>, vector<1x512xf32>
    %40 = vector.broadcast %39 : vector<1x512xf32> to vector<2x512xf32>
    %41 = arith.mulf %38, %40 : vector<2x512xf32>
    %c0_31 = arith.constant 0 : index
    %c0_32 = arith.constant 0 : index
    %42 = vector.load %arg13[%c0_31, %c0_32] : memref<1x512xf32, #tpu.memory_space<vmem>>, vector<1x512xf32>
    %43 = vector.broadcast %42 : vector<1x512xf32> to vector<2x512xf32>
    %44 = arith.addf %41, %43 : vector<2x512xf32>
    %cst_33 = arith.constant 0.000000e+00 : f32
    %45 = vector.broadcast %cst_33 : f32 to vector<2x512xf32>
    %46 = arith.maximumf %44, %45 : vector<2x512xf32>
    %47 = arith.truncf %46 : vector<2x512xf32> to vector<2x512xbf16>
    %c0_34 = arith.constant 0 : index
    %c0_35 = arith.constant 0 : index
    %48 = vector.load %arg14[%c0_34, %c0_35] : memref<512x256xbf16, #tpu.memory_space<vmem>>, vector<512x256xbf16>
    %cst_36 = arith.constant dense<0.000000e+00> : vector<2x256xf32>
    %49 = tpu.matmul %47, %48, %cst_36 {dimension_numbers = #tpu.dot_dimension_numbers<[1], [0], [0], [1], [0, 0, 1, 1], [], []>} : vector<2x512xbf16>, vector<512x256xbf16>, vector<2x256xf32> -> vector<2x256xf32>
    %c0_37 = arith.constant 0 : index
    %c0_38 = arith.constant 0 : index
    %50 = vector.load %arg15[%c0_37, %c0_38] : memref<1x256xf32, #tpu.memory_space<vmem>>, vector<1x256xf32>
    %51 = vector.broadcast %50 : vector<1x256xf32> to vector<2x256xf32>
    %52 = arith.mulf %49, %51 : vector<2x256xf32>
    %c0_39 = arith.constant 0 : index
    %c0_40 = arith.constant 0 : index
    %53 = vector.load %arg16[%c0_39, %c0_40] : memref<1x256xf32, #tpu.memory_space<vmem>>, vector<1x256xf32>
    %54 = vector.broadcast %53 : vector<1x256xf32> to vector<2x256xf32>
    %55 = arith.addf %52, %54 : vector<2x256xf32>
    %cst_41 = arith.constant 0.000000e+00 : f32
    %56 = vector.broadcast %cst_41 : f32 to vector<2x256xf32>
    %57 = arith.maximumf %55, %56 : vector<2x256xf32>
    %58 = arith.truncf %57 : vector<2x256xf32> to vector<2x256xbf16>
    %c0_42 = arith.constant 0 : index
    %c0_43 = arith.constant 0 : index
    %59 = vector.load %arg17[%c0_42, %c0_43] : memref<256x4096xbf16, #tpu.memory_space<vmem>>, vector<256x4096xbf16>
    %cst_44 = arith.constant dense<0.000000e+00> : vector<2x4096xf32>
    %60 = tpu.matmul %58, %59, %cst_44 {dimension_numbers = #tpu.dot_dimension_numbers<[1], [0], [0], [1], [0, 0, 1, 1], [], []>} : vector<2x256xbf16>, vector<256x4096xbf16>, vector<2x4096xf32> -> vector<2x4096xf32>
    %c0_45 = arith.constant 0 : index
    %c0_46 = arith.constant 0 : index
    %61 = vector.load %arg18[%c0_45, %c0_46] : memref<1x4096xf32, #tpu.memory_space<vmem>>, vector<1x4096xf32>
    %62 = vector.broadcast %61 : vector<1x4096xf32> to vector<2x4096xf32>
    %63 = arith.addf %60, %62 : vector<2x4096xf32>
    %c0_47 = arith.constant 0 : index
    %c0_48 = arith.constant 0 : index
    %64 = vector.load %arg19[%c0_47, %c0_48] : memref<1x4096xf32, #tpu.memory_space<vmem>>, vector<1x4096xf32>
    %65 = vector.broadcast %64 : vector<1x4096xf32> to vector<2x4096xf32>
    %66 = arith.addf %63, %65 : vector<2x4096xf32>
    %c0_49 = arith.constant 0 : index
    %c0_50 = arith.constant 0 : index
    %67 = vector.load %arg20[%c0_49, %c0_50] : memref<2x4096xf32, #tpu.memory_space<vmem>>, vector<2x4096xf32>
    tpu.vector_store %arg20[%c0_49, %c0_50], %66 {strides = array<i32>} : memref<2x4096xf32, #tpu.memory_space<vmem>>, vector<2x4096xf32>,
    return
  }
  func.func @transform_0(%arg0: i32) -> (i32, i32, i32) {
    %c0_i32 = arith.constant 0 : i32
    %c0_i32_0 = arith.constant 0 : i32
    %c0_i32_1 = arith.constant 0 : i32
    return %arg0, %c0_i32, %c0_i32_0 : i32, i32, i32
  }
  func.func @transform_1(%arg0: i32) -> (i32, i32) {
    %c0_i32 = arith.constant 0 : i32
    %c0_i32_0 = arith.constant 0 : i32
    %c0_i32_1 = arith.constant 0 : i32
    return %c0_i32, %c0_i32_0 : i32, i32
  }
  func.func @transform_2(%arg0: i32) -> (i32, i32) {
    %c0_i32 = arith.constant 0 : i32
    %c0_i32_0 = arith.constant 0 : i32
    %c0_i32_1 = arith.constant 0 : i32
    return %c0_i32, %c0_i32_0 : i32, i32
  }
  func.func @transform_3(%arg0: i32) -> (i32, i32) {
    %c0_i32 = arith.constant 0 : i32
    %c0_i32_0 = arith.constant 0 : i32
    %c0_i32_1 = arith.constant 0 : i32
    return %c0_i32, %c0_i32_0 : i32, i32
  }
  func.func @transform_4(%arg0: i32) -> (i32, i32) {
    %c0_i32 = arith.constant 0 : i32
    %c0_i32_0 = arith.constant 0 : i32
    %c0_i32_1 = arith.constant 0 : i32
    return %c0_i32, %c0_i32_0 : i32, i32
  }
  func.func @transform_5(%arg0: i32) -> (i32, i32) {
    %c0_i32 = arith.constant 0 : i32
    %c0_i32_0 = arith.constant 0 : i32
    %c0_i32_1 = arith.constant 0 : i32
    return %c0_i32, %c0_i32_0 : i32, i32
  }
  func.func @transform_6(%arg0: i32) -> (i32, i32) {
    %c0_i32 = arith.constant 0 : i32
    %c0_i32_0 = arith.constant 0 : i32
    %c0_i32_1 = arith.constant 0 : i32
    return %c0_i32, %c0_i32_0 : i32, i32
  }
  func.func @transform_7(%arg0: i32) -> (i32, i32) {
    %c0_i32 = arith.constant 0 : i32
    %c0_i32_0 = arith.constant 0 : i32
    %c0_i32_1 = arith.constant 0 : i32
    return %c0_i32, %c0_i32_0 : i32, i32
  }
  func.func @transform_8(%arg0: i32) -> (i32, i32) {
    %c0_i32 = arith.constant 0 : i32
    %c0_i32_0 = arith.constant 0 : i32
    %c0_i32_1 = arith.constant 0 : i32
    return %c0_i32, %c0_i32_0 : i32, i32
  }
  func.func @transform_9(%arg0: i32) -> (i32, i32) {
    %c0_i32 = arith.constant 0 : i32
    %c0_i32_0 = arith.constant 0 : i32
    %c0_i32_1 = arith.constant 0 : i32
    return %c0_i32, %c0_i32_0 : i32, i32
  }
  func.func @transform_10(%arg0: i32) -> (i32, i32) {
    %c0_i32 = arith.constant 0 : i32
    %c0_i32_0 = arith.constant 0 : i32
    %c0_i32_1 = arith.constant 0 : i32
    return %c0_i32, %c0_i32_0 : i32, i32
  }
  func.func @transform_11(%arg0: i32) -> (i32, i32) {
    %c0_i32 = arith.constant 0 : i32
    %c0_i32_0 = arith.constant 0 : i32
    %c0_i32_1 = arith.constant 0 : i32
    return %c0_i32, %c0_i32_0 : i32, i32
  }
  func.func @transform_12(%arg0: i32) -> (i32, i32) {
    %c0_i32 = arith.constant 0 : i32
    %c0_i32_0 = arith.constant 0 : i32
    %c0_i32_1 = arith.constant 0 : i32
    return %c0_i32, %c0_i32_0 : i32, i32
  }
  func.func @transform_13(%arg0: i32) -> (i32, i32) {
    %c0_i32 = arith.constant 0 : i32
    %c0_i32_0 = arith.constant 0 : i32
    %c0_i32_1 = arith.constant 0 : i32
    return %c0_i32, %c0_i32_0 : i32, i32
  }
  func.func @transform_14(%arg0: i32) -> (i32, i32) {
    %c0_i32 = arith.constant 0 : i32
    %c0_i32_0 = arith.constant 0 : i32
    %c0_i32_1 = arith.constant 0 : i32
    return %c0_i32, %c0_i32_0 : i32, i32
  }
  func.func @transform_15(%arg0: i32) -> (i32, i32) {
    %c0_i32 = arith.constant 0 : i32
    %c0_i32_0 = arith.constant 0 : i32
    %c0_i32_1 = arith.constant 0 : i32
    return %c0_i32, %c0_i32_0 : i32, i32
  }
  func.func @transform_16(%arg0: i32) -> (i32, i32) {
    %c0_i32 = arith.constant 0 : i32
    %c0_i32_0 = arith.constant 0 : i32
    %c0_i32_1 = arith.constant 0 : i32
    return %c0_i32, %c0_i32_0 : i32, i32
  }
  func.func @transform_17(%arg0: i32) -> (i32, i32) {
    %c0_i32 = arith.constant 0 : i32
    %c0_i32_0 = arith.constant 0 : i32
    %c0_i32_1 = arith.constant 0 : i32
    return %c0_i32, %c0_i32_0 : i32, i32
  }
  func.func @transform_18(%arg0: i32) -> (i32, i32) {
    %c0_i32 = arith.constant 0 : i32
    %c0_i32_0 = arith.constant 0 : i32
    %c0_i32_1 = arith.constant 0 : i32
    return %c0_i32, %c0_i32_0 : i32, i32
  }
  func.func @transform_19(%arg0: i32) -> (i32, i32) {
    %c0_i32 = arith.constant 0 : i32
    %c0_i32_0 = arith.constant 0 : i32
    return %arg0, %c0_i32 : i32, i32
  }
}

</mosaic_0001>

<llo_original>
// kernel: tpu_custom_call.1
$region0: #{tpu_custom_call.1}
  #allocation0 [shape = 'u32[]', space=smem, size = 0x4, offset = 0x4, fixed_abs, tag = 'smem constant byte address 0x4 - core index']
  #allocation1 [shape = 'u32[144,128]{1,0:T(1,128)}', space=vmem, size = 0x12000, scoped, tag = 'internal scratch']
  %s0 = inlined_call_operand.hbm [shape: bf16[2,16,64], index: 0, kind: input, shape index: {}]
  %s1 = inlined_call_operand.hbm [shape: bf16[64,64], index: 1, kind: input, shape index: {}]
  %s2 = inlined_call_operand.hbm [shape: f32[1,64], index: 2, kind: input, shape index: {}]
  %s3 = inlined_call_operand.hbm [shape: f32[1,64], index: 3, kind: input, shape index: {}]
  %s4 = inlined_call_operand.hbm [shape: bf16[64,128], index: 4, kind: input, shape index: {}]
  %s5 = inlined_call_operand.hbm [shape: f32[1,128], index: 5, kind: input, shape index: {}]
  %s6 = inlined_call_operand.hbm [shape: f32[1,128], index: 6, kind: input, shape index: {}]
  %s7 = inlined_call_operand.hbm [shape: bf16[128,1024], index: 7, kind: input, shape index: {}]
  %s8 = inlined_call_operand.hbm [shape: f32[1,1024], index: 8, kind: input, shape index: {}]
  %s9 = inlined_call_operand.hbm [shape: f32[1,1024], index: 9, kind: input, shape index: {}]
  %s10 = inlined_call_operand.hbm [shape: bf16[1024,512], index: 10, kind: input, shape index: {}]
  %s11 = inlined_call_operand.hbm [shape: f32[1,512], index: 11, kind: input, shape index: {}]
  %s12 = inlined_call_operand.hbm [shape: f32[1,512], index: 12, kind: input, shape index: {}]
  %s13 = inlined_call_operand.hbm [shape: bf16[512,256], index: 13, kind: input, shape index: {}]
  %s14 = inlined_call_operand.hbm [shape: f32[1,256], index: 14, kind: input, shape index: {}]
  %s15 = inlined_call_operand.hbm [shape: f32[1,256], index: 15, kind: input, shape index: {}]
  %s16 = inlined_call_operand.hbm [shape: bf16[256,4096], index: 16, kind: input, shape index: {}]
  %s17 = inlined_call_operand.hbm [shape: f32[1,4096], index: 17, kind: input, shape index: {}]
  %s18 = inlined_call_operand.hbm [shape: f32[1,4096], index: 18, kind: input, shape index: {}]
  %s19 = inlined_call_operand.hbm [shape: f32[2,4096], index: 19, kind: output, shape index: {}]
  %s20 = sld [smem:[#allocation0]]
  $region162: #{tpu_custom_call.1} parent=0
    _
  %s22 = ssub.s32 1, %s20
  %s23 = scalar_select 0, %s22, %s20
  $region1: #{tpu_custom_call.1} parent=0
    #allocation2 [shape = 'u8[8192]{0}', space=vmem, size = 0x2000, scoped, tag = 'input window, operand 0, single buffered']
    #allocation3 [shape = 's32[1]{0}', space=sflag, size = 0x4, scoped, tag = 'scoped memory for tpu_custom_call.1']
    #allocation4 [shape = 's32[1]{0}', space=sflag, size = 0x4, scoped, tag = 'scoped memory for tpu_custom_call.1']
    #allocation5 [shape = 'u8[16384]{0}', space=vmem, size = 0x4000, scoped, tag = 'input window, operand 1, single buffered']
    #allocation6 [shape = 's32[1]{0}', space=sflag, size = 0x4, scoped, tag = 'scoped memory for tpu_custom_call.1']
    #allocation7 [shape = 'u8[512]{0}', space=vmem, size = 0x400, scoped, tag = 'input window, operand 2, single buffered']
    #allocation8 [shape = 'u8[512]{0}', space=vmem, size = 0x400, scoped, tag = 'input window, operand 3, single buffered']
    #allocation9 [shape = 's32[1]{0}', space=sflag, size = 0x4, scoped, tag = 'scoped memory for tpu_custom_call.1']
    #allocation10 [shape = 'u8[16384]{0}', space=vmem, size = 0x4000, scoped, tag = 'input window, operand 4, single buffered']
    #allocation11 [shape = 'u8[512]{0}', space=vmem, size = 0x400, scoped, tag = 'input window, operand 5, single buffered']
    #allocation12 [shape = 's32[1]{0}', space=sflag, size = 0x4, scoped, tag = 'scoped memory for tpu_custom_call.1']
    #allocation13 [shape = 'u8[512]{0}', space=vmem, size = 0x400, scoped, tag = 'input window, operand 6, single buffered']
    #allocation14 [shape = 'u8[262144]{0}', space=vmem, size = 0x40000, scoped, tag = 'input window, operand 7, single buffered']
    #allocation15 [shape = 's32[1]{0}', space=sflag, size = 0x4, scoped, tag = 'scoped memory for tpu_custom_call.1']
    #allocation16 [shape = 'u8[4096]{0}', space=vmem, size = 0x1000, scoped, tag = 'input window, operand 8, single buffered']
    #allocation17 [shape = 'u8[4096]{0}', space=vmem, size = 0x1000, scoped, tag = 'input window, operand 9, single buffered']
    #allocation18 [shape = 's32[1]{0}', space=sflag, size = 0x4, scoped, tag = 'scoped memory for tpu_custom_call.1']
    #allocation19 [shape = 'u8[1048576]{0}', space=vmem, size = 0x100000, scoped, tag = 'input window, operand 10, single buffered']
    #allocation20 [shape = 'u8[2048]{0}', space=vmem, size = 0x800, scoped, tag = 'input window, operand 11, single buffered']
    #allocation21 [shape = 's32[1]{0}', space=sflag, size = 0x4, scoped, tag = 'scoped memory for tpu_custom_call.1']
    #allocation22 [shape = 'u8[2048]{0}', space=vmem, size = 0x800, scoped, tag = 'input window, operand 12, single buffered']
    #allocation23 [shape = 'u8[262144]{0}', space=vmem, size = 0x40000, scoped, tag = 'input window, operand 13, single buffered']
    #allocation24 [shape = 's32[1]{0}', space=sflag, size = 0x4, scoped, tag = 'scoped memory for tpu_custom_call.1']
    #allocation25 [shape = 'u8[1024]{0}', space=vmem, size = 0x400, scoped, tag = 'input window, operand 14, single buffered']
    #allocation26 [shape = 'u8[1024]{0}', space=vmem, size = 0x400, scoped, tag = 'input window, operand 15, single buffered']
    #allocation27 [shape = 's32[1]{0}', space=sflag, size = 0x4, scoped, tag = 'scoped memory for tpu_custom_call.1']
    #allocation28 [shape = 'u8[2097152]{0}', space=vmem, size = 0x200000, scoped, tag = 'input window, operand 16, single buffered']
    #allocation29 [shape = 'u8[16384]{0}', space=vmem, size = 0x4000, scoped, tag = 'input window, operand 17, single buffered']
    #allocation30 [shape = 's32[1]{0}', space=sflag, size = 0x4, scoped, tag = 'scoped memory for tpu_custom_call.1']
    #allocation31 [shape = 'u8[16384]{0}', space=vmem, size = 0x4000, scoped, tag = 'input window, operand 18, single buffered']
    #allocation32 [shape = 'u8[32768]{0}', space=vmem, size = 0x8000, scoped, tag = 'output window, operand 0, single buffered']
    %24 = vsyncpa [#allocation3], 0
    %25 = vsyncpa [#allocation6], 0
    %26 = vsyncpa [#allocation9], 0
    %27 = vsyncpa [#allocation12], 0
    %28 = vsyncpa [#allocation15], 0
    %29 = vsyncpa [#allocation18], 0
    %30 = vsyncpa [#allocation21], 0
    %31 = vsyncpa [#allocation24], 0
    %32 = vsyncpa [#allocation27], 0
    %33 = vsyncpa [#allocation30], 0
    %34 = vsyncpa [#allocation4], 0
    // Predicated region
    $region2: #{tpu_custom_call.1} parent=1 // pred_check
      _
    $region3: #{tpu_custom_call.1} parent=1 // pred_check_branch
      %36 = sbr.rel (0) target = $region5
    $region4: #{tpu_custom_call.1} parent=1 // pred_region
      %s38 = ssub.s32 256, 256
      %39 = vsyncadd [#allocation3], %s38
      %s40 = sshll.u32 [#allocation2], 4
      %s41 = int_to_ptr.vmem [resolvable:$true] %s40
      %46 = dma.hbm_to_vmem [thread:$0]  %s0, 256, %s41, [#allocation3], 64, 64, 4
    $region5: #{tpu_custom_call.1} parent=1 // pred_fallthru
      _
    // Predicated region
    $region6: #{tpu_custom_call.1} parent=1 // pred_check
      _
    $region7: #{tpu_custom_call.1} parent=1 // pred_check_branch
      %48 = sbr.rel (0) target = $region9
    $region8: #{tpu_custom_call.1} parent=1 // pred_region
      %s50 = ssub.s32 512, 512
      %51 = vsyncadd [#allocation6], %s50
      %s52 = sshll.u32 [#allocation5], 4
      %s53 = int_to_ptr.vmem [resolvable:$true] %s52
      %58 = dma.hbm_to_vmem [thread:$0]  %s1, 512, %s53, [#allocation6], 64, 64, 4
    $region9: #{tpu_custom_call.1} parent=1 // pred_fallthru
      _
    // Predicated region
    $region10: #{tpu_custom_call.1} parent=1 // pred_check
      _
    $region11: #{tpu_custom_call.1} parent=1 // pred_check_branch
      %60 = sbr.rel (0) target = $region13
    $region12: #{tpu_custom_call.1} parent=1 // pred_region
      %s62 = ssub.s32 16, 16
      %63 = vsyncadd [#allocation6], %s62
      %s65 = sshll.u32 [#allocation7], 4
      %s66 = int_to_ptr.vmem [resolvable:$true] %s65
      %68 = dma.hbm_to_vmem [thread:$0]  %s2, 16, %s66, [#allocation6]
    $region13: #{tpu_custom_call.1} parent=1 // pred_fallthru
      _
    // Predicated region
    $region14: #{tpu_custom_call.1} parent=1 // pred_check
      _
    $region15: #{tpu_custom_call.1} parent=1 // pred_check_branch
      %70 = sbr.rel (0) target = $region17
    $region16: #{tpu_custom_call.1} parent=1 // pred_region
      %s72 = ssub.s32 16, 16
      %73 = vsyncadd [#allocation9], %s72
      %s75 = sshll.u32 [#allocation8], 4
      %s76 = int_to_ptr.vmem [resolvable:$true] %s75
      %78 = dma.hbm_to_vmem [thread:$0]  %s3, 16, %s76, [#allocation9]
    $region17: #{tpu_custom_call.1} parent=1 // pred_fallthru
      _
    // Predicated region
    $region18: #{tpu_custom_call.1} parent=1 // pred_check
      _
    $region19: #{tpu_custom_call.1} parent=1 // pred_check_branch
      %80 = sbr.rel (0) target = $region21
    $region20: #{tpu_custom_call.1} parent=1 // pred_region
      %s82 = ssub.s32 512, 512
      %83 = vsyncadd [#allocation9], %s82
      %s84 = sshll.u32 [#allocation10], 4
      %s85 = int_to_ptr.vmem [resolvable:$true] %s84
      %90 = dma.hbm_to_vmem [thread:$0]  %s4, 512, %s85, [#allocation9], 64, 64, 4
    $region21: #{tpu_custom_call.1} parent=1 // pred_fallthru
      _
    // Predicated region
    $region22: #{tpu_custom_call.1} parent=1 // pred_check
      _
    $region23: #{tpu_custom_call.1} parent=1 // pred_check_branch
      %92 = sbr.rel (0) target = $region25
    $region24: #{tpu_custom_call.1} parent=1 // pred_region
      %s94 = ssub.s32 16, 16
      %95 = vsyncadd [#allocation12], %s94
      %s97 = sshll.u32 [#allocation11], 4
      %s98 = int_to_ptr.vmem [resolvable:$true] %s97
      %100 = dma.hbm_to_vmem [thread:$0]  %s5, 16, %s98, [#allocation12]
    $region25: #{tpu_custom_call.1} parent=1 // pred_fallthru
      _
    // Predicated region
    $region26: #{tpu_custom_call.1} parent=1 // pred_check
      _
    $region27: #{tpu_custom_call.1} parent=1 // pred_check_branch
      %102 = sbr.rel (0) target = $region29
    $region28: #{tpu_custom_call.1} parent=1 // pred_region
      %s104 = ssub.s32 16, 16
      %105 = vsyncadd [#allocation12], %s104
      %s107 = sshll.u32 [#allocation13], 4
      %s108 = int_to_ptr.vmem [resolvable:$true] %s107
      %110 = dma.hbm_to_vmem [thread:$0]  %s6, 16, %s108, [#allocation12]
    $region29: #{tpu_custom_call.1} parent=1 // pred_fallthru
      _
    // Predicated region
    $region30: #{tpu_custom_call.1} parent=1 // pred_check
      _
    $region31: #{tpu_custom_call.1} parent=1 // pred_check_branch
      %112 = sbr.rel (0) target = $region33
    $region32: #{tpu_custom_call.1} parent=1 // pred_region
      %s114 = ssub.s32 8192, 8192
      %115 = vsyncadd [#allocation15], %s114
      %s116 = sshll.u32 [#allocation14], 4
      %s117 = int_to_ptr.vmem [resolvable:$true] %s116
      %122 = dma.hbm_to_vmem [thread:$0]  %s7, 8192, %s117, [#allocation15], 512, 512, 32
    $region33: #{tpu_custom_call.1} parent=1 // pred_fallthru
      _
    // Predicated region
    $region34: #{tpu_custom_call.1} parent=1 // pred_check
      _
    $region35: #{tpu_custom_call.1} parent=1 // pred_check_branch
      %124 = sbr.rel (0) target = $region37
    $region36: #{tpu_custom_call.1} parent=1 // pred_region
      %s126 = ssub.s32 128, 128
      %127 = vsyncadd [#allocation15], %s126
      %s129 = sshll.u32 [#allocation16], 4
      %s130 = int_to_ptr.vmem [resolvable:$true] %s129
      %132 = dma.hbm_to_vmem [thread:$0]  %s8, 128, %s130, [#allocation15]
    $region37: #{tpu_custom_call.1} parent=1 // pred_fallthru
      _
    // Predicated region
    $region38: #{tpu_custom_call.1} parent=1 // pred_check
      _
    $region39: #{tpu_custom_call.1} parent=1 // pred_check_branch
      %134 = sbr.rel (0) target = $region41
    $region40: #{tpu_custom_call.1} parent=1 // pred_region
      %s136 = ssub.s32 128, 128
      %137 = vsyncadd [#allocation18], %s136
      %s139 = sshll.u32 [#allocation17], 4
      %s140 = int_to_ptr.vmem [resolvable:$true] %s139
      %142 = dma.hbm_to_vmem [thread:$0]  %s9, 128, %s140, [#allocation18]
    $region41: #{tpu_custom_call.1} parent=1 // pred_fallthru
      _
    // Predicated region
    $region42: #{tpu_custom_call.1} parent=1 // pred_check
      _
    $region43: #{tpu_custom_call.1} parent=1 // pred_check_branch
      %144 = sbr.rel (0) target = $region45
    $region44: #{tpu_custom_call.1} parent=1 // pred_region
      %s146 = ssub.s32 32768, 32768
      %147 = vsyncadd [#allocation18], %s146
      %s148 = sshll.u32 [#allocation19], 4
      %s149 = int_to_ptr.vmem [resolvable:$true] %s148
      %154 = dma.hbm_to_vmem [thread:$0]  %s10, 32768, %s149, [#allocation18], 256, 256, 16
    $region45: #{tpu_custom_call.1} parent=1 // pred_fallthru
      _
    // Predicated region
    $region46: #{tpu_custom_call.1} parent=1 // pred_check
      _
    $region47: #{tpu_custom_call.1} parent=1 // pred_check_branch
      %156 = sbr.rel (0) target = $region49
    $region48: #{tpu_custom_call.1} parent=1 // pred_region
      %s158 = ssub.s32 64, 64
      %159 = vsyncadd [#allocation21], %s158
      %s161 = sshll.u32 [#allocation20], 4
      %s162 = int_to_ptr.vmem [resolvable:$true] %s161
      %164 = dma.hbm_to_vmem [thread:$0]  %s11, 64, %s162, [#allocation21]
    $region49: #{tpu_custom_call.1} parent=1 // pred_fallthru
      _
    // Predicated region
    $region50: #{tpu_custom_call.1} parent=1 // pred_check
      _
    $region51: #{tpu_custom_call.1} parent=1 // pred_check_branch
      %166 = sbr.rel (0) target = $region53
    $region52: #{tpu_custom_call.1} parent=1 // pred_region
      %s168 = ssub.s32 64, 64
      %169 = vsyncadd [#allocation21], %s168
      %s171 = sshll.u32 [#allocation22], 4
      %s172 = int_to_ptr.vmem [resolvable:$true] %s171
      %174 = dma.hbm_to_vmem [thread:$0]  %s12, 64, %s172, [#allocation21]
    $region53: #{tpu_custom_call.1} parent=1 // pred_fallthru
      _
    // Predicated region
    $region54: #{tpu_custom_call.1} parent=1 // pred_check
      _
    $region55: #{tpu_custom_call.1} parent=1 // pred_check_branch
      %176 = sbr.rel (0) target = $region57
    $region56: #{tpu_custom_call.1} parent=1 // pred_region
      %s178 = ssub.s32 8192, 8192
      %179 = vsyncadd [#allocation24], %s178
      %s180 = sshll.u32 [#allocation23], 4
      %s181 = int_to_ptr.vmem [resolvable:$true] %s180
      %186 = dma.hbm_to_vmem [thread:$0]  %s13, 8192, %s181, [#allocation24], 128, 128, 8
    $region57: #{tpu_custom_call.1} parent=1 // pred_fallthru
      _
    // Predicated region
    $region58: #{tpu_custom_call.1} parent=1 // pred_check
      _
    $region59: #{tpu_custom_call.1} parent=1 // pred_check_branch
      %188 = sbr.rel (0) target = $region61
    $region60: #{tpu_custom_call.1} parent=1 // pred_region
      %s190 = ssub.s32 32, 32
      %191 = vsyncadd [#allocation24], %s190
      %s193 = sshll.u32 [#allocation25], 4
      %s194 = int_to_ptr.vmem [resolvable:$true] %s193
      %196 = dma.hbm_to_vmem [thread:$0]  %s14, 32, %s194, [#allocation24]
    $region61: #{tpu_custom_call.1} parent=1 // pred_fallthru
      _
    // Predicated region
    $region62: #{tpu_custom_call.1} parent=1 // pred_check
      _
    $region63: #{tpu_custom_call.1} parent=1 // pred_check_branch
      %198 = sbr.rel (0) target = $region65
    $region64: #{tpu_custom_call.1} parent=1 // pred_region
      %s200 = ssub.s32 32, 32
      %201 = vsyncadd [#allocation27], %s200
      %s203 = sshll.u32 [#allocation26], 4
      %s204 = int_to_ptr.vmem [resolvable:$true] %s203
      %206 = dma.hbm_to_vmem [thread:$0]  %s15, 32, %s204, [#allocation27]
    $region65: #{tpu_custom_call.1} parent=1 // pred_fallthru
      _
    // Predicated region
    $region66: #{tpu_custom_call.1} parent=1 // pred_check
      _
    $region67: #{tpu_custom_call.1} parent=1 // pred_check_branch
      %208 = sbr.rel (0) target = $region69
    $region68: #{tpu_custom_call.1} parent=1 // pred_region
      %s210 = ssub.s32 65536, 65536
      %211 = vsyncadd [#allocation27], %s210
      %s212 = sshll.u32 [#allocation28], 4
      %s213 = int_to_ptr.vmem [resolvable:$true] %s212
      %218 = dma.hbm_to_vmem [thread:$0]  %s16, 65536, %s213, [#allocation27], 2048, 2048, 128
    $region69: #{tpu_custom_call.1} parent=1 // pred_fallthru
      _
    // Predicated region
    $region70: #{tpu_custom_call.1} parent=1 // pred_check
      _
    $region71: #{tpu_custom_call.1} parent=1 // pred_check_branch
      %220 = sbr.rel (0) target = $region73
    $region72: #{tpu_custom_call.1} parent=1 // pred_region
      %s222 = ssub.s32 512, 512
      %223 = vsyncadd [#allocation30], %s222
      %s225 = sshll.u32 [#allocation29], 4
      %s226 = int_to_ptr.vmem [resolvable:$true] %s225
      %228 = dma.hbm_to_vmem [thread:$0]  %s17, 512, %s226, [#allocation30]
    $region73: #{tpu_custom_call.1} parent=1 // pred_fallthru
      _
    // Predicated region
    $region74: #{tpu_custom_call.1} parent=1 // pred_check
      _
    $region75: #{tpu_custom_call.1} parent=1 // pred_check_branch
      %230 = sbr.rel (0) target = $region77
    $region76: #{tpu_custom_call.1} parent=1 // pred_region
      %s232 = ssub.s32 512, 512
      %233 = vsyncadd [#allocation30], %s232
      %s235 = sshll.u32 [#allocation31], 4
      %s236 = int_to_ptr.vmem [resolvable:$true] %s235
      %238 = dma.hbm_to_vmem [thread:$0]  %s18, 512, %s236, [#allocation30]
    $region77: #{tpu_custom_call.1} parent=1 // pred_fallthru
      _
    // Predicated region
    $region78: #{tpu_custom_call.1} parent=1 // pred_check
      _
    $region79: #{tpu_custom_call.1} parent=1 // pred_check_branch
      %240 = sbr.rel (0) target = $region81
    $region80: #{tpu_custom_call.1} parent=1 // pred_region
      %241 = dma.done [#allocation3], 256
    $region81: #{tpu_custom_call.1} parent=1 // pred_fallthru
      _
    // Predicated region
    $region82: #{tpu_custom_call.1} parent=1 // pred_check
      _
    $region83: #{tpu_custom_call.1} parent=1 // pred_check_branch
      %243 = sbr.rel (0) target = $region85
    $region84: #{tpu_custom_call.1} parent=1 // pred_region
      %244 = dma.done [#allocation6], 512
    $region85: #{tpu_custom_call.1} parent=1 // pred_fallthru
      _
    // Predicated region
    $region86: #{tpu_custom_call.1} parent=1 // pred_check
      _
    $region87: #{tpu_custom_call.1} parent=1 // pred_check_branch
      %246 = sbr.rel (0) target = $region89
    $region88: #{tpu_custom_call.1} parent=1 // pred_region
      %247 = dma.done [#allocation6], 16
    $region89: #{tpu_custom_call.1} parent=1 // pred_fallthru
      _
    // Predicated region
    $region90: #{tpu_custom_call.1} parent=1 // pred_check
      _
    $region91: #{tpu_custom_call.1} parent=1 // pred_check_branch
      %249 = sbr.rel (0) target = $region93
    $region92: #{tpu_custom_call.1} parent=1 // pred_region
      %250 = dma.done [#allocation9], 16
    $region93: #{tpu_custom_call.1} parent=1 // pred_fallthru
      _
    // Predicated region
    $region94: #{tpu_custom_call.1} parent=1 // pred_check
      _
    $region95: #{tpu_custom_call.1} parent=1 // pred_check_branch
      %252 = sbr.rel (0) target = $region97
    $region96: #{tpu_custom_call.1} parent=1 // pred_region
      %253 = dma.done [#allocation9], 512
    $region97: #{tpu_custom_call.1} parent=1 // pred_fallthru
      _
    // Predicated region
    $region98: #{tpu_custom_call.1} parent=1 // pred_check
      _
    $region99: #{tpu_custom_call.1} parent=1 // pred_check_branch
      %255 = sbr.rel (0) target = $region101
    $region100: #{tpu_custom_call.1} parent=1 // pred_region
      %256 = dma.done [#allocation12], 16
    $region101: #{tpu_custom_call.1} parent=1 // pred_fallthru
      _
    // Predicated region
    $region102: #{tpu_custom_call.1} parent=1 // pred_check
      _
    $region103: #{tpu_custom_call.1} parent=1 // pred_check_branch
      %258 = sbr.rel (0) target = $region105
    $region104: #{tpu_custom_call.1} parent=1 // pred_region
      %259 = dma.done [#allocation12], 16
    $region105: #{tpu_custom_call.1} parent=1 // pred_fallthru
      _
    // Predicated region
    $region106: #{tpu_custom_call.1} parent=1 // pred_check
      _
    $region107: #{tpu_custom_call.1} parent=1 // pred_check_branch
      %261 = sbr.rel (0) target = $region109
    $region108: #{tpu_custom_call.1} parent=1 // pred_region
      %262 = dma.done [#allocation15], 8192
    $region109: #{tpu_custom_call.1} parent=1 // pred_fallthru
      _
    // Predicated region
    $region110: #{tpu_custom_call.1} parent=1 // pred_check
      _
    $region111: #{tpu_custom_call.1} parent=1 // pred_check_branch
      %264 = sbr.rel (0) target = $region113
    $region112: #{tpu_custom_call.1} parent=1 // pred_region
      %265 = dma.done [#allocation15], 128
    $region113: #{tpu_custom_call.1} parent=1 // pred_fallthru
      _
    // Predicated region
    $region114: #{tpu_custom_call.1} parent=1 // pred_check
      _
    $region115: #{tpu_custom_call.1} parent=1 // pred_check_branch
      %267 = sbr.rel (0) target = $region117
    $region116: #{tpu_custom_call.1} parent=1 // pred_region
      %268 = dma.done [#allocation18], 128
    $region117: #{tpu_custom_call.1} parent=1 // pred_fallthru
      _
    // Predicated region
    $region118: #{tpu_custom_call.1} parent=1 // pred_check
      _
    $region119: #{tpu_custom_call.1} parent=1 // pred_check_branch
      %270 = sbr.rel (0) target = $region121
    $region120: #{tpu_custom_call.1} parent=1 // pred_region
      %271 = dma.done [#allocation18], 32768
    $region121: #{tpu_custom_call.1} parent=1 // pred_fallthru
      _
    // Predicated region
    $region122: #{tpu_custom_call.1} parent=1 // pred_check
      _
    $region123: #{tpu_custom_call.1} parent=1 // pred_check_branch
      %273 = sbr.rel (0) target = $region125
    $region124: #{tpu_custom_call.1} parent=1 // pred_region
      %274 = dma.done [#allocation21], 64
    $region125: #{tpu_custom_call.1} parent=1 // pred_fallthru
      _
    // Predicated region
    $region126: #{tpu_custom_call.1} parent=1 // pred_check
      _
    $region127: #{tpu_custom_call.1} parent=1 // pred_check_branch
      %276 = sbr.rel (0) target = $region129
    $region128: #{tpu_custom_call.1} parent=1 // pred_region
      %277 = dma.done [#allocation21], 64
    $region129: #{tpu_custom_call.1} parent=1 // pred_fallthru
      _
    // Predicated region
    $region130: #{tpu_custom_call.1} parent=1 // pred_check
      _
    $region131: #{tpu_custom_call.1} parent=1 // pred_check_branch
      %279 = sbr.rel (0) target = $region133
    $region132: #{tpu_custom_call.1} parent=1 // pred_region
      %280 = dma.done [#allocation24], 8192
    $region133: #{tpu_custom_call.1} parent=1 // pred_fallthru
      _
    // Predicated region
    $region134: #{tpu_custom_call.1} parent=1 // pred_check
      _
    $region135: #{tpu_custom_call.1} parent=1 // pred_check_branch
      %282 = sbr.rel (0) target = $region137
    $region136: #{tpu_custom_call.1} parent=1 // pred_region
      %283 = dma.done [#allocation24], 32
    $region137: #{tpu_custom_call.1} parent=1 // pred_fallthru
      _
    // Predicated region
    $region138: #{tpu_custom_call.1} parent=1 // pred_check
      _
    $region139: #{tpu_custom_call.1} parent=1 // pred_check_branch
      %285 = sbr.rel (0) target = $region141
    $region140: #{tpu_custom_call.1} parent=1 // pred_region
      %286 = dma.done [#allocation27], 32
    $region141: #{tpu_custom_call.1} parent=1 // pred_fallthru
      _
    // Predicated region
    $region142: #{tpu_custom_call.1} parent=1 // pred_check
      _
    $region143: #{tpu_custom_call.1} parent=1 // pred_check_branch
      %288 = sbr.rel (0) target = $region145
    $region144: #{tpu_custom_call.1} parent=1 // pred_region
      %289 = dma.done [#allocation27], 65536
    $region145: #{tpu_custom_call.1} parent=1 // pred_fallthru
      _
    // Predicated region
    $region146: #{tpu_custom_call.1} parent=1 // pred_check
      _
    $region147: #{tpu_custom_call.1} parent=1 // pred_check_branch
      %291 = sbr.rel (0) target = $region149
    $region148: #{tpu_custom_call.1} parent=1 // pred_region
      %292 = dma.done [#allocation30], 512
    $region149: #{tpu_custom_call.1} parent=1 // pred_fallthru
      _
    // Predicated region
    $region150: #{tpu_custom_call.1} parent=1 // pred_check
      _
    $region151: #{tpu_custom_call.1} parent=1 // pred_check_branch
      %294 = sbr.rel (0) target = $region153
    $region152: #{tpu_custom_call.1} parent=1 // pred_region
      %295 = dma.done [#allocation30], 512
    $region153: #{tpu_custom_call.1} parent=1 // pred_fallthru
      _
    %v297 = vld [vmem:[#allocation2] sm:$0xf]
    %v298 = vld [vmem:[#allocation2 + $0x4] sm:$0xf]
    %v299 = vld [vmem:[#allocation2 + $0x8] sm:$0xf]
    %v300 = vld [vmem:[#allocation2 + $0xc] sm:$0xf]
    %v301 = vld [vmem:[#allocation5] sm:$0xf]
    %v302 = vld [vmem:[#allocation5 + $0x4] sm:$0xf]
    %v303 = vld [vmem:[#allocation5 + $0x8] sm:$0xf]
    %v304 = vld [vmem:[#allocation5 + $0xc] sm:$0xf]
    %v305 = vld [vmem:[#allocation5 + $0x10] sm:$0xf]
    %v306 = vld [vmem:[#allocation5 + $0x14] sm:$0xf]
    %v307 = vld [vmem:[#allocation5 + $0x18] sm:$0xf]
    %v308 = vld [vmem:[#allocation5 + $0x1c] sm:$0xf]
    %v313 = vunpack.c.l.b16 %v297
    %v314 = vunpack.c.l.b16 %v298
    %v315 = vunpack.c.l.b16 %v299
    %v316 = vunpack.c.l.b16 %v300
    %v317 = vpack.c.b16 %v314, %v313
    %v318 = vpack.c.b16 %v316, %v315
    %v327 = vunpack.c.l.b16 %v301
    %v328 = vunpack.c.l.b16 %v302
    %v329 = vunpack.c.l.b16 %v303
    %v330 = vunpack.c.l.b16 %v304
    %v331 = vunpack.c.l.b16 %v305
    %v332 = vunpack.c.l.b16 %v306
    %v333 = vunpack.c.l.b16 %v307
    %v334 = vunpack.c.l.b16 %v308
    %v335 = vpack.c.b16 %v328, %v327
    %v336 = vpack.c.b16 %v330, %v329
    %v337 = vpack.c.b16 %v332, %v331
    %v338 = vpack.c.b16 %v334, %v333
    %vm343 = vcmask 523264
    %v345 = vsel %vm343, %v317, 0
    %v348 = vsel %vm343, %v318, 0
    %350 = vmatprep.subr.bf16.mxu0 0
    %351 = vmatpush1.bf16.msra.mxu0 0
    %352 = vmatprep.subr.bf16.mxu0 0
    %353 = vmatpush1.bf16.msra.mxu0 0
    %354 = vmatprep.subr.bf16.mxu0 0
    %355 = vmatpush1.bf16.msra.mxu0 0
    %356 = vmatprep.subr.bf16.mxu0 0
    %357 = vmatpush1.bf16.msra.mxu0 0
    %358 = vmatprep.subr.bf16.mxu0 0
    %359 = vmatpush1.bf16.msra.mxu0 %v338
    %360 = vmatprep.subr.bf16.mxu0 0
    %361 = vmatpush1.bf16.msra.mxu0 %v337
    %362 = vmatprep.subr.bf16.mxu0 0
    %363 = vmatpush1.bf16.msra.mxu0 %v336
    %364 = vmatprep.subr.bf16.mxu0 0
    %365 = vmatpush1.bf16.msra.mxu0 %v335
    %366 = vmatprep.subr.bf16.mxu0 0
    %367 = vmatpush2.bf16.msra.mxu0 0
    %368 = vmatprep.subr.bf16.mxu0 0
    %369 = vmatpush2.bf16.msra.mxu0 0
    %370 = vmatprep.subr.bf16.mxu0 0
    %371 = vmatpush2.bf16.msra.mxu0 0
    %372 = vmatprep.subr.bf16.mxu0 0
    %373 = vmatpush2.bf16.msra.mxu0 0
    %374 = vmatprep.subr.bf16.mxu0 0
    %375 = vmatpush2.bf16.msra.mxu0 0
    %376 = vmatprep.subr.bf16.mxu0 0
    %377 = vmatpush2.bf16.msra.mxu0 0
    %378 = vmatprep.subr.bf16.mxu0 0
    %379 = vmatpush2.bf16.msra.mxu0 0
    %380 = vmatprep.subr.bf16.mxu0 0
    %381 = vmatpush2.bf16.msra.mxu0 0
    %382 = vmatprep.mubr.bf16.mxu0 0
    %383 = vmatmul.mubr.bf16.gmra.mxu0 %v345
    %v384 = vpop.f32.mrf.mxu0
    %v385 = vadd.f32 0.0, %v384
    %v386 = vpop.f32.mrf.mxu0
    %v387 = vpop.f32.mrf.mxu0
    %v388 = vadd.f32 0.0, %v387
    %v389 = vpop.f32.mrf.mxu0
    %390 = vmatprep.mubr.bf16.mxu0 0
    %391 = vmatmul.mubr.bf16.gmra.mxu0 %v348
    %v392 = vpop.f32.mrf.mxu0
    %v393 = vadd.f32 0.0, %v392
    %v394 = vpop.f32.mrf.mxu0
    %v395 = vpop.f32.mrf.mxu0
    %v396 = vadd.f32 0.0, %v395
    %v397 = vpop.f32.mrf.mxu0
    %398 = vdwg.mxu0
    %v399 = vld [vmem:[#allocation7] sm:$0x1]
    %v401 = vlaneseq
    %v402 = vshrl.u32 %v401, 7
    %v403 = vsub.s32 0, %v402
    %v404 = vrot.slane %v399, %v403
    %v406 = vmul.f32 %v385, %v404
    %v407 = vmul.f32 %v388, %v404
    %v408 = vmul.f32 %v393, %v404
    %v409 = vmul.f32 %v396, %v404
    %v410 = vld [vmem:[#allocation8] sm:$0x1]
    %v412 = vlaneseq
    %v413 = vshrl.u32 %v412, 7
    %v414 = vsub.s32 0, %v413
    %v415 = vrot.slane %v410, %v414
    %v417 = vadd.f32 %v406, %v415
    %v418 = vadd.f32 %v407, %v415
    %v419 = vadd.f32 %v408, %v415
    %v420 = vadd.f32 %v409, %v415
    %v421 = vmax.f32 %v417, 0.0
    %v422 = vmax.f32 %v418, 0.0
    %v423 = vmax.f32 %v419, 0.0
    %v424 = vmax.f32 %v420, 0.0
    %v425 = vpack.c.bf16 %v422, %v421
    %v426 = vpack.c.bf16 %v424, %v423
    %v427 = vld [vmem:[#allocation10] sm:$0xf]
    %v428 = vld [vmem:[#allocation10 + $0x4] sm:$0xf]
    %v429 = vld [vmem:[#allocation10 + $0x8] sm:$0xf]
    %v430 = vld [vmem:[#allocation10 + $0xc] sm:$0xf]
    %v431 = vld [vmem:[#allocation10 + $0x10] sm:$0xf]
    %v432 = vld [vmem:[#allocation10 + $0x14] sm:$0xf]
    %v433 = vld [vmem:[#allocation10 + $0x18] sm:$0xf]
    %v434 = vld [vmem:[#allocation10 + $0x1c] sm:$0xf]
    %v443 = vunpack.c.l.b16 %v427
    %v444 = vunpack.c.l.b16 %v428
    %v445 = vunpack.c.l.b16 %v429
    %v446 = vunpack.c.l.b16 %v430
    %v447 = vunpack.c.l.b16 %v431
    %v448 = vunpack.c.l.b16 %v432
    %v449 = vunpack.c.l.b16 %v433
    %v450 = vunpack.c.l.b16 %v434
    %v451 = vpack.c.b16 %v444, %v443
    %v452 = vpack.c.b16 %v446, %v445
    %v453 = vpack.c.b16 %v448, %v447
    %v454 = vpack.c.b16 %v450, %v449
    %v460 = vsel %vm343, %v425, 0
    %v463 = vsel %vm343, %v426, 0
    %465 = vmatprep.subr.bf16.mxu0 0
    %466 = vmatpush1.bf16.msra.mxu0 0
    %467 = vmatprep.subr.bf16.mxu0 0
    %468 = vmatpush1.bf16.msra.mxu0 0
    %469 = vmatprep.subr.bf16.mxu0 0
    %470 = vmatpush1.bf16.msra.mxu0 0
    %471 = vmatprep.subr.bf16.mxu0 0
    %472 = vmatpush1.bf16.msra.mxu0 0
    %473 = vmatprep.subr.bf16.mxu0 0
    %474 = vmatpush1.bf16.msra.mxu0 %v454
    %475 = vmatprep.subr.bf16.mxu0 0
    %476 = vmatpush1.bf16.msra.mxu0 %v453
    %477 = vmatprep.subr.bf16.mxu0 0
    %478 = vmatpush1.bf16.msra.mxu0 %v452
    %479 = vmatprep.subr.bf16.mxu0 0
    %480 = vmatpush1.bf16.msra.mxu0 %v451
    %481 = vmatprep.subr.bf16.mxu0 0
    %482 = vmatpush2.bf16.msra.mxu0 0
    %483 = vmatprep.subr.bf16.mxu0 0
    %484 = vmatpush2.bf16.msra.mxu0 0
    %485 = vmatprep.subr.bf16.mxu0 0
    %486 = vmatpush2.bf16.msra.mxu0 0
    %487 = vmatprep.subr.bf16.mxu0 0
    %488 = vmatpush2.bf16.msra.mxu0 0
    %489 = vmatprep.subr.bf16.mxu0 0
    %490 = vmatpush2.bf16.msra.mxu0 0
    %491 = vmatprep.subr.bf16.mxu0 0
    %492 = vmatpush2.bf16.msra.mxu0 0
    %493 = vmatprep.subr.bf16.mxu0 0
    %494 = vmatpush2.bf16.msra.mxu0 0
    %495 = vmatprep.subr.bf16.mxu0 0
    %496 = vmatpush2.bf16.msra.mxu0 0
    %497 = vmatprep.mubr.bf16.mxu0 0
    %498 = vmatmul.mubr.bf16.gmra.mxu0 %v460
    %v499 = vpop.f32.mrf.mxu0
    %v500 = vadd.f32 0.0, %v499
    %v501 = vpop.f32.mrf.mxu0
    %v502 = vpop.f32.mrf.mxu0
    %v503 = vadd.f32 0.0, %v502
    %v504 = vpop.f32.mrf.mxu0
    %505 = vmatprep.mubr.bf16.mxu0 0
    %506 = vmatmul.mubr.bf16.gmra.mxu0 %v463
    %v507 = vpop.f32.mrf.mxu0
    %v508 = vadd.f32 0.0, %v507
    %v509 = vpop.f32.mrf.mxu0
    %v510 = vpop.f32.mrf.mxu0
    %v511 = vadd.f32 0.0, %v510
    %v512 = vpop.f32.mrf.mxu0
    %513 = vdwg.mxu0
    %v514 = vld [vmem:[#allocation11] sm:$0x1]
    %v516 = vlaneseq
    %v517 = vshrl.u32 %v516, 7
    %v518 = vsub.s32 0, %v517
    %v519 = vrot.slane %v514, %v518
    %v521 = vmul.f32 %v500, %v519
    %v522 = vmul.f32 %v503, %v519
    %v523 = vmul.f32 %v508, %v519
    %v524 = vmul.f32 %v511, %v519
    %v525 = vld [vmem:[#allocation13] sm:$0x1]
    %v527 = vlaneseq
    %v528 = vshrl.u32 %v527, 7
    %v529 = vsub.s32 0, %v528
    %v530 = vrot.slane %v525, %v529
    %v532 = vadd.f32 %v521, %v530
    %v533 = vadd.f32 %v522, %v530
    %v534 = vadd.f32 %v523, %v530
    %v535 = vadd.f32 %v524, %v530
    %v536 = vmax.f32 %v532, 0.0
    %v537 = vmax.f32 %v533, 0.0
    %v538 = vmax.f32 %v534, 0.0
    %v539 = vmax.f32 %v535, 0.0
    %v540 = vpack.c.bf16 %v537, %v536
    %v541 = vpack.c.bf16 %v539, %v538
    %v542 = vld [vmem:[#allocation14] sm:$0xff]
    %v543 = vld [vmem:[#allocation14 + $0x8] sm:$0xff]
    %v544 = vld [vmem:[#allocation14 + $0x10] sm:$0xff]
    %v545 = vld [vmem:[#allocation14 + $0x18] sm:$0xff]
    %v546 = vld [vmem:[#allocation14 + $0x20] sm:$0xff]
    %v547 = vld [vmem:[#allocation14 + $0x28] sm:$0xff]
    %v548 = vld [vmem:[#allocation14 + $0x30] sm:$0xff]
    %v549 = vld [vmem:[#allocation14 + $0x38] sm:$0xff]
    %v550 = vld [vmem:[#allocation14 + $0x40] sm:$0xff]
    %v551 = vld [vmem:[#allocation14 + $0x48] sm:$0xff]
    %v552 = vld [vmem:[#allocation14 + $0x50] sm:$0xff]
    %v553 = vld [vmem:[#allocation14 + $0x58] sm:$0xff]
    %v554 = vld [vmem:[#allocation14 + $0x60] sm:$0xff]
    %v555 = vld [vmem:[#allocation14 + $0x68] sm:$0xff]
    %v556 = vld [vmem:[#allocation14 + $0x70] sm:$0xff]
    %v557 = vld [vmem:[#allocation14 + $0x78] sm:$0xff]
    %v558 = vld [vmem:[#allocation14 + $0x80] sm:$0xff]
    %v559 = vld [vmem:[#allocation14 + $0x88] sm:$0xff]
    %v560 = vld [vmem:[#allocation14 + $0x90] sm:$0xff]
    %v561 = vld [vmem:[#allocation14 + $0x98] sm:$0xff]
    %v562 = vld [vmem:[#allocation14 + $0xa0] sm:$0xff]
    %v563 = vld [vmem:[#allocation14 + $0xa8] sm:$0xff]
    %v564 = vld [vmem:[#allocation14 + $0xb0] sm:$0xff]
    %v565 = vld [vmem:[#allocation14 + $0xb8] sm:$0xff]
    %v566 = vld [vmem:[#allocation14 + $0xc0] sm:$0xff]
    %v567 = vld [vmem:[#allocation14 + $0xc8] sm:$0xff]
    %v568 = vld [vmem:[#allocation14 + $0xd0] sm:$0xff]
    %v569 = vld [vmem:[#allocation14 + $0xd8] sm:$0xff]
    %v570 = vld [vmem:[#allocation14 + $0xe0] sm:$0xff]
    %v571 = vld [vmem:[#allocation14 + $0xe8] sm:$0xff]
    %v572 = vld [vmem:[#allocation14 + $0xf0] sm:$0xff]
    %v573 = vld [vmem:[#allocation14 + $0xf8] sm:$0xff]
    %v574 = vld [vmem:[#allocation14 + $0x100] sm:$0xff]
    %v575 = vld [vmem:[#allocation14 + $0x108] sm:$0xff]
    %v576 = vld [vmem:[#allocation14 + $0x110] sm:$0xff]
    %v577 = vld [vmem:[#allocation14 + $0x118] sm:$0xff]
    %v578 = vld [vmem:[#allocation14 + $0x120] sm:$0xff]
    %v579 = vld [vmem:[#allocation14 + $0x128] sm:$0xff]
    %v580 = vld [vmem:[#allocation14 + $0x130] sm:$0xff]
    %v581 = vld [vmem:[#allocation14 + $0x138] sm:$0xff]
    %v582 = vld [vmem:[#allocation14 + $0x140] sm:$0xff]
    %v583 = vld [vmem:[#allocation14 + $0x148] sm:$0xff]
    %v584 = vld [vmem:[#allocation14 + $0x150] sm:$0xff]
    %v585 = vld [vmem:[#allocation14 + $0x158] sm:$0xff]
    %v586 = vld [vmem:[#allocation14 + $0x160] sm:$0xff]
    %v587 = vld [vmem:[#allocation14 + $0x168] sm:$0xff]
    %v588 = vld [vmem:[#allocation14 + $0x170] sm:$0xff]
    %v589 = vld [vmem:[#allocation14 + $0x178] sm:$0xff]
    %v590 = vld [vmem:[#allocation14 + $0x180] sm:$0xff]
    %v591 = vld [vmem:[#allocation14 + $0x188] sm:$0xff]
    %v592 = vld [vmem:[#allocation14 + $0x190] sm:$0xff]
    %v593 = vld [vmem:[#allocation14 + $0x198] sm:$0xff]
    %v594 = vld [vmem:[#allocation14 + $0x1a0] sm:$0xff]
    %v595 = vld [vmem:[#allocation14 + $0x1a8] sm:$0xff]
    %v596 = vld [vmem:[#allocation14 + $0x1b0] sm:$0xff]
    %v597 = vld [vmem:[#allocation14 + $0x1b8] sm:$0xff]
    %v598 = vld [vmem:[#allocation14 + $0x1c0] sm:$0xff]
    %v599 = vld [vmem:[#allocation14 + $0x1c8] sm:$0xff]
    %v600 = vld [vmem:[#allocation14 + $0x1d0] sm:$0xff]
    %v601 = vld [vmem:[#allocation14 + $0x1d8] sm:$0xff]
    %v602 = vld [vmem:[#allocation14 + $0x1e0] sm:$0xff]
    %v603 = vld [vmem:[#allocation14 + $0x1e8] sm:$0xff]
    %v604 = vld [vmem:[#allocation14 + $0x1f0] sm:$0xff]
    %v605 = vld [vmem:[#allocation14 + $0x1f8] sm:$0xff]
    %v670 = vunpack.c.l.b16 %v542
    %v671 = vunpack.c.h.b16 %v542
    %v672 = vunpack.c.l.b16 %v543
    %v673 = vunpack.c.h.b16 %v543
    %v674 = vunpack.c.l.b16 %v544
    %v675 = vunpack.c.h.b16 %v544
    %v676 = vunpack.c.l.b16 %v545
    %v677 = vunpack.c.h.b16 %v545
    %v678 = vunpack.c.l.b16 %v546
    %v679 = vunpack.c.h.b16 %v546
    %v680 = vunpack.c.l.b16 %v547
    %v681 = vunpack.c.h.b16 %v547
    %v682 = vunpack.c.l.b16 %v548
    %v683 = vunpack.c.h.b16 %v548
    %v684 = vunpack.c.l.b16 %v549
    %v685 = vunpack.c.h.b16 %v549
    %v686 = vunpack.c.l.b16 %v550
    %v687 = vunpack.c.h.b16 %v550
    %v688 = vunpack.c.l.b16 %v551
    %v689 = vunpack.c.h.b16 %v551
    %v690 = vunpack.c.l.b16 %v552
    %v691 = vunpack.c.h.b16 %v552
    %v692 = vunpack.c.l.b16 %v553
    %v693 = vunpack.c.h.b16 %v553
    %v694 = vunpack.c.l.b16 %v554
    %v695 = vunpack.c.h.b16 %v554
    %v696 = vunpack.c.l.b16 %v555
    %v697 = vunpack.c.h.b16 %v555
    %v698 = vunpack.c.l.b16 %v556
    %v699 = vunpack.c.h.b16 %v556
    %v700 = vunpack.c.l.b16 %v557
    %v701 = vunpack.c.h.b16 %v557
    %v702 = vunpack.c.l.b16 %v558
    %v703 = vunpack.c.h.b16 %v558
    %v704 = vunpack.c.l.b16 %v559
    %v705 = vunpack.c.h.b16 %v559
    %v706 = vunpack.c.l.b16 %v560
    %v707 = vunpack.c.h.b16 %v560
    %v708 = vunpack.c.l.b16 %v561
    %v709 = vunpack.c.h.b16 %v561
    %v710 = vunpack.c.l.b16 %v562
    %v711 = vunpack.c.h.b16 %v562
    %v712 = vunpack.c.l.b16 %v563
    %v713 = vunpack.c.h.b16 %v563
    %v714 = vunpack.c.l.b16 %v564
    %v715 = vunpack.c.h.b16 %v564
    %v716 = vunpack.c.l.b16 %v565
    %v717 = vunpack.c.h.b16 %v565
    %v718 = vunpack.c.l.b16 %v566
    %v719 = vunpack.c.h.b16 %v566
    %v720 = vunpack.c.l.b16 %v567
    %v721 = vunpack.c.h.b16 %v567
    %v722 = vunpack.c.l.b16 %v568
    %v723 = vunpack.c.h.b16 %v568
    %v724 = vunpack.c.l.b16 %v569
    %v725 = vunpack.c.h.b16 %v569
    %v726 = vunpack.c.l.b16 %v570
    %v727 = vunpack.c.h.b16 %v570
    %v728 = vunpack.c.l.b16 %v571
    %v729 = vunpack.c.h.b16 %v571
    %v730 = vunpack.c.l.b16 %v572
    %v731 = vunpack.c.h.b16 %v572
    %v732 = vunpack.c.l.b16 %v573
    %v733 = vunpack.c.h.b16 %v573
    %v734 = vunpack.c.l.b16 %v574
    %v735 = vunpack.c.h.b16 %v574
    %v736 = vunpack.c.l.b16 %v575
    %v737 = vunpack.c.h.b16 %v575
    %v738 = vunpack.c.l.b16 %v576
    %v739 = vunpack.c.h.b16 %v576
    %v740 = vunpack.c.l.b16 %v577
    %v741 = vunpack.c.h.b16 %v577
    %v742 = vunpack.c.l.b16 %v578
    %v743 = vunpack.c.h.b16 %v578
    %v744 = vunpack.c.l.b16 %v579
    %v745 = vunpack.c.h.b16 %v579
    %v746 = vunpack.c.l.b16 %v580
    %v747 = vunpack.c.h.b16 %v580
    %v748 = vunpack.c.l.b16 %v581
    %v749 = vunpack.c.h.b16 %v581
    %v750 = vunpack.c.l.b16 %v582
    %v751 = vunpack.c.h.b16 %v582
    %v752 = vunpack.c.l.b16 %v583
    %v753 = vunpack.c.h.b16 %v583
    %v754 = vunpack.c.l.b16 %v584
    %v755 = vunpack.c.h.b16 %v584
    %v756 = vunpack.c.l.b16 %v585
    %v757 = vunpack.c.h.b16 %v585
    %v758 = vunpack.c.l.b16 %v586
    %v759 = vunpack.c.h.b16 %v586
    %v760 = vunpack.c.l.b16 %v587
    %v761 = vunpack.c.h.b16 %v587
    %v762 = vunpack.c.l.b16 %v588
    %v763 = vunpack.c.h.b16 %v588
    %v764 = vunpack.c.l.b16 %v589
    %v765 = vunpack.c.h.b16 %v589
    %v766 = vunpack.c.l.b16 %v590
    %v767 = vunpack.c.h.b16 %v590
    %v768 = vunpack.c.l.b16 %v591
    %v769 = vunpack.c.h.b16 %v591
    %v770 = vunpack.c.l.b16 %v592
    %v771 = vunpack.c.h.b16 %v592
    %v772 = vunpack.c.l.b16 %v593
    %v773 = vunpack.c.h.b16 %v593
    %v774 = vunpack.c.l.b16 %v594
    %v775 = vunpack.c.h.b16 %v594
    %v776 = vunpack.c.l.b16 %v595
    %v777 = vunpack.c.h.b16 %v595
    %v778 = vunpack.c.l.b16 %v596
    %v779 = vunpack.c.h.b16 %v596
    %v780 = vunpack.c.l.b16 %v597
    %v781 = vunpack.c.h.b16 %v597
    %v782 = vunpack.c.l.b16 %v598
    %v783 = vunpack.c.h.b16 %v598
    %v784 = vunpack.c.l.b16 %v599
    %v785 = vunpack.c.h.b16 %v599
    %v786 = vunpack.c.l.b16 %v600
    %v787 = vunpack.c.h.b16 %v600
    %v788 = vunpack.c.l.b16 %v601
    %v789 = vunpack.c.h.b16 %v601
    %v790 = vunpack.c.l.b16 %v602
    %v791 = vunpack.c.h.b16 %v602
    %v792 = vunpack.c.l.b16 %v603
    %v793 = vunpack.c.h.b16 %v603
    %v794 = vunpack.c.l.b16 %v604
    %v795 = vunpack.c.h.b16 %v604
    %v796 = vunpack.c.l.b16 %v605
    %v797 = vunpack.c.h.b16 %v605
    %v798 = vpack.c.b16 %v678, %v670
    %v799 = vpack.c.b16 %v679, %v671
    %v800 = vpack.c.b16 %v680, %v672
    %v801 = vpack.c.b16 %v681, %v673
    %v802 = vpack.c.b16 %v682, %v674
    %v803 = vpack.c.b16 %v683, %v675
    %v804 = vpack.c.b16 %v684, %v676
    %v805 = vpack.c.b16 %v685, %v677
    %v806 = vpack.c.b16 %v694, %v686
    %v807 = vpack.c.b16 %v695, %v687
    %v808 = vpack.c.b16 %v696, %v688
    %v809 = vpack.c.b16 %v697, %v689
    %v810 = vpack.c.b16 %v698, %v690
    %v811 = vpack.c.b16 %v699, %v691
    %v812 = vpack.c.b16 %v700, %v692
    %v813 = vpack.c.b16 %v701, %v693
    %v814 = vpack.c.b16 %v710, %v702
    %v815 = vpack.c.b16 %v711, %v703
    %v816 = vpack.c.b16 %v712, %v704
    %v817 = vpack.c.b16 %v713, %v705
    %v818 = vpack.c.b16 %v714, %v706
    %v819 = vpack.c.b16 %v715, %v707
    %v820 = vpack.c.b16 %v716, %v708
    %v821 = vpack.c.b16 %v717, %v709
    %v822 = vpack.c.b16 %v726, %v718
    %v823 = vpack.c.b16 %v727, %v719
    %v824 = vpack.c.b16 %v728, %v720
    %v825 = vpack.c.b16 %v729, %v721
    %v826 = vpack.c.b16 %v730, %v722
    %v827 = vpack.c.b16 %v731, %v723
    %v828 = vpack.c.b16 %v732, %v724
    %v829 = vpack.c.b16 %v733, %v725
    %v830 = vpack.c.b16 %v742, %v734
    %v831 = vpack.c.b16 %v743, %v735
    %v832 = vpack.c.b16 %v744, %v736
    %v833 = vpack.c.b16 %v745, %v737
    %v834 = vpack.c.b16 %v746, %v738
    %v835 = vpack.c.b16 %v747, %v739
    %v836 = vpack.c.b16 %v748, %v740
    %v837 = vpack.c.b16 %v749, %v741
    %v838 = vpack.c.b16 %v758, %v750
    %v839 = vpack.c.b16 %v759, %v751
    %v840 = vpack.c.b16 %v760, %v752
    %v841 = vpack.c.b16 %v761, %v753
    %v842 = vpack.c.b16 %v762, %v754
    %v843 = vpack.c.b16 %v763, %v755
    %v844 = vpack.c.b16 %v764, %v756
    %v845 = vpack.c.b16 %v765, %v757
    %v846 = vpack.c.b16 %v774, %v766
    %v847 = vpack.c.b16 %v775, %v767
    %v848 = vpack.c.b16 %v776, %v768
    %v849 = vpack.c.b16 %v777, %v769
    %v850 = vpack.c.b16 %v778, %v770
    %v851 = vpack.c.b16 %v779, %v771
    %v852 = vpack.c.b16 %v780, %v772
    %v853 = vpack.c.b16 %v781, %v773
    %v854 = vpack.c.b16 %v790, %v782
    %v855 = vpack.c.b16 %v791, %v783
    %v856 = vpack.c.b16 %v792, %v784
    %v857 = vpack.c.b16 %v793, %v785
    %v858 = vpack.c.b16 %v794, %v786
    %v859 = vpack.c.b16 %v795, %v787
    %v860 = vpack.c.b16 %v796, %v788
    %v861 = vpack.c.b16 %v797, %v789
    %926 = vmatprep.subr.bf16.mxu0 %v855
    %927 = vmatpush1.bf16.msra.mxu0 %v854
    %928 = vmatprep.subr.bf16.mxu0 %v847
    %929 = vmatpush1.bf16.msra.mxu0 %v846
    %930 = vmatprep.subr.bf16.mxu0 %v839
    %931 = vmatpush1.bf16.msra.mxu0 %v838
    %932 = vmatprep.subr.bf16.mxu0 %v831
    %933 = vmatpush1.bf16.msra.mxu0 %v830
    %934 = vmatprep.subr.bf16.mxu0 %v823
    %935 = vmatpush1.bf16.msra.mxu0 %v822
    %936 = vmatprep.subr.bf16.mxu0 %v815
    %937 = vmatpush1.bf16.msra.mxu0 %v814
    %938 = vmatprep.subr.bf16.mxu0 %v807
    %939 = vmatpush1.bf16.msra.mxu0 %v806
    %940 = vmatprep.subr.bf16.mxu0 %v799
    %941 = vmatpush1.bf16.msra.mxu0 %v798
    %942 = vmatprep.subr.bf16.mxu0 0
    %943 = vmatpush2.bf16.msra.mxu0 0
    %944 = vmatprep.subr.bf16.mxu0 0
    %945 = vmatpush2.bf16.msra.mxu0 0
    %946 = vmatprep.subr.bf16.mxu0 0
    %947 = vmatpush2.bf16.msra.mxu0 0
    %948 = vmatprep.subr.bf16.mxu0 0
    %949 = vmatpush2.bf16.msra.mxu0 0
    %950 = vmatprep.subr.bf16.mxu0 0
    %951 = vmatpush2.bf16.msra.mxu0 0
    %952 = vmatprep.subr.bf16.mxu0 0
    %953 = vmatpush2.bf16.msra.mxu0 0
    %954 = vmatprep.subr.bf16.mxu0 0
    %955 = vmatpush2.bf16.msra.mxu0 0
    %956 = vmatprep.subr.bf16.mxu0 0
    %957 = vmatpush2.bf16.msra.mxu0 0
    %958 = vmatprep.mubr.bf16.mxu0 0
    %959 = vmatmul.mubr.bf16.gmra.mxu0 %v540
    %v960 = vpop.f32.mrf.mxu0
    %v961 = vadd.f32 0.0, %v960
    %v962 = vpop.f32.mrf.mxu0
    %v963 = vadd.f32 0.0, %v962
    %v964 = vpop.f32.mrf.mxu0
    %v965 = vadd.f32 0.0, %v964
    %v966 = vpop.f32.mrf.mxu0
    %v967 = vadd.f32 0.0, %v966
    %968 = vmatprep.mubr.bf16.mxu0 0
    %969 = vmatmul.mubr.bf16.gmra.mxu0 %v541
    %v970 = vpop.f32.mrf.mxu0
    %v971 = vadd.f32 0.0, %v970
    %v972 = vpop.f32.mrf.mxu0
    %v973 = vadd.f32 0.0, %v972
    %v974 = vpop.f32.mrf.mxu0
    %v975 = vadd.f32 0.0, %v974
    %v976 = vpop.f32.mrf.mxu0
    %v977 = vadd.f32 0.0, %v976
    %978 = vdwg.mxu0
    %979 = vmatprep.subr.bf16.mxu0 %v857
    %980 = vmatpush1.bf16.msra.mxu0 %v856
    %981 = vmatprep.subr.bf16.mxu0 %v849
    %982 = vmatpush1.bf16.msra.mxu0 %v848
    %983 = vmatprep.subr.bf16.mxu0 %v841
    %984 = vmatpush1.bf16.msra.mxu0 %v840
    %985 = vmatprep.subr.bf16.mxu0 %v833
    %986 = vmatpush1.bf16.msra.mxu0 %v832
    %987 = vmatprep.subr.bf16.mxu0 %v825
    %988 = vmatpush1.bf16.msra.mxu0 %v824
    %989 = vmatprep.subr.bf16.mxu0 %v817
    %990 = vmatpush1.bf16.msra.mxu0 %v816
    %991 = vmatprep.subr.bf16.mxu0 %v809
    %992 = vmatpush1.bf16.msra.mxu0 %v808
    %993 = vmatprep.subr.bf16.mxu0 %v801
    %994 = vmatpush1.bf16.msra.mxu0 %v800
    %995 = vmatprep.subr.bf16.mxu0 0
    %996 = vmatpush2.bf16.msra.mxu0 0
    %997 = vmatprep.subr.bf16.mxu0 0
    %998 = vmatpush2.bf16.msra.mxu0 0
    %999 = vmatprep.subr.bf16.mxu0 0
    %1000 = vmatpush2.bf16.msra.mxu0 0
    %1001 = vmatprep.subr.bf16.mxu0 0
    %1002 = vmatpush2.bf16.msra.mxu0 0
    %1003 = vmatprep.subr.bf16.mxu0 0
    %1004 = vmatpush2.bf16.msra.mxu0 0
    %1005 = vmatprep.subr.bf16.mxu0 0
    %1006 = vmatpush2.bf16.msra.mxu0 0
    %1007 = vmatprep.subr.bf16.mxu0 0
    %1008 = vmatpush2.bf16.msra.mxu0 0
    %1009 = vmatprep.subr.bf16.mxu0 0
    %1010 = vmatpush2.bf16.msra.mxu0 0
    %1011 = vmatprep.mubr.bf16.mxu0 0
    %1012 = vmatmul.mubr.bf16.gmra.mxu0 %v540
    %v1013 = vpop.f32.mrf.mxu0
    %v1014 = vadd.f32 0.0, %v1013
    %v1015 = vpop.f32.mrf.mxu0
    %v1016 = vadd.f32 0.0, %v1015
    %v1017 = vpop.f32.mrf.mxu0
    %v1018 = vadd.f32 0.0, %v1017
    %v1019 = vpop.f32.mrf.mxu0
    %v1020 = vadd.f32 0.0, %v1019
    %1021 = vmatprep.mubr.bf16.mxu0 0
    %1022 = vmatmul.mubr.bf16.gmra.mxu0 %v541
    %v1023 = vpop.f32.mrf.mxu0
    %v1024 = vadd.f32 0.0, %v1023
    %v1025 = vpop.f32.mrf.mxu0
    %v1026 = vadd.f32 0.0, %v1025
    %v1027 = vpop.f32.mrf.mxu0
    %v1028 = vadd.f32 0.0, %v1027
    %v1029 = vpop.f32.mrf.mxu0
    %v1030 = vadd.f32 0.0, %v1029
    %1031 = vdwg.mxu0
    %1032 = vmatprep.subr.bf16.mxu0 %v859
    %1033 = vmatpush1.bf16.msra.mxu0 %v858
    %1034 = vmatprep.subr.bf16.mxu0 %v851
    %1035 = vmatpush1.bf16.msra.mxu0 %v850
    %1036 = vmatprep.subr.bf16.mxu0 %v843
    %1037 = vmatpush1.bf16.msra.mxu0 %v842
    %1038 = vmatprep.subr.bf16.mxu0 %v835
    %1039 = vmatpush1.bf16.msra.mxu0 %v834
    %1040 = vmatprep.subr.bf16.mxu0 %v827
    %1041 = vmatpush1.bf16.msra.mxu0 %v826
    %1042 = vmatprep.subr.bf16.mxu0 %v819
    %1043 = vmatpush1.bf16.msra.mxu0 %v818
    %1044 = vmatprep.subr.bf16.mxu0 %v811
    %1045 = vmatpush1.bf16.msra.mxu0 %v810
    %1046 = vmatprep.subr.bf16.mxu0 %v803
    %1047 = vmatpush1.bf16.msra.mxu0 %v802
    %1048 = vmatprep.subr.bf16.mxu0 0
    %1049 = vmatpush2.bf16.msra.mxu0 0
    %1050 = vmatprep.subr.bf16.mxu0 0
    %1051 = vmatpush2.bf16.msra.mxu0 0
    %1052 = vmatprep.subr.bf16.mxu0 0
    %1053 = vmatpush2.bf16.msra.mxu0 0
    %1054 = vmatprep.subr.bf16.mxu0 0
    %1055 = vmatpush2.bf16.msra.mxu0 0
    %1056 = vmatprep.subr.bf16.mxu0 0
    %1057 = vmatpush2.bf16.msra.mxu0 0
    %1058 = vmatprep.subr.bf16.mxu0 0
    %1059 = vmatpush2.bf16.msra.mxu0 0
    %1060 = vmatprep.subr.bf16.mxu0 0
    %1061 = vmatpush2.bf16.msra.mxu0 0
    %1062 = vmatprep.subr.bf16.mxu0 0
    %1063 = vmatpush2.bf16.msra.mxu0 0
    %1064 = vmatprep.mubr.bf16.mxu0 0
    %1065 = vmatmul.mubr.bf16.gmra.mxu0 %v540
    %v1066 = vpop.f32.mrf.mxu0
    %v1067 = vadd.f32 0.0, %v1066
    %v1068 = vpop.f32.mrf.mxu0
    %v1069 = vadd.f32 0.0, %v1068
    %v1070 = vpop.f32.mrf.mxu0
    %v1071 = vadd.f32 0.0, %v1070
    %v1072 = vpop.f32.mrf.mxu0
    %v1073 = vadd.f32 0.0, %v1072
    %1074 = vmatprep.mubr.bf16.mxu0 0
    %1075 = vmatmul.mubr.bf16.gmra.mxu0 %v541
    %v1076 = vpop.f32.mrf.mxu0
    %v1077 = vadd.f32 0.0, %v1076
    %v1078 = vpop.f32.mrf.mxu0
    %v1079 = vadd.f32 0.0, %v1078
    %v1080 = vpop.f32.mrf.mxu0
    %v1081 = vadd.f32 0.0, %v1080
    %v1082 = vpop.f32.mrf.mxu0
    %v1083 = vadd.f32 0.0, %v1082
    %1084 = vdwg.mxu0
    %1085 = vmatprep.subr.bf16.mxu0 %v861
    %1086 = vmatpush1.bf16.msra.mxu0 %v860
    %1087 = vmatprep.subr.bf16.mxu0 %v853
    %1088 = vmatpush1.bf16.msra.mxu0 %v852
    %1089 = vmatprep.subr.bf16.mxu0 %v845
    %1090 = vmatpush1.bf16.msra.mxu0 %v844
    %1091 = vmatprep.subr.bf16.mxu0 %v837
    %1092 = vmatpush1.bf16.msra.mxu0 %v836
    %1093 = vmatprep.subr.bf16.mxu0 %v829
    %1094 = vmatpush1.bf16.msra.mxu0 %v828
    %1095 = vmatprep.subr.bf16.mxu0 %v821
    %1096 = vmatpush1.bf16.msra.mxu0 %v820
    %1097 = vmatprep.subr.bf16.mxu0 %v813
    %1098 = vmatpush1.bf16.msra.mxu0 %v812
    %1099 = vmatprep.subr.bf16.mxu0 %v805
    %1100 = vmatpush1.bf16.msra.mxu0 %v804
    %1101 = vmatprep.subr.bf16.mxu0 0
    %1102 = vmatpush2.bf16.msra.mxu0 0
    %1103 = vmatprep.subr.bf16.mxu0 0
    %1104 = vmatpush2.bf16.msra.mxu0 0
    %1105 = vmatprep.subr.bf16.mxu0 0
    %1106 = vmatpush2.bf16.msra.mxu0 0
    %1107 = vmatprep.subr.bf16.mxu0 0
    %1108 = vmatpush2.bf16.msra.mxu0 0
    %1109 = vmatprep.subr.bf16.mxu0 0
    %1110 = vmatpush2.bf16.msra.mxu0 0
    %1111 = vmatprep.subr.bf16.mxu0 0
    %1112 = vmatpush2.bf16.msra.mxu0 0
    %1113 = vmatprep.subr.bf16.mxu0 0
    %1114 = vmatpush2.bf16.msra.mxu0 0
    %1115 = vmatprep.subr.bf16.mxu0 0
    %1116 = vmatpush2.bf16.msra.mxu0 0
    %1117 = vmatprep.mubr.bf16.mxu0 0
    %1118 = vmatmul.mubr.bf16.gmra.mxu0 %v540
    %v1119 = vpop.f32.mrf.mxu0
    %v1120 = vadd.f32 0.0, %v1119
    %v1121 = vpop.f32.mrf.mxu0
    %v1122 = vadd.f32 0.0, %v1121
    %v1123 = vpop.f32.mrf.mxu0
    %v1124 = vadd.f32 0.0, %v1123
    %v1125 = vpop.f32.mrf.mxu0
    %v1126 = vadd.f32 0.0, %v1125
    %1127 = vmatprep.mubr.bf16.mxu0 0
    %1128 = vmatmul.mubr.bf16.gmra.mxu0 %v541
    %v1129 = vpop.f32.mrf.mxu0
    %v1130 = vadd.f32 0.0, %v1129
    %v1131 = vpop.f32.mrf.mxu0
    %v1132 = vadd.f32 0.0, %v1131
    %v1133 = vpop.f32.mrf.mxu0
    %v1134 = vadd.f32 0.0, %v1133
    %v1135 = vpop.f32.mrf.mxu0
    %v1136 = vadd.f32 0.0, %v1135
    %1137 = vdwg.mxu0
    %v1138 = vld [vmem:[#allocation16] sm:$0xff]
    %v1140 = vlaneseq
    %v1141 = vshrl.u32 %v1140, 7
    %v1142 = vsub.s32 0, %v1141
    %v1143 = vrot.slane %v1138, %v1142
    %v1144 = vlaneseq
    %v1145 = vshrl.u32 %v1144, 7
    %v1146 = vsub.s32 1, %v1145
    %v1147 = vrot.slane %v1138, %v1146
    %v1148 = vlaneseq
    %v1149 = vshrl.u32 %v1148, 7
    %v1150 = vsub.s32 2, %v1149
    %v1151 = vrot.slane %v1138, %v1150
    %v1152 = vlaneseq
    %v1153 = vshrl.u32 %v1152, 7
    %v1154 = vsub.s32 3, %v1153
    %v1155 = vrot.slane %v1138, %v1154
    %v1156 = vlaneseq
    %v1157 = vshrl.u32 %v1156, 7
    %v1158 = vsub.s32 4, %v1157
    %v1159 = vrot.slane %v1138, %v1158
    %v1160 = vlaneseq
    %v1161 = vshrl.u32 %v1160, 7
    %v1162 = vsub.s32 5, %v1161
    %v1163 = vrot.slane %v1138, %v1162
    %v1164 = vlaneseq
    %v1165 = vshrl.u32 %v1164, 7
    %v1166 = vsub.s32 6, %v1165
    %v1167 = vrot.slane %v1138, %v1166
    %v1168 = vlaneseq
    %v1169 = vshrl.u32 %v1168, 7
    %v1170 = vsub.s32 7, %v1169
    %v1171 = vrot.slane %v1138, %v1170
    %v1180 = vmul.f32 %v961, %v1143
    %v1181 = vmul.f32 %v963, %v1147
    %v1182 = vmul.f32 %v1014, %v1151
    %v1183 = vmul.f32 %v1016, %v1155
    %v1184 = vmul.f32 %v1067, %v1159
    %v1185 = vmul.f32 %v1069, %v1163
    %v1186 = vmul.f32 %v1120, %v1167
    %v1187 = vmul.f32 %v1122, %v1171
    %v1188 = vmul.f32 %v965, %v1143
    %v1189 = vmul.f32 %v967, %v1147
    %v1190 = vmul.f32 %v1018, %v1151
    %v1191 = vmul.f32 %v1020, %v1155
    %v1192 = vmul.f32 %v1071, %v1159
    %v1193 = vmul.f32 %v1073, %v1163
    %v1194 = vmul.f32 %v1124, %v1167
    %v1195 = vmul.f32 %v1126, %v1171
    %v1196 = vmul.f32 %v971, %v1143
    %v1197 = vmul.f32 %v973, %v1147
    %v1198 = vmul.f32 %v1024, %v1151
    %v1199 = vmul.f32 %v1026, %v1155
    %v1200 = vmul.f32 %v1077, %v1159
    %v1201 = vmul.f32 %v1079, %v1163
    %v1202 = vmul.f32 %v1130, %v1167
    %v1203 = vmul.f32 %v1132, %v1171
    %v1204 = vmul.f32 %v975, %v1143
    %v1205 = vmul.f32 %v977, %v1147
    %v1206 = vmul.f32 %v1028, %v1151
    %v1207 = vmul.f32 %v1030, %v1155
    %v1208 = vmul.f32 %v1081, %v1159
    %v1209 = vmul.f32 %v1083, %v1163
    %v1210 = vmul.f32 %v1134, %v1167
    %v1211 = vmul.f32 %v1136, %v1171
    %v1212 = vld [vmem:[#allocation17] sm:$0xff]
    %v1214 = vlaneseq
    %v1215 = vshrl.u32 %v1214, 7
    %v1216 = vsub.s32 0, %v1215
    %v1217 = vrot.slane %v1212, %v1216
    %v1218 = vlaneseq
    %v1219 = vshrl.u32 %v1218, 7
    %v1220 = vsub.s32 1, %v1219
    %v1221 = vrot.slane %v1212, %v1220
    %v1222 = vlaneseq
    %v1223 = vshrl.u32 %v1222, 7
    %v1224 = vsub.s32 2, %v1223
    %v1225 = vrot.slane %v1212, %v1224
    %v1226 = vlaneseq
    %v1227 = vshrl.u32 %v1226, 7
    %v1228 = vsub.s32 3, %v1227
    %v1229 = vrot.slane %v1212, %v1228
    %v1230 = vlaneseq
    %v1231 = vshrl.u32 %v1230, 7
    %v1232 = vsub.s32 4, %v1231
    %v1233 = vrot.slane %v1212, %v1232
    %v1234 = vlaneseq
    %v1235 = vshrl.u32 %v1234, 7
    %v1236 = vsub.s32 5, %v1235
    %v1237 = vrot.slane %v1212, %v1236
    %v1238 = vlaneseq
    %v1239 = vshrl.u32 %v1238, 7
    %v1240 = vsub.s32 6, %v1239
    %v1241 = vrot.slane %v1212, %v1240
    %v1242 = vlaneseq
    %v1243 = vshrl.u32 %v1242, 7
    %v1244 = vsub.s32 7, %v1243
    %v1245 = vrot.slane %v1212, %v1244
    %v1254 = vadd.f32 %v1180, %v1217
    %v1255 = vadd.f32 %v1181, %v1221
    %v1256 = vadd.f32 %v1182, %v1225
    %v1257 = vadd.f32 %v1183, %v1229
    %v1258 = vadd.f32 %v1184, %v1233
    %v1259 = vadd.f32 %v1185, %v1237
    %v1260 = vadd.f32 %v1186, %v1241
    %v1261 = vadd.f32 %v1187, %v1245
    %v1262 = vadd.f32 %v1188, %v1217
    %v1263 = vadd.f32 %v1189, %v1221
    %v1264 = vadd.f32 %v1190, %v1225
    %v1265 = vadd.f32 %v1191, %v1229
    %v1266 = vadd.f32 %v1192, %v1233
    %v1267 = vadd.f32 %v1193, %v1237
    %v1268 = vadd.f32 %v1194, %v1241
    %v1269 = vadd.f32 %v1195, %v1245
    %v1270 = vadd.f32 %v1196, %v1217
    %v1271 = vadd.f32 %v1197, %v1221
    %v1272 = vadd.f32 %v1198, %v1225
    %v1273 = vadd.f32 %v1199, %v1229
    %v1274 = vadd.f32 %v1200, %v1233
    %v1275 = vadd.f32 %v1201, %v1237
    %v1276 = vadd.f32 %v1202, %v1241
    %v1277 = vadd.f32 %v1203, %v1245
    %v1278 = vadd.f32 %v1204, %v1217
    %v1279 = vadd.f32 %v1205, %v1221
    %v1280 = vadd.f32 %v1206, %v1225
    %v1281 = vadd.f32 %v1207, %v1229
    %v1282 = vadd.f32 %v1208, %v1233
    %v1283 = vadd.f32 %v1209, %v1237
    %v1284 = vadd.f32 %v1210, %v1241
    %v1285 = vadd.f32 %v1211, %v1245
    %v1286 = vmax.f32 %v1254, 0.0
    %v1287 = vmax.f32 %v1255, 0.0
    %v1288 = vmax.f32 %v1256, 0.0
    %v1289 = vmax.f32 %v1257, 0.0
    %v1290 = vmax.f32 %v1258, 0.0
    %v1291 = vmax.f32 %v1259, 0.0
    %v1292 = vmax.f32 %v1260, 0.0
    %v1293 = vmax.f32 %v1261, 0.0
    %v1294 = vmax.f32 %v1262, 0.0
    %v1295 = vmax.f32 %v1263, 0.0
    %v1296 = vmax.f32 %v1264, 0.0
    %v1297 = vmax.f32 %v1265, 0.0
    %v1298 = vmax.f32 %v1266, 0.0
    %v1299 = vmax.f32 %v1267, 0.0
    %v1300 = vmax.f32 %v1268, 0.0
    %v1301 = vmax.f32 %v1269, 0.0
    %v1302 = vmax.f32 %v1270, 0.0
    %v1303 = vmax.f32 %v1271, 0.0
    %v1304 = vmax.f32 %v1272, 0.0
    %v1305 = vmax.f32 %v1273, 0.0
    %v1306 = vmax.f32 %v1274, 0.0
    %v1307 = vmax.f32 %v1275, 0.0
    %v1308 = vmax.f32 %v1276, 0.0
    %v1309 = vmax.f32 %v1277, 0.0
    %v1310 = vmax.f32 %v1278, 0.0
    %v1311 = vmax.f32 %v1279, 0.0
    %v1312 = vmax.f32 %v1280, 0.0
    %v1313 = vmax.f32 %v1281, 0.0
    %v1314 = vmax.f32 %v1282, 0.0
    %v1315 = vmax.f32 %v1283, 0.0
    %v1316 = vmax.f32 %v1284, 0.0
    %v1317 = vmax.f32 %v1285, 0.0
    %v1318 = vmax.f32 %v1286, %v1294
    %v1319 = vrot.slane %v1318, 4
    %v1320 = vmax.f32 %v1318, %v1319
    %v1321 = vrot.slane %v1320, 2
    %v1322 = vmax.f32 %v1320, %v1321
    %v1323 = vrot.slane %v1322, 1
    %v1324 = vmax.f32 %v1322, %v1323
    %v1325 = vmax.f32 %v1287, %v1295
    %v1326 = vrot.slane %v1325, 4
    %v1327 = vmax.f32 %v1325, %v1326
    %v1328 = vrot.slane %v1327, 2
    %v1329 = vmax.f32 %v1327, %v1328
    %v1330 = vrot.slane %v1329, 1
    %v1331 = vmax.f32 %v1329, %v1330
    %v1332 = vmax.f32 %v1288, %v1296
    %v1333 = vrot.slane %v1332, 4
    %v1334 = vmax.f32 %v1332, %v1333
    %v1335 = vrot.slane %v1334, 2
    %v1336 = vmax.f32 %v1334, %v1335
    %v1337 = vrot.slane %v1336, 1
    %v1338 = vmax.f32 %v1336, %v1337
    %v1339 = vmax.f32 %v1289, %v1297
    %v1340 = vrot.slane %v1339, 4
    %v1341 = vmax.f32 %v1339, %v1340
    %v1342 = vrot.slane %v1341, 2
    %v1343 = vmax.f32 %v1341, %v1342
    %v1344 = vrot.slane %v1343, 1
    %v1345 = vmax.f32 %v1343, %v1344
    %v1346 = vmax.f32 %v1290, %v1298
    %v1347 = vrot.slane %v1346, 4
    %v1348 = vmax.f32 %v1346, %v1347
    %v1349 = vrot.slane %v1348, 2
    %v1350 = vmax.f32 %v1348, %v1349
    %v1351 = vrot.slane %v1350, 1
    %v1352 = vmax.f32 %v1350, %v1351
    %v1353 = vmax.f32 %v1291, %v1299
    %v1354 = vrot.slane %v1353, 4
    %v1355 = vmax.f32 %v1353, %v1354
    %v1356 = vrot.slane %v1355, 2
    %v1357 = vmax.f32 %v1355, %v1356
    %v1358 = vrot.slane %v1357, 1
    %v1359 = vmax.f32 %v1357, %v1358
    %v1360 = vmax.f32 %v1292, %v1300
    %v1361 = vrot.slane %v1360, 4
    %v1362 = vmax.f32 %v1360, %v1361
    %v1363 = vrot.slane %v1362, 2
    %v1364 = vmax.f32 %v1362, %v1363
    %v1365 = vrot.slane %v1364, 1
    %v1366 = vmax.f32 %v1364, %v1365
    %v1367 = vmax.f32 %v1293, %v1301
    %v1368 = vrot.slane %v1367, 4
    %v1369 = vmax.f32 %v1367, %v1368
    %v1370 = vrot.slane %v1369, 2
    %v1371 = vmax.f32 %v1369, %v1370
    %v1372 = vrot.slane %v1371, 1
    %v1373 = vmax.f32 %v1371, %v1372
    %v1374 = vmax.f32 %v1302, %v1310
    %v1375 = vrot.slane %v1374, 4
    %v1376 = vmax.f32 %v1374, %v1375
    %v1377 = vrot.slane %v1376, 2
    %v1378 = vmax.f32 %v1376, %v1377
    %v1379 = vrot.slane %v1378, 1
    %v1380 = vmax.f32 %v1378, %v1379
    %v1381 = vmax.f32 %v1303, %v1311
    %v1382 = vrot.slane %v1381, 4
    %v1383 = vmax.f32 %v1381, %v1382
    %v1384 = vrot.slane %v1383, 2
    %v1385 = vmax.f32 %v1383, %v1384
    %v1386 = vrot.slane %v1385, 1
    %v1387 = vmax.f32 %v1385, %v1386
    %v1388 = vmax.f32 %v1304, %v1312
    %v1389 = vrot.slane %v1388, 4
    %v1390 = vmax.f32 %v1388, %v1389
    %v1391 = vrot.slane %v1390, 2
    %v1392 = vmax.f32 %v1390, %v1391
    %v1393 = vrot.slane %v1392, 1
    %v1394 = vmax.f32 %v1392, %v1393
    %v1395 = vmax.f32 %v1305, %v1313
    %v1396 = vrot.slane %v1395, 4
    %v1397 = vmax.f32 %v1395, %v1396
    %v1398 = vrot.slane %v1397, 2
    %v1399 = vmax.f32 %v1397, %v1398
    %v1400 = vrot.slane %v1399, 1
    %v1401 = vmax.f32 %v1399, %v1400
    %v1402 = vmax.f32 %v1306, %v1314
    %v1403 = vrot.slane %v1402, 4
    %v1404 = vmax.f32 %v1402, %v1403
    %v1405 = vrot.slane %v1404, 2
    %v1406 = vmax.f32 %v1404, %v1405
    %v1407 = vrot.slane %v1406, 1
    %v1408 = vmax.f32 %v1406, %v1407
    %v1409 = vmax.f32 %v1307, %v1315
    %v1410 = vrot.slane %v1409, 4
    %v1411 = vmax.f32 %v1409, %v1410
    %v1412 = vrot.slane %v1411, 2
    %v1413 = vmax.f32 %v1411, %v1412
    %v1414 = vrot.slane %v1413, 1
    %v1415 = vmax.f32 %v1413, %v1414
    %v1416 = vmax.f32 %v1308, %v1316
    %v1417 = vrot.slane %v1416, 4
    %v1418 = vmax.f32 %v1416, %v1417
    %v1419 = vrot.slane %v1418, 2
    %v1420 = vmax.f32 %v1418, %v1419
    %v1421 = vrot.slane %v1420, 1
    %v1422 = vmax.f32 %v1420, %v1421
    %v1423 = vmax.f32 %v1309, %v1317
    %v1424 = vrot.slane %v1423, 4
    %v1425 = vmax.f32 %v1423, %v1424
    %v1426 = vrot.slane %v1425, 2
    %v1427 = vmax.f32 %v1425, %v1426
    %v1428 = vrot.slane %v1427, 1
    %v1429 = vmax.f32 %v1427, %v1428
    %v1430 = vpack.c.bf16 %v1324, %v1324
    %v1431 = vpack.c.bf16 %v1331, %v1331
    %v1432 = vpack.c.bf16 %v1338, %v1338
    %v1433 = vpack.c.bf16 %v1345, %v1345
    %v1434 = vpack.c.bf16 %v1352, %v1352
    %v1435 = vpack.c.bf16 %v1359, %v1359
    %v1436 = vpack.c.bf16 %v1366, %v1366
    %v1437 = vpack.c.bf16 %v1373, %v1373
    %v1438 = vpack.c.bf16 %v1380, %v1380
    %v1439 = vpack.c.bf16 %v1387, %v1387
    %v1440 = vpack.c.bf16 %v1394, %v1394
    %v1441 = vpack.c.bf16 %v1401, %v1401
    %v1442 = vpack.c.bf16 %v1408, %v1408
    %v1443 = vpack.c.bf16 %v1415, %v1415
    %v1444 = vpack.c.bf16 %v1422, %v1422
    %v1445 = vpack.c.bf16 %v1429, %v1429
    %v1446 = vld [vmem:[#allocation19] sm:$0xff]
    %v1447 = vld [vmem:[#allocation19 + $0x8] sm:$0xff]
    %v1448 = vld [vmem:[#allocation19 + $0x10] sm:$0xff]
    %v1449 = vld [vmem:[#allocation19 + $0x18] sm:$0xff]
    %v1450 = vld [vmem:[#allocation19 + $0x20] sm:$0xff]
    %v1451 = vld [vmem:[#allocation19 + $0x28] sm:$0xff]
    %v1452 = vld [vmem:[#allocation19 + $0x30] sm:$0xff]
    %v1453 = vld [vmem:[#allocation19 + $0x38] sm:$0xff]
    %v1454 = vld [vmem:[#allocation19 + $0x40] sm:$0xff]
    %v1455 = vld [vmem:[#allocation19 + $0x48] sm:$0xff]
    %v1456 = vld [vmem:[#allocation19 + $0x50] sm:$0xff]
    %v1457 = vld [vmem:[#allocation19 + $0x58] sm:$0xff]
    %v1458 = vld [vmem:[#allocation19 + $0x60] sm:$0xff]
    %v1459 = vld [vmem:[#allocation19 + $0x68] sm:$0xff]
    %v1460 = vld [vmem:[#allocation19 + $0x70] sm:$0xff]
    %v1461 = vld [vmem:[#allocation19 + $0x78] sm:$0xff]
    %v1462 = vld [vmem:[#allocation19 + $0x80] sm:$0xff]
    %v1463 = vld [vmem:[#allocation19 + $0x88] sm:$0xff]
    %v1464 = vld [vmem:[#allocation19 + $0x90] sm:$0xff]
    %v1465 = vld [vmem:[#allocation19 + $0x98] sm:$0xff]
    %v1466 = vld [vmem:[#allocation19 + $0xa0] sm:$0xff]
    %v1467 = vld [vmem:[#allocation19 + $0xa8] sm:$0xff]
    %v1468 = vld [vmem:[#allocation19 + $0xb0] sm:$0xff]
    %v1469 = vld [vmem:[#allocation19 + $0xb8] sm:$0xff]
    %v1470 = vld [vmem:[#allocation19 + $0xc0] sm:$0xff]
    %v1471 = vld [vmem:[#allocation19 + $0xc8] sm:$0xff]
    %v1472 = vld [vmem:[#allocation19 + $0xd0] sm:$0xff]
    %v1473 = vld [vmem:[#allocation19 + $0xd8] sm:$0xff]
    %v1474 = vld [vmem:[#allocation19 + $0xe0] sm:$0xff]
    %v1475 = vld [vmem:[#allocation19 + $0xe8] sm:$0xff]
    %v1476 = vld [vmem:[#allocation19 + $0xf0] sm:$0xff]
    %v1477 = vld [vmem:[#allocation19 + $0xf8] sm:$0xff]
    %v1478 = vld [vmem:[#allocation19 + $0x100] sm:$0xff]
    %v1479 = vld [vmem:[#allocation19 + $0x108] sm:$0xff]
    %v1480 = vld [vmem:[#allocation19 + $0x110] sm:$0xff]
    %v1481 = vld [vmem:[#allocation19 + $0x118] sm:$0xff]
    %v1482 = vld [vmem:[#allocation19 + $0x120] sm:$0xff]
    %v1483 = vld [vmem:[#allocation19 + $0x128] sm:$0xff]
    %v1484 = vld [vmem:[#allocation19 + $0x130] sm:$0xff]
    %v1485 = vld [vmem:[#allocation19 + $0x138] sm:$0xff]
    %v1486 = vld [vmem:[#allocation19 + $0x140] sm:$0xff]
    %v1487 = vld [vmem:[#allocation19 + $0x148] sm:$0xff]
    %v1488 = vld [vmem:[#allocation19 + $0x150] sm:$0xff]
    %v1489 = vld [vmem:[#allocation19 + $0x158] sm:$0xff]
    %v1490 = vld [vmem:[#allocation19 + $0x160] sm:$0xff]
    %v1491 = vld [vmem:[#allocation19 + $0x168] sm:$0xff]
    %v1492 = vld [vmem:[#allocation19 + $0x170] sm:$0xff]
    %v1493 = vld [vmem:[#allocation19 + $0x178] sm:$0xff]
    %v1494 = vld [vmem:[#allocation19 + $0x180] sm:$0xff]
    %v1495 = vld [vmem:[#allocation19 + $0x188] sm:$0xff]
    %v1496 = vld [vmem:[#allocation19 + $0x190] sm:$0xff]
    %v1497 = vld [vmem:[#allocation19 + $0x198] sm:$0xff]
    %v1498 = vld [vmem:[#allocation19 + $0x1a0] sm:$0xff]
    %v1499 = vld [vmem:[#allocation19 + $0x1a8] sm:$0xff]
    %v1500 = vld [vmem:[#allocation19 + $0x1b0] sm:$0xff]
    %v1501 = vld [vmem:[#allocation19 + $0x1b8] sm:$0xff]
    %v1502 = vld [vmem:[#allocation19 + $0x1c0] sm:$0xff]
    %v1503 = vld [vmem:[#allocation19 + $0x1c8] sm:$0xff]
    %v1504 = vld [vmem:[#allocation19 + $0x1d0] sm:$0xff]
    %v1505 = vld [vmem:[#allocation19 + $0x1d8] sm:$0xff]
    %v1506 = vld [vmem:[#allocation19 + $0x1e0] sm:$0xff]
    %v1507 = vld [vmem:[#allocation19 + $0x1e8] sm:$0xff]
    %v1508 = vld [vmem:[#allocation19 + $0x1f0] sm:$0xff]
    %v1509 = vld [vmem:[#allocation19 + $0x1f8] sm:$0xff]
    %v1510 = vld [vmem:[#allocation19 + $0x200] sm:$0xff]
    %v1511 = vld [vmem:[#allocation19 + $0x208] sm:$0xff]
    %v1512 = vld [vmem:[#allocation19 + $0x210] sm:$0xff]
    %v1513 = vld [vmem:[#allocation19 + $0x218] sm:$0xff]
    %v1514 = vld [vmem:[#allocation19 + $0x220] sm:$0xff]
    %v1515 = vld [vmem:[#allocation19 + $0x228] sm:$0xff]
    %v1516 = vld [vmem:[#allocation19 + $0x230] sm:$0xff]
    %v1517 = vld [vmem:[#allocation19 + $0x238] sm:$0xff]
    %v1518 = vld [vmem:[#allocation19 + $0x240] sm:$0xff]
    %v1519 = vld [vmem:[#allocation19 + $0x248] sm:$0xff]
    %v1520 = vld [vmem:[#allocation19 + $0x250] sm:$0xff]
    %v1521 = vld [vmem:[#allocation19 + $0x258] sm:$0xff]
    %v1522 = vld [vmem:[#allocation19 + $0x260] sm:$0xff]
    %v1523 = vld [vmem:[#allocation19 + $0x268] sm:$0xff]
    %v1524 = vld [vmem:[#allocation19 + $0x270] sm:$0xff]
    %v1525 = vld [vmem:[#allocation19 + $0x278] sm:$0xff]
    %v1526 = vld [vmem:[#allocation19 + $0x280] sm:$0xff]
    %v1527 = vld [vmem:[#allocation19 + $0x288] sm:$0xff]
    %v1528 = vld [vmem:[#allocation19 + $0x290] sm:$0xff]
    %v1529 = vld [vmem:[#allocation19 + $0x298] sm:$0xff]
    %v1530 = vld [vmem:[#allocation19 + $0x2a0] sm:$0xff]
    %v1531 = vld [vmem:[#allocation19 + $0x2a8] sm:$0xff]
    %v1532 = vld [vmem:[#allocation19 + $0x2b0] sm:$0xff]
    %v1533 = vld [vmem:[#allocation19 + $0x2b8] sm:$0xff]
    %v1534 = vld [vmem:[#allocation19 + $0x2c0] sm:$0xff]
    %v1535 = vld [vmem:[#allocation19 + $0x2c8] sm:$0xff]
    %v1536 = vld [vmem:[#allocation19 + $0x2d0] sm:$0xff]
    %v1537 = vld [vmem:[#allocation19 + $0x2d8] sm:$0xff]
    %v1538 = vld [vmem:[#allocation19 + $0x2e0] sm:$0xff]
    %v1539 = vld [vmem:[#allocation19 + $0x2e8] sm:$0xff]
    %v1540 = vld [vmem:[#allocation19 + $0x2f0] sm:$0xff]
    %v1541 = vld [vmem:[#allocation19 + $0x2f8] sm:$0xff]
    %v1542 = vld [vmem:[#allocation19 + $0x300] sm:$0xff]
    %v1543 = vld [vmem:[#allocation19 + $0x308] sm:$0xff]
    %v1544 = vld [vmem:[#allocation19 + $0x310] sm:$0xff]
    %v1545 = vld [vmem:[#allocation19 + $0x318] sm:$0xff]
    %v1546 = vld [vmem:[#allocation19 + $0x320] sm:$0xff]
    %v1547 = vld [vmem:[#allocation19 + $0x328] sm:$0xff]
    %v1548 = vld [vmem:[#allocation19 + $0x330] sm:$0xff]
    %v1549 = vld [vmem:[#allocation19 + $0x338] sm:$0xff]
    %v1550 = vld [vmem:[#allocation19 + $0x340] sm:$0xff]
    %v1551 = vld [vmem:[#allocation19 + $0x348] sm:$0xff]
    %v1552 = vld [vmem:[#allocation19 + $0x350] sm:$0xff]
    %v1553 = vld [vmem:[#allocation19 + $0x358] sm:$0xff]
    %v1554 = vld [vmem:[#allocation19 + $0x360] sm:$0xff]
    %v1555 = vld [vmem:[#allocation19 + $0x368] sm:$0xff]
    %v1556 = vld [vmem:[#allocation19 + $0x370] sm:$0xff]
    %v1557 = vld [vmem:[#allocation19 + $0x378] sm:$0xff]
    %v1558 = vld [vmem:[#allocation19 + $0x380] sm:$0xff]
    %v1559 = vld [vmem:[#allocation19 + $0x388] sm:$0xff]
    %v1560 = vld [vmem:[#allocation19 + $0x390] sm:$0xff]
    %v1561 = vld [vmem:[#allocation19 + $0x398] sm:$0xff]
    %v1562 = vld [vmem:[#allocation19 + $0x3a0] sm:$0xff]
    %v1563 = vld [vmem:[#allocation19 + $0x3a8] sm:$0xff]
    %v1564 = vld [vmem:[#allocation19 + $0x3b0] sm:$0xff]
    %v1565 = vld [vmem:[#allocation19 + $0x3b8] sm:$0xff]
    %v1566 = vld [vmem:[#allocation19 + $0x3c0] sm:$0xff]
    %v1567 = vld [vmem:[#allocation19 + $0x3c8] sm:$0xff]
    %v1568 = vld [vmem:[#allocation19 + $0x3d0] sm:$0xff]
    %v1569 = vld [vmem:[#allocation19 + $0x3d8] sm:$0xff]
    %v1570 = vld [vmem:[#allocation19 + $0x3e0] sm:$0xff]
    %v1571 = vld [vmem:[#allocation19 + $0x3e8] sm:$0xff]
    %v1572 = vld [vmem:[#allocation19 + $0x3f0] sm:$0xff]
    %v1573 = vld [vmem:[#allocation19 + $0x3f8] sm:$0xff]
    %v1574 = vld [vmem:[#allocation19 + $0x400] sm:$0xff]
    %v1575 = vld [vmem:[#allocation19 + $0x408] sm:$0xff]
    %v1576 = vld [vmem:[#allocation19 + $0x410] sm:$0xff]
    %v1577 = vld [vmem:[#allocation19 + $0x418] sm:$0xff]
    %v1578 = vld [vmem:[#allocation19 + $0x420] sm:$0xff]
    %v1579 = vld [vmem:[#allocation19 + $0x428] sm:$0xff]
    %v1580 = vld [vmem:[#allocation19 + $0x430] sm:$0xff]
    %v1581 = vld [vmem:[#allocation19 + $0x438] sm:$0xff]
    %v1582 = vld [vmem:[#allocation19 + $0x440] sm:$0xff]
    %v1583 = vld [vmem:[#allocation19 + $0x448] sm:$0xff]
    %v1584 = vld [vmem:[#allocation19 + $0x450] sm:$0xff]
    %v1585 = vld [vmem:[#allocation19 + $0x458] sm:$0xff]
    %v1586 = vld [vmem:[#allocation19 + $0x460] sm:$0xff]
    %v1587 = vld [vmem:[#allocation19 + $0x468] sm:$0xff]
    %v1588 = vld [vmem:[#allocation19 + $0x470] sm:$0xff]
    %v1589 = vld [vmem:[#allocation19 + $0x478] sm:$0xff]
    %v1590 = vld [vmem:[#allocation19 + $0x480] sm:$0xff]
    %v1591 = vld [vmem:[#allocation19 + $0x488] sm:$0xff]
    %v1592 = vld [vmem:[#allocation19 + $0x490] sm:$0xff]
    %v1593 = vld [vmem:[#allocation19 + $0x498] sm:$0xff]
    %v1594 = vld [vmem:[#allocation19 + $0x4a0] sm:$0xff]
    %v1595 = vld [vmem:[#allocation19 + $0x4a8] sm:$0xff]
    %v1596 = vld [vmem:[#allocation19 + $0x4b0] sm:$0xff]
    %v1597 = vld [vmem:[#allocation19 + $0x4b8] sm:$0xff]
    %v1598 = vld [vmem:[#allocation19 + $0x4c0] sm:$0xff]
    %v1599 = vld [vmem:[#allocation19 + $0x4c8] sm:$0xff]
    %v1600 = vld [vmem:[#allocation19 + $0x4d0] sm:$0xff]
    %v1601 = vld [vmem:[#allocation19 + $0x4d8] sm:$0xff]
    %v1602 = vld [vmem:[#allocation19 + $0x4e0] sm:$0xff]
    %v1603 = vld [vmem:[#allocation19 + $0x4e8] sm:$0xff]
    %v1604 = vld [vmem:[#allocation19 + $0x4f0] sm:$0xff]
    %v1605 = vld [vmem:[#allocation19 + $0x4f8] sm:$0xff]
    %v1606 = vld [vmem:[#allocation19 + $0x500] sm:$0xff]
    %v1607 = vld [vmem:[#allocation19 + $0x508] sm:$0xff]
    %v1608 = vld [vmem:[#allocation19 + $0x510] sm:$0xff]
    %v1609 = vld [vmem:[#allocation19 + $0x518] sm:$0xff]
    %v1610 = vld [vmem:[#allocation19 + $0x520] sm:$0xff]
    %v1611 = vld [vmem:[#allocation19 + $0x528] sm:$0xff]
    %v1612 = vld [vmem:[#allocation19 + $0x530] sm:$0xff]
    %v1613 = vld [vmem:[#allocation19 + $0x538] sm:$0xff]
    %v1614 = vld [vmem:[#allocation19 + $0x540] sm:$0xff]
    %v1615 = vld [vmem:[#allocation19 + $0x548] sm:$0xff]
    %v1616 = vld [vmem:[#allocation19 + $0x550] sm:$0xff]
    %v1617 = vld [vmem:[#allocation19 + $0x558] sm:$0xff]
    %v1618 = vld [vmem:[#allocation19 + $0x560] sm:$0xff]
    %v1619 = vld [vmem:[#allocation19 + $0x568] sm:$0xff]
    %v1620 = vld [vmem:[#allocation19 + $0x570] sm:$0xff]
    %v1621 = vld [vmem:[#allocation19 + $0x578] sm:$0xff]
    %v1622 = vld [vmem:[#allocation19 + $0x580] sm:$0xff]
    %v1623 = vld [vmem:[#allocation19 + $0x588] sm:$0xff]
    %v1624 = vld [vmem:[#allocation19 + $0x590] sm:$0xff]
    %v1625 = vld [vmem:[#allocation19 + $0x598] sm:$0xff]
    %v1626 = vld [vmem:[#allocation19 + $0x5a0] sm:$0xff]
    %v1627 = vld [vmem:[#allocation19 + $0x5a8] sm:$0xff]
    %v1628 = vld [vmem:[#allocation19 + $0x5b0] sm:$0xff]
    %v1629 = vld [vmem:[#allocation19 + $0x5b8] sm:$0xff]
    %v1630 = vld [vmem:[#allocation19 + $0x5c0] sm:$0xff]
    %v1631 = vld [vmem:[#allocation19 + $0x5c8] sm:$0xff]
    %v1632 = vld [vmem:[#allocation19 + $0x5d0] sm:$0xff]
    %v1633 = vld [vmem:[#allocation19 + $0x5d8] sm:$0xff]
    %v1634 = vld [vmem:[#allocation19 + $0x5e0] sm:$0xff]
    %v1635 = vld [vmem:[#allocation19 + $0x5e8] sm:$0xff]
    %v1636 = vld [vmem:[#allocation19 + $0x5f0] sm:$0xff]
    %v1637 = vld [vmem:[#allocation19 + $0x5f8] sm:$0xff]
    %v1638 = vld [vmem:[#allocation19 + $0x600] sm:$0xff]
    %v1639 = vld [vmem:[#allocation19 + $0x608] sm:$0xff]
    %v1640 = vld [vmem:[#allocation19 + $0x610] sm:$0xff]
    %v1641 = vld [vmem:[#allocation19 + $0x618] sm:$0xff]
    %v1642 = vld [vmem:[#allocation19 + $0x620] sm:$0xff]
    %v1643 = vld [vmem:[#allocation19 + $0x628] sm:$0xff]
    %v1644 = vld [vmem:[#allocation19 + $0x630] sm:$0xff]
    %v1645 = vld [vmem:[#allocation19 + $0x638] sm:$0xff]
    %v1646 = vld [vmem:[#allocation19 + $0x640] sm:$0xff]
    %v1647 = vld [vmem:[#allocation19 + $0x648] sm:$0xff]
    %v1648 = vld [vmem:[#allocation19 + $0x650] sm:$0xff]
    %v1649 = vld [vmem:[#allocation19 + $0x658] sm:$0xff]
    %v1650 = vld [vmem:[#allocation19 + $0x660] sm:$0xff]
    %v1651 = vld [vmem:[#allocation19 + $0x668] sm:$0xff]
    %v1652 = vld [vmem:[#allocation19 + $0x670] sm:$0xff]
    %v1653 = vld [vmem:[#allocation19 + $0x678] sm:$0xff]
    %v1654 = vld [vmem:[#allocation19 + $0x680] sm:$0xff]
    %v1655 = vld [vmem:[#allocation19 + $0x688] sm:$0xff]
    %v1656 = vld [vmem:[#allocation19 + $0x690] sm:$0xff]
    %v1657 = vld [vmem:[#allocation19 + $0x698] sm:$0xff]
    %v1658 = vld [vmem:[#allocation19 + $0x6a0] sm:$0xff]
    %v1659 = vld [vmem:[#allocation19 + $0x6a8] sm:$0xff]
    %v1660 = vld [vmem:[#allocation19 + $0x6b0] sm:$0xff]
    %v1661 = vld [vmem:[#allocation19 + $0x6b8] sm:$0xff]
    %v1662 = vld [vmem:[#allocation19 + $0x6c0] sm:$0xff]
    %v1663 = vld [vmem:[#allocation19 + $0x6c8] sm:$0xff]
    %v1664 = vld [vmem:[#allocation19 + $0x6d0] sm:$0xff]
    %v1665 = vld [vmem:[#allocation19 + $0x6d8] sm:$0xff]
    %v1666 = vld [vmem:[#allocation19 + $0x6e0] sm:$0xff]
    %v1667 = vld [vmem:[#allocation19 + $0x6e8] sm:$0xff]
    %v1668 = vld [vmem:[#allocation19 + $0x6f0] sm:$0xff]
    %v1669 = vld [vmem:[#allocation19 + $0x6f8] sm:$0xff]
    %v1670 = vld [vmem:[#allocation19 + $0x700] sm:$0xff]
    %v1671 = vld [vmem:[#allocation19 + $0x708] sm:$0xff]
    %v1672 = vld [vmem:[#allocation19 + $0x710] sm:$0xff]
    %v1673 = vld [vmem:[#allocation19 + $0x718] sm:$0xff]
    %v1674 = vld [vmem:[#allocation19 + $0x720] sm:$0xff]
    %v1675 = vld [vmem:[#allocation19 + $0x728] sm:$0xff]
    %v1676 = vld [vmem:[#allocation19 + $0x730] sm:$0xff]
    %v1677 = vld [vmem:[#allocation19 + $0x738] sm:$0xff]
    %v1678 = vld [vmem:[#allocation19 + $0x740] sm:$0xff]
    %v1679 = vld [vmem:[#allocation19 + $0x748] sm:$0xff]
    %v1680 = vld [vmem:[#allocation19 + $0x750] sm:$0xff]
    %v1681 = vld [vmem:[#allocation19 + $0x758] sm:$0xff]
    %v1682 = vld [vmem:[#allocation19 + $0x760] sm:$0xff]
    %v1683 = vld [vmem:[#allocation19 + $0x768] sm:$0xff]
    %v1684 = vld [vmem:[#allocation19 + $0x770] sm:$0xff]
    %v1685 = vld [vmem:[#allocation19 + $0x778] sm:$0xff]
    %v1686 = vld [vmem:[#allocation19 + $0x780] sm:$0xff]
    %v1687 = vld [vmem:[#allocation19 + $0x788] sm:$0xff]
    %v1688 = vld [vmem:[#allocation19 + $0x790] sm:$0xff]
    %v1689 = vld [vmem:[#allocation19 + $0x798] sm:$0xff]
    %v1690 = vld [vmem:[#allocation19 + $0x7a0] sm:$0xff]
    %v1691 = vld [vmem:[#allocation19 + $0x7a8] sm:$0xff]
    %v1692 = vld [vmem:[#allocation19 + $0x7b0] sm:$0xff]
    %v1693 = vld [vmem:[#allocation19 + $0x7b8] sm:$0xff]
    %v1694 = vld [vmem:[#allocation19 + $0x7c0] sm:$0xff]
    %v1695 = vld [vmem:[#allocation19 + $0x7c8] sm:$0xff]
    %v1696 = vld [vmem:[#allocation19 + $0x7d0] sm:$0xff]
    %v1697 = vld [vmem:[#allocation19 + $0x7d8] sm:$0xff]
    %v1698 = vld [vmem:[#allocation19 + $0x7e0] sm:$0xff]
    %v1699 = vld [vmem:[#allocation19 + $0x7e8] sm:$0xff]
    %v1700 = vld [vmem:[#allocation19 + $0x7f0] sm:$0xff]
    %v1701 = vld [vmem:[#allocation19 + $0x7f8] sm:$0xff]
    %v1718 = vunpack.c.l.b16 %v1430
    %v1719 = vunpack.c.l.b16 %v1431
    %v1720 = vunpack.c.l.b16 %v1432
    %v1721 = vunpack.c.l.b16 %v1433
    %v1722 = vunpack.c.l.b16 %v1434
    %v1723 = vunpack.c.l.b16 %v1435
    %v1724 = vunpack.c.l.b16 %v1436
    %v1725 = vunpack.c.l.b16 %v1437
    %v1726 = vunpack.c.l.b16 %v1438
    %v1727 = vunpack.c.l.b16 %v1439
    %v1728 = vunpack.c.l.b16 %v1440
    %v1729 = vunpack.c.l.b16 %v1441
    %v1730 = vunpack.c.l.b16 %v1442
    %v1731 = vunpack.c.l.b16 %v1443
    %v1732 = vunpack.c.l.b16 %v1444
    %v1733 = vunpack.c.l.b16 %v1445
    %vm1734 = vcmask 1041409
    %v1735 = vsel %vm1734, %v1726, %v1718
    %v1736 = vsel %vm1734, %v1727, %v1719
    %v1737 = vsel %vm1734, %v1728, %v1720
    %v1738 = vsel %vm1734, %v1729, %v1721
    %v1739 = vsel %vm1734, %v1730, %v1722
    %v1740 = vsel %vm1734, %v1731, %v1723
    %v1741 = vsel %vm1734, %v1732, %v1724
    %v1742 = vsel %vm1734, %v1733, %v1725
    %v1743 = vpack.c.b16 %v1735, %v1735
    %v1744 = vpack.c.b16 %v1736, %v1736
    %v1745 = vpack.c.b16 %v1737, %v1737
    %v1746 = vpack.c.b16 %v1738, %v1738
    %v1747 = vpack.c.b16 %v1739, %v1739
    %v1748 = vpack.c.b16 %v1740, %v1740
    %v1749 = vpack.c.b16 %v1741, %v1741
    %v1750 = vpack.c.b16 %v1742, %v1742
    %v2015 = vunpack.c.l.b16 %v1446
    %v2016 = vunpack.c.h.b16 %v1446
    %v2017 = vunpack.c.l.b16 %v1447
    %v2018 = vunpack.c.h.b16 %v1447
    %v2019 = vunpack.c.l.b16 %v1448
    %v2020 = vunpack.c.h.b16 %v1448
    %v2021 = vunpack.c.l.b16 %v1449
    %v2022 = vunpack.c.h.b16 %v1449
    %v2023 = vunpack.c.l.b16 %v1450
    %v2024 = vunpack.c.h.b16 %v1450
    %v2025 = vunpack.c.l.b16 %v1451
    %v2026 = vunpack.c.h.b16 %v1451
    %v2027 = vunpack.c.l.b16 %v1452
    %v2028 = vunpack.c.h.b16 %v1452
    %v2029 = vunpack.c.l.b16 %v1453
    %v2030 = vunpack.c.h.b16 %v1453
    %v2031 = vunpack.c.l.b16 %v1454
    %v2032 = vunpack.c.h.b16 %v1454
    %v2033 = vunpack.c.l.b16 %v1455
    %v2034 = vunpack.c.h.b16 %v1455
    %v2035 = vunpack.c.l.b16 %v1456
    %v2036 = vunpack.c.h.b16 %v1456
    %v2037 = vunpack.c.l.b16 %v1457
    %v2038 = vunpack.c.h.b16 %v1457
    %v2039 = vunpack.c.l.b16 %v1458
    %v2040 = vunpack.c.h.b16 %v1458
    %v2041 = vunpack.c.l.b16 %v1459
    %v2042 = vunpack.c.h.b16 %v1459
    %v2043 = vunpack.c.l.b16 %v1460
    %v2044 = vunpack.c.h.b16 %v1460
    %v2045 = vunpack.c.l.b16 %v1461
    %v2046 = vunpack.c.h.b16 %v1461
    %v2047 = vunpack.c.l.b16 %v1462
    %v2048 = vunpack.c.h.b16 %v1462
    %v2049 = vunpack.c.l.b16 %v1463
    %v2050 = vunpack.c.h.b16 %v1463
    %v2051 = vunpack.c.l.b16 %v1464
    %v2052 = vunpack.c.h.b16 %v1464
    %v2053 = vunpack.c.l.b16 %v1465
    %v2054 = vunpack.c.h.b16 %v1465
    %v2055 = vunpack.c.l.b16 %v1466
    %v2056 = vunpack.c.h.b16 %v1466
    %v2057 = vunpack.c.l.b16 %v1467
    %v2058 = vunpack.c.h.b16 %v1467
    %v2059 = vunpack.c.l.b16 %v1468
    %v2060 = vunpack.c.h.b16 %v1468
    %v2061 = vunpack.c.l.b16 %v1469
    %v2062 = vunpack.c.h.b16 %v1469
    %v2063 = vunpack.c.l.b16 %v1470
    %v2064 = vunpack.c.h.b16 %v1470
    %v2065 = vunpack.c.l.b16 %v1471
    %v2066 = vunpack.c.h.b16 %v1471
    %v2067 = vunpack.c.l.b16 %v1472
    %v2068 = vunpack.c.h.b16 %v1472
    %v2069 = vunpack.c.l.b16 %v1473
    %v2070 = vunpack.c.h.b16 %v1473
    %v2071 = vunpack.c.l.b16 %v1474
    %v2072 = vunpack.c.h.b16 %v1474
    %v2073 = vunpack.c.l.b16 %v1475
    %v2074 = vunpack.c.h.b16 %v1475
    %v2075 = vunpack.c.l.b16 %v1476
    %v2076 = vunpack.c.h.b16 %v1476
    %v2077 = vunpack.c.l.b16 %v1477
    %v2078 = vunpack.c.h.b16 %v1477
    %v2079 = vunpack.c.l.b16 %v1478
    %v2080 = vunpack.c.h.b16 %v1478
    %v2081 = vunpack.c.l.b16 %v1479
    %v2082 = vunpack.c.h.b16 %v1479
    %v2083 = vunpack.c.l.b16 %v1480
    %v2084 = vunpack.c.h.b16 %v1480
    %v2085 = vunpack.c.l.b16 %v1481
    %v2086 = vunpack.c.h.b16 %v1481
    %v2087 = vunpack.c.l.b16 %v1482
    %v2088 = vunpack.c.h.b16 %v1482
    %v2089 = vunpack.c.l.b16 %v1483
    %v2090 = vunpack.c.h.b16 %v1483
    %v2091 = vunpack.c.l.b16 %v1484
    %v2092 = vunpack.c.h.b16 %v1484
    %v2093 = vunpack.c.l.b16 %v1485
    %v2094 = vunpack.c.h.b16 %v1485
    %v2095 = vunpack.c.l.b16 %v1486
    %v2096 = vunpack.c.h.b16 %v1486
    %v2097 = vunpack.c.l.b16 %v1487
    %v2098 = vunpack.c.h.b16 %v1487
    %v2099 = vunpack.c.l.b16 %v1488
    %v2100 = vunpack.c.h.b16 %v1488
    %v2101 = vunpack.c.l.b16 %v1489
    %v2102 = vunpack.c.h.b16 %v1489
    %v2103 = vunpack.c.l.b16 %v1490
    %v2104 = vunpack.c.h.b16 %v1490
    %v2105 = vunpack.c.l.b16 %v1491
    %v2106 = vunpack.c.h.b16 %v1491
    %v2107 = vunpack.c.l.b16 %v1492
    %v2108 = vunpack.c.h.b16 %v1492
    %v2109 = vunpack.c.l.b16 %v1493
    %v2110 = vunpack.c.h.b16 %v1493
    %v2111 = vunpack.c.l.b16 %v1494
    %v2112 = vunpack.c.h.b16 %v1494
    %v2113 = vunpack.c.l.b16 %v1495
    %v2114 = vunpack.c.h.b16 %v1495
    %v2115 = vunpack.c.l.b16 %v1496
    %v2116 = vunpack.c.h.b16 %v1496
    %v2117 = vunpack.c.l.b16 %v1497
    %v2118 = vunpack.c.h.b16 %v1497
    %v2119 = vunpack.c.l.b16 %v1498
    %v2120 = vunpack.c.h.b16 %v1498
    %v2121 = vunpack.c.l.b16 %v1499
    %v2122 = vunpack.c.h.b16 %v1499
    %v2123 = vunpack.c.l.b16 %v1500
    %v2124 = vunpack.c.h.b16 %v1500
    %v2125 = vunpack.c.l.b16 %v1501
    %v2126 = vunpack.c.h.b16 %v1501
    %v2127 = vunpack.c.l.b16 %v1502
    %v2128 = vunpack.c.h.b16 %v1502
    %v2129 = vunpack.c.l.b16 %v1503
    %v2130 = vunpack.c.h.b16 %v1503
    %v2131 = vunpack.c.l.b16 %v1504
    %v2132 = vunpack.c.h.b16 %v1504
    %v2133 = vunpack.c.l.b16 %v1505
    %v2134 = vunpack.c.h.b16 %v1505
    %v2135 = vunpack.c.l.b16 %v1506
    %v2136 = vunpack.c.h.b16 %v1506
    %v2137 = vunpack.c.l.b16 %v1507
    %v2138 = vunpack.c.h.b16 %v1507
    %v2139 = vunpack.c.l.b16 %v1508
    %v2140 = vunpack.c.h.b16 %v1508
    %v2141 = vunpack.c.l.b16 %v1509
    %v2142 = vunpack.c.h.b16 %v1509
    %v2143 = vunpack.c.l.b16 %v1510
    %v2144 = vunpack.c.h.b16 %v1510
    %v2145 = vunpack.c.l.b16 %v1511
    %v2146 = vunpack.c.h.b16 %v1511
    %v2147 = vunpack.c.l.b16 %v1512
    %v2148 = vunpack.c.h.b16 %v1512
    %v2149 = vunpack.c.l.b16 %v1513
    %v2150 = vunpack.c.h.b16 %v1513
    %v2151 = vunpack.c.l.b16 %v1514
    %v2152 = vunpack.c.h.b16 %v1514
    %v2153 = vunpack.c.l.b16 %v1515
    %v2154 = vunpack.c.h.b16 %v1515
    %v2155 = vunpack.c.l.b16 %v1516
    %v2156 = vunpack.c.h.b16 %v1516
    %v2157 = vunpack.c.l.b16 %v1517
    %v2158 = vunpack.c.h.b16 %v1517
    %v2159 = vunpack.c.l.b16 %v1518
    %v2160 = vunpack.c.h.b16 %v1518
    %v2161 = vunpack.c.l.b16 %v1519
    %v2162 = vunpack.c.h.b16 %v1519
    %v2163 = vunpack.c.l.b16 %v1520
    %v2164 = vunpack.c.h.b16 %v1520
    %v2165 = vunpack.c.l.b16 %v1521
    %v2166 = vunpack.c.h.b16 %v1521
    %v2167 = vunpack.c.l.b16 %v1522
    %v2168 = vunpack.c.h.b16 %v1522
    %v2169 = vunpack.c.l.b16 %v1523
    %v2170 = vunpack.c.h.b16 %v1523
    %v2171 = vunpack.c.l.b16 %v1524
    %v2172 = vunpack.c.h.b16 %v1524
    %v2173 = vunpack.c.l.b16 %v1525
    %v2174 = vunpack.c.h.b16 %v1525
    %v2175 = vunpack.c.l.b16 %v1526
    %v2176 = vunpack.c.h.b16 %v1526
    %v2177 = vunpack.c.l.b16 %v1527
    %v2178 = vunpack.c.h.b16 %v1527
    %v2179 = vunpack.c.l.b16 %v1528
    %v2180 = vunpack.c.h.b16 %v1528
    %v2181 = vunpack.c.l.b16 %v1529
    %v2182 = vunpack.c.h.b16 %v1529
    %v2183 = vunpack.c.l.b16 %v1530
    %v2184 = vunpack.c.h.b16 %v1530
    %v2185 = vunpack.c.l.b16 %v1531
    %v2186 = vunpack.c.h.b16 %v1531
    %v2187 = vunpack.c.l.b16 %v1532
    %v2188 = vunpack.c.h.b16 %v1532
    %v2189 = vunpack.c.l.b16 %v1533
    %v2190 = vunpack.c.h.b16 %v1533
    %v2191 = vunpack.c.l.b16 %v1534
    %v2192 = vunpack.c.h.b16 %v1534
    %v2193 = vunpack.c.l.b16 %v1535
    %v2194 = vunpack.c.h.b16 %v1535
    %v2195 = vunpack.c.l.b16 %v1536
    %v2196 = vunpack.c.h.b16 %v1536
    %v2197 = vunpack.c.l.b16 %v1537
    %v2198 = vunpack.c.h.b16 %v1537
    %v2199 = vunpack.c.l.b16 %v1538
    %v2200 = vunpack.c.h.b16 %v1538
    %v2201 = vunpack.c.l.b16 %v1539
    %v2202 = vunpack.c.h.b16 %v1539
    %v2203 = vunpack.c.l.b16 %v1540
    %v2204 = vunpack.c.h.b16 %v1540
    %v2205 = vunpack.c.l.b16 %v1541
    %v2206 = vunpack.c.h.b16 %v1541
    %v2207 = vunpack.c.l.b16 %v1542
    %v2208 = vunpack.c.h.b16 %v1542
    %v2209 = vunpack.c.l.b16 %v1543
    %v2210 = vunpack.c.h.b16 %v1543
    %v2211 = vunpack.c.l.b16 %v1544
    %v2212 = vunpack.c.h.b16 %v1544
    %v2213 = vunpack.c.l.b16 %v1545
    %v2214 = vunpack.c.h.b16 %v1545
    %v2215 = vunpack.c.l.b16 %v1546
    %v2216 = vunpack.c.h.b16 %v1546
    %v2217 = vunpack.c.l.b16 %v1547
    %v2218 = vunpack.c.h.b16 %v1547
    %v2219 = vunpack.c.l.b16 %v1548
    %v2220 = vunpack.c.h.b16 %v1548
    %v2221 = vunpack.c.l.b16 %v1549
    %v2222 = vunpack.c.h.b16 %v1549
    %v2223 = vunpack.c.l.b16 %v1550
    %v2224 = vunpack.c.h.b16 %v1550
    %v2225 = vunpack.c.l.b16 %v1551
    %v2226 = vunpack.c.h.b16 %v1551
    %v2227 = vunpack.c.l.b16 %v1552
    %v2228 = vunpack.c.h.b16 %v1552
    %v2229 = vunpack.c.l.b16 %v1553
    %v2230 = vunpack.c.h.b16 %v1553
    %v2231 = vunpack.c.l.b16 %v1554
    %v2232 = vunpack.c.h.b16 %v1554
    %v2233 = vunpack.c.l.b16 %v1555
    %v2234 = vunpack.c.h.b16 %v1555
    %v2235 = vunpack.c.l.b16 %v1556
    %v2236 = vunpack.c.h.b16 %v1556
    %v2237 = vunpack.c.l.b16 %v1557
    %v2238 = vunpack.c.h.b16 %v1557
    %v2239 = vunpack.c.l.b16 %v1558
    %v2240 = vunpack.c.h.b16 %v1558
    %v2241 = vunpack.c.l.b16 %v1559
    %v2242 = vunpack.c.h.b16 %v1559
    %v2243 = vunpack.c.l.b16 %v1560
    %v2244 = vunpack.c.h.b16 %v1560
    %v2245 = vunpack.c.l.b16 %v1561
    %v2246 = vunpack.c.h.b16 %v1561
    %v2247 = vunpack.c.l.b16 %v1562
    %v2248 = vunpack.c.h.b16 %v1562
    %v2249 = vunpack.c.l.b16 %v1563
    %v2250 = vunpack.c.h.b16 %v1563
    %v2251 = vunpack.c.l.b16 %v1564
    %v2252 = vunpack.c.h.b16 %v1564
    %v2253 = vunpack.c.l.b16 %v1565
    %v2254 = vunpack.c.h.b16 %v1565
    %v2255 = vunpack.c.l.b16 %v1566
    %v2256 = vunpack.c.h.b16 %v1566
    %v2257 = vunpack.c.l.b16 %v1567
    %v2258 = vunpack.c.h.b16 %v1567
    %v2259 = vunpack.c.l.b16 %v1568
    %v2260 = vunpack.c.h.b16 %v1568
    %v2261 = vunpack.c.l.b16 %v1569
    %v2262 = vunpack.c.h.b16 %v1569
    %v2263 = vunpack.c.l.b16 %v1570
    %v2264 = vunpack.c.h.b16 %v1570
    %v2265 = vunpack.c.l.b16 %v1571
    %v2266 = vunpack.c.h.b16 %v1571
    %v2267 = vunpack.c.l.b16 %v1572
    %v2268 = vunpack.c.h.b16 %v1572
    %v2269 = vunpack.c.l.b16 %v1573
    %v2270 = vunpack.c.h.b16 %v1573
    %v2271 = vunpack.c.l.b16 %v1574
    %v2272 = vunpack.c.h.b16 %v1574
    %v2273 = vunpack.c.l.b16 %v1575
    %v2274 = vunpack.c.h.b16 %v1575
    %v2275 = vunpack.c.l.b16 %v1576
    %v2276 = vunpack.c.h.b16 %v1576
    %v2277 = vunpack.c.l.b16 %v1577
    %v2278 = vunpack.c.h.b16 %v1577
    %v2279 = vunpack.c.l.b16 %v1578
    %v2280 = vunpack.c.h.b16 %v1578
    %v2281 = vunpack.c.l.b16 %v1579
    %v2282 = vunpack.c.h.b16 %v1579
    %v2283 = vunpack.c.l.b16 %v1580
    %v2284 = vunpack.c.h.b16 %v1580
    %v2285 = vunpack.c.l.b16 %v1581
    %v2286 = vunpack.c.h.b16 %v1581
    %v2287 = vunpack.c.l.b16 %v1582
    %v2288 = vunpack.c.h.b16 %v1582
    %v2289 = vunpack.c.l.b16 %v1583
    %v2290 = vunpack.c.h.b16 %v1583
    %v2291 = vunpack.c.l.b16 %v1584
    %v2292 = vunpack.c.h.b16 %v1584
    %v2293 = vunpack.c.l.b16 %v1585
    %v2294 = vunpack.c.h.b16 %v1585
    %v2295 = vunpack.c.l.b16 %v1586
    %v2296 = vunpack.c.h.b16 %v1586
    %v2297 = vunpack.c.l.b16 %v1587
    %v2298 = vunpack.c.h.b16 %v1587
    %v2299 = vunpack.c.l.b16 %v1588
    %v2300 = vunpack.c.h.b16 %v1588
    %v2301 = vunpack.c.l.b16 %v1589
    %v2302 = vunpack.c.h.b16 %v1589
    %v2303 = vunpack.c.l.b16 %v1590
    %v2304 = vunpack.c.h.b16 %v1590
    %v2305 = vunpack.c.l.b16 %v1591
    %v2306 = vunpack.c.h.b16 %v1591
    %v2307 = vunpack.c.l.b16 %v1592
    %v2308 = vunpack.c.h.b16 %v1592
    %v2309 = vunpack.c.l.b16 %v1593
    %v2310 = vunpack.c.h.b16 %v1593
    %v2311 = vunpack.c.l.b16 %v1594
    %v2312 = vunpack.c.h.b16 %v1594
    %v2313 = vunpack.c.l.b16 %v1595
    %v2314 = vunpack.c.h.b16 %v1595
    %v2315 = vunpack.c.l.b16 %v1596
    %v2316 = vunpack.c.h.b16 %v1596
    %v2317 = vunpack.c.l.b16 %v1597
    %v2318 = vunpack.c.h.b16 %v1597
    %v2319 = vunpack.c.l.b16 %v1598
    %v2320 = vunpack.c.h.b16 %v1598
    %v2321 = vunpack.c.l.b16 %v1599
    %v2322 = vunpack.c.h.b16 %v1599
    %v2323 = vunpack.c.l.b16 %v1600
    %v2324 = vunpack.c.h.b16 %v1600
    %v2325 = vunpack.c.l.b16 %v1601
    %v2326 = vunpack.c.h.b16 %v1601
    %v2327 = vunpack.c.l.b16 %v1602
    %v2328 = vunpack.c.h.b16 %v1602
    %v2329 = vunpack.c.l.b16 %v1603
    %v2330 = vunpack.c.h.b16 %v1603
    %v2331 = vunpack.c.l.b16 %v1604
    %v2332 = vunpack.c.h.b16 %v1604
    %v2333 = vunpack.c.l.b16 %v1605
    %v2334 = vunpack.c.h.b16 %v1605
    %v2335 = vunpack.c.l.b16 %v1606
    %v2336 = vunpack.c.h.b16 %v1606
    %v2337 = vunpack.c.l.b16 %v1607
    %v2338 = vunpack.c.h.b16 %v1607
    %v2339 = vunpack.c.l.b16 %v1608
    %v2340 = vunpack.c.h.b16 %v1608
    %v2341 = vunpack.c.l.b16 %v1609
    %v2342 = vunpack.c.h.b16 %v1609
    %v2343 = vunpack.c.l.b16 %v1610
    %v2344 = vunpack.c.h.b16 %v1610
    %v2345 = vunpack.c.l.b16 %v1611
    %v2346 = vunpack.c.h.b16 %v1611
    %v2347 = vunpack.c.l.b16 %v1612
    %v2348 = vunpack.c.h.b16 %v1612
    %v2349 = vunpack.c.l.b16 %v1613
    %v2350 = vunpack.c.h.b16 %v1613
    %v2351 = vunpack.c.l.b16 %v1614
    %v2352 = vunpack.c.h.b16 %v1614
    %v2353 = vunpack.c.l.b16 %v1615
    %v2354 = vunpack.c.h.b16 %v1615
    %v2355 = vunpack.c.l.b16 %v1616
    %v2356 = vunpack.c.h.b16 %v1616
    %v2357 = vunpack.c.l.b16 %v1617
    %v2358 = vunpack.c.h.b16 %v1617
    %v2359 = vunpack.c.l.b16 %v1618
    %v2360 = vunpack.c.h.b16 %v1618
    %v2361 = vunpack.c.l.b16 %v1619
    %v2362 = vunpack.c.h.b16 %v1619
    %v2363 = vunpack.c.l.b16 %v1620
    %v2364 = vunpack.c.h.b16 %v1620
    %v2365 = vunpack.c.l.b16 %v1621
    %v2366 = vunpack.c.h.b16 %v1621
    %v2367 = vunpack.c.l.b16 %v1622
    %v2368 = vunpack.c.h.b16 %v1622
    %v2369 = vunpack.c.l.b16 %v1623
    %v2370 = vunpack.c.h.b16 %v1623
    %v2371 = vunpack.c.l.b16 %v1624
    %v2372 = vunpack.c.h.b16 %v1624
    %v2373 = vunpack.c.l.b16 %v1625
    %v2374 = vunpack.c.h.b16 %v1625
    %v2375 = vunpack.c.l.b16 %v1626
    %v2376 = vunpack.c.h.b16 %v1626
    %v2377 = vunpack.c.l.b16 %v1627
    %v2378 = vunpack.c.h.b16 %v1627
    %v2379 = vunpack.c.l.b16 %v1628
    %v2380 = vunpack.c.h.b16 %v1628
    %v2381 = vunpack.c.l.b16 %v1629
    %v2382 = vunpack.c.h.b16 %v1629
    %v2383 = vunpack.c.l.b16 %v1630
    %v2384 = vunpack.c.h.b16 %v1630
    %v2385 = vunpack.c.l.b16 %v1631
    %v2386 = vunpack.c.h.b16 %v1631
    %v2387 = vunpack.c.l.b16 %v1632
    %v2388 = vunpack.c.h.b16 %v1632
    %v2389 = vunpack.c.l.b16 %v1633
    %v2390 = vunpack.c.h.b16 %v1633
    %v2391 = vunpack.c.l.b16 %v1634
    %v2392 = vunpack.c.h.b16 %v1634
    %v2393 = vunpack.c.l.b16 %v1635
    %v2394 = vunpack.c.h.b16 %v1635
    %v2395 = vunpack.c.l.b16 %v1636
    %v2396 = vunpack.c.h.b16 %v1636
    %v2397 = vunpack.c.l.b16 %v1637
    %v2398 = vunpack.c.h.b16 %v1637
    %v2399 = vunpack.c.l.b16 %v1638
    %v2400 = vunpack.c.h.b16 %v1638
    %v2401 = vunpack.c.l.b16 %v1639
    %v2402 = vunpack.c.h.b16 %v1639
    %v2403 = vunpack.c.l.b16 %v1640
    %v2404 = vunpack.c.h.b16 %v1640
    %v2405 = vunpack.c.l.b16 %v1641
    %v2406 = vunpack.c.h.b16 %v1641
    %v2407 = vunpack.c.l.b16 %v1642
    %v2408 = vunpack.c.h.b16 %v1642
    %v2409 = vunpack.c.l.b16 %v1643
    %v2410 = vunpack.c.h.b16 %v1643
    %v2411 = vunpack.c.l.b16 %v1644
    %v2412 = vunpack.c.h.b16 %v1644
    %v2413 = vunpack.c.l.b16 %v1645
    %v2414 = vunpack.c.h.b16 %v1645
    %v2415 = vunpack.c.l.b16 %v1646
    %v2416 = vunpack.c.h.b16 %v1646
    %v2417 = vunpack.c.l.b16 %v1647
    %v2418 = vunpack.c.h.b16 %v1647
    %v2419 = vunpack.c.l.b16 %v1648
    %v2420 = vunpack.c.h.b16 %v1648
    %v2421 = vunpack.c.l.b16 %v1649
    %v2422 = vunpack.c.h.b16 %v1649
    %v2423 = vunpack.c.l.b16 %v1650
    %v2424 = vunpack.c.h.b16 %v1650
    %v2425 = vunpack.c.l.b16 %v1651
    %v2426 = vunpack.c.h.b16 %v1651
    %v2427 = vunpack.c.l.b16 %v1652
    %v2428 = vunpack.c.h.b16 %v1652
    %v2429 = vunpack.c.l.b16 %v1653
    %v2430 = vunpack.c.h.b16 %v1653
    %v2431 = vunpack.c.l.b16 %v1654
    %v2432 = vunpack.c.h.b16 %v1654
    %v2433 = vunpack.c.l.b16 %v1655
    %v2434 = vunpack.c.h.b16 %v1655
    %v2435 = vunpack.c.l.b16 %v1656
    %v2436 = vunpack.c.h.b16 %v1656
    %v2437 = vunpack.c.l.b16 %v1657
    %v2438 = vunpack.c.h.b16 %v1657
    %v2439 = vunpack.c.l.b16 %v1658
    %v2440 = vunpack.c.h.b16 %v1658
    %v2441 = vunpack.c.l.b16 %v1659
    %v2442 = vunpack.c.h.b16 %v1659
    %v2443 = vunpack.c.l.b16 %v1660
    %v2444 = vunpack.c.h.b16 %v1660
    %v2445 = vunpack.c.l.b16 %v1661
    %v2446 = vunpack.c.h.b16 %v1661
    %v2447 = vunpack.c.l.b16 %v1662
    %v2448 = vunpack.c.h.b16 %v1662
    %v2449 = vunpack.c.l.b16 %v1663
    %v2450 = vunpack.c.h.b16 %v1663
    %v2451 = vunpack.c.l.b16 %v1664
    %v2452 = vunpack.c.h.b16 %v1664
    %v2453 = vunpack.c.l.b16 %v1665
    %v2454 = vunpack.c.h.b16 %v1665
    %v2455 = vunpack.c.l.b16 %v1666
    %v2456 = vunpack.c.h.b16 %v1666
    %v2457 = vunpack.c.l.b16 %v1667
    %v2458 = vunpack.c.h.b16 %v1667
    %v2459 = vunpack.c.l.b16 %v1668
    %v2460 = vunpack.c.h.b16 %v1668
    %v2461 = vunpack.c.l.b16 %v1669
    %v2462 = vunpack.c.h.b16 %v1669
    %v2463 = vunpack.c.l.b16 %v1670
    %v2464 = vunpack.c.h.b16 %v1670
    %v2465 = vunpack.c.l.b16 %v1671
    %v2466 = vunpack.c.h.b16 %v1671
    %v2467 = vunpack.c.l.b16 %v1672
    %v2468 = vunpack.c.h.b16 %v1672
    %v2469 = vunpack.c.l.b16 %v1673
    %v2470 = vunpack.c.h.b16 %v1673
    %v2471 = vunpack.c.l.b16 %v1674
    %v2472 = vunpack.c.h.b16 %v1674
    %v2473 = vunpack.c.l.b16 %v1675
    %v2474 = vunpack.c.h.b16 %v1675
    %v2475 = vunpack.c.l.b16 %v1676
    %v2476 = vunpack.c.h.b16 %v1676
    %v2477 = vunpack.c.l.b16 %v1677
    %v2478 = vunpack.c.h.b16 %v1677
    %v2479 = vunpack.c.l.b16 %v1678
    %v2480 = vunpack.c.h.b16 %v1678
    %v2481 = vunpack.c.l.b16 %v1679
    %v2482 = vunpack.c.h.b16 %v1679
    %v2483 = vunpack.c.l.b16 %v1680
    %v2484 = vunpack.c.h.b16 %v1680
    %v2485 = vunpack.c.l.b16 %v1681
    %v2486 = vunpack.c.h.b16 %v1681
    %v2487 = vunpack.c.l.b16 %v1682
    %v2488 = vunpack.c.h.b16 %v1682
    %v2489 = vunpack.c.l.b16 %v1683
    %v2490 = vunpack.c.h.b16 %v1683
    %v2491 = vunpack.c.l.b16 %v1684
    %v2492 = vunpack.c.h.b16 %v1684
    %v2493 = vunpack.c.l.b16 %v1685
    %v2494 = vunpack.c.h.b16 %v1685
    %v2495 = vunpack.c.l.b16 %v1686
    %v2496 = vunpack.c.h.b16 %v1686
    %v2497 = vunpack.c.l.b16 %v1687
    %v2498 = vunpack.c.h.b16 %v1687
    %v2499 = vunpack.c.l.b16 %v1688
    %v2500 = vunpack.c.h.b16 %v1688
    %v2501 = vunpack.c.l.b16 %v1689
    %v2502 = vunpack.c.h.b16 %v1689
    %v2503 = vunpack.c.l.b16 %v1690
    %v2504 = vunpack.c.h.b16 %v1690
    %v2505 = vunpack.c.l.b16 %v1691
    %v2506 = vunpack.c.h.b16 %v1691
    %v2507 = vunpack.c.l.b16 %v1692
    %v2508 = vunpack.c.h.b16 %v1692
    %v2509 = vunpack.c.l.b16 %v1693
    %v2510 = vunpack.c.h.b16 %v1693
    %v2511 = vunpack.c.l.b16 %v1694
    %v2512 = vunpack.c.h.b16 %v1694
    %v2513 = vunpack.c.l.b16 %v1695
    %v2514 = vunpack.c.h.b16 %v1695
    %v2515 = vunpack.c.l.b16 %v1696
    %v2516 = vunpack.c.h.b16 %v1696
    %v2517 = vunpack.c.l.b16 %v1697
    %v2518 = vunpack.c.h.b16 %v1697
    %v2519 = vunpack.c.l.b16 %v1698
    %v2520 = vunpack.c.h.b16 %v1698
    %v2521 = vunpack.c.l.b16 %v1699
    %v2522 = vunpack.c.h.b16 %v1699
    %v2523 = vunpack.c.l.b16 %v1700
    %v2524 = vunpack.c.h.b16 %v1700
    %v2525 = vunpack.c.l.b16 %v1701
    %v2526 = vunpack.c.h.b16 %v1701
    %v2527 = vpack.c.b16 %v2019, %v2015
    %v2528 = vpack.c.b16 %v2020, %v2016
    %v2529 = vpack.c.b16 %v2021, %v2017
    %v2530 = vpack.c.b16 %v2022, %v2018
    %v2531 = vpack.c.b16 %v2027, %v2023
    %v2532 = vpack.c.b16 %v2028, %v2024
    %v2533 = vpack.c.b16 %v2029, %v2025
    %v2534 = vpack.c.b16 %v2030, %v2026
    %v2535 = vpack.c.b16 %v2035, %v2031
    %v2536 = vpack.c.b16 %v2036, %v2032
    %v2537 = vpack.c.b16 %v2037, %v2033
    %v2538 = vpack.c.b16 %v2038, %v2034
    %v2539 = vpack.c.b16 %v2043, %v2039
    %v2540 = vpack.c.b16 %v2044, %v2040
    %v2541 = vpack.c.b16 %v2045, %v2041
    %v2542 = vpack.c.b16 %v2046, %v2042
    %v2543 = vpack.c.b16 %v2051, %v2047
    %v2544 = vpack.c.b16 %v2052, %v2048
    %v2545 = vpack.c.b16 %v2053, %v2049
    %v2546 = vpack.c.b16 %v2054, %v2050
    %v2547 = vpack.c.b16 %v2059, %v2055
    %v2548 = vpack.c.b16 %v2060, %v2056
    %v2549 = vpack.c.b16 %v2061, %v2057
    %v2550 = vpack.c.b16 %v2062, %v2058
    %v2551 = vpack.c.b16 %v2067, %v2063
    %v2552 = vpack.c.b16 %v2068, %v2064
    %v2553 = vpack.c.b16 %v2069, %v2065
    %v2554 = vpack.c.b16 %v2070, %v2066
    %v2555 = vpack.c.b16 %v2075, %v2071
    %v2556 = vpack.c.b16 %v2076, %v2072
    %v2557 = vpack.c.b16 %v2077, %v2073
    %v2558 = vpack.c.b16 %v2078, %v2074
    %v2559 = vpack.c.b16 %v2083, %v2079
    %v2560 = vpack.c.b16 %v2084, %v2080
    %v2561 = vpack.c.b16 %v2085, %v2081
    %v2562 = vpack.c.b16 %v2086, %v2082
    %v2563 = vpack.c.b16 %v2091, %v2087
    %v2564 = vpack.c.b16 %v2092, %v2088
    %v2565 = vpack.c.b16 %v2093, %v2089
    %v2566 = vpack.c.b16 %v2094, %v2090
    %v2567 = vpack.c.b16 %v2099, %v2095
    %v2568 = vpack.c.b16 %v2100, %v2096
    %v2569 = vpack.c.b16 %v2101, %v2097
    %v2570 = vpack.c.b16 %v2102, %v2098
    %v2571 = vpack.c.b16 %v2107, %v2103
    %v2572 = vpack.c.b16 %v2108, %v2104
    %v2573 = vpack.c.b16 %v2109, %v2105
    %v2574 = vpack.c.b16 %v2110, %v2106
    %v2575 = vpack.c.b16 %v2115, %v2111
    %v2576 = vpack.c.b16 %v2116, %v2112
    %v2577 = vpack.c.b16 %v2117, %v2113
    %v2578 = vpack.c.b16 %v2118, %v2114
    %v2579 = vpack.c.b16 %v2123, %v2119
    %v2580 = vpack.c.b16 %v2124, %v2120
    %v2581 = vpack.c.b16 %v2125, %v2121
    %v2582 = vpack.c.b16 %v2126, %v2122
    %v2583 = vpack.c.b16 %v2131, %v2127
    %v2584 = vpack.c.b16 %v2132, %v2128
    %v2585 = vpack.c.b16 %v2133, %v2129
    %v2586 = vpack.c.b16 %v2134, %v2130
    %v2587 = vpack.c.b16 %v2139, %v2135
    %v2588 = vpack.c.b16 %v2140, %v2136
    %v2589 = vpack.c.b16 %v2141, %v2137
    %v2590 = vpack.c.b16 %v2142, %v2138
    %v2591 = vpack.c.b16 %v2147, %v2143
    %v2592 = vpack.c.b16 %v2148, %v2144
    %v2593 = vpack.c.b16 %v2149, %v2145
    %v2594 = vpack.c.b16 %v2150, %v2146
    %v2595 = vpack.c.b16 %v2155, %v2151
    %v2596 = vpack.c.b16 %v2156, %v2152
    %v2597 = vpack.c.b16 %v2157, %v2153
    %v2598 = vpack.c.b16 %v2158, %v2154
    %v2599 = vpack.c.b16 %v2163, %v2159
    %v2600 = vpack.c.b16 %v2164, %v2160
    %v2601 = vpack.c.b16 %v2165, %v2161
    %v2602 = vpack.c.b16 %v2166, %v2162
    %v2603 = vpack.c.b16 %v2171, %v2167
    %v2604 = vpack.c.b16 %v2172, %v2168
    %v2605 = vpack.c.b16 %v2173, %v2169
    %v2606 = vpack.c.b16 %v2174, %v2170
    %v2607 = vpack.c.b16 %v2179, %v2175
    %v2608 = vpack.c.b16 %v2180, %v2176
    %v2609 = vpack.c.b16 %v2181, %v2177
    %v2610 = vpack.c.b16 %v2182, %v2178
    %v2611 = vpack.c.b16 %v2187, %v2183
    %v2612 = vpack.c.b16 %v2188, %v2184
    %v2613 = vpack.c.b16 %v2189, %v2185
    %v2614 = vpack.c.b16 %v2190, %v2186
    %v2615 = vpack.c.b16 %v2195, %v2191
    %v2616 = vpack.c.b16 %v2196, %v2192
    %v2617 = vpack.c.b16 %v2197, %v2193
    %v2618 = vpack.c.b16 %v2198, %v2194
    %v2619 = vpack.c.b16 %v2203, %v2199
    %v2620 = vpack.c.b16 %v2204, %v2200
    %v2621 = vpack.c.b16 %v2205, %v2201
    %v2622 = vpack.c.b16 %v2206, %v2202
    %v2623 = vpack.c.b16 %v2211, %v2207
    %v2624 = vpack.c.b16 %v2212, %v2208
    %v2625 = vpack.c.b16 %v2213, %v2209
    %v2626 = vpack.c.b16 %v2214, %v2210
    %v2627 = vpack.c.b16 %v2219, %v2215
    %v2628 = vpack.c.b16 %v2220, %v2216
    %v2629 = vpack.c.b16 %v2221, %v2217
    %v2630 = vpack.c.b16 %v2222, %v2218
    %v2631 = vpack.c.b16 %v2227, %v2223
    %v2632 = vpack.c.b16 %v2228, %v2224
    %v2633 = vpack.c.b16 %v2229, %v2225
    %v2634 = vpack.c.b16 %v2230, %v2226
    %v2635 = vpack.c.b16 %v2235, %v2231
    %v2636 = vpack.c.b16 %v2236, %v2232
    %v2637 = vpack.c.b16 %v2237, %v2233
    %v2638 = vpack.c.b16 %v2238, %v2234
    %v2639 = vpack.c.b16 %v2243, %v2239
    %v2640 = vpack.c.b16 %v2244, %v2240
    %v2641 = vpack.c.b16 %v2245, %v2241
    %v2642 = vpack.c.b16 %v2246, %v2242
    %v2643 = vpack.c.b16 %v2251, %v2247
    %v2644 = vpack.c.b16 %v2252, %v2248
    %v2645 = vpack.c.b16 %v2253, %v2249
    %v2646 = vpack.c.b16 %v2254, %v2250
    %v2647 = vpack.c.b16 %v2259, %v2255
    %v2648 = vpack.c.b16 %v2260, %v2256
    %v2649 = vpack.c.b16 %v2261, %v2257
    %v2650 = vpack.c.b16 %v2262, %v2258
    %v2651 = vpack.c.b16 %v2267, %v2263
    %v2652 = vpack.c.b16 %v2268, %v2264
    %v2653 = vpack.c.b16 %v2269, %v2265
    %v2654 = vpack.c.b16 %v2270, %v2266
    %v2655 = vpack.c.b16 %v2275, %v2271
    %v2656 = vpack.c.b16 %v2276, %v2272
    %v2657 = vpack.c.b16 %v2277, %v2273
    %v2658 = vpack.c.b16 %v2278, %v2274
    %v2659 = vpack.c.b16 %v2283, %v2279
    %v2660 = vpack.c.b16 %v2284, %v2280
    %v2661 = vpack.c.b16 %v2285, %v2281
    %v2662 = vpack.c.b16 %v2286, %v2282
    %v2663 = vpack.c.b16 %v2291, %v2287
    %v2664 = vpack.c.b16 %v2292, %v2288
    %v2665 = vpack.c.b16 %v2293, %v2289
    %v2666 = vpack.c.b16 %v2294, %v2290
    %v2667 = vpack.c.b16 %v2299, %v2295
    %v2668 = vpack.c.b16 %v2300, %v2296
    %v2669 = vpack.c.b16 %v2301, %v2297
    %v2670 = vpack.c.b16 %v2302, %v2298
    %v2671 = vpack.c.b16 %v2307, %v2303
    %v2672 = vpack.c.b16 %v2308, %v2304
    %v2673 = vpack.c.b16 %v2309, %v2305
    %v2674 = vpack.c.b16 %v2310, %v2306
    %v2675 = vpack.c.b16 %v2315, %v2311
    %v2676 = vpack.c.b16 %v2316, %v2312
    %v2677 = vpack.c.b16 %v2317, %v2313
    %v2678 = vpack.c.b16 %v2318, %v2314
    %v2679 = vpack.c.b16 %v2323, %v2319
    %v2680 = vpack.c.b16 %v2324, %v2320
    %v2681 = vpack.c.b16 %v2325, %v2321
    %v2682 = vpack.c.b16 %v2326, %v2322
    %v2683 = vpack.c.b16 %v2331, %v2327
    %v2684 = vpack.c.b16 %v2332, %v2328
    %v2685 = vpack.c.b16 %v2333, %v2329
    %v2686 = vpack.c.b16 %v2334, %v2330
    %v2687 = vpack.c.b16 %v2339, %v2335
    %v2688 = vpack.c.b16 %v2340, %v2336
    %v2689 = vpack.c.b16 %v2341, %v2337
    %v2690 = vpack.c.b16 %v2342, %v2338
    %v2691 = vpack.c.b16 %v2347, %v2343
    %v2692 = vpack.c.b16 %v2348, %v2344
    %v2693 = vpack.c.b16 %v2349, %v2345
    %v2694 = vpack.c.b16 %v2350, %v2346
    %v2695 = vpack.c.b16 %v2355, %v2351
    %v2696 = vpack.c.b16 %v2356, %v2352
    %v2697 = vpack.c.b16 %v2357, %v2353
    %v2698 = vpack.c.b16 %v2358, %v2354
    %v2699 = vpack.c.b16 %v2363, %v2359
    %v2700 = vpack.c.b16 %v2364, %v2360
    %v2701 = vpack.c.b16 %v2365, %v2361
    %v2702 = vpack.c.b16 %v2366, %v2362
    %v2703 = vpack.c.b16 %v2371, %v2367
    %v2704 = vpack.c.b16 %v2372, %v2368
    %v2705 = vpack.c.b16 %v2373, %v2369
    %v2706 = vpack.c.b16 %v2374, %v2370
    %v2707 = vpack.c.b16 %v2379, %v2375
    %v2708 = vpack.c.b16 %v2380, %v2376
    %v2709 = vpack.c.b16 %v2381, %v2377
    %v2710 = vpack.c.b16 %v2382, %v2378
    %v2711 = vpack.c.b16 %v2387, %v2383
    %v2712 = vpack.c.b16 %v2388, %v2384
    %v2713 = vpack.c.b16 %v2389, %v2385
    %v2714 = vpack.c.b16 %v2390, %v2386
    %v2715 = vpack.c.b16 %v2395, %v2391
    %v2716 = vpack.c.b16 %v2396, %v2392
    %v2717 = vpack.c.b16 %v2397, %v2393
    %v2718 = vpack.c.b16 %v2398, %v2394
    %v2719 = vpack.c.b16 %v2403, %v2399
    %v2720 = vpack.c.b16 %v2404, %v2400
    %v2721 = vpack.c.b16 %v2405, %v2401
    %v2722 = vpack.c.b16 %v2406, %v2402
    %v2723 = vpack.c.b16 %v2411, %v2407
    %v2724 = vpack.c.b16 %v2412, %v2408
    %v2725 = vpack.c.b16 %v2413, %v2409
    %v2726 = vpack.c.b16 %v2414, %v2410
    %v2727 = vpack.c.b16 %v2419, %v2415
    %v2728 = vpack.c.b16 %v2420, %v2416
    %v2729 = vpack.c.b16 %v2421, %v2417
    %v2730 = vpack.c.b16 %v2422, %v2418
    %v2731 = vpack.c.b16 %v2427, %v2423
    %v2732 = vpack.c.b16 %v2428, %v2424
    %v2733 = vpack.c.b16 %v2429, %v2425
    %v2734 = vpack.c.b16 %v2430, %v2426
    %v2735 = vpack.c.b16 %v2435, %v2431
    %v2736 = vpack.c.b16 %v2436, %v2432
    %v2737 = vpack.c.b16 %v2437, %v2433
    %v2738 = vpack.c.b16 %v2438, %v2434
    %v2739 = vpack.c.b16 %v2443, %v2439
    %v2740 = vpack.c.b16 %v2444, %v2440
    %v2741 = vpack.c.b16 %v2445, %v2441
    %v2742 = vpack.c.b16 %v2446, %v2442
    %v2743 = vpack.c.b16 %v2451, %v2447
    %v2744 = vpack.c.b16 %v2452, %v2448
    %v2745 = vpack.c.b16 %v2453, %v2449
    %v2746 = vpack.c.b16 %v2454, %v2450
    %v2747 = vpack.c.b16 %v2459, %v2455
    %v2748 = vpack.c.b16 %v2460, %v2456
    %v2749 = vpack.c.b16 %v2461, %v2457
    %v2750 = vpack.c.b16 %v2462, %v2458
    %v2751 = vpack.c.b16 %v2467, %v2463
    %v2752 = vpack.c.b16 %v2468, %v2464
    %v2753 = vpack.c.b16 %v2469, %v2465
    %v2754 = vpack.c.b16 %v2470, %v2466
    %v2755 = vpack.c.b16 %v2475, %v2471
    %v2756 = vpack.c.b16 %v2476, %v2472
    %v2757 = vpack.c.b16 %v2477, %v2473
    %v2758 = vpack.c.b16 %v2478, %v2474
    %v2759 = vpack.c.b16 %v2483, %v2479
    %v2760 = vpack.c.b16 %v2484, %v2480
    %v2761 = vpack.c.b16 %v2485, %v2481
    %v2762 = vpack.c.b16 %v2486, %v2482
    %v2763 = vpack.c.b16 %v2491, %v2487
    %v2764 = vpack.c.b16 %v2492, %v2488
    %v2765 = vpack.c.b16 %v2493, %v2489
    %v2766 = vpack.c.b16 %v2494, %v2490
    %v2767 = vpack.c.b16 %v2499, %v2495
    %v2768 = vpack.c.b16 %v2500, %v2496
    %v2769 = vpack.c.b16 %v2501, %v2497
    %v2770 = vpack.c.b16 %v2502, %v2498
    %v2771 = vpack.c.b16 %v2507, %v2503
    %v2772 = vpack.c.b16 %v2508, %v2504
    %v2773 = vpack.c.b16 %v2509, %v2505
    %v2774 = vpack.c.b16 %v2510, %v2506
    %v2775 = vpack.c.b16 %v2515, %v2511
    %v2776 = vpack.c.b16 %v2516, %v2512
    %v2777 = vpack.c.b16 %v2517, %v2513
    %v2778 = vpack.c.b16 %v2518, %v2514
    %v2779 = vpack.c.b16 %v2523, %v2519
    %v2780 = vpack.c.b16 %v2524, %v2520
    %v2781 = vpack.c.b16 %v2525, %v2521
    %v2782 = vpack.c.b16 %v2526, %v2522
    %3039 = vmatprep.subr.bf16.mxu0 %v2556
    %3040 = vmatpush1.bf16.msra.mxu0 %v2555
    %3041 = vmatprep.subr.bf16.mxu0 %v2552
    %3042 = vmatpush1.bf16.msra.mxu0 %v2551
    %3043 = vmatprep.subr.bf16.mxu0 %v2548
    %3044 = vmatpush1.bf16.msra.mxu0 %v2547
    %3045 = vmatprep.subr.bf16.mxu0 %v2544
    %3046 = vmatpush1.bf16.msra.mxu0 %v2543
    %3047 = vmatprep.subr.bf16.mxu0 %v2540
    %3048 = vmatpush1.bf16.msra.mxu0 %v2539
    %3049 = vmatprep.subr.bf16.mxu0 %v2536
    %3050 = vmatpush1.bf16.msra.mxu0 %v2535
    %3051 = vmatprep.subr.bf16.mxu0 %v2532
    %3052 = vmatpush1.bf16.msra.mxu0 %v2531
    %3053 = vmatprep.subr.bf16.mxu0 %v2528
    %3054 = vmatpush1.bf16.msra.mxu0 %v2527
    %3055 = vmatprep.subr.bf16.mxu0 %v2588
    %3056 = vmatpush2.bf16.msra.mxu0 %v2587
    %3057 = vmatprep.subr.bf16.mxu0 %v2584
    %3058 = vmatpush2.bf16.msra.mxu0 %v2583
    %3059 = vmatprep.subr.bf16.mxu0 %v2580
    %3060 = vmatpush2.bf16.msra.mxu0 %v2579
    %3061 = vmatprep.subr.bf16.mxu0 %v2576
    %3062 = vmatpush2.bf16.msra.mxu0 %v2575
    %3063 = vmatprep.subr.bf16.mxu0 %v2572
    %3064 = vmatpush2.bf16.msra.mxu0 %v2571
    %3065 = vmatprep.subr.bf16.mxu0 %v2568
    %3066 = vmatpush2.bf16.msra.mxu0 %v2567
    %3067 = vmatprep.subr.bf16.mxu0 %v2564
    %3068 = vmatpush2.bf16.msra.mxu0 %v2563
    %3069 = vmatprep.subr.bf16.mxu0 %v2560
    %3070 = vmatpush2.bf16.msra.mxu0 %v2559
    %3071 = vmatprep.mubr.bf16.mxu0 %v1744
    %3072 = vmatmul.mubr.bf16.gmra.mxu0 %v1743
    %v3073 = vpop.f32.mrf.mxu0
    %v3074 = vadd.f32 0.0, %v3073
    %v3075 = vpop.f32.mrf.mxu0
    %v3076 = vadd.f32 0.0, %v3075
    %v3077 = vpop.f32.mrf.mxu0
    %v3078 = vpop.f32.mrf.mxu0
    %3079 = vdwg.mxu0
    %3080 = vmatprep.subr.bf16.mxu0 %v2620
    %3081 = vmatpush1.bf16.msra.mxu0 %v2619
    %3082 = vmatprep.subr.bf16.mxu0 %v2616
    %3083 = vmatpush1.bf16.msra.mxu0 %v2615
    %3084 = vmatprep.subr.bf16.mxu0 %v2612
    %3085 = vmatpush1.bf16.msra.mxu0 %v2611
    %3086 = vmatprep.subr.bf16.mxu0 %v2608
    %3087 = vmatpush1.bf16.msra.mxu0 %v2607
    %3088 = vmatprep.subr.bf16.mxu0 %v2604
    %3089 = vmatpush1.bf16.msra.mxu0 %v2603
    %3090 = vmatprep.subr.bf16.mxu0 %v2600
    %3091 = vmatpush1.bf16.msra.mxu0 %v2599
    %3092 = vmatprep.subr.bf16.mxu0 %v2596
    %3093 = vmatpush1.bf16.msra.mxu0 %v2595
    %3094 = vmatprep.subr.bf16.mxu0 %v2592
    %3095 = vmatpush1.bf16.msra.mxu0 %v2591
    %3096 = vmatprep.subr.bf16.mxu0 %v2652
    %3097 = vmatpush2.bf16.msra.mxu0 %v2651
    %3098 = vmatprep.subr.bf16.mxu0 %v2648
    %3099 = vmatpush2.bf16.msra.mxu0 %v2647
    %3100 = vmatprep.subr.bf16.mxu0 %v2644
    %3101 = vmatpush2.bf16.msra.mxu0 %v2643
    %3102 = vmatprep.subr.bf16.mxu0 %v2640
    %3103 = vmatpush2.bf16.msra.mxu0 %v2639
    %3104 = vmatprep.subr.bf16.mxu0 %v2636
    %3105 = vmatpush2.bf16.msra.mxu0 %v2635
    %3106 = vmatprep.subr.bf16.mxu0 %v2632
    %3107 = vmatpush2.bf16.msra.mxu0 %v2631
    %3108 = vmatprep.subr.bf16.mxu0 %v2628
    %3109 = vmatpush2.bf16.msra.mxu0 %v2627
    %3110 = vmatprep.subr.bf16.mxu0 %v2624
    %3111 = vmatpush2.bf16.msra.mxu0 %v2623
    %3112 = vmatprep.mubr.bf16.mxu0 %v1746
    %3113 = vmatmul.mubr.bf16.gmra.mxu0 %v1745
    %v3114 = vpop.f32.mrf.mxu0
    %v3115 = vadd.f32 %v3074, %v3114
    %v3116 = vpop.f32.mrf.mxu0
    %v3117 = vadd.f32 %v3076, %v3116
    %v3118 = vpop.f32.mrf.mxu0
    %v3119 = vpop.f32.mrf.mxu0
    %3120 = vdwg.mxu0
    %3121 = vmatprep.subr.bf16.mxu0 %v2684
    %3122 = vmatpush1.bf16.msra.mxu0 %v2683
    %3123 = vmatprep.subr.bf16.mxu0 %v2680
    %3124 = vmatpush1.bf16.msra.mxu0 %v2679
    %3125 = vmatprep.subr.bf16.mxu0 %v2676
    %3126 = vmatpush1.bf16.msra.mxu0 %v2675
    %3127 = vmatprep.subr.bf16.mxu0 %v2672
    %3128 = vmatpush1.bf16.msra.mxu0 %v2671
    %3129 = vmatprep.subr.bf16.mxu0 %v2668
    %3130 = vmatpush1.bf16.msra.mxu0 %v2667
    %3131 = vmatprep.subr.bf16.mxu0 %v2664
    %3132 = vmatpush1.bf16.msra.mxu0 %v2663
    %3133 = vmatprep.subr.bf16.mxu0 %v2660
    %3134 = vmatpush1.bf16.msra.mxu0 %v2659
    %3135 = vmatprep.subr.bf16.mxu0 %v2656
    %3136 = vmatpush1.bf16.msra.mxu0 %v2655
    %3137 = vmatprep.subr.bf16.mxu0 %v2716
    %3138 = vmatpush2.bf16.msra.mxu0 %v2715
    %3139 = vmatprep.subr.bf16.mxu0 %v2712
    %3140 = vmatpush2.bf16.msra.mxu0 %v2711
    %3141 = vmatprep.subr.bf16.mxu0 %v2708
    %3142 = vmatpush2.bf16.msra.mxu0 %v2707
    %3143 = vmatprep.subr.bf16.mxu0 %v2704
    %3144 = vmatpush2.bf16.msra.mxu0 %v2703
    %3145 = vmatprep.subr.bf16.mxu0 %v2700
    %3146 = vmatpush2.bf16.msra.mxu0 %v2699
    %3147 = vmatprep.subr.bf16.mxu0 %v2696
    %3148 = vmatpush2.bf16.msra.mxu0 %v2695
    %3149 = vmatprep.subr.bf16.mxu0 %v2692
    %3150 = vmatpush2.bf16.msra.mxu0 %v2691
    %3151 = vmatprep.subr.bf16.mxu0 %v2688
    %3152 = vmatpush2.bf16.msra.mxu0 %v2687
    %3153 = vmatprep.mubr.bf16.mxu0 %v1748
    %3154 = vmatmul.mubr.bf16.gmra.mxu0 %v1747
    %v3155 = vpop.f32.mrf.mxu0
    %v3156 = vadd.f32 %v3115, %v3155
    %v3157 = vpop.f32.mrf.mxu0
    %v3158 = vadd.f32 %v3117, %v3157
    %v3159 = vpop.f32.mrf.mxu0
    %v3160 = vpop.f32.mrf.mxu0
    %3161 = vdwg.mxu0
    %3162 = vmatprep.subr.bf16.mxu0 %v2748
    %3163 = vmatpush1.bf16.msra.mxu0 %v2747
    %3164 = vmatprep.subr.bf16.mxu0 %v2744
    %3165 = vmatpush1.bf16.msra.mxu0 %v2743
    %3166 = vmatprep.subr.bf16.mxu0 %v2740
    %3167 = vmatpush1.bf16.msra.mxu0 %v2739
    %3168 = vmatprep.subr.bf16.mxu0 %v2736
    %3169 = vmatpush1.bf16.msra.mxu0 %v2735
    %3170 = vmatprep.subr.bf16.mxu0 %v2732
    %3171 = vmatpush1.bf16.msra.mxu0 %v2731
    %3172 = vmatprep.subr.bf16.mxu0 %v2728
    %3173 = vmatpush1.bf16.msra.mxu0 %v2727
    %3174 = vmatprep.subr.bf16.mxu0 %v2724
    %3175 = vmatpush1.bf16.msra.mxu0 %v2723
    %3176 = vmatprep.subr.bf16.mxu0 %v2720
    %3177 = vmatpush1.bf16.msra.mxu0 %v2719
    %3178 = vmatprep.subr.bf16.mxu0 %v2780
    %3179 = vmatpush2.bf16.msra.mxu0 %v2779
    %3180 = vmatprep.subr.bf16.mxu0 %v2776
    %3181 = vmatpush2.bf16.msra.mxu0 %v2775
    %3182 = vmatprep.subr.bf16.mxu0 %v2772
    %3183 = vmatpush2.bf16.msra.mxu0 %v2771
    %3184 = vmatprep.subr.bf16.mxu0 %v2768
    %3185 = vmatpush2.bf16.msra.mxu0 %v2767
    %3186 = vmatprep.subr.bf16.mxu0 %v2764
    %3187 = vmatpush2.bf16.msra.mxu0 %v2763
    %3188 = vmatprep.subr.bf16.mxu0 %v2760
    %3189 = vmatpush2.bf16.msra.mxu0 %v2759
    %3190 = vmatprep.subr.bf16.mxu0 %v2756
    %3191 = vmatpush2.bf16.msra.mxu0 %v2755
    %3192 = vmatprep.subr.bf16.mxu0 %v2752
    %3193 = vmatpush2.bf16.msra.mxu0 %v2751
    %3194 = vmatprep.mubr.bf16.mxu0 %v1750
    %3195 = vmatmul.mubr.bf16.gmra.mxu0 %v1749
    %v3196 = vpop.f32.mrf.mxu0
    %v3197 = vadd.f32 %v3156, %v3196
    %v3198 = vpop.f32.mrf.mxu0
    %v3199 = vadd.f32 %v3158, %v3198
    %v3200 = vpop.f32.mrf.mxu0
    %v3201 = vpop.f32.mrf.mxu0
    %3202 = vdwg.mxu0
    %3203 = vmatprep.subr.bf16.mxu0 %v2558
    %3204 = vmatpush1.bf16.msra.mxu0 %v2557
    %3205 = vmatprep.subr.bf16.mxu0 %v2554
    %3206 = vmatpush1.bf16.msra.mxu0 %v2553
    %3207 = vmatprep.subr.bf16.mxu0 %v2550
    %3208 = vmatpush1.bf16.msra.mxu0 %v2549
    %3209 = vmatprep.subr.bf16.mxu0 %v2546
    %3210 = vmatpush1.bf16.msra.mxu0 %v2545
    %3211 = vmatprep.subr.bf16.mxu0 %v2542
    %3212 = vmatpush1.bf16.msra.mxu0 %v2541
    %3213 = vmatprep.subr.bf16.mxu0 %v2538
    %3214 = vmatpush1.bf16.msra.mxu0 %v2537
    %3215 = vmatprep.subr.bf16.mxu0 %v2534
    %3216 = vmatpush1.bf16.msra.mxu0 %v2533
    %3217 = vmatprep.subr.bf16.mxu0 %v2530
    %3218 = vmatpush1.bf16.msra.mxu0 %v2529
    %3219 = vmatprep.subr.bf16.mxu0 %v2590
    %3220 = vmatpush2.bf16.msra.mxu0 %v2589
    %3221 = vmatprep.subr.bf16.mxu0 %v2586
    %3222 = vmatpush2.bf16.msra.mxu0 %v2585
    %3223 = vmatprep.subr.bf16.mxu0 %v2582
    %3224 = vmatpush2.bf16.msra.mxu0 %v2581
    %3225 = vmatprep.subr.bf16.mxu0 %v2578
    %3226 = vmatpush2.bf16.msra.mxu0 %v2577
    %3227 = vmatprep.subr.bf16.mxu0 %v2574
    %3228 = vmatpush2.bf16.msra.mxu0 %v2573
    %3229 = vmatprep.subr.bf16.mxu0 %v2570
    %3230 = vmatpush2.bf16.msra.mxu0 %v2569
    %3231 = vmatprep.subr.bf16.mxu0 %v2566
    %3232 = vmatpush2.bf16.msra.mxu0 %v2565
    %3233 = vmatprep.subr.bf16.mxu0 %v2562
    %3234 = vmatpush2.bf16.msra.mxu0 %v2561
    %3235 = vmatprep.mubr.bf16.mxu0 %v1744
    %3236 = vmatmul.mubr.bf16.gmra.mxu0 %v1743
    %v3237 = vpop.f32.mrf.mxu0
    %v3238 = vadd.f32 0.0, %v3237
    %v3239 = vpop.f32.mrf.mxu0
    %v3240 = vadd.f32 0.0, %v3239
    %v3241 = vpop.f32.mrf.mxu0
    %v3242 = vpop.f32.mrf.mxu0
    %3243 = vdwg.mxu0
    %3244 = vmatprep.subr.bf16.mxu0 %v2622
    %3245 = vmatpush1.bf16.msra.mxu0 %v2621
    %3246 = vmatprep.subr.bf16.mxu0 %v2618
    %3247 = vmatpush1.bf16.msra.mxu0 %v2617
    %3248 = vmatprep.subr.bf16.mxu0 %v2614
    %3249 = vmatpush1.bf16.msra.mxu0 %v2613
    %3250 = vmatprep.subr.bf16.mxu0 %v2610
    %3251 = vmatpush1.bf16.msra.mxu0 %v2609
    %3252 = vmatprep.subr.bf16.mxu0 %v2606
    %3253 = vmatpush1.bf16.msra.mxu0 %v2605
    %3254 = vmatprep.subr.bf16.mxu0 %v2602
    %3255 = vmatpush1.bf16.msra.mxu0 %v2601
    %3256 = vmatprep.subr.bf16.mxu0 %v2598
    %3257 = vmatpush1.bf16.msra.mxu0 %v2597
    %3258 = vmatprep.subr.bf16.mxu0 %v2594
    %3259 = vmatpush1.bf16.msra.mxu0 %v2593
    %3260 = vmatprep.subr.bf16.mxu0 %v2654
    %3261 = vmatpush2.bf16.msra.mxu0 %v2653
    %3262 = vmatprep.subr.bf16.mxu0 %v2650
    %3263 = vmatpush2.bf16.msra.mxu0 %v2649
    %3264 = vmatprep.subr.bf16.mxu0 %v2646
    %3265 = vmatpush2.bf16.msra.mxu0 %v2645
    %3266 = vmatprep.subr.bf16.mxu0 %v2642
    %3267 = vmatpush2.bf16.msra.mxu0 %v2641
    %3268 = vmatprep.subr.bf16.mxu0 %v2638
    %3269 = vmatpush2.bf16.msra.mxu0 %v2637
    %3270 = vmatprep.subr.bf16.mxu0 %v2634
    %3271 = vmatpush2.bf16.msra.mxu0 %v2633
    %3272 = vmatprep.subr.bf16.mxu0 %v2630
    %3273 = vmatpush2.bf16.msra.mxu0 %v2629
    %3274 = vmatprep.subr.bf16.mxu0 %v2626
    %3275 = vmatpush2.bf16.msra.mxu0 %v2625
    %3276 = vmatprep.mubr.bf16.mxu0 %v1746
    %3277 = vmatmul.mubr.bf16.gmra.mxu0 %v1745
    %v3278 = vpop.f32.mrf.mxu0
    %v3279 = vadd.f32 %v3238, %v3278
    %v3280 = vpop.f32.mrf.mxu0
    %v3281 = vadd.f32 %v3240, %v3280
    %v3282 = vpop.f32.mrf.mxu0
    %v3283 = vpop.f32.mrf.mxu0
    %3284 = vdwg.mxu0
    %3285 = vmatprep.subr.bf16.mxu0 %v2686
    %3286 = vmatpush1.bf16.msra.mxu0 %v2685
    %3287 = vmatprep.subr.bf16.mxu0 %v2682
    %3288 = vmatpush1.bf16.msra.mxu0 %v2681
    %3289 = vmatprep.subr.bf16.mxu0 %v2678
    %3290 = vmatpush1.bf16.msra.mxu0 %v2677
    %3291 = vmatprep.subr.bf16.mxu0 %v2674
    %3292 = vmatpush1.bf16.msra.mxu0 %v2673
    %3293 = vmatprep.subr.bf16.mxu0 %v2670
    %3294 = vmatpush1.bf16.msra.mxu0 %v2669
    %3295 = vmatprep.subr.bf16.mxu0 %v2666
    %3296 = vmatpush1.bf16.msra.mxu0 %v2665
    %3297 = vmatprep.subr.bf16.mxu0 %v2662
    %3298 = vmatpush1.bf16.msra.mxu0 %v2661
    %3299 = vmatprep.subr.bf16.mxu0 %v2658
    %3300 = vmatpush1.bf16.msra.mxu0 %v2657
    %3301 = vmatprep.subr.bf16.mxu0 %v2718
    %3302 = vmatpush2.bf16.msra.mxu0 %v2717
    %3303 = vmatprep.subr.bf16.mxu0 %v2714
    %3304 = vmatpush2.bf16.msra.mxu0 %v2713
    %3305 = vmatprep.subr.bf16.mxu0 %v2710
    %3306 = vmatpush2.bf16.msra.mxu0 %v2709
    %3307 = vmatprep.subr.bf16.mxu0 %v2706
    %3308 = vmatpush2.bf16.msra.mxu0 %v2705
    %3309 = vmatprep.subr.bf16.mxu0 %v2702
    %3310 = vmatpush2.bf16.msra.mxu0 %v2701
    %3311 = vmatprep.subr.bf16.mxu0 %v2698
    %3312 = vmatpush2.bf16.msra.mxu0 %v2697
    %3313 = vmatprep.subr.bf16.mxu0 %v2694
    %3314 = vmatpush2.bf16.msra.mxu0 %v2693
    %3315 = vmatprep.subr.bf16.mxu0 %v2690
    %3316 = vmatpush2.bf16.msra.mxu0 %v2689
    %3317 = vmatprep.mubr.bf16.mxu0 %v1748
    %3318 = vmatmul.mubr.bf16.gmra.mxu0 %v1747
    %v3319 = vpop.f32.mrf.mxu0
    %v3320 = vadd.f32 %v3279, %v3319
    %v3321 = vpop.f32.mrf.mxu0
    %v3322 = vadd.f32 %v3281, %v3321
    %v3323 = vpop.f32.mrf.mxu0
    %v3324 = vpop.f32.mrf.mxu0
    %3325 = vdwg.mxu0
    %3326 = vmatprep.subr.bf16.mxu0 %v2750
    %3327 = vmatpush1.bf16.msra.mxu0 %v2749
    %3328 = vmatprep.subr.bf16.mxu0 %v2746
    %3329 = vmatpush1.bf16.msra.mxu0 %v2745
    %3330 = vmatprep.subr.bf16.mxu0 %v2742
    %3331 = vmatpush1.bf16.msra.mxu0 %v2741
    %3332 = vmatprep.subr.bf16.mxu0 %v2738
    %3333 = vmatpush1.bf16.msra.mxu0 %v2737
    %3334 = vmatprep.subr.bf16.mxu0 %v2734
    %3335 = vmatpush1.bf16.msra.mxu0 %v2733
    %3336 = vmatprep.subr.bf16.mxu0 %v2730
    %3337 = vmatpush1.bf16.msra.mxu0 %v2729
    %3338 = vmatprep.subr.bf16.mxu0 %v2726
    %3339 = vmatpush1.bf16.msra.mxu0 %v2725
    %3340 = vmatprep.subr.bf16.mxu0 %v2722
    %3341 = vmatpush1.bf16.msra.mxu0 %v2721
    %3342 = vmatprep.subr.bf16.mxu0 %v2782
    %3343 = vmatpush2.bf16.msra.mxu0 %v2781
    %3344 = vmatprep.subr.bf16.mxu0 %v2778
    %3345 = vmatpush2.bf16.msra.mxu0 %v2777
    %3346 = vmatprep.subr.bf16.mxu0 %v2774
    %3347 = vmatpush2.bf16.msra.mxu0 %v2773
    %3348 = vmatprep.subr.bf16.mxu0 %v2770
    %3349 = vmatpush2.bf16.msra.mxu0 %v2769
    %3350 = vmatprep.subr.bf16.mxu0 %v2766
    %3351 = vmatpush2.bf16.msra.mxu0 %v2765
    %3352 = vmatprep.subr.bf16.mxu0 %v2762
    %3353 = vmatpush2.bf16.msra.mxu0 %v2761
    %3354 = vmatprep.subr.bf16.mxu0 %v2758
    %3355 = vmatpush2.bf16.msra.mxu0 %v2757
    %3356 = vmatprep.subr.bf16.mxu0 %v2754
    %3357 = vmatpush2.bf16.msra.mxu0 %v2753
    %3358 = vmatprep.mubr.bf16.mxu0 %v1750
    %3359 = vmatmul.mubr.bf16.gmra.mxu0 %v1749
    %v3360 = vpop.f32.mrf.mxu0
    %v3361 = vadd.f32 %v3320, %v3360
    %v3362 = vpop.f32.mrf.mxu0
    %v3363 = vadd.f32 %v3322, %v3362
    %v3364 = vpop.f32.mrf.mxu0
    %v3365 = vpop.f32.mrf.mxu0
    %3366 = vdwg.mxu0
    %v3367 = vld [vmem:[#allocation20] sm:$0xf]
    %v3369 = vlaneseq
    %v3370 = vshrl.u32 %v3369, 7
    %v3371 = vsub.s32 0, %v3370
    %v3372 = vrot.slane %v3367, %v3371
    %v3373 = vlaneseq
    %v3374 = vshrl.u32 %v3373, 7
    %v3375 = vsub.s32 1, %v3374
    %v3376 = vrot.slane %v3367, %v3375
    %v3377 = vlaneseq
    %v3378 = vshrl.u32 %v3377, 7
    %v3379 = vsub.s32 2, %v3378
    %v3380 = vrot.slane %v3367, %v3379
    %v3381 = vlaneseq
    %v3382 = vshrl.u32 %v3381, 7
    %v3383 = vsub.s32 3, %v3382
    %v3384 = vrot.slane %v3367, %v3383
    %v3389 = vmul.f32 %v3197, %v3372
    %v3390 = vmul.f32 %v3199, %v3376
    %v3391 = vmul.f32 %v3361, %v3380
    %v3392 = vmul.f32 %v3363, %v3384
    %v3393 = vld [vmem:[#allocation22] sm:$0xf]
    %v3395 = vlaneseq
    %v3396 = vshrl.u32 %v3395, 7
    %v3397 = vsub.s32 0, %v3396
    %v3398 = vrot.slane %v3393, %v3397
    %v3399 = vlaneseq
    %v3400 = vshrl.u32 %v3399, 7
    %v3401 = vsub.s32 1, %v3400
    %v3402 = vrot.slane %v3393, %v3401
    %v3403 = vlaneseq
    %v3404 = vshrl.u32 %v3403, 7
    %v3405 = vsub.s32 2, %v3404
    %v3406 = vrot.slane %v3393, %v3405
    %v3407 = vlaneseq
    %v3408 = vshrl.u32 %v3407, 7
    %v3409 = vsub.s32 3, %v3408
    %v3410 = vrot.slane %v3393, %v3409
    %v3415 = vadd.f32 %v3389, %v3398
    %v3416 = vadd.f32 %v3390, %v3402
    %v3417 = vadd.f32 %v3391, %v3406
    %v3418 = vadd.f32 %v3392, %v3410
    %v3419 = vmax.f32 %v3415, 0.0
    %v3420 = vmax.f32 %v3416, 0.0
    %v3421 = vmax.f32 %v3417, 0.0
    %v3422 = vmax.f32 %v3418, 0.0
    %v3423 = vpack.c.bf16 %v3419, %v3419
    %v3424 = vpack.c.bf16 %v3420, %v3420
    %v3425 = vpack.c.bf16 %v3421, %v3421
    %v3426 = vpack.c.bf16 %v3422, %v3422
    %v3427 = vld [vmem:[#allocation23] sm:$0xff]
    %v3428 = vld [vmem:[#allocation23 + $0x8] sm:$0xff]
    %v3429 = vld [vmem:[#allocation23 + $0x10] sm:$0xff]
    %v3430 = vld [vmem:[#allocation23 + $0x18] sm:$0xff]
    %v3431 = vld [vmem:[#allocation23 + $0x20] sm:$0xff]
    %v3432 = vld [vmem:[#allocation23 + $0x28] sm:$0xff]
    %v3433 = vld [vmem:[#allocation23 + $0x30] sm:$0xff]
    %v3434 = vld [vmem:[#allocation23 + $0x38] sm:$0xff]
    %v3435 = vld [vmem:[#allocation23 + $0x40] sm:$0xff]
    %v3436 = vld [vmem:[#allocation23 + $0x48] sm:$0xff]
    %v3437 = vld [vmem:[#allocation23 + $0x50] sm:$0xff]
    %v3438 = vld [vmem:[#allocation23 + $0x58] sm:$0xff]
    %v3439 = vld [vmem:[#allocation23 + $0x60] sm:$0xff]
    %v3440 = vld [vmem:[#allocation23 + $0x68] sm:$0xff]
    %v3441 = vld [vmem:[#allocation23 + $0x70] sm:$0xff]
    %v3442 = vld [vmem:[#allocation23 + $0x78] sm:$0xff]
    %v3443 = vld [vmem:[#allocation23 + $0x80] sm:$0xff]
    %v3444 = vld [vmem:[#allocation23 + $0x88] sm:$0xff]
    %v3445 = vld [vmem:[#allocation23 + $0x90] sm:$0xff]
    %v3446 = vld [vmem:[#allocation23 + $0x98] sm:$0xff]
    %v3447 = vld [vmem:[#allocation23 + $0xa0] sm:$0xff]
    %v3448 = vld [vmem:[#allocation23 + $0xa8] sm:$0xff]
    %v3449 = vld [vmem:[#allocation23 + $0xb0] sm:$0xff]
    %v3450 = vld [vmem:[#allocation23 + $0xb8] sm:$0xff]
    %v3451 = vld [vmem:[#allocation23 + $0xc0] sm:$0xff]
    %v3452 = vld [vmem:[#allocation23 + $0xc8] sm:$0xff]
    %v3453 = vld [vmem:[#allocation23 + $0xd0] sm:$0xff]
    %v3454 = vld [vmem:[#allocation23 + $0xd8] sm:$0xff]
    %v3455 = vld [vmem:[#allocation23 + $0xe0] sm:$0xff]
    %v3456 = vld [vmem:[#allocation23 + $0xe8] sm:$0xff]
    %v3457 = vld [vmem:[#allocation23 + $0xf0] sm:$0xff]
    %v3458 = vld [vmem:[#allocation23 + $0xf8] sm:$0xff]
    %v3459 = vld [vmem:[#allocation23 + $0x100] sm:$0xff]
    %v3460 = vld [vmem:[#allocation23 + $0x108] sm:$0xff]
    %v3461 = vld [vmem:[#allocation23 + $0x110] sm:$0xff]
    %v3462 = vld [vmem:[#allocation23 + $0x118] sm:$0xff]
    %v3463 = vld [vmem:[#allocation23 + $0x120] sm:$0xff]
    %v3464 = vld [vmem:[#allocation23 + $0x128] sm:$0xff]
    %v3465 = vld [vmem:[#allocation23 + $0x130] sm:$0xff]
    %v3466 = vld [vmem:[#allocation23 + $0x138] sm:$0xff]
    %v3467 = vld [vmem:[#allocation23 + $0x140] sm:$0xff]
    %v3468 = vld [vmem:[#allocation23 + $0x148] sm:$0xff]
    %v3469 = vld [vmem:[#allocation23 + $0x150] sm:$0xff]
    %v3470 = vld [vmem:[#allocation23 + $0x158] sm:$0xff]
    %v3471 = vld [vmem:[#allocation23 + $0x160] sm:$0xff]
    %v3472 = vld [vmem:[#allocation23 + $0x168] sm:$0xff]
    %v3473 = vld [vmem:[#allocation23 + $0x170] sm:$0xff]
    %v3474 = vld [vmem:[#allocation23 + $0x178] sm:$0xff]
    %v3475 = vld [vmem:[#allocation23 + $0x180] sm:$0xff]
    %v3476 = vld [vmem:[#allocation23 + $0x188] sm:$0xff]
    %v3477 = vld [vmem:[#allocation23 + $0x190] sm:$0xff]
    %v3478 = vld [vmem:[#allocation23 + $0x198] sm:$0xff]
    %v3479 = vld [vmem:[#allocation23 + $0x1a0] sm:$0xff]
    %v3480 = vld [vmem:[#allocation23 + $0x1a8] sm:$0xff]
    %v3481 = vld [vmem:[#allocation23 + $0x1b0] sm:$0xff]
    %v3482 = vld [vmem:[#allocation23 + $0x1b8] sm:$0xff]
    %v3483 = vld [vmem:[#allocation23 + $0x1c0] sm:$0xff]
    %v3484 = vld [vmem:[#allocation23 + $0x1c8] sm:$0xff]
    %v3485 = vld [vmem:[#allocation23 + $0x1d0] sm:$0xff]
    %v3486 = vld [vmem:[#allocation23 + $0x1d8] sm:$0xff]
    %v3487 = vld [vmem:[#allocation23 + $0x1e0] sm:$0xff]
    %v3488 = vld [vmem:[#allocation23 + $0x1e8] sm:$0xff]
    %v3489 = vld [vmem:[#allocation23 + $0x1f0] sm:$0xff]
    %v3490 = vld [vmem:[#allocation23 + $0x1f8] sm:$0xff]
    %v3555 = vunpack.c.l.b16 %v3427
    %v3556 = vunpack.c.h.b16 %v3427
    %v3557 = vunpack.c.l.b16 %v3428
    %v3558 = vunpack.c.h.b16 %v3428
    %v3559 = vunpack.c.l.b16 %v3429
    %v3560 = vunpack.c.h.b16 %v3429
    %v3561 = vunpack.c.l.b16 %v3430
    %v3562 = vunpack.c.h.b16 %v3430
    %v3563 = vunpack.c.l.b16 %v3431
    %v3564 = vunpack.c.h.b16 %v3431
    %v3565 = vunpack.c.l.b16 %v3432
    %v3566 = vunpack.c.h.b16 %v3432
    %v3567 = vunpack.c.l.b16 %v3433
    %v3568 = vunpack.c.h.b16 %v3433
    %v3569 = vunpack.c.l.b16 %v3434
    %v3570 = vunpack.c.h.b16 %v3434
    %v3571 = vunpack.c.l.b16 %v3435
    %v3572 = vunpack.c.h.b16 %v3435
    %v3573 = vunpack.c.l.b16 %v3436
    %v3574 = vunpack.c.h.b16 %v3436
    %v3575 = vunpack.c.l.b16 %v3437
    %v3576 = vunpack.c.h.b16 %v3437
    %v3577 = vunpack.c.l.b16 %v3438
    %v3578 = vunpack.c.h.b16 %v3438
    %v3579 = vunpack.c.l.b16 %v3439
    %v3580 = vunpack.c.h.b16 %v3439
    %v3581 = vunpack.c.l.b16 %v3440
    %v3582 = vunpack.c.h.b16 %v3440
    %v3583 = vunpack.c.l.b16 %v3441
    %v3584 = vunpack.c.h.b16 %v3441
    %v3585 = vunpack.c.l.b16 %v3442
    %v3586 = vunpack.c.h.b16 %v3442
    %v3587 = vunpack.c.l.b16 %v3443
    %v3588 = vunpack.c.h.b16 %v3443
    %v3589 = vunpack.c.l.b16 %v3444
    %v3590 = vunpack.c.h.b16 %v3444
    %v3591 = vunpack.c.l.b16 %v3445
    %v3592 = vunpack.c.h.b16 %v3445
    %v3593 = vunpack.c.l.b16 %v3446
    %v3594 = vunpack.c.h.b16 %v3446
    %v3595 = vunpack.c.l.b16 %v3447
    %v3596 = vunpack.c.h.b16 %v3447
    %v3597 = vunpack.c.l.b16 %v3448
    %v3598 = vunpack.c.h.b16 %v3448
    %v3599 = vunpack.c.l.b16 %v3449
    %v3600 = vunpack.c.h.b16 %v3449
    %v3601 = vunpack.c.l.b16 %v3450
    %v3602 = vunpack.c.h.b16 %v3450
    %v3603 = vunpack.c.l.b16 %v3451
    %v3604 = vunpack.c.h.b16 %v3451
    %v3605 = vunpack.c.l.b16 %v3452
    %v3606 = vunpack.c.h.b16 %v3452
    %v3607 = vunpack.c.l.b16 %v3453
    %v3608 = vunpack.c.h.b16 %v3453
    %v3609 = vunpack.c.l.b16 %v3454
    %v3610 = vunpack.c.h.b16 %v3454
    %v3611 = vunpack.c.l.b16 %v3455
    %v3612 = vunpack.c.h.b16 %v3455
    %v3613 = vunpack.c.l.b16 %v3456
    %v3614 = vunpack.c.h.b16 %v3456
    %v3615 = vunpack.c.l.b16 %v3457
    %v3616 = vunpack.c.h.b16 %v3457
    %v3617 = vunpack.c.l.b16 %v3458
    %v3618 = vunpack.c.h.b16 %v3458
    %v3619 = vunpack.c.l.b16 %v3459
    %v3620 = vunpack.c.h.b16 %v3459
    %v3621 = vunpack.c.l.b16 %v3460
    %v3622 = vunpack.c.h.b16 %v3460
    %v3623 = vunpack.c.l.b16 %v3461
    %v3624 = vunpack.c.h.b16 %v3461
    %v3625 = vunpack.c.l.b16 %v3462
    %v3626 = vunpack.c.h.b16 %v3462
    %v3627 = vunpack.c.l.b16 %v3463
    %v3628 = vunpack.c.h.b16 %v3463
    %v3629 = vunpack.c.l.b16 %v3464
    %v3630 = vunpack.c.h.b16 %v3464
    %v3631 = vunpack.c.l.b16 %v3465
    %v3632 = vunpack.c.h.b16 %v3465
    %v3633 = vunpack.c.l.b16 %v3466
    %v3634 = vunpack.c.h.b16 %v3466
    %v3635 = vunpack.c.l.b16 %v3467
    %v3636 = vunpack.c.h.b16 %v3467
    %v3637 = vunpack.c.l.b16 %v3468
    %v3638 = vunpack.c.h.b16 %v3468
    %v3639 = vunpack.c.l.b16 %v3469
    %v3640 = vunpack.c.h.b16 %v3469
    %v3641 = vunpack.c.l.b16 %v3470
    %v3642 = vunpack.c.h.b16 %v3470
    %v3643 = vunpack.c.l.b16 %v3471
    %v3644 = vunpack.c.h.b16 %v3471
    %v3645 = vunpack.c.l.b16 %v3472
    %v3646 = vunpack.c.h.b16 %v3472
    %v3647 = vunpack.c.l.b16 %v3473
    %v3648 = vunpack.c.h.b16 %v3473
    %v3649 = vunpack.c.l.b16 %v3474
    %v3650 = vunpack.c.h.b16 %v3474
    %v3651 = vunpack.c.l.b16 %v3475
    %v3652 = vunpack.c.h.b16 %v3475
    %v3653 = vunpack.c.l.b16 %v3476
    %v3654 = vunpack.c.h.b16 %v3476
    %v3655 = vunpack.c.l.b16 %v3477
    %v3656 = vunpack.c.h.b16 %v3477
    %v3657 = vunpack.c.l.b16 %v3478
    %v3658 = vunpack.c.h.b16 %v3478
    %v3659 = vunpack.c.l.b16 %v3479
    %v3660 = vunpack.c.h.b16 %v3479
    %v3661 = vunpack.c.l.b16 %v3480
    %v3662 = vunpack.c.h.b16 %v3480
    %v3663 = vunpack.c.l.b16 %v3481
    %v3664 = vunpack.c.h.b16 %v3481
    %v3665 = vunpack.c.l.b16 %v3482
    %v3666 = vunpack.c.h.b16 %v3482
    %v3667 = vunpack.c.l.b16 %v3483
    %v3668 = vunpack.c.h.b16 %v3483
    %v3669 = vunpack.c.l.b16 %v3484
    %v3670 = vunpack.c.h.b16 %v3484
    %v3671 = vunpack.c.l.b16 %v3485
    %v3672 = vunpack.c.h.b16 %v3485
    %v3673 = vunpack.c.l.b16 %v3486
    %v3674 = vunpack.c.h.b16 %v3486
    %v3675 = vunpack.c.l.b16 %v3487
    %v3676 = vunpack.c.h.b16 %v3487
    %v3677 = vunpack.c.l.b16 %v3488
    %v3678 = vunpack.c.h.b16 %v3488
    %v3679 = vunpack.c.l.b16 %v3489
    %v3680 = vunpack.c.h.b16 %v3489
    %v3681 = vunpack.c.l.b16 %v3490
    %v3682 = vunpack.c.h.b16 %v3490
    %v3683 = vpack.c.b16 %v3557, %v3555
    %v3684 = vpack.c.b16 %v3558, %v3556
    %v3685 = vpack.c.b16 %v3561, %v3559
    %v3686 = vpack.c.b16 %v3562, %v3560
    %v3687 = vpack.c.b16 %v3565, %v3563
    %v3688 = vpack.c.b16 %v3566, %v3564
    %v3689 = vpack.c.b16 %v3569, %v3567
    %v3690 = vpack.c.b16 %v3570, %v3568
    %v3691 = vpack.c.b16 %v3573, %v3571
    %v3692 = vpack.c.b16 %v3574, %v3572
    %v3693 = vpack.c.b16 %v3577, %v3575
    %v3694 = vpack.c.b16 %v3578, %v3576
    %v3695 = vpack.c.b16 %v3581, %v3579
    %v3696 = vpack.c.b16 %v3582, %v3580
    %v3697 = vpack.c.b16 %v3585, %v3583
    %v3698 = vpack.c.b16 %v3586, %v3584
    %v3699 = vpack.c.b16 %v3589, %v3587
    %v3700 = vpack.c.b16 %v3590, %v3588
    %v3701 = vpack.c.b16 %v3593, %v3591
    %v3702 = vpack.c.b16 %v3594, %v3592
    %v3703 = vpack.c.b16 %v3597, %v3595
    %v3704 = vpack.c.b16 %v3598, %v3596
    %v3705 = vpack.c.b16 %v3601, %v3599
    %v3706 = vpack.c.b16 %v3602, %v3600
    %v3707 = vpack.c.b16 %v3605, %v3603
    %v3708 = vpack.c.b16 %v3606, %v3604
    %v3709 = vpack.c.b16 %v3609, %v3607
    %v3710 = vpack.c.b16 %v3610, %v3608
    %v3711 = vpack.c.b16 %v3613, %v3611
    %v3712 = vpack.c.b16 %v3614, %v3612
    %v3713 = vpack.c.b16 %v3617, %v3615
    %v3714 = vpack.c.b16 %v3618, %v3616
    %v3715 = vpack.c.b16 %v3621, %v3619
    %v3716 = vpack.c.b16 %v3622, %v3620
    %v3717 = vpack.c.b16 %v3625, %v3623
    %v3718 = vpack.c.b16 %v3626, %v3624
    %v3719 = vpack.c.b16 %v3629, %v3627
    %v3720 = vpack.c.b16 %v3630, %v3628
    %v3721 = vpack.c.b16 %v3633, %v3631
    %v3722 = vpack.c.b16 %v3634, %v3632
    %v3723 = vpack.c.b16 %v3637, %v3635
    %v3724 = vpack.c.b16 %v3638, %v3636
    %v3725 = vpack.c.b16 %v3641, %v3639
    %v3726 = vpack.c.b16 %v3642, %v3640
    %v3727 = vpack.c.b16 %v3645, %v3643
    %v3728 = vpack.c.b16 %v3646, %v3644
    %v3729 = vpack.c.b16 %v3649, %v3647
    %v3730 = vpack.c.b16 %v3650, %v3648
    %v3731 = vpack.c.b16 %v3653, %v3651
    %v3732 = vpack.c.b16 %v3654, %v3652
    %v3733 = vpack.c.b16 %v3657, %v3655
    %v3734 = vpack.c.b16 %v3658, %v3656
    %v3735 = vpack.c.b16 %v3661, %v3659
    %v3736 = vpack.c.b16 %v3662, %v3660
    %v3737 = vpack.c.b16 %v3665, %v3663
    %v3738 = vpack.c.b16 %v3666, %v3664
    %v3739 = vpack.c.b16 %v3669, %v3667
    %v3740 = vpack.c.b16 %v3670, %v3668
    %v3741 = vpack.c.b16 %v3673, %v3671
    %v3742 = vpack.c.b16 %v3674, %v3672
    %v3743 = vpack.c.b16 %v3677, %v3675
    %v3744 = vpack.c.b16 %v3678, %v3676
    %v3745 = vpack.c.b16 %v3681, %v3679
    %v3746 = vpack.c.b16 %v3682, %v3680
    %3811 = vmatprep.subr.bf16.mxu0 %v3698
    %3812 = vmatpush1.bf16.msra.mxu0 %v3697
    %3813 = vmatprep.subr.bf16.mxu0 %v3696
    %3814 = vmatpush1.bf16.msra.mxu0 %v3695
    %3815 = vmatprep.subr.bf16.mxu0 %v3694
    %3816 = vmatpush1.bf16.msra.mxu0 %v3693
    %3817 = vmatprep.subr.bf16.mxu0 %v3692
    %3818 = vmatpush1.bf16.msra.mxu0 %v3691
    %3819 = vmatprep.subr.bf16.mxu0 %v3690
    %3820 = vmatpush1.bf16.msra.mxu0 %v3689
    %3821 = vmatprep.subr.bf16.mxu0 %v3688
    %3822 = vmatpush1.bf16.msra.mxu0 %v3687
    %3823 = vmatprep.subr.bf16.mxu0 %v3686
    %3824 = vmatpush1.bf16.msra.mxu0 %v3685
    %3825 = vmatprep.subr.bf16.mxu0 %v3684
    %3826 = vmatpush1.bf16.msra.mxu0 %v3683
    %3827 = vmatprep.subr.bf16.mxu0 %v3714
    %3828 = vmatpush2.bf16.msra.mxu0 %v3713
    %3829 = vmatprep.subr.bf16.mxu0 %v3712
    %3830 = vmatpush2.bf16.msra.mxu0 %v3711
    %3831 = vmatprep.subr.bf16.mxu0 %v3710
    %3832 = vmatpush2.bf16.msra.mxu0 %v3709
    %3833 = vmatprep.subr.bf16.mxu0 %v3708
    %3834 = vmatpush2.bf16.msra.mxu0 %v3707
    %3835 = vmatprep.subr.bf16.mxu0 %v3706
    %3836 = vmatpush2.bf16.msra.mxu0 %v3705
    %3837 = vmatprep.subr.bf16.mxu0 %v3704
    %3838 = vmatpush2.bf16.msra.mxu0 %v3703
    %3839 = vmatprep.subr.bf16.mxu0 %v3702
    %3840 = vmatpush2.bf16.msra.mxu0 %v3701
    %3841 = vmatprep.subr.bf16.mxu0 %v3700
    %3842 = vmatpush2.bf16.msra.mxu0 %v3699
    %3843 = vmatprep.mubr.bf16.mxu0 %v3424
    %3844 = vmatmul.mubr.bf16.gmra.mxu0 %v3423
    %v3845 = vpop.f32.mrf.mxu0
    %v3846 = vadd.f32 0.0, %v3845
    %v3847 = vpop.f32.mrf.mxu0
    %v3848 = vadd.f32 0.0, %v3847
    %v3849 = vpop.f32.mrf.mxu0
    %v3850 = vpop.f32.mrf.mxu0
    %3851 = vdwg.mxu0
    %3852 = vmatprep.subr.bf16.mxu0 %v3730
    %3853 = vmatpush1.bf16.msra.mxu0 %v3729
    %3854 = vmatprep.subr.bf16.mxu0 %v3728
    %3855 = vmatpush1.bf16.msra.mxu0 %v3727
    %3856 = vmatprep.subr.bf16.mxu0 %v3726
    %3857 = vmatpush1.bf16.msra.mxu0 %v3725
    %3858 = vmatprep.subr.bf16.mxu0 %v3724
    %3859 = vmatpush1.bf16.msra.mxu0 %v3723
    %3860 = vmatprep.subr.bf16.mxu0 %v3722
    %3861 = vmatpush1.bf16.msra.mxu0 %v3721
    %3862 = vmatprep.subr.bf16.mxu0 %v3720
    %3863 = vmatpush1.bf16.msra.mxu0 %v3719
    %3864 = vmatprep.subr.bf16.mxu0 %v3718
    %3865 = vmatpush1.bf16.msra.mxu0 %v3717
    %3866 = vmatprep.subr.bf16.mxu0 %v3716
    %3867 = vmatpush1.bf16.msra.mxu0 %v3715
    %3868 = vmatprep.subr.bf16.mxu0 %v3746
    %3869 = vmatpush2.bf16.msra.mxu0 %v3745
    %3870 = vmatprep.subr.bf16.mxu0 %v3744
    %3871 = vmatpush2.bf16.msra.mxu0 %v3743
    %3872 = vmatprep.subr.bf16.mxu0 %v3742
    %3873 = vmatpush2.bf16.msra.mxu0 %v3741
    %3874 = vmatprep.subr.bf16.mxu0 %v3740
    %3875 = vmatpush2.bf16.msra.mxu0 %v3739
    %3876 = vmatprep.subr.bf16.mxu0 %v3738
    %3877 = vmatpush2.bf16.msra.mxu0 %v3737
    %3878 = vmatprep.subr.bf16.mxu0 %v3736
    %3879 = vmatpush2.bf16.msra.mxu0 %v3735
    %3880 = vmatprep.subr.bf16.mxu0 %v3734
    %3881 = vmatpush2.bf16.msra.mxu0 %v3733
    %3882 = vmatprep.subr.bf16.mxu0 %v3732
    %3883 = vmatpush2.bf16.msra.mxu0 %v3731
    %3884 = vmatprep.mubr.bf16.mxu0 %v3426
    %3885 = vmatmul.mubr.bf16.gmra.mxu0 %v3425
    %v3886 = vpop.f32.mrf.mxu0
    %v3887 = vadd.f32 %v3846, %v3886
    %v3888 = vpop.f32.mrf.mxu0
    %v3889 = vadd.f32 %v3848, %v3888
    %v3890 = vpop.f32.mrf.mxu0
    %v3891 = vpop.f32.mrf.mxu0
    %3892 = vdwg.mxu0
    %v3893 = vld [vmem:[#allocation25] sm:$0x3]
    %v3895 = vlaneseq
    %v3896 = vshrl.u32 %v3895, 7
    %v3897 = vsub.s32 0, %v3896
    %v3898 = vrot.slane %v3893, %v3897
    %v3899 = vlaneseq
    %v3900 = vshrl.u32 %v3899, 7
    %v3901 = vsub.s32 1, %v3900
    %v3902 = vrot.slane %v3893, %v3901
    %v3905 = vmul.f32 %v3887, %v3898
    %v3906 = vmul.f32 %v3889, %v3902
    %v3907 = vld [vmem:[#allocation26] sm:$0x3]
    %v3909 = vlaneseq
    %v3910 = vshrl.u32 %v3909, 7
    %v3911 = vsub.s32 0, %v3910
    %v3912 = vrot.slane %v3907, %v3911
    %v3913 = vlaneseq
    %v3914 = vshrl.u32 %v3913, 7
    %v3915 = vsub.s32 1, %v3914
    %v3916 = vrot.slane %v3907, %v3915
    %v3919 = vadd.f32 %v3905, %v3912
    %v3920 = vadd.f32 %v3906, %v3916
    %v3921 = vmax.f32 %v3919, 0.0
    %v3922 = vmax.f32 %v3920, 0.0
    %v3923 = vpack.c.bf16 %v3921, %v3921
    %v3924 = vpack.c.bf16 %v3922, %v3922
    %v3925 = vld [vmem:[#allocation28] sm:$0xff]
    %v3926 = vld [vmem:[#allocation28 + $0x8] sm:$0xff]
    %v3927 = vld [vmem:[#allocation28 + $0x10] sm:$0xff]
    %v3928 = vld [vmem:[#allocation28 + $0x18] sm:$0xff]
    %v3929 = vld [vmem:[#allocation28 + $0x20] sm:$0xff]
    %v3930 = vld [vmem:[#allocation28 + $0x28] sm:$0xff]
    %v3931 = vld [vmem:[#allocation28 + $0x30] sm:$0xff]
    %v3932 = vld [vmem:[#allocation28 + $0x38] sm:$0xff]
    %v3933 = vld [vmem:[#allocation28 + $0x40] sm:$0xff]
    %v3934 = vld [vmem:[#allocation28 + $0x48] sm:$0xff]
    %v3935 = vld [vmem:[#allocation28 + $0x50] sm:$0xff]
    %v3936 = vld [vmem:[#allocation28 + $0x58] sm:$0xff]
    %v3937 = vld [vmem:[#allocation28 + $0x60] sm:$0xff]
    %v3938 = vld [vmem:[#allocation28 + $0x68] sm:$0xff]
    %v3939 = vld [vmem:[#allocation28 + $0x70] sm:$0xff]
    %v3940 = vld [vmem:[#allocation28 + $0x78] sm:$0xff]
    %v3941 = vld [vmem:[#allocation28 + $0x80] sm:$0xff]
    %v3942 = vld [vmem:[#allocation28 + $0x88] sm:$0xff]
    %v3943 = vld [vmem:[#allocation28 + $0x90] sm:$0xff]
    %v3944 = vld [vmem:[#allocation28 + $0x98] sm:$0xff]
    %v3945 = vld [vmem:[#allocation28 + $0xa0] sm:$0xff]
    %v3946 = vld [vmem:[#allocation28 + $0xa8] sm:$0xff]
    %v3947 = vld [vmem:[#allocation28 + $0xb0] sm:$0xff]
    %v3948 = vld [vmem:[#allocation28 + $0xb8] sm:$0xff]
    %v3949 = vld [vmem:[#allocation28 + $0xc0] sm:$0xff]
    %v3950 = vld [vmem:[#allocation28 + $0xc8] sm:$0xff]
    %v3951 = vld [vmem:[#allocation28 + $0xd0] sm:$0xff]
    %v3952 = vld [vmem:[#allocation28 + $0xd8] sm:$0xff]
    %v3953 = vld [vmem:[#allocation28 + $0xe0] sm:$0xff]
    %v3954 = vld [vmem:[#allocation28 + $0xe8] sm:$0xff]
    %v3955 = vld [vmem:[#allocation28 + $0xf0] sm:$0xff]
    %v3956 = vld [vmem:[#allocation28 + $0xf8] sm:$0xff]
    %v3957 = vld [vmem:[#allocation28 + $0x100] sm:$0xff]
    %v3958 = vld [vmem:[#allocation28 + $0x108] sm:$0xff]
    %v3959 = vld [vmem:[#allocation28 + $0x110] sm:$0xff]
    %v3960 = vld [vmem:[#allocation28 + $0x118] sm:$0xff]
    %v3961 = vld [vmem:[#allocation28 + $0x120] sm:$0xff]
    %v3962 = vld [vmem:[#allocation28 + $0x128] sm:$0xff]
    %v3963 = vld [vmem:[#allocation28 + $0x130] sm:$0xff]
    %v3964 = vld [vmem:[#allocation28 + $0x138] sm:$0xff]
    %v3965 = vld [vmem:[#allocation28 + $0x140] sm:$0xff]
    %v3966 = vld [vmem:[#allocation28 + $0x148] sm:$0xff]
    %v3967 = vld [vmem:[#allocation28 + $0x150] sm:$0xff]
    %v3968 = vld [vmem:[#allocation28 + $0x158] sm:$0xff]
    %v3969 = vld [vmem:[#allocation28 + $0x160] sm:$0xff]
    %v3970 = vld [vmem:[#allocation28 + $0x168] sm:$0xff]
    %v3971 = vld [vmem:[#allocation28 + $0x170] sm:$0xff]
    %v3972 = vld [vmem:[#allocation28 + $0x178] sm:$0xff]
    %v3973 = vld [vmem:[#allocation28 + $0x180] sm:$0xff]
    %v3974 = vld [vmem:[#allocation28 + $0x188] sm:$0xff]
    %v3975 = vld [vmem:[#allocation28 + $0x190] sm:$0xff]
    %v3976 = vld [vmem:[#allocation28 + $0x198] sm:$0xff]
    %v3977 = vld [vmem:[#allocation28 + $0x1a0] sm:$0xff]
    %v3978 = vld [vmem:[#allocation28 + $0x1a8] sm:$0xff]
    %v3979 = vld [vmem:[#allocation28 + $0x1b0] sm:$0xff]
    %v3980 = vld [vmem:[#allocation28 + $0x1b8] sm:$0xff]
    %v3981 = vld [vmem:[#allocation28 + $0x1c0] sm:$0xff]
    %v3982 = vld [vmem:[#allocation28 + $0x1c8] sm:$0xff]
    %v3983 = vld [vmem:[#allocation28 + $0x1d0] sm:$0xff]
    %v3984 = vld [vmem:[#allocation28 + $0x1d8] sm:$0xff]
    %v3985 = vld [vmem:[#allocation28 + $0x1e0] sm:$0xff]
    %v3986 = vld [vmem:[#allocation28 + $0x1e8] sm:$0xff]
    %v3987 = vld [vmem:[#allocation28 + $0x1f0] sm:$0xff]
    %v3988 = vld [vmem:[#allocation28 + $0x1f8] sm:$0xff]
    %v3989 = vld [vmem:[#allocation28 + $0x200] sm:$0xff]
    %v3990 = vld [vmem:[#allocation28 + $0x208] sm:$0xff]
    %v3991 = vld [vmem:[#allocation28 + $0x210] sm:$0xff]
    %v3992 = vld [vmem:[#allocation28 + $0x218] sm:$0xff]
    %v3993 = vld [vmem:[#allocation28 + $0x220] sm:$0xff]
    %v3994 = vld [vmem:[#allocation28 + $0x228] sm:$0xff]
    %v3995 = vld [vmem:[#allocation28 + $0x230] sm:$0xff]
    %v3996 = vld [vmem:[#allocation28 + $0x238] sm:$0xff]
    %v3997 = vld [vmem:[#allocation28 + $0x240] sm:$0xff]
    %v3998 = vld [vmem:[#allocation28 + $0x248] sm:$0xff]
    %v3999 = vld [vmem:[#allocation28 + $0x250] sm:$0xff]
    %v4000 = vld [vmem:[#allocation28 + $0x258] sm:$0xff]
    %v4001 = vld [vmem:[#allocation28 + $0x260] sm:$0xff]
    %v4002 = vld [vmem:[#allocation28 + $0x268] sm:$0xff]
    %v4003 = vld [vmem:[#allocation28 + $0x270] sm:$0xff]
    %v4004 = vld [vmem:[#allocation28 + $0x278] sm:$0xff]
    %v4005 = vld [vmem:[#allocation28 + $0x280] sm:$0xff]
    %v4006 = vld [vmem:[#allocation28 + $0x288] sm:$0xff]
    %v4007 = vld [vmem:[#allocation28 + $0x290] sm:$0xff]
    %v4008 = vld [vmem:[#allocation28 + $0x298] sm:$0xff]
    %v4009 = vld [vmem:[#allocation28 + $0x2a0] sm:$0xff]
    %v4010 = vld [vmem:[#allocation28 + $0x2a8] sm:$0xff]
    %v4011 = vld [vmem:[#allocation28 + $0x2b0] sm:$0xff]
    %v4012 = vld [vmem:[#allocation28 + $0x2b8] sm:$0xff]
    %v4013 = vld [vmem:[#allocation28 + $0x2c0] sm:$0xff]
    %v4014 = vld [vmem:[#allocation28 + $0x2c8] sm:$0xff]
    %v4015 = vld [vmem:[#allocation28 + $0x2d0] sm:$0xff]
    %v4016 = vld [vmem:[#allocation28 + $0x2d8] sm:$0xff]
    %v4017 = vld [vmem:[#allocation28 + $0x2e0] sm:$0xff]
    %v4018 = vld [vmem:[#allocation28 + $0x2e8] sm:$0xff]
    %v4019 = vld [vmem:[#allocation28 + $0x2f0] sm:$0xff]
    %v4020 = vld [vmem:[#allocation28 + $0x2f8] sm:$0xff]
    %v4021 = vld [vmem:[#allocation28 + $0x300] sm:$0xff]
    %v4022 = vld [vmem:[#allocation28 + $0x308] sm:$0xff]
    %v4023 = vld [vmem:[#allocation28 + $0x310] sm:$0xff]
    %v4024 = vld [vmem:[#allocation28 + $0x318] sm:$0xff]
    %v4025 = vld [vmem:[#allocation28 + $0x320] sm:$0xff]
    %v4026 = vld [vmem:[#allocation28 + $0x328] sm:$0xff]
    %v4027 = vld [vmem:[#allocation28 + $0x330] sm:$0xff]
    %v4028 = vld [vmem:[#allocation28 + $0x338] sm:$0xff]
    %v4029 = vld [vmem:[#allocation28 + $0x340] sm:$0xff]
    %v4030 = vld [vmem:[#allocation28 + $0x348] sm:$0xff]
    %v4031 = vld [vmem:[#allocation28 + $0x350] sm:$0xff]
    %v4032 = vld [vmem:[#allocation28 + $0x358] sm:$0xff]
    %v4033 = vld [vmem:[#allocation28 + $0x360] sm:$0xff]
    %v4034 = vld [vmem:[#allocation28 + $0x368] sm:$0xff]
    %v4035 = vld [vmem:[#allocation28 + $0x370] sm:$0xff]
    %v4036 = vld [vmem:[#allocation28 + $0x378] sm:$0xff]
    %v4037 = vld [vmem:[#allocation28 + $0x380] sm:$0xff]
    %v4038 = vld [vmem:[#allocation28 + $0x388] sm:$0xff]
    %v4039 = vld [vmem:[#allocation28 + $0x390] sm:$0xff]
    %v4040 = vld [vmem:[#allocation28 + $0x398] sm:$0xff]
    %v4041 = vld [vmem:[#allocation28 + $0x3a0] sm:$0xff]
    %v4042 = vld [vmem:[#allocation28 + $0x3a8] sm:$0xff]
    %v4043 = vld [vmem:[#allocation28 + $0x3b0] sm:$0xff]
    %v4044 = vld [vmem:[#allocation28 + $0x3b8] sm:$0xff]
    %v4045 = vld [vmem:[#allocation28 + $0x3c0] sm:$0xff]
    %v4046 = vld [vmem:[#allocation28 + $0x3c8] sm:$0xff]
    %v4047 = vld [vmem:[#allocation28 + $0x3d0] sm:$0xff]
    %v4048 = vld [vmem:[#allocation28 + $0x3d8] sm:$0xff]
    %v4049 = vld [vmem:[#allocation28 + $0x3e0] sm:$0xff]
    %v4050 = vld [vmem:[#allocation28 + $0x3e8] sm:$0xff]
    %v4051 = vld [vmem:[#allocation28 + $0x3f0] sm:$0xff]
    %v4052 = vld [vmem:[#allocation28 + $0x3f8] sm:$0xff]
    %v4053 = vld [vmem:[#allocation28 + $0x400] sm:$0xff]
    %v4054 = vld [vmem:[#allocation28 + $0x408] sm:$0xff]
    %v4055 = vld [vmem:[#allocation28 + $0x410] sm:$0xff]
    %v4056 = vld [vmem:[#allocation28 + $0x418] sm:$0xff]
    %v4057 = vld [vmem:[#allocation28 + $0x420] sm:$0xff]
    %v4058 = vld [vmem:[#allocation28 + $0x428] sm:$0xff]
    %v4059 = vld [vmem:[#allocation28 + $0x430] sm:$0xff]
    %v4060 = vld [vmem:[#allocation28 + $0x438] sm:$0xff]
    %v4061 = vld [vmem:[#allocation28 + $0x440] sm:$0xff]
    %v4062 = vld [vmem:[#allocation28 + $0x448] sm:$0xff]
    %v4063 = vld [vmem:[#allocation28 + $0x450] sm:$0xff]
    %v4064 = vld [vmem:[#allocation28 + $0x458] sm:$0xff]
    %v4065 = vld [vmem:[#allocation28 + $0x460] sm:$0xff]
    %v4066 = vld [vmem:[#allocation28 + $0x468] sm:$0xff]
    %v4067 = vld [vmem:[#allocation28 + $0x470] sm:$0xff]
    %v4068 = vld [vmem:[#allocation28 + $0x478] sm:$0xff]
    %v4069 = vld [vmem:[#allocation28 + $0x480] sm:$0xff]
    %v4070 = vld [vmem:[#allocation28 + $0x488] sm:$0xff]
    %v4071 = vld [vmem:[#allocation28 + $0x490] sm:$0xff]
    %v4072 = vld [vmem:[#allocation28 + $0x498] sm:$0xff]
    %v4073 = vld [vmem:[#allocation28 + $0x4a0] sm:$0xff]
    %v4074 = vld [vmem:[#allocation28 + $0x4a8] sm:$0xff]
    %v4075 = vld [vmem:[#allocation28 + $0x4b0] sm:$0xff]
    %v4076 = vld [vmem:[#allocation28 + $0x4b8] sm:$0xff]
    %v4077 = vld [vmem:[#allocation28 + $0x4c0] sm:$0xff]
    %v4078 = vld [vmem:[#allocation28 + $0x4c8] sm:$0xff]
    %v4079 = vld [vmem:[#allocation28 + $0x4d0] sm:$0xff]
    %v4080 = vld [vmem:[#allocation28 + $0x4d8] sm:$0xff]
    %v4081 = vld [vmem:[#allocation28 + $0x4e0] sm:$0xff]
    %v4082 = vld [vmem:[#allocation28 + $0x4e8] sm:$0xff]
    %v4083 = vld [vmem:[#allocation28 + $0x4f0] sm:$0xff]
    %v4084 = vld [vmem:[#allocation28 + $0x4f8] sm:$0xff]
    %v4085 = vld [vmem:[#allocation28 + $0x500] sm:$0xff]
    %v4086 = vld [vmem:[#allocation28 + $0x508] sm:$0xff]
    %v4087 = vld [vmem:[#allocation28 + $0x510] sm:$0xff]
    %v4088 = vld [vmem:[#allocation28 + $0x518] sm:$0xff]
    %v4089 = vld [vmem:[#allocation28 + $0x520] sm:$0xff]
    %v4090 = vld [vmem:[#allocation28 + $0x528] sm:$0xff]
    %v4091 = vld [vmem:[#allocation28 + $0x530] sm:$0xff]
    %v4092 = vld [vmem:[#allocation28 + $0x538] sm:$0xff]
    %v4093 = vld [vmem:[#allocation28 + $0x540] sm:$0xff]
    %v4094 = vld [vmem:[#allocation28 + $0x548] sm:$0xff]
    %v4095 = vld [vmem:[#allocation28 + $0x550] sm:$0xff]
    %v4096 = vld [vmem:[#allocation28 + $0x558] sm:$0xff]
    %v4097 = vld [vmem:[#allocation28 + $0x560] sm:$0xff]
    %v4098 = vld [vmem:[#allocation28 + $0x568] sm:$0xff]
    %v4099 = vld [vmem:[#allocation28 + $0x570] sm:$0xff]
    %v4100 = vld [vmem:[#allocation28 + $0x578] sm:$0xff]
    %v4101 = vld [vmem:[#allocation28 + $0x580] sm:$0xff]
    %v4102 = vld [vmem:[#allocation28 + $0x588] sm:$0xff]
    %v4103 = vld [vmem:[#allocation28 + $0x590] sm:$0xff]
    %v4104 = vld [vmem:[#allocation28 + $0x598] sm:$0xff]
    %v4105 = vld [vmem:[#allocation28 + $0x5a0] sm:$0xff]
    %v4106 = vld [vmem:[#allocation28 + $0x5a8] sm:$0xff]
    %v4107 = vld [vmem:[#allocation28 + $0x5b0] sm:$0xff]
    %v4108 = vld [vmem:[#allocation28 + $0x5b8] sm:$0xff]
    %v4109 = vld [vmem:[#allocation28 + $0x5c0] sm:$0xff]
    %v4110 = vld [vmem:[#allocation28 + $0x5c8] sm:$0xff]
    %v4111 = vld [vmem:[#allocation28 + $0x5d0] sm:$0xff]
    %v4112 = vld [vmem:[#allocation28 + $0x5d8] sm:$0xff]
    %v4113 = vld [vmem:[#allocation28 + $0x5e0] sm:$0xff]
    %v4114 = vld [vmem:[#allocation28 + $0x5e8] sm:$0xff]
    %v4115 = vld [vmem:[#allocation28 + $0x5f0] sm:$0xff]
    %v4116 = vld [vmem:[#allocation28 + $0x5f8] sm:$0xff]
    %v4117 = vld [vmem:[#allocation28 + $0x600] sm:$0xff]
    %v4118 = vld [vmem:[#allocation28 + $0x608] sm:$0xff]
    %v4119 = vld [vmem:[#allocation28 + $0x610] sm:$0xff]
    %v4120 = vld [vmem:[#allocation28 + $0x618] sm:$0xff]
    %v4121 = vld [vmem:[#allocation28 + $0x620] sm:$0xff]
    %v4122 = vld [vmem:[#allocation28 + $0x628] sm:$0xff]
    %v4123 = vld [vmem:[#allocation28 + $0x630] sm:$0xff]
    %v4124 = vld [vmem:[#allocation28 + $0x638] sm:$0xff]
    %v4125 = vld [vmem:[#allocation28 + $0x640] sm:$0xff]
    %v4126 = vld [vmem:[#allocation28 + $0x648] sm:$0xff]
    %v4127 = vld [vmem:[#allocation28 + $0x650] sm:$0xff]
    %v4128 = vld [vmem:[#allocation28 + $0x658] sm:$0xff]
    %v4129 = vld [vmem:[#allocation28 + $0x660] sm:$0xff]
    %v4130 = vld [vmem:[#allocation28 + $0x668] sm:$0xff]
    %v4131 = vld [vmem:[#allocation28 + $0x670] sm:$0xff]
    %v4132 = vld [vmem:[#allocation28 + $0x678] sm:$0xff]
    %v4133 = vld [vmem:[#allocation28 + $0x680] sm:$0xff]
    %v4134 = vld [vmem:[#allocation28 + $0x688] sm:$0xff]
    %v4135 = vld [vmem:[#allocation28 + $0x690] sm:$0xff]
    %v4136 = vld [vmem:[#allocation28 + $0x698] sm:$0xff]
    %v4137 = vld [vmem:[#allocation28 + $0x6a0] sm:$0xff]
    %v4138 = vld [vmem:[#allocation28 + $0x6a8] sm:$0xff]
    %v4139 = vld [vmem:[#allocation28 + $0x6b0] sm:$0xff]
    %v4140 = vld [vmem:[#allocation28 + $0x6b8] sm:$0xff]
    %v4141 = vld [vmem:[#allocation28 + $0x6c0] sm:$0xff]
    %v4142 = vld [vmem:[#allocation28 + $0x6c8] sm:$0xff]
    %v4143 = vld [vmem:[#allocation28 + $0x6d0] sm:$0xff]
    %v4144 = vld [vmem:[#allocation28 + $0x6d8] sm:$0xff]
    %v4145 = vld [vmem:[#allocation28 + $0x6e0] sm:$0xff]
    %v4146 = vld [vmem:[#allocation28 + $0x6e8] sm:$0xff]
    %v4147 = vld [vmem:[#allocation28 + $0x6f0] sm:$0xff]
    %v4148 = vld [vmem:[#allocation28 + $0x6f8] sm:$0xff]
    %v4149 = vld [vmem:[#allocation28 + $0x700] sm:$0xff]
    %v4150 = vld [vmem:[#allocation28 + $0x708] sm:$0xff]
    %v4151 = vld [vmem:[#allocation28 + $0x710] sm:$0xff]
    %v4152 = vld [vmem:[#allocation28 + $0x718] sm:$0xff]
    %v4153 = vld [vmem:[#allocation28 + $0x720] sm:$0xff]
    %v4154 = vld [vmem:[#allocation28 + $0x728] sm:$0xff]
    %v4155 = vld [vmem:[#allocation28 + $0x730] sm:$0xff]
    %v4156 = vld [vmem:[#allocation28 + $0x738] sm:$0xff]
    %v4157 = vld [vmem:[#allocation28 + $0x740] sm:$0xff]
    %v4158 = vld [vmem:[#allocation28 + $0x748] sm:$0xff]
    %v4159 = vld [vmem:[#allocation28 + $0x750] sm:$0xff]
    %v4160 = vld [vmem:[#allocation28 + $0x758] sm:$0xff]
    %v4161 = vld [vmem:[#allocation28 + $0x760] sm:$0xff]
    %v4162 = vld [vmem:[#allocation28 + $0x768] sm:$0xff]
    %v4163 = vld [vmem:[#allocation28 + $0x770] sm:$0xff]
    %v4164 = vld [vmem:[#allocation28 + $0x778] sm:$0xff]
    %v4165 = vld [vmem:[#allocation28 + $0x780] sm:$0xff]
    %v4166 = vld [vmem:[#allocation28 + $0x788] sm:$0xff]
    %v4167 = vld [vmem:[#allocation28 + $0x790] sm:$0xff]
    %v4168 = vld [vmem:[#allocation28 + $0x798] sm:$0xff]
    %v4169 = vld [vmem:[#allocation28 + $0x7a0] sm:$0xff]
    %v4170 = vld [vmem:[#allocation28 + $0x7a8] sm:$0xff]
    %v4171 = vld [vmem:[#allocation28 + $0x7b0] sm:$0xff]
    %v4172 = vld [vmem:[#allocation28 + $0x7b8] sm:$0xff]
    %v4173 = vld [vmem:[#allocation28 + $0x7c0] sm:$0xff]
    %v4174 = vld [vmem:[#allocation28 + $0x7c8] sm:$0xff]
    %v4175 = vld [vmem:[#allocation28 + $0x7d0] sm:$0xff]
    %v4176 = vld [vmem:[#allocation28 + $0x7d8] sm:$0xff]
    %v4177 = vld [vmem:[#allocation28 + $0x7e0] sm:$0xff]
    %v4178 = vld [vmem:[#allocation28 + $0x7e8] sm:$0xff]
    %v4179 = vld [vmem:[#allocation28 + $0x7f0] sm:$0xff]
    %v4180 = vld [vmem:[#allocation28 + $0x7f8] sm:$0xff]
    %v4181 = vld [vmem:[#allocation28 + $0x800] sm:$0xff]
    %v4182 = vld [vmem:[#allocation28 + $0x808] sm:$0xff]
    %v4183 = vld [vmem:[#allocation28 + $0x810] sm:$0xff]
    %v4184 = vld [vmem:[#allocation28 + $0x818] sm:$0xff]
    %v4185 = vld [vmem:[#allocation28 + $0x820] sm:$0xff]
    %v4186 = vld [vmem:[#allocation28 + $0x828] sm:$0xff]
    %v4187 = vld [vmem:[#allocation28 + $0x830] sm:$0xff]
    %v4188 = vld [vmem:[#allocation28 + $0x838] sm:$0xff]
    %v4189 = vld [vmem:[#allocation28 + $0x840] sm:$0xff]
    %v4190 = vld [vmem:[#allocation28 + $0x848] sm:$0xff]
    %v4191 = vld [vmem:[#allocation28 + $0x850] sm:$0xff]
    %v4192 = vld [vmem:[#allocation28 + $0x858] sm:$0xff]
    %v4193 = vld [vmem:[#allocation28 + $0x860] sm:$0xff]
    %v4194 = vld [vmem:[#allocation28 + $0x868] sm:$0xff]
    %v4195 = vld [vmem:[#allocation28 + $0x870] sm:$0xff]
    %v4196 = vld [vmem:[#allocation28 + $0x878] sm:$0xff]
    %v4197 = vld [vmem:[#allocation28 + $0x880] sm:$0xff]
    %v4198 = vld [vmem:[#allocation28 + $0x888] sm:$0xff]
    %v4199 = vld [vmem:[#allocation28 + $0x890] sm:$0xff]
    %v4200 = vld [vmem:[#allocation28 + $0x898] sm:$0xff]
    %v4201 = vld [vmem:[#allocation28 + $0x8a0] sm:$0xff]
    %v4202 = vld [vmem:[#allocation28 + $0x8a8] sm:$0xff]
    %v4203 = vld [vmem:[#allocation28 + $0x8b0] sm:$0xff]
    %v4204 = vld [vmem:[#allocation28 + $0x8b8] sm:$0xff]
    %v4205 = vld [vmem:[#allocation28 + $0x8c0] sm:$0xff]
    %v4206 = vld [vmem:[#allocation28 + $0x8c8] sm:$0xff]
    %v4207 = vld [vmem:[#allocation28 + $0x8d0] sm:$0xff]
    %v4208 = vld [vmem:[#allocation28 + $0x8d8] sm:$0xff]
    %v4209 = vld [vmem:[#allocation28 + $0x8e0] sm:$0xff]
    %v4210 = vld [vmem:[#allocation28 + $0x8e8] sm:$0xff]
    %v4211 = vld [vmem:[#allocation28 + $0x8f0] sm:$0xff]
    %v4212 = vld [vmem:[#allocation28 + $0x8f8] sm:$0xff]
    %v4213 = vld [vmem:[#allocation28 + $0x900] sm:$0xff]
    %v4214 = vld [vmem:[#allocation28 + $0x908] sm:$0xff]
    %v4215 = vld [vmem:[#allocation28 + $0x910] sm:$0xff]
    %v4216 = vld [vmem:[#allocation28 + $0x918] sm:$0xff]
    %v4217 = vld [vmem:[#allocation28 + $0x920] sm:$0xff]
    %v4218 = vld [vmem:[#allocation28 + $0x928] sm:$0xff]
    %v4219 = vld [vmem:[#allocation28 + $0x930] sm:$0xff]
    %v4220 = vld [vmem:[#allocation28 + $0x938] sm:$0xff]
    %v4221 = vld [vmem:[#allocation28 + $0x940] sm:$0xff]
    %v4222 = vld [vmem:[#allocation28 + $0x948] sm:$0xff]
    %v4223 = vld [vmem:[#allocation28 + $0x950] sm:$0xff]
    %v4224 = vld [vmem:[#allocation28 + $0x958] sm:$0xff]
    %v4225 = vld [vmem:[#allocation28 + $0x960] sm:$0xff]
    %v4226 = vld [vmem:[#allocation28 + $0x968] sm:$0xff]
    %v4227 = vld [vmem:[#allocation28 + $0x970] sm:$0xff]
    %v4228 = vld [vmem:[#allocation28 + $0x978] sm:$0xff]
    %v4229 = vld [vmem:[#allocation28 + $0x980] sm:$0xff]
    %v4230 = vld [vmem:[#allocation28 + $0x988] sm:$0xff]
    %v4231 = vld [vmem:[#allocation28 + $0x990] sm:$0xff]
    %v4232 = vld [vmem:[#allocation28 + $0x998] sm:$0xff]
    %v4233 = vld [vmem:[#allocation28 + $0x9a0] sm:$0xff]
    %v4234 = vld [vmem:[#allocation28 + $0x9a8] sm:$0xff]
    %v4235 = vld [vmem:[#allocation28 + $0x9b0] sm:$0xff]
    %v4236 = vld [vmem:[#allocation28 + $0x9b8] sm:$0xff]
    %v4237 = vld [vmem:[#allocation28 + $0x9c0] sm:$0xff]
    %v4238 = vld [vmem:[#allocation28 + $0x9c8] sm:$0xff]
    %v4239 = vld [vmem:[#allocation28 + $0x9d0] sm:$0xff]
    %v4240 = vld [vmem:[#allocation28 + $0x9d8] sm:$0xff]
    %v4241 = vld [vmem:[#allocation28 + $0x9e0] sm:$0xff]
    %v4242 = vld [vmem:[#allocation28 + $0x9e8] sm:$0xff]
    %v4243 = vld [vmem:[#allocation28 + $0x9f0] sm:$0xff]
    %v4244 = vld [vmem:[#allocation28 + $0x9f8] sm:$0xff]
    %v4245 = vld [vmem:[#allocation28 + $0xa00] sm:$0xff]
    %v4246 = vld [vmem:[#allocation28 + $0xa08] sm:$0xff]
    %v4247 = vld [vmem:[#allocation28 + $0xa10] sm:$0xff]
    %v4248 = vld [vmem:[#allocation28 + $0xa18] sm:$0xff]
    %v4249 = vld [vmem:[#allocation28 + $0xa20] sm:$0xff]
    %v4250 = vld [vmem:[#allocation28 + $0xa28] sm:$0xff]
    %v4251 = vld [vmem:[#allocation28 + $0xa30] sm:$0xff]
    %v4252 = vld [vmem:[#allocation28 + $0xa38] sm:$0xff]
    %v4253 = vld [vmem:[#allocation28 + $0xa40] sm:$0xff]
    %v4254 = vld [vmem:[#allocation28 + $0xa48] sm:$0xff]
    %v4255 = vld [vmem:[#allocation28 + $0xa50] sm:$0xff]
    %v4256 = vld [vmem:[#allocation28 + $0xa58] sm:$0xff]
    %v4257 = vld [vmem:[#allocation28 + $0xa60] sm:$0xff]
    %v4258 = vld [vmem:[#allocation28 + $0xa68] sm:$0xff]
    %v4259 = vld [vmem:[#allocation28 + $0xa70] sm:$0xff]
    %v4260 = vld [vmem:[#allocation28 + $0xa78] sm:$0xff]
    %v4261 = vld [vmem:[#allocation28 + $0xa80] sm:$0xff]
    %v4262 = vld [vmem:[#allocation28 + $0xa88] sm:$0xff]
    %v4263 = vld [vmem:[#allocation28 + $0xa90] sm:$0xff]
    %v4264 = vld [vmem:[#allocation28 + $0xa98] sm:$0xff]
    %v4265 = vld [vmem:[#allocation28 + $0xaa0] sm:$0xff]
    %v4266 = vld [vmem:[#allocation28 + $0xaa8] sm:$0xff]
    %v4267 = vld [vmem:[#allocation28 + $0xab0] sm:$0xff]
    %v4268 = vld [vmem:[#allocation28 + $0xab8] sm:$0xff]
    %v4269 = vld [vmem:[#allocation28 + $0xac0] sm:$0xff]
    %v4270 = vld [vmem:[#allocation28 + $0xac8] sm:$0xff]
    %v4271 = vld [vmem:[#allocation28 + $0xad0] sm:$0xff]
    %v4272 = vld [vmem:[#allocation28 + $0xad8] sm:$0xff]
    %v4273 = vld [vmem:[#allocation28 + $0xae0] sm:$0xff]
    %v4274 = vld [vmem:[#allocation28 + $0xae8] sm:$0xff]
    %v4275 = vld [vmem:[#allocation28 + $0xaf0] sm:$0xff]
    %v4276 = vld [vmem:[#allocation28 + $0xaf8] sm:$0xff]
    %v4277 = vld [vmem:[#allocation28 + $0xb00] sm:$0xff]
    %v4278 = vld [vmem:[#allocation28 + $0xb08] sm:$0xff]
    %v4279 = vld [vmem:[#allocation28 + $0xb10] sm:$0xff]
    %v4280 = vld [vmem:[#allocation28 + $0xb18] sm:$0xff]
    %v4281 = vld [vmem:[#allocation28 + $0xb20] sm:$0xff]
    %v4282 = vld [vmem:[#allocation28 + $0xb28] sm:$0xff]
    %v4283 = vld [vmem:[#allocation28 + $0xb30] sm:$0xff]
    %v4284 = vld [vmem:[#allocation28 + $0xb38] sm:$0xff]
    %v4285 = vld [vmem:[#allocation28 + $0xb40] sm:$0xff]
    %v4286 = vld [vmem:[#allocation28 + $0xb48] sm:$0xff]
    %v4287 = vld [vmem:[#allocation28 + $0xb50] sm:$0xff]
    %v4288 = vld [vmem:[#allocation28 + $0xb58] sm:$0xff]
    %v4289 = vld [vmem:[#allocation28 + $0xb60] sm:$0xff]
    %v4290 = vld [vmem:[#allocation28 + $0xb68] sm:$0xff]
    %v4291 = vld [vmem:[#allocation28 + $0xb70] sm:$0xff]
    %v4292 = vld [vmem:[#allocation28 + $0xb78] sm:$0xff]
    %v4293 = vld [vmem:[#allocation28 + $0xb80] sm:$0xff]
    %v4294 = vld [vmem:[#allocation28 + $0xb88] sm:$0xff]
    %v4295 = vld [vmem:[#allocation28 + $0xb90] sm:$0xff]
    %v4296 = vld [vmem:[#allocation28 + $0xb98] sm:$0xff]
    %v4297 = vld [vmem:[#allocation28 + $0xba0] sm:$0xff]
    %v4298 = vld [vmem:[#allocation28 + $0xba8] sm:$0xff]
    %v4299 = vld [vmem:[#allocation28 + $0xbb0] sm:$0xff]
    %v4300 = vld [vmem:[#allocation28 + $0xbb8] sm:$0xff]
    %v4301 = vld [vmem:[#allocation28 + $0xbc0] sm:$0xff]
    %v4302 = vld [vmem:[#allocation28 + $0xbc8] sm:$0xff]
    %v4303 = vld [vmem:[#allocation28 + $0xbd0] sm:$0xff]
    %v4304 = vld [vmem:[#allocation28 + $0xbd8] sm:$0xff]
    %v4305 = vld [vmem:[#allocation28 + $0xbe0] sm:$0xff]
    %v4306 = vld [vmem:[#allocation28 + $0xbe8] sm:$0xff]
    %v4307 = vld [vmem:[#allocation28 + $0xbf0] sm:$0xff]
    %v4308 = vld [vmem:[#allocation28 + $0xbf8] sm:$0xff]
    %v4309 = vld [vmem:[#allocation28 + $0xc00] sm:$0xff]
    %v4310 = vld [vmem:[#allocation28 + $0xc08] sm:$0xff]
    %v4311 = vld [vmem:[#allocation28 + $0xc10] sm:$0xff]
    %v4312 = vld [vmem:[#allocation28 + $0xc18] sm:$0xff]
    %v4313 = vld [vmem:[#allocation28 + $0xc20] sm:$0xff]
    %v4314 = vld [vmem:[#allocation28 + $0xc28] sm:$0xff]
    %v4315 = vld [vmem:[#allocation28 + $0xc30] sm:$0xff]
    %v4316 = vld [vmem:[#allocation28 + $0xc38] sm:$0xff]
    %v4317 = vld [vmem:[#allocation28 + $0xc40] sm:$0xff]
    %v4318 = vld [vmem:[#allocation28 + $0xc48] sm:$0xff]
    %v4319 = vld [vmem:[#allocation28 + $0xc50] sm:$0xff]
    %v4320 = vld [vmem:[#allocation28 + $0xc58] sm:$0xff]
    %v4321 = vld [vmem:[#allocation28 + $0xc60] sm:$0xff]
    %v4322 = vld [vmem:[#allocation28 + $0xc68] sm:$0xff]
    %v4323 = vld [vmem:[#allocation28 + $0xc70] sm:$0xff]
    %v4324 = vld [vmem:[#allocation28 + $0xc78] sm:$0xff]
    %v4325 = vld [vmem:[#allocation28 + $0xc80] sm:$0xff]
    %v4326 = vld [vmem:[#allocation28 + $0xc88] sm:$0xff]
    %v4327 = vld [vmem:[#allocation28 + $0xc90] sm:$0xff]
    %v4328 = vld [vmem:[#allocation28 + $0xc98] sm:$0xff]
    %v4329 = vld [vmem:[#allocation28 + $0xca0] sm:$0xff]
    %v4330 = vld [vmem:[#allocation28 + $0xca8] sm:$0xff]
    %v4331 = vld [vmem:[#allocation28 + $0xcb0] sm:$0xff]
    %v4332 = vld [vmem:[#allocation28 + $0xcb8] sm:$0xff]
    %v4333 = vld [vmem:[#allocation28 + $0xcc0] sm:$0xff]
    %v4334 = vld [vmem:[#allocation28 + $0xcc8] sm:$0xff]
    %v4335 = vld [vmem:[#allocation28 + $0xcd0] sm:$0xff]
    %v4336 = vld [vmem:[#allocation28 + $0xcd8] sm:$0xff]
    %v4337 = vld [vmem:[#allocation28 + $0xce0] sm:$0xff]
    %v4338 = vld [vmem:[#allocation28 + $0xce8] sm:$0xff]
    %v4339 = vld [vmem:[#allocation28 + $0xcf0] sm:$0xff]
    %v4340 = vld [vmem:[#allocation28 + $0xcf8] sm:$0xff]
    %v4341 = vld [vmem:[#allocation28 + $0xd00] sm:$0xff]
    %v4342 = vld [vmem:[#allocation28 + $0xd08] sm:$0xff]
    %v4343 = vld [vmem:[#allocation28 + $0xd10] sm:$0xff]
    %v4344 = vld [vmem:[#allocation28 + $0xd18] sm:$0xff]
    %v4345 = vld [vmem:[#allocation28 + $0xd20] sm:$0xff]
    %v4346 = vld [vmem:[#allocation28 + $0xd28] sm:$0xff]
    %v4347 = vld [vmem:[#allocation28 + $0xd30] sm:$0xff]
    %v4348 = vld [vmem:[#allocation28 + $0xd38] sm:$0xff]
    %v4349 = vld [vmem:[#allocation28 + $0xd40] sm:$0xff]
    %v4350 = vld [vmem:[#allocation28 + $0xd48] sm:$0xff]
    %v4351 = vld [vmem:[#allocation28 + $0xd50] sm:$0xff]
    %v4352 = vld [vmem:[#allocation28 + $0xd58] sm:$0xff]
    %v4353 = vld [vmem:[#allocation28 + $0xd60] sm:$0xff]
    %v4354 = vld [vmem:[#allocation28 + $0xd68] sm:$0xff]
    %v4355 = vld [vmem:[#allocation28 + $0xd70] sm:$0xff]
    %v4356 = vld [vmem:[#allocation28 + $0xd78] sm:$0xff]
    %v4357 = vld [vmem:[#allocation28 + $0xd80] sm:$0xff]
    %v4358 = vld [vmem:[#allocation28 + $0xd88] sm:$0xff]
    %v4359 = vld [vmem:[#allocation28 + $0xd90] sm:$0xff]
    %v4360 = vld [vmem:[#allocation28 + $0xd98] sm:$0xff]
    %v4361 = vld [vmem:[#allocation28 + $0xda0] sm:$0xff]
    %v4362 = vld [vmem:[#allocation28 + $0xda8] sm:$0xff]
    %v4363 = vld [vmem:[#allocation28 + $0xdb0] sm:$0xff]
    %v4364 = vld [vmem:[#allocation28 + $0xdb8] sm:$0xff]
    %v4365 = vld [vmem:[#allocation28 + $0xdc0] sm:$0xff]
    %v4366 = vld [vmem:[#allocation28 + $0xdc8] sm:$0xff]
    %v4367 = vld [vmem:[#allocation28 + $0xdd0] sm:$0xff]
    %v4368 = vld [vmem:[#allocation28 + $0xdd8] sm:$0xff]
    %v4369 = vld [vmem:[#allocation28 + $0xde0] sm:$0xff]
    %v4370 = vld [vmem:[#allocation28 + $0xde8] sm:$0xff]
    %v4371 = vld [vmem:[#allocation28 + $0xdf0] sm:$0xff]
    %v4372 = vld [vmem:[#allocation28 + $0xdf8] sm:$0xff]
    %v4373 = vld [vmem:[#allocation28 + $0xe00] sm:$0xff]
    %v4374 = vld [vmem:[#allocation28 + $0xe08] sm:$0xff]
    %v4375 = vld [vmem:[#allocation28 + $0xe10] sm:$0xff]
    %v4376 = vld [vmem:[#allocation28 + $0xe18] sm:$0xff]
    %v4377 = vld [vmem:[#allocation28 + $0xe20] sm:$0xff]
    %v4378 = vld [vmem:[#allocation28 + $0xe28] sm:$0xff]
    %v4379 = vld [vmem:[#allocation28 + $0xe30] sm:$0xff]
    %v4380 = vld [vmem:[#allocation28 + $0xe38] sm:$0xff]
    %v4381 = vld [vmem:[#allocation28 + $0xe40] sm:$0xff]
    %v4382 = vld [vmem:[#allocation28 + $0xe48] sm:$0xff]
    %v4383 = vld [vmem:[#allocation28 + $0xe50] sm:$0xff]
    %v4384 = vld [vmem:[#allocation28 + $0xe58] sm:$0xff]
    %v4385 = vld [vmem:[#allocation28 + $0xe60] sm:$0xff]
    %v4386 = vld [vmem:[#allocation28 + $0xe68] sm:$0xff]
    %v4387 = vld [vmem:[#allocation28 + $0xe70] sm:$0xff]
    %v4388 = vld [vmem:[#allocation28 + $0xe78] sm:$0xff]
    %v4389 = vld [vmem:[#allocation28 + $0xe80] sm:$0xff]
    %v4390 = vld [vmem:[#allocation28 + $0xe88] sm:$0xff]
    %v4391 = vld [vmem:[#allocation28 + $0xe90] sm:$0xff]
    %v4392 = vld [vmem:[#allocation28 + $0xe98] sm:$0xff]
    %v4393 = vld [vmem:[#allocation28 + $0xea0] sm:$0xff]
    %v4394 = vld [vmem:[#allocation28 + $0xea8] sm:$0xff]
    %v4395 = vld [vmem:[#allocation28 + $0xeb0] sm:$0xff]
    %v4396 = vld [vmem:[#allocation28 + $0xeb8] sm:$0xff]
    %v4397 = vld [vmem:[#allocation28 + $0xec0] sm:$0xff]
    %v4398 = vld [vmem:[#allocation28 + $0xec8] sm:$0xff]
    %v4399 = vld [vmem:[#allocation28 + $0xed0] sm:$0xff]
    %v4400 = vld [vmem:[#allocation28 + $0xed8] sm:$0xff]
    %v4401 = vld [vmem:[#allocation28 + $0xee0] sm:$0xff]
    %v4402 = vld [vmem:[#allocation28 + $0xee8] sm:$0xff]
    %v4403 = vld [vmem:[#allocation28 + $0xef0] sm:$0xff]
    %v4404 = vld [vmem:[#allocation28 + $0xef8] sm:$0xff]
    %v4405 = vld [vmem:[#allocation28 + $0xf00] sm:$0xff]
    %v4406 = vld [vmem:[#allocation28 + $0xf08] sm:$0xff]
    %v4407 = vld [vmem:[#allocation28 + $0xf10] sm:$0xff]
    %v4408 = vld [vmem:[#allocation28 + $0xf18] sm:$0xff]
    %v4409 = vld [vmem:[#allocation28 + $0xf20] sm:$0xff]
    %v4410 = vld [vmem:[#allocation28 + $0xf28] sm:$0xff]
    %v4411 = vld [vmem:[#allocation28 + $0xf30] sm:$0xff]
    %v4412 = vld [vmem:[#allocation28 + $0xf38] sm:$0xff]
    %v4413 = vld [vmem:[#allocation28 + $0xf40] sm:$0xff]
    %v4414 = vld [vmem:[#allocation28 + $0xf48] sm:$0xff]
    %v4415 = vld [vmem:[#allocation28 + $0xf50] sm:$0xff]
    %v4416 = vld [vmem:[#allocation28 + $0xf58] sm:$0xff]
    %v4417 = vld [vmem:[#allocation28 + $0xf60] sm:$0xff]
    %v4418 = vld [vmem:[#allocation28 + $0xf68] sm:$0xff]
    %v4419 = vld [vmem:[#allocation28 + $0xf70] sm:$0xff]
    %v4420 = vld [vmem:[#allocation28 + $0xf78] sm:$0xff]
    %v4421 = vld [vmem:[#allocation28 + $0xf80] sm:$0xff]
    %v4422 = vld [vmem:[#allocation28 + $0xf88] sm:$0xff]
    %v4423 = vld [vmem:[#allocation28 + $0xf90] sm:$0xff]
    %v4424 = vld [vmem:[#allocation28 + $0xf98] sm:$0xff]
    %v4425 = vld [vmem:[#allocation28 + $0xfa0] sm:$0xff]
    %v4426 = vld [vmem:[#allocation28 + $0xfa8] sm:$0xff]
    %v4427 = vld [vmem:[#allocation28 + $0xfb0] sm:$0xff]
    %v4428 = vld [vmem:[#allocation28 + $0xfb8] sm:$0xff]
    %v4429 = vld [vmem:[#allocation28 + $0xfc0] sm:$0xff]
    %v4430 = vld [vmem:[#allocation28 + $0xfc8] sm:$0xff]
    %v4431 = vld [vmem:[#allocation28 + $0xfd0] sm:$0xff]
    %v4432 = vld [vmem:[#allocation28 + $0xfd8] sm:$0xff]
    %v4433 = vld [vmem:[#allocation28 + $0xfe0] sm:$0xff]
    %v4434 = vld [vmem:[#allocation28 + $0xfe8] sm:$0xff]
    %v4435 = vld [vmem:[#allocation28 + $0xff0] sm:$0xff]
    %v4436 = vld [vmem:[#allocation28 + $0xff8] sm:$0xff]
    %v4437 = vld [vmem:[#allocation29] sm:$0xff]
    %v4438 = vld [vmem:[#allocation29 + $0x8] sm:$0xff]
    %v4439 = vld [vmem:[#allocation29 + $0x10] sm:$0xff]
    %v4440 = vld [vmem:[#allocation29 + $0x18] sm:$0xff]
    %v4445 = vlaneseq
    %v4446 = vshrl.u32 %v4445, 7
    %v4447 = vsub.s32 0, %v4446
    %v4448 = vrot.slane %v4437, %v4447
    %v4449 = vlaneseq
    %v4450 = vshrl.u32 %v4449, 7
    %v4451 = vsub.s32 1, %v4450
    %v4452 = vrot.slane %v4437, %v4451
    %v4453 = vlaneseq
    %v4454 = vshrl.u32 %v4453, 7
    %v4455 = vsub.s32 2, %v4454
    %v4456 = vrot.slane %v4437, %v4455
    %v4457 = vlaneseq
    %v4458 = vshrl.u32 %v4457, 7
    %v4459 = vsub.s32 3, %v4458
    %v4460 = vrot.slane %v4437, %v4459
    %v4461 = vlaneseq
    %v4462 = vshrl.u32 %v4461, 7
    %v4463 = vsub.s32 4, %v4462
    %v4464 = vrot.slane %v4437, %v4463
    %v4465 = vlaneseq
    %v4466 = vshrl.u32 %v4465, 7
    %v4467 = vsub.s32 5, %v4466
    %v4468 = vrot.slane %v4437, %v4467
    %v4469 = vlaneseq
    %v4470 = vshrl.u32 %v4469, 7
    %v4471 = vsub.s32 6, %v4470
    %v4472 = vrot.slane %v4437, %v4471
    %v4473 = vlaneseq
    %v4474 = vshrl.u32 %v4473, 7
    %v4475 = vsub.s32 7, %v4474
    %v4476 = vrot.slane %v4437, %v4475
    %v4477 = vlaneseq
    %v4478 = vshrl.u32 %v4477, 7
    %v4479 = vsub.s32 0, %v4478
    %v4480 = vrot.slane %v4438, %v4479
    %v4481 = vlaneseq
    %v4482 = vshrl.u32 %v4481, 7
    %v4483 = vsub.s32 1, %v4482
    %v4484 = vrot.slane %v4438, %v4483
    %v4485 = vlaneseq
    %v4486 = vshrl.u32 %v4485, 7
    %v4487 = vsub.s32 2, %v4486
    %v4488 = vrot.slane %v4438, %v4487
    %v4489 = vlaneseq
    %v4490 = vshrl.u32 %v4489, 7
    %v4491 = vsub.s32 3, %v4490
    %v4492 = vrot.slane %v4438, %v4491
    %v4493 = vlaneseq
    %v4494 = vshrl.u32 %v4493, 7
    %v4495 = vsub.s32 4, %v4494
    %v4496 = vrot.slane %v4438, %v4495
    %v4497 = vlaneseq
    %v4498 = vshrl.u32 %v4497, 7
    %v4499 = vsub.s32 5, %v4498
    %v4500 = vrot.slane %v4438, %v4499
    %v4501 = vlaneseq
    %v4502 = vshrl.u32 %v4501, 7
    %v4503 = vsub.s32 6, %v4502
    %v4504 = vrot.slane %v4438, %v4503
    %v4505 = vlaneseq
    %v4506 = vshrl.u32 %v4505, 7
    %v4507 = vsub.s32 7, %v4506
    %v4508 = vrot.slane %v4438, %v4507
    %v4509 = vlaneseq
    %v4510 = vshrl.u32 %v4509, 7
    %v4511 = vsub.s32 0, %v4510
    %v4512 = vrot.slane %v4439, %v4511
    %v4513 = vlaneseq
    %v4514 = vshrl.u32 %v4513, 7
    %v4515 = vsub.s32 1, %v4514
    %v4516 = vrot.slane %v4439, %v4515
    %v4517 = vlaneseq
    %v4518 = vshrl.u32 %v4517, 7
    %v4519 = vsub.s32 2, %v4518
    %v4520 = vrot.slane %v4439, %v4519
    %v4521 = vlaneseq
    %v4522 = vshrl.u32 %v4521, 7
    %v4523 = vsub.s32 3, %v4522
    %v4524 = vrot.slane %v4439, %v4523
    %v4525 = vlaneseq
    %v4526 = vshrl.u32 %v4525, 7
    %v4527 = vsub.s32 4, %v4526
    %v4528 = vrot.slane %v4439, %v4527
    %v4529 = vlaneseq
    %v4530 = vshrl.u32 %v4529, 7
    %v4531 = vsub.s32 5, %v4530
    %v4532 = vrot.slane %v4439, %v4531
    %v4533 = vlaneseq
    %v4534 = vshrl.u32 %v4533, 7
    %v4535 = vsub.s32 6, %v4534
    %v4536 = vrot.slane %v4439, %v4535
    %v4537 = vlaneseq
    %v4538 = vshrl.u32 %v4537, 7
    %v4539 = vsub.s32 7, %v4538
    %v4540 = vrot.slane %v4439, %v4539
    %v4541 = vlaneseq
    %v4542 = vshrl.u32 %v4541, 7
    %v4543 = vsub.s32 0, %v4542
    %v4544 = vrot.slane %v4440, %v4543
    %v4545 = vlaneseq
    %v4546 = vshrl.u32 %v4545, 7
    %v4547 = vsub.s32 1, %v4546
    %v4548 = vrot.slane %v4440, %v4547
    %v4549 = vlaneseq
    %v4550 = vshrl.u32 %v4549, 7
    %v4551 = vsub.s32 2, %v4550
    %v4552 = vrot.slane %v4440, %v4551
    %v4553 = vlaneseq
    %v4554 = vshrl.u32 %v4553, 7
    %v4555 = vsub.s32 3, %v4554
    %v4556 = vrot.slane %v4440, %v4555
    %v4557 = vlaneseq
    %v4558 = vshrl.u32 %v4557, 7
    %v4559 = vsub.s32 4, %v4558
    %v4560 = vrot.slane %v4440, %v4559
    %v4561 = vlaneseq
    %v4562 = vshrl.u32 %v4561, 7
    %v4563 = vsub.s32 5, %v4562
    %v4564 = vrot.slane %v4440, %v4563
    %v4565 = vlaneseq
    %v4566 = vshrl.u32 %v4565, 7
    %v4567 = vsub.s32 6, %v4566
    %v4568 = vrot.slane %v4440, %v4567
    %v4569 = vlaneseq
    %v4570 = vshrl.u32 %v4569, 7
    %v4571 = vsub.s32 7, %v4570
    %v4572 = vrot.slane %v4440, %v4571
    %v5117 = vunpack.c.l.b16 %v3925
    %v5118 = vunpack.c.h.b16 %v3925
    %v5119 = vunpack.c.l.b16 %v3926
    %v5120 = vunpack.c.h.b16 %v3926
    %v5121 = vunpack.c.l.b16 %v3927
    %v5122 = vunpack.c.h.b16 %v3927
    %v5123 = vunpack.c.l.b16 %v3928
    %v5124 = vunpack.c.h.b16 %v3928
    %v5125 = vunpack.c.l.b16 %v3929
    %v5126 = vunpack.c.h.b16 %v3929
    %v5127 = vunpack.c.l.b16 %v3930
    %v5128 = vunpack.c.h.b16 %v3930
    %v5129 = vunpack.c.l.b16 %v3931
    %v5130 = vunpack.c.h.b16 %v3931
    %v5131 = vunpack.c.l.b16 %v3932
    %v5132 = vunpack.c.h.b16 %v3932
    %v5133 = vunpack.c.l.b16 %v3933
    %v5134 = vunpack.c.h.b16 %v3933
    %v5135 = vunpack.c.l.b16 %v3934
    %v5136 = vunpack.c.h.b16 %v3934
    %v5137 = vunpack.c.l.b16 %v3935
    %v5138 = vunpack.c.h.b16 %v3935
    %v5139 = vunpack.c.l.b16 %v3936
    %v5140 = vunpack.c.h.b16 %v3936
    %v5141 = vunpack.c.l.b16 %v3937
    %v5142 = vunpack.c.h.b16 %v3937
    %v5143 = vunpack.c.l.b16 %v3938
    %v5144 = vunpack.c.h.b16 %v3938
    %v5145 = vunpack.c.l.b16 %v3939
    %v5146 = vunpack.c.h.b16 %v3939
    %v5147 = vunpack.c.l.b16 %v3940
    %v5148 = vunpack.c.h.b16 %v3940
    %v5149 = vunpack.c.l.b16 %v3941
    %v5150 = vunpack.c.h.b16 %v3941
    %v5151 = vunpack.c.l.b16 %v3942
    %v5152 = vunpack.c.h.b16 %v3942
    %v5153 = vunpack.c.l.b16 %v3943
    %v5154 = vunpack.c.h.b16 %v3943
    %v5155 = vunpack.c.l.b16 %v3944
    %v5156 = vunpack.c.h.b16 %v3944
    %v5157 = vunpack.c.l.b16 %v3945
    %v5158 = vunpack.c.h.b16 %v3945
    %v5159 = vunpack.c.l.b16 %v3946
    %v5160 = vunpack.c.h.b16 %v3946
    %v5161 = vunpack.c.l.b16 %v3947
    %v5162 = vunpack.c.h.b16 %v3947
    %v5163 = vunpack.c.l.b16 %v3948
    %v5164 = vunpack.c.h.b16 %v3948
    %v5165 = vunpack.c.l.b16 %v3949
    %v5166 = vunpack.c.h.b16 %v3949
    %v5167 = vunpack.c.l.b16 %v3950
    %v5168 = vunpack.c.h.b16 %v3950
    %v5169 = vunpack.c.l.b16 %v3951
    %v5170 = vunpack.c.h.b16 %v3951
    %v5171 = vunpack.c.l.b16 %v3952
    %v5172 = vunpack.c.h.b16 %v3952
    %v5173 = vunpack.c.l.b16 %v3953
    %v5174 = vunpack.c.h.b16 %v3953
    %v5175 = vunpack.c.l.b16 %v3954
    %v5176 = vunpack.c.h.b16 %v3954
    %v5177 = vunpack.c.l.b16 %v3955
    %v5178 = vunpack.c.h.b16 %v3955
    %v5179 = vunpack.c.l.b16 %v3956
    %v5180 = vunpack.c.h.b16 %v3956
    %v5181 = vunpack.c.l.b16 %v3957
    %v5182 = vunpack.c.h.b16 %v3957
    %v5183 = vunpack.c.l.b16 %v3958
    %v5184 = vunpack.c.h.b16 %v3958
    %v5185 = vunpack.c.l.b16 %v3959
    %v5186 = vunpack.c.h.b16 %v3959
    %v5187 = vunpack.c.l.b16 %v3960
    %v5188 = vunpack.c.h.b16 %v3960
    %v5189 = vunpack.c.l.b16 %v3961
    %v5190 = vunpack.c.h.b16 %v3961
    %v5191 = vunpack.c.l.b16 %v3962
    %v5192 = vunpack.c.h.b16 %v3962
    %v5193 = vunpack.c.l.b16 %v3963
    %v5194 = vunpack.c.h.b16 %v3963
    %v5195 = vunpack.c.l.b16 %v3964
    %v5196 = vunpack.c.h.b16 %v3964
    %v5197 = vunpack.c.l.b16 %v3965
    %v5198 = vunpack.c.h.b16 %v3965
    %v5199 = vunpack.c.l.b16 %v3966
    %v5200 = vunpack.c.h.b16 %v3966
    %v5201 = vunpack.c.l.b16 %v3967
    %v5202 = vunpack.c.h.b16 %v3967
    %v5203 = vunpack.c.l.b16 %v3968
    %v5204 = vunpack.c.h.b16 %v3968
    %v5205 = vunpack.c.l.b16 %v3969
    %v5206 = vunpack.c.h.b16 %v3969
    %v5207 = vunpack.c.l.b16 %v3970
    %v5208 = vunpack.c.h.b16 %v3970
    %v5209 = vunpack.c.l.b16 %v3971
    %v5210 = vunpack.c.h.b16 %v3971
    %v5211 = vunpack.c.l.b16 %v3972
    %v5212 = vunpack.c.h.b16 %v3972
    %v5213 = vunpack.c.l.b16 %v3973
    %v5214 = vunpack.c.h.b16 %v3973
    %v5215 = vunpack.c.l.b16 %v3974
    %v5216 = vunpack.c.h.b16 %v3974
    %v5217 = vunpack.c.l.b16 %v3975
    %v5218 = vunpack.c.h.b16 %v3975
    %v5219 = vunpack.c.l.b16 %v3976
    %v5220 = vunpack.c.h.b16 %v3976
    %v5221 = vunpack.c.l.b16 %v3977
    %v5222 = vunpack.c.h.b16 %v3977
    %v5223 = vunpack.c.l.b16 %v3978
    %v5224 = vunpack.c.h.b16 %v3978
    %v5225 = vunpack.c.l.b16 %v3979
    %v5226 = vunpack.c.h.b16 %v3979
    %v5227 = vunpack.c.l.b16 %v3980
    %v5228 = vunpack.c.h.b16 %v3980
    %v5229 = vunpack.c.l.b16 %v3981
    %v5230 = vunpack.c.h.b16 %v3981
    %v5231 = vunpack.c.l.b16 %v3982
    %v5232 = vunpack.c.h.b16 %v3982
    %v5233 = vunpack.c.l.b16 %v3983
    %v5234 = vunpack.c.h.b16 %v3983
    %v5235 = vunpack.c.l.b16 %v3984
    %v5236 = vunpack.c.h.b16 %v3984
    %v5237 = vunpack.c.l.b16 %v3985
    %v5238 = vunpack.c.h.b16 %v3985
    %v5239 = vunpack.c.l.b16 %v3986
    %v5240 = vunpack.c.h.b16 %v3986
    %v5241 = vunpack.c.l.b16 %v3987
    %v5242 = vunpack.c.h.b16 %v3987
    %v5243 = vunpack.c.l.b16 %v3988
    %v5244 = vunpack.c.h.b16 %v3988
    %v5245 = vunpack.c.l.b16 %v3989
    %v5246 = vunpack.c.h.b16 %v3989
    %v5247 = vunpack.c.l.b16 %v3990
    %v5248 = vunpack.c.h.b16 %v3990
    %v5249 = vunpack.c.l.b16 %v3991
    %v5250 = vunpack.c.h.b16 %v3991
    %v5251 = vunpack.c.l.b16 %v3992
    %v5252 = vunpack.c.h.b16 %v3992
    %v5253 = vunpack.c.l.b16 %v3993
    %v5254 = vunpack.c.h.b16 %v3993
    %v5255 = vunpack.c.l.b16 %v3994
    %v5256 = vunpack.c.h.b16 %v3994
    %v5257 = vunpack.c.l.b16 %v3995
    %v5258 = vunpack.c.h.b16 %v3995
    %v5259 = vunpack.c.l.b16 %v3996
    %v5260 = vunpack.c.h.b16 %v3996
    %v5261 = vunpack.c.l.b16 %v3997
    %v5262 = vunpack.c.h.b16 %v3997
    %v5263 = vunpack.c.l.b16 %v3998
    %v5264 = vunpack.c.h.b16 %v3998
    %v5265 = vunpack.c.l.b16 %v3999
    %v5266 = vunpack.c.h.b16 %v3999
    %v5267 = vunpack.c.l.b16 %v4000
    %v5268 = vunpack.c.h.b16 %v4000
    %v5269 = vunpack.c.l.b16 %v4001
    %v5270 = vunpack.c.h.b16 %v4001
    %v5271 = vunpack.c.l.b16 %v4002
    %v5272 = vunpack.c.h.b16 %v4002
    %v5273 = vunpack.c.l.b16 %v4003
    %v5274 = vunpack.c.h.b16 %v4003
    %v5275 = vunpack.c.l.b16 %v4004
    %v5276 = vunpack.c.h.b16 %v4004
    %v5277 = vunpack.c.l.b16 %v4005
    %v5278 = vunpack.c.h.b16 %v4005
    %v5279 = vunpack.c.l.b16 %v4006
    %v5280 = vunpack.c.h.b16 %v4006
    %v5281 = vunpack.c.l.b16 %v4007
    %v5282 = vunpack.c.h.b16 %v4007
    %v5283 = vunpack.c.l.b16 %v4008
    %v5284 = vunpack.c.h.b16 %v4008
    %v5285 = vunpack.c.l.b16 %v4009
    %v5286 = vunpack.c.h.b16 %v4009
    %v5287 = vunpack.c.l.b16 %v4010
    %v5288 = vunpack.c.h.b16 %v4010
    %v5289 = vunpack.c.l.b16 %v4011
    %v5290 = vunpack.c.h.b16 %v4011
    %v5291 = vunpack.c.l.b16 %v4012
    %v5292 = vunpack.c.h.b16 %v4012
    %v5293 = vunpack.c.l.b16 %v4013
    %v5294 = vunpack.c.h.b16 %v4013
    %v5295 = vunpack.c.l.b16 %v4014
    %v5296 = vunpack.c.h.b16 %v4014
    %v5297 = vunpack.c.l.b16 %v4015
    %v5298 = vunpack.c.h.b16 %v4015
    %v5299 = vunpack.c.l.b16 %v4016
    %v5300 = vunpack.c.h.b16 %v4016
    %v5301 = vunpack.c.l.b16 %v4017
    %v5302 = vunpack.c.h.b16 %v4017
    %v5303 = vunpack.c.l.b16 %v4018
    %v5304 = vunpack.c.h.b16 %v4018
    %v5305 = vunpack.c.l.b16 %v4019
    %v5306 = vunpack.c.h.b16 %v4019
    %v5307 = vunpack.c.l.b16 %v4020
    %v5308 = vunpack.c.h.b16 %v4020
    %v5309 = vunpack.c.l.b16 %v4021
    %v5310 = vunpack.c.h.b16 %v4021
    %v5311 = vunpack.c.l.b16 %v4022
    %v5312 = vunpack.c.h.b16 %v4022
    %v5313 = vunpack.c.l.b16 %v4023
    %v5314 = vunpack.c.h.b16 %v4023
    %v5315 = vunpack.c.l.b16 %v4024
    %v5316 = vunpack.c.h.b16 %v4024
    %v5317 = vunpack.c.l.b16 %v4025
    %v5318 = vunpack.c.h.b16 %v4025
    %v5319 = vunpack.c.l.b16 %v4026
    %v5320 = vunpack.c.h.b16 %v4026
    %v5321 = vunpack.c.l.b16 %v4027
    %v5322 = vunpack.c.h.b16 %v4027
    %v5323 = vunpack.c.l.b16 %v4028
    %v5324 = vunpack.c.h.b16 %v4028
    %v5325 = vunpack.c.l.b16 %v4029
    %v5326 = vunpack.c.h.b16 %v4029
    %v5327 = vunpack.c.l.b16 %v4030
    %v5328 = vunpack.c.h.b16 %v4030
    %v5329 = vunpack.c.l.b16 %v4031
    %v5330 = vunpack.c.h.b16 %v4031
    %v5331 = vunpack.c.l.b16 %v4032
    %v5332 = vunpack.c.h.b16 %v4032
    %v5333 = vunpack.c.l.b16 %v4033
    %v5334 = vunpack.c.h.b16 %v4033
    %v5335 = vunpack.c.l.b16 %v4034
    %v5336 = vunpack.c.h.b16 %v4034
    %v5337 = vunpack.c.l.b16 %v4035
    %v5338 = vunpack.c.h.b16 %v4035
    %v5339 = vunpack.c.l.b16 %v4036
    %v5340 = vunpack.c.h.b16 %v4036
    %v5341 = vunpack.c.l.b16 %v4037
    %v5342 = vunpack.c.h.b16 %v4037
    %v5343 = vunpack.c.l.b16 %v4038
    %v5344 = vunpack.c.h.b16 %v4038
    %v5345 = vunpack.c.l.b16 %v4039
    %v5346 = vunpack.c.h.b16 %v4039
    %v5347 = vunpack.c.l.b16 %v4040
    %v5348 = vunpack.c.h.b16 %v4040
    %v5349 = vunpack.c.l.b16 %v4041
    %v5350 = vunpack.c.h.b16 %v4041
    %v5351 = vunpack.c.l.b16 %v4042
    %v5352 = vunpack.c.h.b16 %v4042
    %v5353 = vunpack.c.l.b16 %v4043
    %v5354 = vunpack.c.h.b16 %v4043
    %v5355 = vunpack.c.l.b16 %v4044
    %v5356 = vunpack.c.h.b16 %v4044
    %v5357 = vunpack.c.l.b16 %v4045
    %v5358 = vunpack.c.h.b16 %v4045
    %v5359 = vunpack.c.l.b16 %v4046
    %v5360 = vunpack.c.h.b16 %v4046
    %v5361 = vunpack.c.l.b16 %v4047
    %v5362 = vunpack.c.h.b16 %v4047
    %v5363 = vunpack.c.l.b16 %v4048
    %v5364 = vunpack.c.h.b16 %v4048
    %v5365 = vunpack.c.l.b16 %v4049
    %v5366 = vunpack.c.h.b16 %v4049
    %v5367 = vunpack.c.l.b16 %v4050
    %v5368 = vunpack.c.h.b16 %v4050
    %v5369 = vunpack.c.l.b16 %v4051
    %v5370 = vunpack.c.h.b16 %v4051
    %v5371 = vunpack.c.l.b16 %v4052
    %v5372 = vunpack.c.h.b16 %v4052
    %v5373 = vunpack.c.l.b16 %v4053
    %v5374 = vunpack.c.h.b16 %v4053
    %v5375 = vunpack.c.l.b16 %v4054
    %v5376 = vunpack.c.h.b16 %v4054
    %v5377 = vunpack.c.l.b16 %v4055
    %v5378 = vunpack.c.h.b16 %v4055
    %v5379 = vunpack.c.l.b16 %v4056
    %v5380 = vunpack.c.h.b16 %v4056
    %v5381 = vunpack.c.l.b16 %v4057
    %v5382 = vunpack.c.h.b16 %v4057
    %v5383 = vunpack.c.l.b16 %v4058
    %v5384 = vunpack.c.h.b16 %v4058
    %v5385 = vunpack.c.l.b16 %v4059
    %v5386 = vunpack.c.h.b16 %v4059
    %v5387 = vunpack.c.l.b16 %v4060
    %v5388 = vunpack.c.h.b16 %v4060
    %v5389 = vunpack.c.l.b16 %v4061
    %v5390 = vunpack.c.h.b16 %v4061
    %v5391 = vunpack.c.l.b16 %v4062
    %v5392 = vunpack.c.h.b16 %v4062
    %v5393 = vunpack.c.l.b16 %v4063
    %v5394 = vunpack.c.h.b16 %v4063
    %v5395 = vunpack.c.l.b16 %v4064
    %v5396 = vunpack.c.h.b16 %v4064
    %v5397 = vunpack.c.l.b16 %v4065
    %v5398 = vunpack.c.h.b16 %v4065
    %v5399 = vunpack.c.l.b16 %v4066
    %v5400 = vunpack.c.h.b16 %v4066
    %v5401 = vunpack.c.l.b16 %v4067
    %v5402 = vunpack.c.h.b16 %v4067
    %v5403 = vunpack.c.l.b16 %v4068
    %v5404 = vunpack.c.h.b16 %v4068
    %v5405 = vunpack.c.l.b16 %v4069
    %v5406 = vunpack.c.h.b16 %v4069
    %v5407 = vunpack.c.l.b16 %v4070
    %v5408 = vunpack.c.h.b16 %v4070
    %v5409 = vunpack.c.l.b16 %v4071
    %v5410 = vunpack.c.h.b16 %v4071
    %v5411 = vunpack.c.l.b16 %v4072
    %v5412 = vunpack.c.h.b16 %v4072
    %v5413 = vunpack.c.l.b16 %v4073
    %v5414 = vunpack.c.h.b16 %v4073
    %v5415 = vunpack.c.l.b16 %v4074
    %v5416 = vunpack.c.h.b16 %v4074
    %v5417 = vunpack.c.l.b16 %v4075
    %v5418 = vunpack.c.h.b16 %v4075
    %v5419 = vunpack.c.l.b16 %v4076
    %v5420 = vunpack.c.h.b16 %v4076
    %v5421 = vunpack.c.l.b16 %v4077
    %v5422 = vunpack.c.h.b16 %v4077
    %v5423 = vunpack.c.l.b16 %v4078
    %v5424 = vunpack.c.h.b16 %v4078
    %v5425 = vunpack.c.l.b16 %v4079
    %v5426 = vunpack.c.h.b16 %v4079
    %v5427 = vunpack.c.l.b16 %v4080
    %v5428 = vunpack.c.h.b16 %v4080
    %v5429 = vunpack.c.l.b16 %v4081
    %v5430 = vunpack.c.h.b16 %v4081
    %v5431 = vunpack.c.l.b16 %v4082
    %v5432 = vunpack.c.h.b16 %v4082
    %v5433 = vunpack.c.l.b16 %v4083
    %v5434 = vunpack.c.h.b16 %v4083
    %v5435 = vunpack.c.l.b16 %v4084
    %v5436 = vunpack.c.h.b16 %v4084
    %v5437 = vunpack.c.l.b16 %v4085
    %v5438 = vunpack.c.h.b16 %v4085
    %v5439 = vunpack.c.l.b16 %v4086
    %v5440 = vunpack.c.h.b16 %v4086
    %v5441 = vunpack.c.l.b16 %v4087
    %v5442 = vunpack.c.h.b16 %v4087
    %v5443 = vunpack.c.l.b16 %v4088
    %v5444 = vunpack.c.h.b16 %v4088
    %v5445 = vunpack.c.l.b16 %v4089
    %v5446 = vunpack.c.h.b16 %v4089
    %v5447 = vunpack.c.l.b16 %v4090
    %v5448 = vunpack.c.h.b16 %v4090
    %v5449 = vunpack.c.l.b16 %v4091
    %v5450 = vunpack.c.h.b16 %v4091
    %v5451 = vunpack.c.l.b16 %v4092
    %v5452 = vunpack.c.h.b16 %v4092
    %v5453 = vunpack.c.l.b16 %v4093
    %v5454 = vunpack.c.h.b16 %v4093
    %v5455 = vunpack.c.l.b16 %v4094
    %v5456 = vunpack.c.h.b16 %v4094
    %v5457 = vunpack.c.l.b16 %v4095
    %v5458 = vunpack.c.h.b16 %v4095
    %v5459 = vunpack.c.l.b16 %v4096
    %v5460 = vunpack.c.h.b16 %v4096
    %v5461 = vunpack.c.l.b16 %v4097
    %v5462 = vunpack.c.h.b16 %v4097
    %v5463 = vunpack.c.l.b16 %v4098
    %v5464 = vunpack.c.h.b16 %v4098
    %v5465 = vunpack.c.l.b16 %v4099
    %v5466 = vunpack.c.h.b16 %v4099
    %v5467 = vunpack.c.l.b16 %v4100
    %v5468 = vunpack.c.h.b16 %v4100
    %v5469 = vunpack.c.l.b16 %v4101
    %v5470 = vunpack.c.h.b16 %v4101
    %v5471 = vunpack.c.l.b16 %v4102
    %v5472 = vunpack.c.h.b16 %v4102
    %v5473 = vunpack.c.l.b16 %v4103
    %v5474 = vunpack.c.h.b16 %v4103
    %v5475 = vunpack.c.l.b16 %v4104
    %v5476 = vunpack.c.h.b16 %v4104
    %v5477 = vunpack.c.l.b16 %v4105
    %v5478 = vunpack.c.h.b16 %v4105
    %v5479 = vunpack.c.l.b16 %v4106
    %v5480 = vunpack.c.h.b16 %v4106
    %v5481 = vunpack.c.l.b16 %v4107
    %v5482 = vunpack.c.h.b16 %v4107
    %v5483 = vunpack.c.l.b16 %v4108
    %v5484 = vunpack.c.h.b16 %v4108
    %v5485 = vunpack.c.l.b16 %v4109
    %v5486 = vunpack.c.h.b16 %v4109
    %v5487 = vunpack.c.l.b16 %v4110
    %v5488 = vunpack.c.h.b16 %v4110
    %v5489 = vunpack.c.l.b16 %v4111
    %v5490 = vunpack.c.h.b16 %v4111
    %v5491 = vunpack.c.l.b16 %v4112
    %v5492 = vunpack.c.h.b16 %v4112
    %v5493 = vunpack.c.l.b16 %v4113
    %v5494 = vunpack.c.h.b16 %v4113
    %v5495 = vunpack.c.l.b16 %v4114
    %v5496 = vunpack.c.h.b16 %v4114
    %v5497 = vunpack.c.l.b16 %v4115
    %v5498 = vunpack.c.h.b16 %v4115
    %v5499 = vunpack.c.l.b16 %v4116
    %v5500 = vunpack.c.h.b16 %v4116
    %v5501 = vunpack.c.l.b16 %v4117
    %v5502 = vunpack.c.h.b16 %v4117
    %v5503 = vunpack.c.l.b16 %v4118
    %v5504 = vunpack.c.h.b16 %v4118
    %v5505 = vunpack.c.l.b16 %v4119
    %v5506 = vunpack.c.h.b16 %v4119
    %v5507 = vunpack.c.l.b16 %v4120
    %v5508 = vunpack.c.h.b16 %v4120
    %v5509 = vunpack.c.l.b16 %v4121
    %v5510 = vunpack.c.h.b16 %v4121
    %v5511 = vunpack.c.l.b16 %v4122
    %v5512 = vunpack.c.h.b16 %v4122
    %v5513 = vunpack.c.l.b16 %v4123
    %v5514 = vunpack.c.h.b16 %v4123
    %v5515 = vunpack.c.l.b16 %v4124
    %v5516 = vunpack.c.h.b16 %v4124
    %v5517 = vunpack.c.l.b16 %v4125
    %v5518 = vunpack.c.h.b16 %v4125
    %v5519 = vunpack.c.l.b16 %v4126
    %v5520 = vunpack.c.h.b16 %v4126
    %v5521 = vunpack.c.l.b16 %v4127
    %v5522 = vunpack.c.h.b16 %v4127
    %v5523 = vunpack.c.l.b16 %v4128
    %v5524 = vunpack.c.h.b16 %v4128
    %v5525 = vunpack.c.l.b16 %v4129
    %v5526 = vunpack.c.h.b16 %v4129
    %v5527 = vunpack.c.l.b16 %v4130
    %v5528 = vunpack.c.h.b16 %v4130
    %v5529 = vunpack.c.l.b16 %v4131
    %v5530 = vunpack.c.h.b16 %v4131
    %v5531 = vunpack.c.l.b16 %v4132
    %v5532 = vunpack.c.h.b16 %v4132
    %v5533 = vunpack.c.l.b16 %v4133
    %v5534 = vunpack.c.h.b16 %v4133
    %v5535 = vunpack.c.l.b16 %v4134
    %v5536 = vunpack.c.h.b16 %v4134
    %v5537 = vunpack.c.l.b16 %v4135
    %v5538 = vunpack.c.h.b16 %v4135
    %v5539 = vunpack.c.l.b16 %v4136
    %v5540 = vunpack.c.h.b16 %v4136
    %v5541 = vunpack.c.l.b16 %v4137
    %v5542 = vunpack.c.h.b16 %v4137
    %v5543 = vunpack.c.l.b16 %v4138
    %v5544 = vunpack.c.h.b16 %v4138
    %v5545 = vunpack.c.l.b16 %v4139
    %v5546 = vunpack.c.h.b16 %v4139
    %v5547 = vunpack.c.l.b16 %v4140
    %v5548 = vunpack.c.h.b16 %v4140
    %v5549 = vunpack.c.l.b16 %v4141
    %v5550 = vunpack.c.h.b16 %v4141
    %v5551 = vunpack.c.l.b16 %v4142
    %v5552 = vunpack.c.h.b16 %v4142
    %v5553 = vunpack.c.l.b16 %v4143
    %v5554 = vunpack.c.h.b16 %v4143
    %v5555 = vunpack.c.l.b16 %v4144
    %v5556 = vunpack.c.h.b16 %v4144
    %v5557 = vunpack.c.l.b16 %v4145
    %v5558 = vunpack.c.h.b16 %v4145
    %v5559 = vunpack.c.l.b16 %v4146
    %v5560 = vunpack.c.h.b16 %v4146
    %v5561 = vunpack.c.l.b16 %v4147
    %v5562 = vunpack.c.h.b16 %v4147
    %v5563 = vunpack.c.l.b16 %v4148
    %v5564 = vunpack.c.h.b16 %v4148
    %v5565 = vunpack.c.l.b16 %v4149
    %v5566 = vunpack.c.h.b16 %v4149
    %v5567 = vunpack.c.l.b16 %v4150
    %v5568 = vunpack.c.h.b16 %v4150
    %v5569 = vunpack.c.l.b16 %v4151
    %v5570 = vunpack.c.h.b16 %v4151
    %v5571 = vunpack.c.l.b16 %v4152
    %v5572 = vunpack.c.h.b16 %v4152
    %v5573 = vunpack.c.l.b16 %v4153
    %v5574 = vunpack.c.h.b16 %v4153
    %v5575 = vunpack.c.l.b16 %v4154
    %v5576 = vunpack.c.h.b16 %v4154
    %v5577 = vunpack.c.l.b16 %v4155
    %v5578 = vunpack.c.h.b16 %v4155
    %v5579 = vunpack.c.l.b16 %v4156
    %v5580 = vunpack.c.h.b16 %v4156
    %v5581 = vunpack.c.l.b16 %v4157
    %v5582 = vunpack.c.h.b16 %v4157
    %v5583 = vunpack.c.l.b16 %v4158
    %v5584 = vunpack.c.h.b16 %v4158
    %v5585 = vunpack.c.l.b16 %v4159
    %v5586 = vunpack.c.h.b16 %v4159
    %v5587 = vunpack.c.l.b16 %v4160
    %v5588 = vunpack.c.h.b16 %v4160
    %v5589 = vunpack.c.l.b16 %v4161
    %v5590 = vunpack.c.h.b16 %v4161
    %v5591 = vunpack.c.l.b16 %v4162
    %v5592 = vunpack.c.h.b16 %v4162
    %v5593 = vunpack.c.l.b16 %v4163
    %v5594 = vunpack.c.h.b16 %v4163
    %v5595 = vunpack.c.l.b16 %v4164
    %v5596 = vunpack.c.h.b16 %v4164
    %v5597 = vunpack.c.l.b16 %v4165
    %v5598 = vunpack.c.h.b16 %v4165
    %v5599 = vunpack.c.l.b16 %v4166
    %v5600 = vunpack.c.h.b16 %v4166
    %v5601 = vunpack.c.l.b16 %v4167
    %v5602 = vunpack.c.h.b16 %v4167
    %v5603 = vunpack.c.l.b16 %v4168
    %v5604 = vunpack.c.h.b16 %v4168
    %v5605 = vunpack.c.l.b16 %v4169
    %v5606 = vunpack.c.h.b16 %v4169
    %v5607 = vunpack.c.l.b16 %v4170
    %v5608 = vunpack.c.h.b16 %v4170
    %v5609 = vunpack.c.l.b16 %v4171
    %v5610 = vunpack.c.h.b16 %v4171
    %v5611 = vunpack.c.l.b16 %v4172
    %v5612 = vunpack.c.h.b16 %v4172
    %v5613 = vunpack.c.l.b16 %v4173
    %v5614 = vunpack.c.h.b16 %v4173
    %v5615 = vunpack.c.l.b16 %v4174
    %v5616 = vunpack.c.h.b16 %v4174
    %v5617 = vunpack.c.l.b16 %v4175
    %v5618 = vunpack.c.h.b16 %v4175
    %v5619 = vunpack.c.l.b16 %v4176
    %v5620 = vunpack.c.h.b16 %v4176
    %v5621 = vunpack.c.l.b16 %v4177
    %v5622 = vunpack.c.h.b16 %v4177
    %v5623 = vunpack.c.l.b16 %v4178
    %v5624 = vunpack.c.h.b16 %v4178
    %v5625 = vunpack.c.l.b16 %v4179
    %v5626 = vunpack.c.h.b16 %v4179
    %v5627 = vunpack.c.l.b16 %v4180
    %v5628 = vunpack.c.h.b16 %v4180
    %v5629 = vunpack.c.l.b16 %v4181
    %v5630 = vunpack.c.h.b16 %v4181
    %v5631 = vunpack.c.l.b16 %v4182
    %v5632 = vunpack.c.h.b16 %v4182
    %v5633 = vunpack.c.l.b16 %v4183
    %v5634 = vunpack.c.h.b16 %v4183
    %v5635 = vunpack.c.l.b16 %v4184
    %v5636 = vunpack.c.h.b16 %v4184
    %v5637 = vunpack.c.l.b16 %v4185
    %v5638 = vunpack.c.h.b16 %v4185
    %v5639 = vunpack.c.l.b16 %v4186
    %v5640 = vunpack.c.h.b16 %v4186
    %v5641 = vunpack.c.l.b16 %v4187
    %v5642 = vunpack.c.h.b16 %v4187
    %v5643 = vunpack.c.l.b16 %v4188
    %v5644 = vunpack.c.h.b16 %v4188
    %v5645 = vunpack.c.l.b16 %v4189
    %v5646 = vunpack.c.h.b16 %v4189
    %v5647 = vunpack.c.l.b16 %v4190
    %v5648 = vunpack.c.h.b16 %v4190
    %v5649 = vunpack.c.l.b16 %v4191
    %v5650 = vunpack.c.h.b16 %v4191
    %v5651 = vunpack.c.l.b16 %v4192
    %v5652 = vunpack.c.h.b16 %v4192
    %v5653 = vunpack.c.l.b16 %v4193
    %v5654 = vunpack.c.h.b16 %v4193
    %v5655 = vunpack.c.l.b16 %v4194
    %v5656 = vunpack.c.h.b16 %v4194
    %v5657 = vunpack.c.l.b16 %v4195
    %v5658 = vunpack.c.h.b16 %v4195
    %v5659 = vunpack.c.l.b16 %v4196
    %v5660 = vunpack.c.h.b16 %v4196
    %v5661 = vunpack.c.l.b16 %v4197
    %v5662 = vunpack.c.h.b16 %v4197
    %v5663 = vunpack.c.l.b16 %v4198
    %v5664 = vunpack.c.h.b16 %v4198
    %v5665 = vunpack.c.l.b16 %v4199
    %v5666 = vunpack.c.h.b16 %v4199
    %v5667 = vunpack.c.l.b16 %v4200
    %v5668 = vunpack.c.h.b16 %v4200
    %v5669 = vunpack.c.l.b16 %v4201
    %v5670 = vunpack.c.h.b16 %v4201
    %v5671 = vunpack.c.l.b16 %v4202
    %v5672 = vunpack.c.h.b16 %v4202
    %v5673 = vunpack.c.l.b16 %v4203
    %v5674 = vunpack.c.h.b16 %v4203
    %v5675 = vunpack.c.l.b16 %v4204
    %v5676 = vunpack.c.h.b16 %v4204
    %v5677 = vunpack.c.l.b16 %v4205
    %v5678 = vunpack.c.h.b16 %v4205
    %v5679 = vunpack.c.l.b16 %v4206
    %v5680 = vunpack.c.h.b16 %v4206
    %v5681 = vunpack.c.l.b16 %v4207
    %v5682 = vunpack.c.h.b16 %v4207
    %v5683 = vunpack.c.l.b16 %v4208
    %v5684 = vunpack.c.h.b16 %v4208
    %v5685 = vunpack.c.l.b16 %v4209
    %v5686 = vunpack.c.h.b16 %v4209
    %v5687 = vunpack.c.l.b16 %v4210
    %v5688 = vunpack.c.h.b16 %v4210
    %v5689 = vunpack.c.l.b16 %v4211
    %v5690 = vunpack.c.h.b16 %v4211
    %v5691 = vunpack.c.l.b16 %v4212
    %v5692 = vunpack.c.h.b16 %v4212
    %v5693 = vunpack.c.l.b16 %v4213
    %v5694 = vunpack.c.h.b16 %v4213
    %v5695 = vunpack.c.l.b16 %v4214
    %v5696 = vunpack.c.h.b16 %v4214
    %v5697 = vunpack.c.l.b16 %v4215
    %v5698 = vunpack.c.h.b16 %v4215
    %v5699 = vunpack.c.l.b16 %v4216
    %v5700 = vunpack.c.h.b16 %v4216
    %v5701 = vunpack.c.l.b16 %v4217
    %v5702 = vunpack.c.h.b16 %v4217
    %v5703 = vunpack.c.l.b16 %v4218
    %v5704 = vunpack.c.h.b16 %v4218
    %v5705 = vunpack.c.l.b16 %v4219
    %v5706 = vunpack.c.h.b16 %v4219
    %v5707 = vunpack.c.l.b16 %v4220
    %v5708 = vunpack.c.h.b16 %v4220
    %v5709 = vunpack.c.l.b16 %v4221
    %v5710 = vunpack.c.h.b16 %v4221
    %v5711 = vunpack.c.l.b16 %v4222
    %v5712 = vunpack.c.h.b16 %v4222
    %v5713 = vunpack.c.l.b16 %v4223
    %v5714 = vunpack.c.h.b16 %v4223
    %v5715 = vunpack.c.l.b16 %v4224
    %v5716 = vunpack.c.h.b16 %v4224
    %v5717 = vunpack.c.l.b16 %v4225
    %v5718 = vunpack.c.h.b16 %v4225
    %v5719 = vunpack.c.l.b16 %v4226
    %v5720 = vunpack.c.h.b16 %v4226
    %v5721 = vunpack.c.l.b16 %v4227
    %v5722 = vunpack.c.h.b16 %v4227
    %v5723 = vunpack.c.l.b16 %v4228
    %v5724 = vunpack.c.h.b16 %v4228
    %v5725 = vunpack.c.l.b16 %v4229
    %v5726 = vunpack.c.h.b16 %v4229
    %v5727 = vunpack.c.l.b16 %v4230
    %v5728 = vunpack.c.h.b16 %v4230
    %v5729 = vunpack.c.l.b16 %v4231
    %v5730 = vunpack.c.h.b16 %v4231
    %v5731 = vunpack.c.l.b16 %v4232
    %v5732 = vunpack.c.h.b16 %v4232
    %v5733 = vunpack.c.l.b16 %v4233
    %v5734 = vunpack.c.h.b16 %v4233
    %v5735 = vunpack.c.l.b16 %v4234
    %v5736 = vunpack.c.h.b16 %v4234
    %v5737 = vunpack.c.l.b16 %v4235
    %v5738 = vunpack.c.h.b16 %v4235
    %v5739 = vunpack.c.l.b16 %v4236
    %v5740 = vunpack.c.h.b16 %v4236
    %v5741 = vunpack.c.l.b16 %v4237
    %v5742 = vunpack.c.h.b16 %v4237
    %v5743 = vunpack.c.l.b16 %v4238
    %v5744 = vunpack.c.h.b16 %v4238
    %v5745 = vunpack.c.l.b16 %v4239
    %v5746 = vunpack.c.h.b16 %v4239
    %v5747 = vunpack.c.l.b16 %v4240
    %v5748 = vunpack.c.h.b16 %v4240
    %v5749 = vunpack.c.l.b16 %v4241
    %v5750 = vunpack.c.h.b16 %v4241
    %v5751 = vunpack.c.l.b16 %v4242
    %v5752 = vunpack.c.h.b16 %v4242
    %v5753 = vunpack.c.l.b16 %v4243
    %v5754 = vunpack.c.h.b16 %v4243
    %v5755 = vunpack.c.l.b16 %v4244
    %v5756 = vunpack.c.h.b16 %v4244
    %v5757 = vunpack.c.l.b16 %v4245
    %v5758 = vunpack.c.h.b16 %v4245
    %v5759 = vunpack.c.l.b16 %v4246
    %v5760 = vunpack.c.h.b16 %v4246
    %v5761 = vunpack.c.l.b16 %v4247
    %v5762 = vunpack.c.h.b16 %v4247
    %v5763 = vunpack.c.l.b16 %v4248
    %v5764 = vunpack.c.h.b16 %v4248
    %v5765 = vunpack.c.l.b16 %v4249
    %v5766 = vunpack.c.h.b16 %v4249
    %v5767 = vunpack.c.l.b16 %v4250
    %v5768 = vunpack.c.h.b16 %v4250
    %v5769 = vunpack.c.l.b16 %v4251
    %v5770 = vunpack.c.h.b16 %v4251
    %v5771 = vunpack.c.l.b16 %v4252
    %v5772 = vunpack.c.h.b16 %v4252
    %v5773 = vunpack.c.l.b16 %v4253
    %v5774 = vunpack.c.h.b16 %v4253
    %v5775 = vunpack.c.l.b16 %v4254
    %v5776 = vunpack.c.h.b16 %v4254
    %v5777 = vunpack.c.l.b16 %v4255
    %v5778 = vunpack.c.h.b16 %v4255
    %v5779 = vunpack.c.l.b16 %v4256
    %v5780 = vunpack.c.h.b16 %v4256
    %v5781 = vunpack.c.l.b16 %v4257
    %v5782 = vunpack.c.h.b16 %v4257
    %v5783 = vunpack.c.l.b16 %v4258
    %v5784 = vunpack.c.h.b16 %v4258
    %v5785 = vunpack.c.l.b16 %v4259
    %v5786 = vunpack.c.h.b16 %v4259
    %v5787 = vunpack.c.l.b16 %v4260
    %v5788 = vunpack.c.h.b16 %v4260
    %v5789 = vunpack.c.l.b16 %v4261
    %v5790 = vunpack.c.h.b16 %v4261
    %v5791 = vunpack.c.l.b16 %v4262
    %v5792 = vunpack.c.h.b16 %v4262
    %v5793 = vunpack.c.l.b16 %v4263
    %v5794 = vunpack.c.h.b16 %v4263
    %v5795 = vunpack.c.l.b16 %v4264
    %v5796 = vunpack.c.h.b16 %v4264
    %v5797 = vunpack.c.l.b16 %v4265
    %v5798 = vunpack.c.h.b16 %v4265
    %v5799 = vunpack.c.l.b16 %v4266
    %v5800 = vunpack.c.h.b16 %v4266
    %v5801 = vunpack.c.l.b16 %v4267
    %v5802 = vunpack.c.h.b16 %v4267
    %v5803 = vunpack.c.l.b16 %v4268
    %v5804 = vunpack.c.h.b16 %v4268
    %v5805 = vunpack.c.l.b16 %v4269
    %v5806 = vunpack.c.h.b16 %v4269
    %v5807 = vunpack.c.l.b16 %v4270
    %v5808 = vunpack.c.h.b16 %v4270
    %v5809 = vunpack.c.l.b16 %v4271
    %v5810 = vunpack.c.h.b16 %v4271
    %v5811 = vunpack.c.l.b16 %v4272
    %v5812 = vunpack.c.h.b16 %v4272
    %v5813 = vunpack.c.l.b16 %v4273
    %v5814 = vunpack.c.h.b16 %v4273
    %v5815 = vunpack.c.l.b16 %v4274
    %v5816 = vunpack.c.h.b16 %v4274
    %v5817 = vunpack.c.l.b16 %v4275
    %v5818 = vunpack.c.h.b16 %v4275
    %v5819 = vunpack.c.l.b16 %v4276
    %v5820 = vunpack.c.h.b16 %v4276
    %v5821 = vunpack.c.l.b16 %v4277
    %v5822 = vunpack.c.h.b16 %v4277
    %v5823 = vunpack.c.l.b16 %v4278
    %v5824 = vunpack.c.h.b16 %v4278
    %v5825 = vunpack.c.l.b16 %v4279
    %v5826 = vunpack.c.h.b16 %v4279
    %v5827 = vunpack.c.l.b16 %v4280
    %v5828 = vunpack.c.h.b16 %v4280
    %v5829 = vunpack.c.l.b16 %v4281
    %v5830 = vunpack.c.h.b16 %v4281
    %v5831 = vunpack.c.l.b16 %v4282
    %v5832 = vunpack.c.h.b16 %v4282
    %v5833 = vunpack.c.l.b16 %v4283
    %v5834 = vunpack.c.h.b16 %v4283
    %v5835 = vunpack.c.l.b16 %v4284
    %v5836 = vunpack.c.h.b16 %v4284
    %v5837 = vunpack.c.l.b16 %v4285
    %v5838 = vunpack.c.h.b16 %v4285
    %v5839 = vunpack.c.l.b16 %v4286
    %v5840 = vunpack.c.h.b16 %v4286
    %v5841 = vunpack.c.l.b16 %v4287
    %v5842 = vunpack.c.h.b16 %v4287
    %v5843 = vunpack.c.l.b16 %v4288
    %v5844 = vunpack.c.h.b16 %v4288
    %v5845 = vunpack.c.l.b16 %v4289
    %v5846 = vunpack.c.h.b16 %v4289
    %v5847 = vunpack.c.l.b16 %v4290
    %v5848 = vunpack.c.h.b16 %v4290
    %v5849 = vunpack.c.l.b16 %v4291
    %v5850 = vunpack.c.h.b16 %v4291
    %v5851 = vunpack.c.l.b16 %v4292
    %v5852 = vunpack.c.h.b16 %v4292
    %v5853 = vunpack.c.l.b16 %v4293
    %v5854 = vunpack.c.h.b16 %v4293
    %v5855 = vunpack.c.l.b16 %v4294
    %v5856 = vunpack.c.h.b16 %v4294
    %v5857 = vunpack.c.l.b16 %v4295
    %v5858 = vunpack.c.h.b16 %v4295
    %v5859 = vunpack.c.l.b16 %v4296
    %v5860 = vunpack.c.h.b16 %v4296
    %v5861 = vunpack.c.l.b16 %v4297
    %v5862 = vunpack.c.h.b16 %v4297
    %v5863 = vunpack.c.l.b16 %v4298
    %v5864 = vunpack.c.h.b16 %v4298
    %v5865 = vunpack.c.l.b16 %v4299
    %v5866 = vunpack.c.h.b16 %v4299
    %v5867 = vunpack.c.l.b16 %v4300
    %v5868 = vunpack.c.h.b16 %v4300
    %v5869 = vunpack.c.l.b16 %v4301
    %v5870 = vunpack.c.h.b16 %v4301
    %v5871 = vunpack.c.l.b16 %v4302
    %v5872 = vunpack.c.h.b16 %v4302
    %v5873 = vunpack.c.l.b16 %v4303
    %v5874 = vunpack.c.h.b16 %v4303
    %v5875 = vunpack.c.l.b16 %v4304
    %v5876 = vunpack.c.h.b16 %v4304
    %v5877 = vunpack.c.l.b16 %v4305
    %v5878 = vunpack.c.h.b16 %v4305
    %v5879 = vunpack.c.l.b16 %v4306
    %v5880 = vunpack.c.h.b16 %v4306
    %v5881 = vunpack.c.l.b16 %v4307
    %v5882 = vunpack.c.h.b16 %v4307
    %v5883 = vunpack.c.l.b16 %v4308
    %v5884 = vunpack.c.h.b16 %v4308
    %v5885 = vunpack.c.l.b16 %v4309
    %v5886 = vunpack.c.h.b16 %v4309
    %v5887 = vunpack.c.l.b16 %v4310
    %v5888 = vunpack.c.h.b16 %v4310
    %v5889 = vunpack.c.l.b16 %v4311
    %v5890 = vunpack.c.h.b16 %v4311
    %v5891 = vunpack.c.l.b16 %v4312
    %v5892 = vunpack.c.h.b16 %v4312
    %v5893 = vunpack.c.l.b16 %v4313
    %v5894 = vunpack.c.h.b16 %v4313
    %v5895 = vunpack.c.l.b16 %v4314
    %v5896 = vunpack.c.h.b16 %v4314
    %v5897 = vunpack.c.l.b16 %v4315
    %v5898 = vunpack.c.h.b16 %v4315
    %v5899 = vunpack.c.l.b16 %v4316
    %v5900 = vunpack.c.h.b16 %v4316
    %v5901 = vunpack.c.l.b16 %v4317
    %v5902 = vunpack.c.h.b16 %v4317
    %v5903 = vunpack.c.l.b16 %v4318
    %v5904 = vunpack.c.h.b16 %v4318
    %v5905 = vunpack.c.l.b16 %v4319
    %v5906 = vunpack.c.h.b16 %v4319
    %v5907 = vunpack.c.l.b16 %v4320
    %v5908 = vunpack.c.h.b16 %v4320
    %v5909 = vunpack.c.l.b16 %v4321
    %v5910 = vunpack.c.h.b16 %v4321
    %v5911 = vunpack.c.l.b16 %v4322
    %v5912 = vunpack.c.h.b16 %v4322
    %v5913 = vunpack.c.l.b16 %v4323
    %v5914 = vunpack.c.h.b16 %v4323
    %v5915 = vunpack.c.l.b16 %v4324
    %v5916 = vunpack.c.h.b16 %v4324
    %v5917 = vunpack.c.l.b16 %v4325
    %v5918 = vunpack.c.h.b16 %v4325
    %v5919 = vunpack.c.l.b16 %v4326
    %v5920 = vunpack.c.h.b16 %v4326
    %v5921 = vunpack.c.l.b16 %v4327
    %v5922 = vunpack.c.h.b16 %v4327
    %v5923 = vunpack.c.l.b16 %v4328
    %v5924 = vunpack.c.h.b16 %v4328
    %v5925 = vunpack.c.l.b16 %v4329
    %v5926 = vunpack.c.h.b16 %v4329
    %v5927 = vunpack.c.l.b16 %v4330
    %v5928 = vunpack.c.h.b16 %v4330
    %v5929 = vunpack.c.l.b16 %v4331
    %v5930 = vunpack.c.h.b16 %v4331
    %v5931 = vunpack.c.l.b16 %v4332
    %v5932 = vunpack.c.h.b16 %v4332
    %v5933 = vunpack.c.l.b16 %v4333
    %v5934 = vunpack.c.h.b16 %v4333
    %v5935 = vunpack.c.l.b16 %v4334
    %v5936 = vunpack.c.h.b16 %v4334
    %v5937 = vunpack.c.l.b16 %v4335
    %v5938 = vunpack.c.h.b16 %v4335
    %v5939 = vunpack.c.l.b16 %v4336
    %v5940 = vunpack.c.h.b16 %v4336
    %v5941 = vunpack.c.l.b16 %v4337
    %v5942 = vunpack.c.h.b16 %v4337
    %v5943 = vunpack.c.l.b16 %v4338
    %v5944 = vunpack.c.h.b16 %v4338
    %v5945 = vunpack.c.l.b16 %v4339
    %v5946 = vunpack.c.h.b16 %v4339
    %v5947 = vunpack.c.l.b16 %v4340
    %v5948 = vunpack.c.h.b16 %v4340
    %v5949 = vunpack.c.l.b16 %v4341
    %v5950 = vunpack.c.h.b16 %v4341
    %v5951 = vunpack.c.l.b16 %v4342
    %v5952 = vunpack.c.h.b16 %v4342
    %v5953 = vunpack.c.l.b16 %v4343
    %v5954 = vunpack.c.h.b16 %v4343
    %v5955 = vunpack.c.l.b16 %v4344
    %v5956 = vunpack.c.h.b16 %v4344
    %v5957 = vunpack.c.l.b16 %v4345
    %v5958 = vunpack.c.h.b16 %v4345
    %v5959 = vunpack.c.l.b16 %v4346
    %v5960 = vunpack.c.h.b16 %v4346
    %v5961 = vunpack.c.l.b16 %v4347
    %v5962 = vunpack.c.h.b16 %v4347
    %v5963 = vunpack.c.l.b16 %v4348
    %v5964 = vunpack.c.h.b16 %v4348
    %v5965 = vunpack.c.l.b16 %v4349
    %v5966 = vunpack.c.h.b16 %v4349
    %v5967 = vunpack.c.l.b16 %v4350
    %v5968 = vunpack.c.h.b16 %v4350
    %v5969 = vunpack.c.l.b16 %v4351
    %v5970 = vunpack.c.h.b16 %v4351
    %v5971 = vunpack.c.l.b16 %v4352
    %v5972 = vunpack.c.h.b16 %v4352
    %v5973 = vunpack.c.l.b16 %v4353
    %v5974 = vunpack.c.h.b16 %v4353
    %v5975 = vunpack.c.l.b16 %v4354
    %v5976 = vunpack.c.h.b16 %v4354
    %v5977 = vunpack.c.l.b16 %v4355
    %v5978 = vunpack.c.h.b16 %v4355
    %v5979 = vunpack.c.l.b16 %v4356
    %v5980 = vunpack.c.h.b16 %v4356
    %v5981 = vunpack.c.l.b16 %v4357
    %v5982 = vunpack.c.h.b16 %v4357
    %v5983 = vunpack.c.l.b16 %v4358
    %v5984 = vunpack.c.h.b16 %v4358
    %v5985 = vunpack.c.l.b16 %v4359
    %v5986 = vunpack.c.h.b16 %v4359
    %v5987 = vunpack.c.l.b16 %v4360
    %v5988 = vunpack.c.h.b16 %v4360
    %v5989 = vunpack.c.l.b16 %v4361
    %v5990 = vunpack.c.h.b16 %v4361
    %v5991 = vunpack.c.l.b16 %v4362
    %v5992 = vunpack.c.h.b16 %v4362
    %v5993 = vunpack.c.l.b16 %v4363
    %v5994 = vunpack.c.h.b16 %v4363
    %v5995 = vunpack.c.l.b16 %v4364
    %v5996 = vunpack.c.h.b16 %v4364
    %v5997 = vunpack.c.l.b16 %v4365
    %v5998 = vunpack.c.h.b16 %v4365
    %v5999 = vunpack.c.l.b16 %v4366
    %v6000 = vunpack.c.h.b16 %v4366
    %v6001 = vunpack.c.l.b16 %v4367
    %v6002 = vunpack.c.h.b16 %v4367
    %v6003 = vunpack.c.l.b16 %v4368
    %v6004 = vunpack.c.h.b16 %v4368
    %v6005 = vunpack.c.l.b16 %v4369
    %v6006 = vunpack.c.h.b16 %v4369
    %v6007 = vunpack.c.l.b16 %v4370
    %v6008 = vunpack.c.h.b16 %v4370
    %v6009 = vunpack.c.l.b16 %v4371
    %v6010 = vunpack.c.h.b16 %v4371
    %v6011 = vunpack.c.l.b16 %v4372
    %v6012 = vunpack.c.h.b16 %v4372
    %v6013 = vunpack.c.l.b16 %v4373
    %v6014 = vunpack.c.h.b16 %v4373
    %v6015 = vunpack.c.l.b16 %v4374
    %v6016 = vunpack.c.h.b16 %v4374
    %v6017 = vunpack.c.l.b16 %v4375
    %v6018 = vunpack.c.h.b16 %v4375
    %v6019 = vunpack.c.l.b16 %v4376
    %v6020 = vunpack.c.h.b16 %v4376
    %v6021 = vunpack.c.l.b16 %v4377
    %v6022 = vunpack.c.h.b16 %v4377
    %v6023 = vunpack.c.l.b16 %v4378
    %v6024 = vunpack.c.h.b16 %v4378
    %v6025 = vunpack.c.l.b16 %v4379
    %v6026 = vunpack.c.h.b16 %v4379
    %v6027 = vunpack.c.l.b16 %v4380
    %v6028 = vunpack.c.h.b16 %v4380
    %v6029 = vunpack.c.l.b16 %v4381
    %v6030 = vunpack.c.h.b16 %v4381
    %v6031 = vunpack.c.l.b16 %v4382
    %v6032 = vunpack.c.h.b16 %v4382
    %v6033 = vunpack.c.l.b16 %v4383
    %v6034 = vunpack.c.h.b16 %v4383
    %v6035 = vunpack.c.l.b16 %v4384
    %v6036 = vunpack.c.h.b16 %v4384
    %v6037 = vunpack.c.l.b16 %v4385
    %v6038 = vunpack.c.h.b16 %v4385
    %v6039 = vunpack.c.l.b16 %v4386
    %v6040 = vunpack.c.h.b16 %v4386
    %v6041 = vunpack.c.l.b16 %v4387
    %v6042 = vunpack.c.h.b16 %v4387
    %v6043 = vunpack.c.l.b16 %v4388
    %v6044 = vunpack.c.h.b16 %v4388
    %v6045 = vunpack.c.l.b16 %v4389
    %v6046 = vunpack.c.h.b16 %v4389
    %v6047 = vunpack.c.l.b16 %v4390
    %v6048 = vunpack.c.h.b16 %v4390
    %v6049 = vunpack.c.l.b16 %v4391
    %v6050 = vunpack.c.h.b16 %v4391
    %v6051 = vunpack.c.l.b16 %v4392
    %v6052 = vunpack.c.h.b16 %v4392
    %v6053 = vunpack.c.l.b16 %v4393
    %v6054 = vunpack.c.h.b16 %v4393
    %v6055 = vunpack.c.l.b16 %v4394
    %v6056 = vunpack.c.h.b16 %v4394
    %v6057 = vunpack.c.l.b16 %v4395
    %v6058 = vunpack.c.h.b16 %v4395
    %v6059 = vunpack.c.l.b16 %v4396
    %v6060 = vunpack.c.h.b16 %v4396
    %v6061 = vunpack.c.l.b16 %v4397
    %v6062 = vunpack.c.h.b16 %v4397
    %v6063 = vunpack.c.l.b16 %v4398
    %v6064 = vunpack.c.h.b16 %v4398
    %v6065 = vunpack.c.l.b16 %v4399
    %v6066 = vunpack.c.h.b16 %v4399
    %v6067 = vunpack.c.l.b16 %v4400
    %v6068 = vunpack.c.h.b16 %v4400
    %v6069 = vunpack.c.l.b16 %v4401
    %v6070 = vunpack.c.h.b16 %v4401
    %v6071 = vunpack.c.l.b16 %v4402
    %v6072 = vunpack.c.h.b16 %v4402
    %v6073 = vunpack.c.l.b16 %v4403
    %v6074 = vunpack.c.h.b16 %v4403
    %v6075 = vunpack.c.l.b16 %v4404
    %v6076 = vunpack.c.h.b16 %v4404
    %v6077 = vunpack.c.l.b16 %v4405
    %v6078 = vunpack.c.h.b16 %v4405
    %v6079 = vunpack.c.l.b16 %v4406
    %v6080 = vunpack.c.h.b16 %v4406
    %v6081 = vunpack.c.l.b16 %v4407
    %v6082 = vunpack.c.h.b16 %v4407
    %v6083 = vunpack.c.l.b16 %v4408
    %v6084 = vunpack.c.h.b16 %v4408
    %v6085 = vunpack.c.l.b16 %v4409
    %v6086 = vunpack.c.h.b16 %v4409
    %v6087 = vunpack.c.l.b16 %v4410
    %v6088 = vunpack.c.h.b16 %v4410
    %v6089 = vunpack.c.l.b16 %v4411
    %v6090 = vunpack.c.h.b16 %v4411
    %v6091 = vunpack.c.l.b16 %v4412
    %v6092 = vunpack.c.h.b16 %v4412
    %v6093 = vunpack.c.l.b16 %v4413
    %v6094 = vunpack.c.h.b16 %v4413
    %v6095 = vunpack.c.l.b16 %v4414
    %v6096 = vunpack.c.h.b16 %v4414
    %v6097 = vunpack.c.l.b16 %v4415
    %v6098 = vunpack.c.h.b16 %v4415
    %v6099 = vunpack.c.l.b16 %v4416
    %v6100 = vunpack.c.h.b16 %v4416
    %v6101 = vunpack.c.l.b16 %v4417
    %v6102 = vunpack.c.h.b16 %v4417
    %v6103 = vunpack.c.l.b16 %v4418
    %v6104 = vunpack.c.h.b16 %v4418
    %v6105 = vunpack.c.l.b16 %v4419
    %v6106 = vunpack.c.h.b16 %v4419
    %v6107 = vunpack.c.l.b16 %v4420
    %v6108 = vunpack.c.h.b16 %v4420
    %v6109 = vunpack.c.l.b16 %v4421
    %v6110 = vunpack.c.h.b16 %v4421
    %v6111 = vunpack.c.l.b16 %v4422
    %v6112 = vunpack.c.h.b16 %v4422
    %v6113 = vunpack.c.l.b16 %v4423
    %v6114 = vunpack.c.h.b16 %v4423
    %v6115 = vunpack.c.l.b16 %v4424
    %v6116 = vunpack.c.h.b16 %v4424
    %v6117 = vunpack.c.l.b16 %v4425
    %v6118 = vunpack.c.h.b16 %v4425
    %v6119 = vunpack.c.l.b16 %v4426
    %v6120 = vunpack.c.h.b16 %v4426
    %v6121 = vunpack.c.l.b16 %v4427
    %v6122 = vunpack.c.h.b16 %v4427
    %v6123 = vunpack.c.l.b16 %v4428
    %v6124 = vunpack.c.h.b16 %v4428
    %v6125 = vunpack.c.l.b16 %v4429
    %v6126 = vunpack.c.h.b16 %v4429
    %v6127 = vunpack.c.l.b16 %v4430
    %v6128 = vunpack.c.h.b16 %v4430
    %v6129 = vunpack.c.l.b16 %v4431
    %v6130 = vunpack.c.h.b16 %v4431
    %v6131 = vunpack.c.l.b16 %v4432
    %v6132 = vunpack.c.h.b16 %v4432
    %v6133 = vunpack.c.l.b16 %v4433
    %v6134 = vunpack.c.h.b16 %v4433
    %v6135 = vunpack.c.l.b16 %v4434
    %v6136 = vunpack.c.h.b16 %v4434
    %v6137 = vunpack.c.l.b16 %v4435
    %v6138 = vunpack.c.h.b16 %v4435
    %v6139 = vunpack.c.l.b16 %v4436
    %v6140 = vunpack.c.h.b16 %v4436
    %v6141 = vpack.c.b16 %v5149, %v5117
    %v6142 = vpack.c.b16 %v5150, %v5118
    %v6143 = vpack.c.b16 %v5151, %v5119
    %v6144 = vpack.c.b16 %v5152, %v5120
    %v6145 = vpack.c.b16 %v5153, %v5121
    %v6146 = vpack.c.b16 %v5154, %v5122
    %v6147 = vpack.c.b16 %v5155, %v5123
    %v6148 = vpack.c.b16 %v5156, %v5124
    %v6149 = vpack.c.b16 %v5157, %v5125
    %v6150 = vpack.c.b16 %v5158, %v5126
    %v6151 = vpack.c.b16 %v5159, %v5127
    %v6152 = vpack.c.b16 %v5160, %v5128
    %v6153 = vpack.c.b16 %v5161, %v5129
    %v6154 = vpack.c.b16 %v5162, %v5130
    %v6155 = vpack.c.b16 %v5163, %v5131
    %v6156 = vpack.c.b16 %v5164, %v5132
    %v6157 = vpack.c.b16 %v5165, %v5133
    %v6158 = vpack.c.b16 %v5166, %v5134
    %v6159 = vpack.c.b16 %v5167, %v5135
    %v6160 = vpack.c.b16 %v5168, %v5136
    %v6161 = vpack.c.b16 %v5169, %v5137
    %v6162 = vpack.c.b16 %v5170, %v5138
    %v6163 = vpack.c.b16 %v5171, %v5139
    %v6164 = vpack.c.b16 %v5172, %v5140
    %v6165 = vpack.c.b16 %v5173, %v5141
    %v6166 = vpack.c.b16 %v5174, %v5142
    %v6167 = vpack.c.b16 %v5175, %v5143
    %v6168 = vpack.c.b16 %v5176, %v5144
    %v6169 = vpack.c.b16 %v5177, %v5145
    %v6170 = vpack.c.b16 %v5178, %v5146
    %v6171 = vpack.c.b16 %v5179, %v5147
    %v6172 = vpack.c.b16 %v5180, %v5148
    %v6173 = vpack.c.b16 %v5213, %v5181
    %v6174 = vpack.c.b16 %v5214, %v5182
    %v6175 = vpack.c.b16 %v5215, %v5183
    %v6176 = vpack.c.b16 %v5216, %v5184
    %v6177 = vpack.c.b16 %v5217, %v5185
    %v6178 = vpack.c.b16 %v5218, %v5186
    %v6179 = vpack.c.b16 %v5219, %v5187
    %v6180 = vpack.c.b16 %v5220, %v5188
    %v6181 = vpack.c.b16 %v5221, %v5189
    %v6182 = vpack.c.b16 %v5222, %v5190
    %v6183 = vpack.c.b16 %v5223, %v5191
    %v6184 = vpack.c.b16 %v5224, %v5192
    %v6185 = vpack.c.b16 %v5225, %v5193
    %v6186 = vpack.c.b16 %v5226, %v5194
    %v6187 = vpack.c.b16 %v5227, %v5195
    %v6188 = vpack.c.b16 %v5228, %v5196
    %v6189 = vpack.c.b16 %v5229, %v5197
    %v6190 = vpack.c.b16 %v5230, %v5198
    %v6191 = vpack.c.b16 %v5231, %v5199
    %v6192 = vpack.c.b16 %v5232, %v5200
    %v6193 = vpack.c.b16 %v5233, %v5201
    %v6194 = vpack.c.b16 %v5234, %v5202
    %v6195 = vpack.c.b16 %v5235, %v5203
    %v6196 = vpack.c.b16 %v5236, %v5204
    %v6197 = vpack.c.b16 %v5237, %v5205
    %v6198 = vpack.c.b16 %v5238, %v5206
    %v6199 = vpack.c.b16 %v5239, %v5207
    %v6200 = vpack.c.b16 %v5240, %v5208
    %v6201 = vpack.c.b16 %v5241, %v5209
    %v6202 = vpack.c.b16 %v5242, %v5210
    %v6203 = vpack.c.b16 %v5243, %v5211
    %v6204 = vpack.c.b16 %v5244, %v5212
    %v6205 = vpack.c.b16 %v5277, %v5245
    %v6206 = vpack.c.b16 %v5278, %v5246
    %v6207 = vpack.c.b16 %v5279, %v5247
    %v6208 = vpack.c.b16 %v5280, %v5248
    %v6209 = vpack.c.b16 %v5281, %v5249
    %v6210 = vpack.c.b16 %v5282, %v5250
    %v6211 = vpack.c.b16 %v5283, %v5251
    %v6212 = vpack.c.b16 %v5284, %v5252
    %v6213 = vpack.c.b16 %v5285, %v5253
    %v6214 = vpack.c.b16 %v5286, %v5254
    %v6215 = vpack.c.b16 %v5287, %v5255
    %v6216 = vpack.c.b16 %v5288, %v5256
    %v6217 = vpack.c.b16 %v5289, %v5257
    %v6218 = vpack.c.b16 %v5290, %v5258
    %v6219 = vpack.c.b16 %v5291, %v5259
    %v6220 = vpack.c.b16 %v5292, %v5260
    %v6221 = vpack.c.b16 %v5293, %v5261
    %v6222 = vpack.c.b16 %v5294, %v5262
    %v6223 = vpack.c.b16 %v5295, %v5263
    %v6224 = vpack.c.b16 %v5296, %v5264
    %v6225 = vpack.c.b16 %v5297, %v5265
    %v6226 = vpack.c.b16 %v5298, %v5266
    %v6227 = vpack.c.b16 %v5299, %v5267
    %v6228 = vpack.c.b16 %v5300, %v5268
    %v6229 = vpack.c.b16 %v5301, %v5269
    %v6230 = vpack.c.b16 %v5302, %v5270
    %v6231 = vpack.c.b16 %v5303, %v5271
    %v6232 = vpack.c.b16 %v5304, %v5272
    %v6233 = vpack.c.b16 %v5305, %v5273
    %v6234 = vpack.c.b16 %v5306, %v5274
    %v6235 = vpack.c.b16 %v5307, %v5275
    %v6236 = vpack.c.b16 %v5308, %v5276
    %v6237 = vpack.c.b16 %v5341, %v5309
    %v6238 = vpack.c.b16 %v5342, %v5310
    %v6239 = vpack.c.b16 %v5343, %v5311
    %v6240 = vpack.c.b16 %v5344, %v5312
    %v6241 = vpack.c.b16 %v5345, %v5313
    %v6242 = vpack.c.b16 %v5346, %v5314
    %v6243 = vpack.c.b16 %v5347, %v5315
    %v6244 = vpack.c.b16 %v5348, %v5316
    %v6245 = vpack.c.b16 %v5349, %v5317
    %v6246 = vpack.c.b16 %v5350, %v5318
    %v6247 = vpack.c.b16 %v5351, %v5319
    %v6248 = vpack.c.b16 %v5352, %v5320
    %v6249 = vpack.c.b16 %v5353, %v5321
    %v6250 = vpack.c.b16 %v5354, %v5322
    %v6251 = vpack.c.b16 %v5355, %v5323
    %v6252 = vpack.c.b16 %v5356, %v5324
    %v6253 = vpack.c.b16 %v5357, %v5325
    %v6254 = vpack.c.b16 %v5358, %v5326
    %v6255 = vpack.c.b16 %v5359, %v5327
    %v6256 = vpack.c.b16 %v5360, %v5328
    %v6257 = vpack.c.b16 %v5361, %v5329
    %v6258 = vpack.c.b16 %v5362, %v5330
    %v6259 = vpack.c.b16 %v5363, %v5331
    %v6260 = vpack.c.b16 %v5364, %v5332
    %v6261 = vpack.c.b16 %v5365, %v5333
    %v6262 = vpack.c.b16 %v5366, %v5334
    %v6263 = vpack.c.b16 %v5367, %v5335
    %v6264 = vpack.c.b16 %v5368, %v5336
    %v6265 = vpack.c.b16 %v5369, %v5337
    %v6266 = vpack.c.b16 %v5370, %v5338
    %v6267 = vpack.c.b16 %v5371, %v5339
    %v6268 = vpack.c.b16 %v5372, %v5340
    %v6269 = vpack.c.b16 %v5405, %v5373
    %v6270 = vpack.c.b16 %v5406, %v5374
    %v6271 = vpack.c.b16 %v5407, %v5375
    %v6272 = vpack.c.b16 %v5408, %v5376
    %v6273 = vpack.c.b16 %v5409, %v5377
    %v6274 = vpack.c.b16 %v5410, %v5378
    %v6275 = vpack.c.b16 %v5411, %v5379
    %v6276 = vpack.c.b16 %v5412, %v5380
    %v6277 = vpack.c.b16 %v5413, %v5381
    %v6278 = vpack.c.b16 %v5414, %v5382
    %v6279 = vpack.c.b16 %v5415, %v5383
    %v6280 = vpack.c.b16 %v5416, %v5384
    %v6281 = vpack.c.b16 %v5417, %v5385
    %v6282 = vpack.c.b16 %v5418, %v5386
    %v6283 = vpack.c.b16 %v5419, %v5387
    %v6284 = vpack.c.b16 %v5420, %v5388
    %v6285 = vpack.c.b16 %v5421, %v5389
    %v6286 = vpack.c.b16 %v5422, %v5390
    %v6287 = vpack.c.b16 %v5423, %v5391
    %v6288 = vpack.c.b16 %v5424, %v5392
    %v6289 = vpack.c.b16 %v5425, %v5393
    %v6290 = vpack.c.b16 %v5426, %v5394
    %v6291 = vpack.c.b16 %v5427, %v5395
    %v6292 = vpack.c.b16 %v5428, %v5396
    %v6293 = vpack.c.b16 %v5429, %v5397
    %v6294 = vpack.c.b16 %v5430, %v5398
    %v6295 = vpack.c.b16 %v5431, %v5399
    %v6296 = vpack.c.b16 %v5432, %v5400
    %v6297 = vpack.c.b16 %v5433, %v5401
    %v6298 = vpack.c.b16 %v5434, %v5402
    %v6299 = vpack.c.b16 %v5435, %v5403
    %v6300 = vpack.c.b16 %v5436, %v5404
    %v6301 = vpack.c.b16 %v5469, %v5437
    %v6302 = vpack.c.b16 %v5470, %v5438
    %v6303 = vpack.c.b16 %v5471, %v5439
    %v6304 = vpack.c.b16 %v5472, %v5440
    %v6305 = vpack.c.b16 %v5473, %v5441
    %v6306 = vpack.c.b16 %v5474, %v5442
    %v6307 = vpack.c.b16 %v5475, %v5443
    %v6308 = vpack.c.b16 %v5476, %v5444
    %v6309 = vpack.c.b16 %v5477, %v5445
    %v6310 = vpack.c.b16 %v5478, %v5446
    %v6311 = vpack.c.b16 %v5479, %v5447
    %v6312 = vpack.c.b16 %v5480, %v5448
    %v6313 = vpack.c.b16 %v5481, %v5449
    %v6314 = vpack.c.b16 %v5482, %v5450
    %v6315 = vpack.c.b16 %v5483, %v5451
    %v6316 = vpack.c.b16 %v5484, %v5452
    %v6317 = vpack.c.b16 %v5485, %v5453
    %v6318 = vpack.c.b16 %v5486, %v5454
    %v6319 = vpack.c.b16 %v5487, %v5455
    %v6320 = vpack.c.b16 %v5488, %v5456
    %v6321 = vpack.c.b16 %v5489, %v5457
    %v6322 = vpack.c.b16 %v5490, %v5458
    %v6323 = vpack.c.b16 %v5491, %v5459
    %v6324 = vpack.c.b16 %v5492, %v5460
    %v6325 = vpack.c.b16 %v5493, %v5461
    %v6326 = vpack.c.b16 %v5494, %v5462
    %v6327 = vpack.c.b16 %v5495, %v5463
    %v6328 = vpack.c.b16 %v5496, %v5464
    %v6329 = vpack.c.b16 %v5497, %v5465
    %v6330 = vpack.c.b16 %v5498, %v5466
    %v6331 = vpack.c.b16 %v5499, %v5467
    %v6332 = vpack.c.b16 %v5500, %v5468
    %v6333 = vpack.c.b16 %v5533, %v5501
    %v6334 = vpack.c.b16 %v5534, %v5502
    %v6335 = vpack.c.b16 %v5535, %v5503
    %v6336 = vpack.c.b16 %v5536, %v5504
    %v6337 = vpack.c.b16 %v5537, %v5505
    %v6338 = vpack.c.b16 %v5538, %v5506
    %v6339 = vpack.c.b16 %v5539, %v5507
    %v6340 = vpack.c.b16 %v5540, %v5508
    %v6341 = vpack.c.b16 %v5541, %v5509
    %v6342 = vpack.c.b16 %v5542, %v5510
    %v6343 = vpack.c.b16 %v5543, %v5511
    %v6344 = vpack.c.b16 %v5544, %v5512
    %v6345 = vpack.c.b16 %v5545, %v5513
    %v6346 = vpack.c.b16 %v5546, %v5514
    %v6347 = vpack.c.b16 %v5547, %v5515
    %v6348 = vpack.c.b16 %v5548, %v5516
    %v6349 = vpack.c.b16 %v5549, %v5517
    %v6350 = vpack.c.b16 %v5550, %v5518
    %v6351 = vpack.c.b16 %v5551, %v5519
    %v6352 = vpack.c.b16 %v5552, %v5520
    %v6353 = vpack.c.b16 %v5553, %v5521
    %v6354 = vpack.c.b16 %v5554, %v5522
    %v6355 = vpack.c.b16 %v5555, %v5523
    %v6356 = vpack.c.b16 %v5556, %v5524
    %v6357 = vpack.c.b16 %v5557, %v5525
    %v6358 = vpack.c.b16 %v5558, %v5526
    %v6359 = vpack.c.b16 %v5559, %v5527
    %v6360 = vpack.c.b16 %v5560, %v5528
    %v6361 = vpack.c.b16 %v5561, %v5529
    %v6362 = vpack.c.b16 %v5562, %v5530
    %v6363 = vpack.c.b16 %v5563, %v5531
    %v6364 = vpack.c.b16 %v5564, %v5532
    %v6365 = vpack.c.b16 %v5597, %v5565
    %v6366 = vpack.c.b16 %v5598, %v5566
    %v6367 = vpack.c.b16 %v5599, %v5567
    %v6368 = vpack.c.b16 %v5600, %v5568
    %v6369 = vpack.c.b16 %v5601, %v5569
    %v6370 = vpack.c.b16 %v5602, %v5570
    %v6371 = vpack.c.b16 %v5603, %v5571
    %v6372 = vpack.c.b16 %v5604, %v5572
    %v6373 = vpack.c.b16 %v5605, %v5573
    %v6374 = vpack.c.b16 %v5606, %v5574
    %v6375 = vpack.c.b16 %v5607, %v5575
    %v6376 = vpack.c.b16 %v5608, %v5576
    %v6377 = vpack.c.b16 %v5609, %v5577
    %v6378 = vpack.c.b16 %v5610, %v5578
    %v6379 = vpack.c.b16 %v5611, %v5579
    %v6380 = vpack.c.b16 %v5612, %v5580
    %v6381 = vpack.c.b16 %v5613, %v5581
    %v6382 = vpack.c.b16 %v5614, %v5582
    %v6383 = vpack.c.b16 %v5615, %v5583
    %v6384 = vpack.c.b16 %v5616, %v5584
    %v6385 = vpack.c.b16 %v5617, %v5585
    %v6386 = vpack.c.b16 %v5618, %v5586
    %v6387 = vpack.c.b16 %v5619, %v5587
    %v6388 = vpack.c.b16 %v5620, %v5588
    %v6389 = vpack.c.b16 %v5621, %v5589
    %v6390 = vpack.c.b16 %v5622, %v5590
    %v6391 = vpack.c.b16 %v5623, %v5591
    %v6392 = vpack.c.b16 %v5624, %v5592
    %v6393 = vpack.c.b16 %v5625, %v5593
    %v6394 = vpack.c.b16 %v5626, %v5594
    %v6395 = vpack.c.b16 %v5627, %v5595
    %v6396 = vpack.c.b16 %v5628, %v5596
    %v6397 = vpack.c.b16 %v5661, %v5629
    %v6398 = vpack.c.b16 %v5662, %v5630
    %v6399 = vpack.c.b16 %v5663, %v5631
    %v6400 = vpack.c.b16 %v5664, %v5632
    %v6401 = vpack.c.b16 %v5665, %v5633
    %v6402 = vpack.c.b16 %v5666, %v5634
    %v6403 = vpack.c.b16 %v5667, %v5635
    %v6404 = vpack.c.b16 %v5668, %v5636
    %v6405 = vpack.c.b16 %v5669, %v5637
    %v6406 = vpack.c.b16 %v5670, %v5638
    %v6407 = vpack.c.b16 %v5671, %v5639
    %v6408 = vpack.c.b16 %v5672, %v5640
    %v6409 = vpack.c.b16 %v5673, %v5641
    %v6410 = vpack.c.b16 %v5674, %v5642
    %v6411 = vpack.c.b16 %v5675, %v5643
    %v6412 = vpack.c.b16 %v5676, %v5644
    %v6413 = vpack.c.b16 %v5677, %v5645
    %v6414 = vpack.c.b16 %v5678, %v5646
    %v6415 = vpack.c.b16 %v5679, %v5647
    %v6416 = vpack.c.b16 %v5680, %v5648
    %v6417 = vpack.c.b16 %v5681, %v5649
    %v6418 = vpack.c.b16 %v5682, %v5650
    %v6419 = vpack.c.b16 %v5683, %v5651
    %v6420 = vpack.c.b16 %v5684, %v5652
    %v6421 = vpack.c.b16 %v5685, %v5653
    %v6422 = vpack.c.b16 %v5686, %v5654
    %v6423 = vpack.c.b16 %v5687, %v5655
    %v6424 = vpack.c.b16 %v5688, %v5656
    %v6425 = vpack.c.b16 %v5689, %v5657
    %v6426 = vpack.c.b16 %v5690, %v5658
    %v6427 = vpack.c.b16 %v5691, %v5659
    %v6428 = vpack.c.b16 %v5692, %v5660
    %v6429 = vpack.c.b16 %v5725, %v5693
    %v6430 = vpack.c.b16 %v5726, %v5694
    %v6431 = vpack.c.b16 %v5727, %v5695
    %v6432 = vpack.c.b16 %v5728, %v5696
    %v6433 = vpack.c.b16 %v5729, %v5697
    %v6434 = vpack.c.b16 %v5730, %v5698
    %v6435 = vpack.c.b16 %v5731, %v5699
    %v6436 = vpack.c.b16 %v5732, %v5700
    %v6437 = vpack.c.b16 %v5733, %v5701
    %v6438 = vpack.c.b16 %v5734, %v5702
    %v6439 = vpack.c.b16 %v5735, %v5703
    %v6440 = vpack.c.b16 %v5736, %v5704
    %v6441 = vpack.c.b16 %v5737, %v5705
    %v6442 = vpack.c.b16 %v5738, %v5706
    %v6443 = vpack.c.b16 %v5739, %v5707
    %v6444 = vpack.c.b16 %v5740, %v5708
    %v6445 = vpack.c.b16 %v5741, %v5709
    %v6446 = vpack.c.b16 %v5742, %v5710
    %v6447 = vpack.c.b16 %v5743, %v5711
    %v6448 = vpack.c.b16 %v5744, %v5712
    %v6449 = vpack.c.b16 %v5745, %v5713
    %v6450 = vpack.c.b16 %v5746, %v5714
    %v6451 = vpack.c.b16 %v5747, %v5715
    %v6452 = vpack.c.b16 %v5748, %v5716
    %v6453 = vpack.c.b16 %v5749, %v5717
    %v6454 = vpack.c.b16 %v5750, %v5718
    %v6455 = vpack.c.b16 %v5751, %v5719
    %v6456 = vpack.c.b16 %v5752, %v5720
    %v6457 = vpack.c.b16 %v5753, %v5721
    %v6458 = vpack.c.b16 %v5754, %v5722
    %v6459 = vpack.c.b16 %v5755, %v5723
    %v6460 = vpack.c.b16 %v5756, %v5724
    %v6461 = vpack.c.b16 %v5789, %v5757
    %v6462 = vpack.c.b16 %v5790, %v5758
    %v6463 = vpack.c.b16 %v5791, %v5759
    %v6464 = vpack.c.b16 %v5792, %v5760
    %v6465 = vpack.c.b16 %v5793, %v5761
    %v6466 = vpack.c.b16 %v5794, %v5762
    %v6467 = vpack.c.b16 %v5795, %v5763
    %v6468 = vpack.c.b16 %v5796, %v5764
    %v6469 = vpack.c.b16 %v5797, %v5765
    %v6470 = vpack.c.b16 %v5798, %v5766
    %v6471 = vpack.c.b16 %v5799, %v5767
    %v6472 = vpack.c.b16 %v5800, %v5768
    %v6473 = vpack.c.b16 %v5801, %v5769
    %v6474 = vpack.c.b16 %v5802, %v5770
    %v6475 = vpack.c.b16 %v5803, %v5771
    %v6476 = vpack.c.b16 %v5804, %v5772
    %v6477 = vpack.c.b16 %v5805, %v5773
    %v6478 = vpack.c.b16 %v5806, %v5774
    %v6479 = vpack.c.b16 %v5807, %v5775
    %v6480 = vpack.c.b16 %v5808, %v5776
    %v6481 = vpack.c.b16 %v5809, %v5777
    %v6482 = vpack.c.b16 %v5810, %v5778
    %v6483 = vpack.c.b16 %v5811, %v5779
    %v6484 = vpack.c.b16 %v5812, %v5780
    %v6485 = vpack.c.b16 %v5813, %v5781
    %v6486 = vpack.c.b16 %v5814, %v5782
    %v6487 = vpack.c.b16 %v5815, %v5783
    %v6488 = vpack.c.b16 %v5816, %v5784
    %v6489 = vpack.c.b16 %v5817, %v5785
    %v6490 = vpack.c.b16 %v5818, %v5786
    %v6491 = vpack.c.b16 %v5819, %v5787
    %v6492 = vpack.c.b16 %v5820, %v5788
    %v6493 = vpack.c.b16 %v5853, %v5821
    %v6494 = vpack.c.b16 %v5854, %v5822
    %v6495 = vpack.c.b16 %v5855, %v5823
    %v6496 = vpack.c.b16 %v5856, %v5824
    %v6497 = vpack.c.b16 %v5857, %v5825
    %v6498 = vpack.c.b16 %v5858, %v5826
    %v6499 = vpack.c.b16 %v5859, %v5827
    %v6500 = vpack.c.b16 %v5860, %v5828
    %v6501 = vpack.c.b16 %v5861, %v5829
    %v6502 = vpack.c.b16 %v5862, %v5830
    %v6503 = vpack.c.b16 %v5863, %v5831
    %v6504 = vpack.c.b16 %v5864, %v5832
    %v6505 = vpack.c.b16 %v5865, %v5833
    %v6506 = vpack.c.b16 %v5866, %v5834
    %v6507 = vpack.c.b16 %v5867, %v5835
    %v6508 = vpack.c.b16 %v5868, %v5836
    %v6509 = vpack.c.b16 %v5869, %v5837
    %v6510 = vpack.c.b16 %v5870, %v5838
    %v6511 = vpack.c.b16 %v5871, %v5839
    %v6512 = vpack.c.b16 %v5872, %v5840
    %v6513 = vpack.c.b16 %v5873, %v5841
    %v6514 = vpack.c.b16 %v5874, %v5842
    %v6515 = vpack.c.b16 %v5875, %v5843
    %v6516 = vpack.c.b16 %v5876, %v5844
    %v6517 = vpack.c.b16 %v5877, %v5845
    %v6518 = vpack.c.b16 %v5878, %v5846
    %v6519 = vpack.c.b16 %v5879, %v5847
    %v6520 = vpack.c.b16 %v5880, %v5848
    %v6521 = vpack.c.b16 %v5881, %v5849
    %v6522 = vpack.c.b16 %v5882, %v5850
    %v6523 = vpack.c.b16 %v5883, %v5851
    %v6524 = vpack.c.b16 %v5884, %v5852
    %v6525 = vpack.c.b16 %v5917, %v5885
    %v6526 = vpack.c.b16 %v5918, %v5886
    %v6527 = vpack.c.b16 %v5919, %v5887
    %v6528 = vpack.c.b16 %v5920, %v5888
    %v6529 = vpack.c.b16 %v5921, %v5889
    %v6530 = vpack.c.b16 %v5922, %v5890
    %v6531 = vpack.c.b16 %v5923, %v5891
    %v6532 = vpack.c.b16 %v5924, %v5892
    %v6533 = vpack.c.b16 %v5925, %v5893
    %v6534 = vpack.c.b16 %v5926, %v5894
    %v6535 = vpack.c.b16 %v5927, %v5895
    %v6536 = vpack.c.b16 %v5928, %v5896
    %v6537 = vpack.c.b16 %v5929, %v5897
    %v6538 = vpack.c.b16 %v5930, %v5898
    %v6539 = vpack.c.b16 %v5931, %v5899
    %v6540 = vpack.c.b16 %v5932, %v5900
    %v6541 = vpack.c.b16 %v5933, %v5901
    %v6542 = vpack.c.b16 %v5934, %v5902
    %v6543 = vpack.c.b16 %v5935, %v5903
    %v6544 = vpack.c.b16 %v5936, %v5904
    %v6545 = vpack.c.b16 %v5937, %v5905
    %v6546 = vpack.c.b16 %v5938, %v5906
    %v6547 = vpack.c.b16 %v5939, %v5907
    %v6548 = vpack.c.b16 %v5940, %v5908
    %v6549 = vpack.c.b16 %v5941, %v5909
    %v6550 = vpack.c.b16 %v5942, %v5910
    %v6551 = vpack.c.b16 %v5943, %v5911
    %v6552 = vpack.c.b16 %v5944, %v5912
    %v6553 = vpack.c.b16 %v5945, %v5913
    %v6554 = vpack.c.b16 %v5946, %v5914
    %v6555 = vpack.c.b16 %v5947, %v5915
    %v6556 = vpack.c.b16 %v5948, %v5916
    %v6557 = vpack.c.b16 %v5981, %v5949
    %v6558 = vpack.c.b16 %v5982, %v5950
    %v6559 = vpack.c.b16 %v5983, %v5951
    %v6560 = vpack.c.b16 %v5984, %v5952
    %v6561 = vpack.c.b16 %v5985, %v5953
    %v6562 = vpack.c.b16 %v5986, %v5954
    %v6563 = vpack.c.b16 %v5987, %v5955
    %v6564 = vpack.c.b16 %v5988, %v5956
    %v6565 = vpack.c.b16 %v5989, %v5957
    %v6566 = vpack.c.b16 %v5990, %v5958
    %v6567 = vpack.c.b16 %v5991, %v5959
    %v6568 = vpack.c.b16 %v5992, %v5960
    %v6569 = vpack.c.b16 %v5993, %v5961
    %v6570 = vpack.c.b16 %v5994, %v5962
    %v6571 = vpack.c.b16 %v5995, %v5963
    %v6572 = vpack.c.b16 %v5996, %v5964
    %v6573 = vpack.c.b16 %v5997, %v5965
    %v6574 = vpack.c.b16 %v5998, %v5966
    %v6575 = vpack.c.b16 %v5999, %v5967
    %v6576 = vpack.c.b16 %v6000, %v5968
    %v6577 = vpack.c.b16 %v6001, %v5969
    %v6578 = vpack.c.b16 %v6002, %v5970
    %v6579 = vpack.c.b16 %v6003, %v5971
    %v6580 = vpack.c.b16 %v6004, %v5972
    %v6581 = vpack.c.b16 %v6005, %v5973
    %v6582 = vpack.c.b16 %v6006, %v5974
    %v6583 = vpack.c.b16 %v6007, %v5975
    %v6584 = vpack.c.b16 %v6008, %v5976
    %v6585 = vpack.c.b16 %v6009, %v5977
    %v6586 = vpack.c.b16 %v6010, %v5978
    %v6587 = vpack.c.b16 %v6011, %v5979
    %v6588 = vpack.c.b16 %v6012, %v5980
    %v6589 = vpack.c.b16 %v6045, %v6013
    %v6590 = vpack.c.b16 %v6046, %v6014
    %v6591 = vpack.c.b16 %v6047, %v6015
    %v6592 = vpack.c.b16 %v6048, %v6016
    %v6593 = vpack.c.b16 %v6049, %v6017
    %v6594 = vpack.c.b16 %v6050, %v6018
    %v6595 = vpack.c.b16 %v6051, %v6019
    %v6596 = vpack.c.b16 %v6052, %v6020
    %v6597 = vpack.c.b16 %v6053, %v6021
    %v6598 = vpack.c.b16 %v6054, %v6022
    %v6599 = vpack.c.b16 %v6055, %v6023
    %v6600 = vpack.c.b16 %v6056, %v6024
    %v6601 = vpack.c.b16 %v6057, %v6025
    %v6602 = vpack.c.b16 %v6058, %v6026
    %v6603 = vpack.c.b16 %v6059, %v6027
    %v6604 = vpack.c.b16 %v6060, %v6028
    %v6605 = vpack.c.b16 %v6061, %v6029
    %v6606 = vpack.c.b16 %v6062, %v6030
    %v6607 = vpack.c.b16 %v6063, %v6031
    %v6608 = vpack.c.b16 %v6064, %v6032
    %v6609 = vpack.c.b16 %v6065, %v6033
    %v6610 = vpack.c.b16 %v6066, %v6034
    %v6611 = vpack.c.b16 %v6067, %v6035
    %v6612 = vpack.c.b16 %v6068, %v6036
    %v6613 = vpack.c.b16 %v6069, %v6037
    %v6614 = vpack.c.b16 %v6070, %v6038
    %v6615 = vpack.c.b16 %v6071, %v6039
    %v6616 = vpack.c.b16 %v6072, %v6040
    %v6617 = vpack.c.b16 %v6073, %v6041
    %v6618 = vpack.c.b16 %v6074, %v6042
    %v6619 = vpack.c.b16 %v6075, %v6043
    %v6620 = vpack.c.b16 %v6076, %v6044
    %v6621 = vpack.c.b16 %v6109, %v6077
    %v6622 = vpack.c.b16 %v6110, %v6078
    %v6623 = vpack.c.b16 %v6111, %v6079
    %v6624 = vpack.c.b16 %v6112, %v6080
    %v6625 = vpack.c.b16 %v6113, %v6081
    %v6626 = vpack.c.b16 %v6114, %v6082
    %v6627 = vpack.c.b16 %v6115, %v6083
    %v6628 = vpack.c.b16 %v6116, %v6084
    %v6629 = vpack.c.b16 %v6117, %v6085
    %v6630 = vpack.c.b16 %v6118, %v6086
    %v6631 = vpack.c.b16 %v6119, %v6087
    %v6632 = vpack.c.b16 %v6120, %v6088
    %v6633 = vpack.c.b16 %v6121, %v6089
    %v6634 = vpack.c.b16 %v6122, %v6090
    %v6635 = vpack.c.b16 %v6123, %v6091
    %v6636 = vpack.c.b16 %v6124, %v6092
    %v6637 = vpack.c.b16 %v6125, %v6093
    %v6638 = vpack.c.b16 %v6126, %v6094
    %v6639 = vpack.c.b16 %v6127, %v6095
    %v6640 = vpack.c.b16 %v6128, %v6096
    %v6641 = vpack.c.b16 %v6129, %v6097
    %v6642 = vpack.c.b16 %v6130, %v6098
    %v6643 = vpack.c.b16 %v6131, %v6099
    %v6644 = vpack.c.b16 %v6132, %v6100
    %v6645 = vpack.c.b16 %v6133, %v6101
    %v6646 = vpack.c.b16 %v6134, %v6102
    %v6647 = vpack.c.b16 %v6135, %v6103
    %v6648 = vpack.c.b16 %v6136, %v6104
    %v6649 = vpack.c.b16 %v6137, %v6105
    %v6650 = vpack.c.b16 %v6138, %v6106
    %v6651 = vpack.c.b16 %v6139, %v6107
    %v6652 = vpack.c.b16 %v6140, %v6108
    %7165 = vmatprep.subr.bf16.mxu0 %v6366
    %7166 = vmatpush1.bf16.msra.mxu0 %v6365
    %7167 = vmatprep.subr.bf16.mxu0 %v6334
    %7168 = vmatpush1.bf16.msra.mxu0 %v6333
    %7169 = vmatprep.subr.bf16.mxu0 %v6302
    %7170 = vmatpush1.bf16.msra.mxu0 %v6301
    %7171 = vmatprep.subr.bf16.mxu0 %v6270
    %7172 = vmatpush1.bf16.msra.mxu0 %v6269
    %7173 = vmatprep.subr.bf16.mxu0 %v6238
    %7174 = vmatpush1.bf16.msra.mxu0 %v6237
    %7175 = vmatprep.subr.bf16.mxu0 %v6206
    %7176 = vmatpush1.bf16.msra.mxu0 %v6205
    %7177 = vmatprep.subr.bf16.mxu0 %v6174
    %7178 = vmatpush1.bf16.msra.mxu0 %v6173
    %7179 = vmatprep.subr.bf16.mxu0 %v6142
    %7180 = vmatpush1.bf16.msra.mxu0 %v6141
    %7181 = vmatprep.subr.bf16.mxu0 %v6622
    %7182 = vmatpush2.bf16.msra.mxu0 %v6621
    %7183 = vmatprep.subr.bf16.mxu0 %v6590
    %7184 = vmatpush2.bf16.msra.mxu0 %v6589
    %7185 = vmatprep.subr.bf16.mxu0 %v6558
    %7186 = vmatpush2.bf16.msra.mxu0 %v6557
    %7187 = vmatprep.subr.bf16.mxu0 %v6526
    %7188 = vmatpush2.bf16.msra.mxu0 %v6525
    %7189 = vmatprep.subr.bf16.mxu0 %v6494
    %7190 = vmatpush2.bf16.msra.mxu0 %v6493
    %7191 = vmatprep.subr.bf16.mxu0 %v6462
    %7192 = vmatpush2.bf16.msra.mxu0 %v6461
    %7193 = vmatprep.subr.bf16.mxu0 %v6430
    %7194 = vmatpush2.bf16.msra.mxu0 %v6429
    %7195 = vmatprep.subr.bf16.mxu0 %v6398
    %7196 = vmatpush2.bf16.msra.mxu0 %v6397
    %7197 = vmatprep.mubr.bf16.mxu0 %v3924
    %7198 = vmatmul.mubr.bf16.gmra.mxu0 %v3923
    %v7199 = vpop.f32.mrf.mxu0
    %v7200 = vadd.f32 %v4448, %v7199
    %v7201 = vpop.f32.mrf.mxu0
    %v7202 = vadd.f32 %v4452, %v7201
    %v7203 = vpop.f32.mrf.mxu0
    %v7204 = vpop.f32.mrf.mxu0
    %7205 = vdwg.mxu0
    %7206 = vmatprep.subr.bf16.mxu0 %v6368
    %7207 = vmatpush1.bf16.msra.mxu0 %v6367
    %7208 = vmatprep.subr.bf16.mxu0 %v6336
    %7209 = vmatpush1.bf16.msra.mxu0 %v6335
    %7210 = vmatprep.subr.bf16.mxu0 %v6304
    %7211 = vmatpush1.bf16.msra.mxu0 %v6303
    %7212 = vmatprep.subr.bf16.mxu0 %v6272
    %7213 = vmatpush1.bf16.msra.mxu0 %v6271
    %7214 = vmatprep.subr.bf16.mxu0 %v6240
    %7215 = vmatpush1.bf16.msra.mxu0 %v6239
    %7216 = vmatprep.subr.bf16.mxu0 %v6208
    %7217 = vmatpush1.bf16.msra.mxu0 %v6207
    %7218 = vmatprep.subr.bf16.mxu0 %v6176
    %7219 = vmatpush1.bf16.msra.mxu0 %v6175
    %7220 = vmatprep.subr.bf16.mxu0 %v6144
    %7221 = vmatpush1.bf16.msra.mxu0 %v6143
    %7222 = vmatprep.subr.bf16.mxu0 %v6624
    %7223 = vmatpush2.bf16.msra.mxu0 %v6623
    %7224 = vmatprep.subr.bf16.mxu0 %v6592
    %7225 = vmatpush2.bf16.msra.mxu0 %v6591
    %7226 = vmatprep.subr.bf16.mxu0 %v6560
    %7227 = vmatpush2.bf16.msra.mxu0 %v6559
    %7228 = vmatprep.subr.bf16.mxu0 %v6528
    %7229 = vmatpush2.bf16.msra.mxu0 %v6527
    %7230 = vmatprep.subr.bf16.mxu0 %v6496
    %7231 = vmatpush2.bf16.msra.mxu0 %v6495
    %7232 = vmatprep.subr.bf16.mxu0 %v6464
    %7233 = vmatpush2.bf16.msra.mxu0 %v6463
    %7234 = vmatprep.subr.bf16.mxu0 %v6432
    %7235 = vmatpush2.bf16.msra.mxu0 %v6431
    %7236 = vmatprep.subr.bf16.mxu0 %v6400
    %7237 = vmatpush2.bf16.msra.mxu0 %v6399
    %7238 = vmatprep.mubr.bf16.mxu0 %v3924
    %7239 = vmatmul.mubr.bf16.gmra.mxu0 %v3923
    %v7240 = vpop.f32.mrf.mxu0
    %v7241 = vadd.f32 %v4456, %v7240
    %v7242 = vpop.f32.mrf.mxu0
    %v7243 = vadd.f32 %v4460, %v7242
    %v7244 = vpop.f32.mrf.mxu0
    %v7245 = vpop.f32.mrf.mxu0
    %7246 = vdwg.mxu0
    %7247 = vmatprep.subr.bf16.mxu0 %v6370
    %7248 = vmatpush1.bf16.msra.mxu0 %v6369
    %7249 = vmatprep.subr.bf16.mxu0 %v6338
    %7250 = vmatpush1.bf16.msra.mxu0 %v6337
    %7251 = vmatprep.subr.bf16.mxu0 %v6306
    %7252 = vmatpush1.bf16.msra.mxu0 %v6305
    %7253 = vmatprep.subr.bf16.mxu0 %v6274
    %7254 = vmatpush1.bf16.msra.mxu0 %v6273
    %7255 = vmatprep.subr.bf16.mxu0 %v6242
    %7256 = vmatpush1.bf16.msra.mxu0 %v6241
    %7257 = vmatprep.subr.bf16.mxu0 %v6210
    %7258 = vmatpush1.bf16.msra.mxu0 %v6209
    %7259 = vmatprep.subr.bf16.mxu0 %v6178
    %7260 = vmatpush1.bf16.msra.mxu0 %v6177
    %7261 = vmatprep.subr.bf16.mxu0 %v6146
    %7262 = vmatpush1.bf16.msra.mxu0 %v6145
    %7263 = vmatprep.subr.bf16.mxu0 %v6626
    %7264 = vmatpush2.bf16.msra.mxu0 %v6625
    %7265 = vmatprep.subr.bf16.mxu0 %v6594
    %7266 = vmatpush2.bf16.msra.mxu0 %v6593
    %7267 = vmatprep.subr.bf16.mxu0 %v6562
    %7268 = vmatpush2.bf16.msra.mxu0 %v6561
    %7269 = vmatprep.subr.bf16.mxu0 %v6530
    %7270 = vmatpush2.bf16.msra.mxu0 %v6529
    %7271 = vmatprep.subr.bf16.mxu0 %v6498
    %7272 = vmatpush2.bf16.msra.mxu0 %v6497
    %7273 = vmatprep.subr.bf16.mxu0 %v6466
    %7274 = vmatpush2.bf16.msra.mxu0 %v6465
    %7275 = vmatprep.subr.bf16.mxu0 %v6434
    %7276 = vmatpush2.bf16.msra.mxu0 %v6433
    %7277 = vmatprep.subr.bf16.mxu0 %v6402
    %7278 = vmatpush2.bf16.msra.mxu0 %v6401
    %7279 = vmatprep.mubr.bf16.mxu0 %v3924
    %7280 = vmatmul.mubr.bf16.gmra.mxu0 %v3923
    %v7281 = vpop.f32.mrf.mxu0
    %v7282 = vadd.f32 %v4464, %v7281
    %v7283 = vpop.f32.mrf.mxu0
    %v7284 = vadd.f32 %v4468, %v7283
    %v7285 = vpop.f32.mrf.mxu0
    %v7286 = vpop.f32.mrf.mxu0
    %7287 = vdwg.mxu0
    %7288 = vmatprep.subr.bf16.mxu0 %v6372
    %7289 = vmatpush1.bf16.msra.mxu0 %v6371
    %7290 = vmatprep.subr.bf16.mxu0 %v6340
    %7291 = vmatpush1.bf16.msra.mxu0 %v6339
    %7292 = vmatprep.subr.bf16.mxu0 %v6308
    %7293 = vmatpush1.bf16.msra.mxu0 %v6307
    %7294 = vmatprep.subr.bf16.mxu0 %v6276
    %7295 = vmatpush1.bf16.msra.mxu0 %v6275
    %7296 = vmatprep.subr.bf16.mxu0 %v6244
    %7297 = vmatpush1.bf16.msra.mxu0 %v6243
    %7298 = vmatprep.subr.bf16.mxu0 %v6212
    %7299 = vmatpush1.bf16.msra.mxu0 %v6211
    %7300 = vmatprep.subr.bf16.mxu0 %v6180
    %7301 = vmatpush1.bf16.msra.mxu0 %v6179
    %7302 = vmatprep.subr.bf16.mxu0 %v6148
    %7303 = vmatpush1.bf16.msra.mxu0 %v6147
    %7304 = vmatprep.subr.bf16.mxu0 %v6628
    %7305 = vmatpush2.bf16.msra.mxu0 %v6627
    %7306 = vmatprep.subr.bf16.mxu0 %v6596
    %7307 = vmatpush2.bf16.msra.mxu0 %v6595
    %7308 = vmatprep.subr.bf16.mxu0 %v6564
    %7309 = vmatpush2.bf16.msra.mxu0 %v6563
    %7310 = vmatprep.subr.bf16.mxu0 %v6532
    %7311 = vmatpush2.bf16.msra.mxu0 %v6531
    %7312 = vmatprep.subr.bf16.mxu0 %v6500
    %7313 = vmatpush2.bf16.msra.mxu0 %v6499
    %7314 = vmatprep.subr.bf16.mxu0 %v6468
    %7315 = vmatpush2.bf16.msra.mxu0 %v6467
    %7316 = vmatprep.subr.bf16.mxu0 %v6436
    %7317 = vmatpush2.bf16.msra.mxu0 %v6435
    %7318 = vmatprep.subr.bf16.mxu0 %v6404
    %7319 = vmatpush2.bf16.msra.mxu0 %v6403
    %7320 = vmatprep.mubr.bf16.mxu0 %v3924
    %7321 = vmatmul.mubr.bf16.gmra.mxu0 %v3923
    %v7322 = vpop.f32.mrf.mxu0
    %v7323 = vadd.f32 %v4472, %v7322
    %v7324 = vpop.f32.mrf.mxu0
    %v7325 = vadd.f32 %v4476, %v7324
    %v7326 = vpop.f32.mrf.mxu0
    %v7327 = vpop.f32.mrf.mxu0
    %7328 = vdwg.mxu0
    %7329 = vmatprep.subr.bf16.mxu0 %v6374
    %7330 = vmatpush1.bf16.msra.mxu0 %v6373
    %7331 = vmatprep.subr.bf16.mxu0 %v6342
    %7332 = vmatpush1.bf16.msra.mxu0 %v6341
    %7333 = vmatprep.subr.bf16.mxu0 %v6310
    %7334 = vmatpush1.bf16.msra.mxu0 %v6309
    %7335 = vmatprep.subr.bf16.mxu0 %v6278
    %7336 = vmatpush1.bf16.msra.mxu0 %v6277
    %7337 = vmatprep.subr.bf16.mxu0 %v6246
    %7338 = vmatpush1.bf16.msra.mxu0 %v6245
    %7339 = vmatprep.subr.bf16.mxu0 %v6214
    %7340 = vmatpush1.bf16.msra.mxu0 %v6213
    %7341 = vmatprep.subr.bf16.mxu0 %v6182
    %7342 = vmatpush1.bf16.msra.mxu0 %v6181
    %7343 = vmatprep.subr.bf16.mxu0 %v6150
    %7344 = vmatpush1.bf16.msra.mxu0 %v6149
    %7345 = vmatprep.subr.bf16.mxu0 %v6630
    %7346 = vmatpush2.bf16.msra.mxu0 %v6629
    %7347 = vmatprep.subr.bf16.mxu0 %v6598
    %7348 = vmatpush2.bf16.msra.mxu0 %v6597
    %7349 = vmatprep.subr.bf16.mxu0 %v6566
    %7350 = vmatpush2.bf16.msra.mxu0 %v6565
    %7351 = vmatprep.subr.bf16.mxu0 %v6534
    %7352 = vmatpush2.bf16.msra.mxu0 %v6533
    %7353 = vmatprep.subr.bf16.mxu0 %v6502
    %7354 = vmatpush2.bf16.msra.mxu0 %v6501
    %7355 = vmatprep.subr.bf16.mxu0 %v6470
    %7356 = vmatpush2.bf16.msra.mxu0 %v6469
    %7357 = vmatprep.subr.bf16.mxu0 %v6438
    %7358 = vmatpush2.bf16.msra.mxu0 %v6437
    %7359 = vmatprep.subr.bf16.mxu0 %v6406
    %7360 = vmatpush2.bf16.msra.mxu0 %v6405
    %7361 = vmatprep.mubr.bf16.mxu0 %v3924
    %7362 = vmatmul.mubr.bf16.gmra.mxu0 %v3923
    %v7363 = vpop.f32.mrf.mxu0
    %v7364 = vadd.f32 %v4480, %v7363
    %v7365 = vpop.f32.mrf.mxu0
    %v7366 = vadd.f32 %v4484, %v7365
    %v7367 = vpop.f32.mrf.mxu0
    %v7368 = vpop.f32.mrf.mxu0
    %7369 = vdwg.mxu0
    %7370 = vmatprep.subr.bf16.mxu0 %v6376
    %7371 = vmatpush1.bf16.msra.mxu0 %v6375
    %7372 = vmatprep.subr.bf16.mxu0 %v6344
    %7373 = vmatpush1.bf16.msra.mxu0 %v6343
    %7374 = vmatprep.subr.bf16.mxu0 %v6312
    %7375 = vmatpush1.bf16.msra.mxu0 %v6311
    %7376 = vmatprep.subr.bf16.mxu0 %v6280
    %7377 = vmatpush1.bf16.msra.mxu0 %v6279
    %7378 = vmatprep.subr.bf16.mxu0 %v6248
    %7379 = vmatpush1.bf16.msra.mxu0 %v6247
    %7380 = vmatprep.subr.bf16.mxu0 %v6216
    %7381 = vmatpush1.bf16.msra.mxu0 %v6215
    %7382 = vmatprep.subr.bf16.mxu0 %v6184
    %7383 = vmatpush1.bf16.msra.mxu0 %v6183
    %7384 = vmatprep.subr.bf16.mxu0 %v6152
    %7385 = vmatpush1.bf16.msra.mxu0 %v6151
    %7386 = vmatprep.subr.bf16.mxu0 %v6632
    %7387 = vmatpush2.bf16.msra.mxu0 %v6631
    %7388 = vmatprep.subr.bf16.mxu0 %v6600
    %7389 = vmatpush2.bf16.msra.mxu0 %v6599
    %7390 = vmatprep.subr.bf16.mxu0 %v6568
    %7391 = vmatpush2.bf16.msra.mxu0 %v6567
    %7392 = vmatprep.subr.bf16.mxu0 %v6536
    %7393 = vmatpush2.bf16.msra.mxu0 %v6535
    %7394 = vmatprep.subr.bf16.mxu0 %v6504
    %7395 = vmatpush2.bf16.msra.mxu0 %v6503
    %7396 = vmatprep.subr.bf16.mxu0 %v6472
    %7397 = vmatpush2.bf16.msra.mxu0 %v6471
    %7398 = vmatprep.subr.bf16.mxu0 %v6440
    %7399 = vmatpush2.bf16.msra.mxu0 %v6439
    %7400 = vmatprep.subr.bf16.mxu0 %v6408
    %7401 = vmatpush2.bf16.msra.mxu0 %v6407
    %7402 = vmatprep.mubr.bf16.mxu0 %v3924
    %7403 = vmatmul.mubr.bf16.gmra.mxu0 %v3923
    %v7404 = vpop.f32.mrf.mxu0
    %v7405 = vadd.f32 %v4488, %v7404
    %v7406 = vpop.f32.mrf.mxu0
    %v7407 = vadd.f32 %v4492, %v7406
    %v7408 = vpop.f32.mrf.mxu0
    %v7409 = vpop.f32.mrf.mxu0
    %7410 = vdwg.mxu0
    %7411 = vmatprep.subr.bf16.mxu0 %v6378
    %7412 = vmatpush1.bf16.msra.mxu0 %v6377
    %7413 = vmatprep.subr.bf16.mxu0 %v6346
    %7414 = vmatpush1.bf16.msra.mxu0 %v6345
    %7415 = vmatprep.subr.bf16.mxu0 %v6314
    %7416 = vmatpush1.bf16.msra.mxu0 %v6313
    %7417 = vmatprep.subr.bf16.mxu0 %v6282
    %7418 = vmatpush1.bf16.msra.mxu0 %v6281
    %7419 = vmatprep.subr.bf16.mxu0 %v6250
    %7420 = vmatpush1.bf16.msra.mxu0 %v6249
    %7421 = vmatprep.subr.bf16.mxu0 %v6218
    %7422 = vmatpush1.bf16.msra.mxu0 %v6217
    %7423 = vmatprep.subr.bf16.mxu0 %v6186
    %7424 = vmatpush1.bf16.msra.mxu0 %v6185
    %7425 = vmatprep.subr.bf16.mxu0 %v6154
    %7426 = vmatpush1.bf16.msra.mxu0 %v6153
    %7427 = vmatprep.subr.bf16.mxu0 %v6634
    %7428 = vmatpush2.bf16.msra.mxu0 %v6633
    %7429 = vmatprep.subr.bf16.mxu0 %v6602
    %7430 = vmatpush2.bf16.msra.mxu0 %v6601
    %7431 = vmatprep.subr.bf16.mxu0 %v6570
    %7432 = vmatpush2.bf16.msra.mxu0 %v6569
    %7433 = vmatprep.subr.bf16.mxu0 %v6538
    %7434 = vmatpush2.bf16.msra.mxu0 %v6537
    %7435 = vmatprep.subr.bf16.mxu0 %v6506
    %7436 = vmatpush2.bf16.msra.mxu0 %v6505
    %7437 = vmatprep.subr.bf16.mxu0 %v6474
    %7438 = vmatpush2.bf16.msra.mxu0 %v6473
    %7439 = vmatprep.subr.bf16.mxu0 %v6442
    %7440 = vmatpush2.bf16.msra.mxu0 %v6441
    %7441 = vmatprep.subr.bf16.mxu0 %v6410
    %7442 = vmatpush2.bf16.msra.mxu0 %v6409
    %7443 = vmatprep.mubr.bf16.mxu0 %v3924
    %7444 = vmatmul.mubr.bf16.gmra.mxu0 %v3923
    %v7445 = vpop.f32.mrf.mxu0
    %v7446 = vadd.f32 %v4496, %v7445
    %v7447 = vpop.f32.mrf.mxu0
    %v7448 = vadd.f32 %v4500, %v7447
    %v7449 = vpop.f32.mrf.mxu0
    %v7450 = vpop.f32.mrf.mxu0
    %7451 = vdwg.mxu0
    %7452 = vmatprep.subr.bf16.mxu0 %v6380
    %7453 = vmatpush1.bf16.msra.mxu0 %v6379
    %7454 = vmatprep.subr.bf16.mxu0 %v6348
    %7455 = vmatpush1.bf16.msra.mxu0 %v6347
    %7456 = vmatprep.subr.bf16.mxu0 %v6316
    %7457 = vmatpush1.bf16.msra.mxu0 %v6315
    %7458 = vmatprep.subr.bf16.mxu0 %v6284
    %7459 = vmatpush1.bf16.msra.mxu0 %v6283
    %7460 = vmatprep.subr.bf16.mxu0 %v6252
    %7461 = vmatpush1.bf16.msra.mxu0 %v6251
    %7462 = vmatprep.subr.bf16.mxu0 %v6220
    %7463 = vmatpush1.bf16.msra.mxu0 %v6219
    %7464 = vmatprep.subr.bf16.mxu0 %v6188
    %7465 = vmatpush1.bf16.msra.mxu0 %v6187
    %7466 = vmatprep.subr.bf16.mxu0 %v6156
    %7467 = vmatpush1.bf16.msra.mxu0 %v6155
    %7468 = vmatprep.subr.bf16.mxu0 %v6636
    %7469 = vmatpush2.bf16.msra.mxu0 %v6635
    %7470 = vmatprep.subr.bf16.mxu0 %v6604
    %7471 = vmatpush2.bf16.msra.mxu0 %v6603
    %7472 = vmatprep.subr.bf16.mxu0 %v6572
    %7473 = vmatpush2.bf16.msra.mxu0 %v6571
    %7474 = vmatprep.subr.bf16.mxu0 %v6540
    %7475 = vmatpush2.bf16.msra.mxu0 %v6539
    %7476 = vmatprep.subr.bf16.mxu0 %v6508
    %7477 = vmatpush2.bf16.msra.mxu0 %v6507
    %7478 = vmatprep.subr.bf16.mxu0 %v6476
    %7479 = vmatpush2.bf16.msra.mxu0 %v6475
    %7480 = vmatprep.subr.bf16.mxu0 %v6444
    %7481 = vmatpush2.bf16.msra.mxu0 %v6443
    %7482 = vmatprep.subr.bf16.mxu0 %v6412
    %7483 = vmatpush2.bf16.msra.mxu0 %v6411
    %7484 = vmatprep.mubr.bf16.mxu0 %v3924
    %7485 = vmatmul.mubr.bf16.gmra.mxu0 %v3923
    %v7486 = vpop.f32.mrf.mxu0
    %v7487 = vadd.f32 %v4504, %v7486
    %v7488 = vpop.f32.mrf.mxu0
    %v7489 = vadd.f32 %v4508, %v7488
    %v7490 = vpop.f32.mrf.mxu0
    %v7491 = vpop.f32.mrf.mxu0
    %7492 = vdwg.mxu0
    %7493 = vmatprep.subr.bf16.mxu0 %v6382
    %7494 = vmatpush1.bf16.msra.mxu0 %v6381
    %7495 = vmatprep.subr.bf16.mxu0 %v6350
    %7496 = vmatpush1.bf16.msra.mxu0 %v6349
    %7497 = vmatprep.subr.bf16.mxu0 %v6318
    %7498 = vmatpush1.bf16.msra.mxu0 %v6317
    %7499 = vmatprep.subr.bf16.mxu0 %v6286
    %7500 = vmatpush1.bf16.msra.mxu0 %v6285
    %7501 = vmatprep.subr.bf16.mxu0 %v6254
    %7502 = vmatpush1.bf16.msra.mxu0 %v6253
    %7503 = vmatprep.subr.bf16.mxu0 %v6222
    %7504 = vmatpush1.bf16.msra.mxu0 %v6221
    %7505 = vmatprep.subr.bf16.mxu0 %v6190
    %7506 = vmatpush1.bf16.msra.mxu0 %v6189
    %7507 = vmatprep.subr.bf16.mxu0 %v6158
    %7508 = vmatpush1.bf16.msra.mxu0 %v6157
    %7509 = vmatprep.subr.bf16.mxu0 %v6638
    %7510 = vmatpush2.bf16.msra.mxu0 %v6637
    %7511 = vmatprep.subr.bf16.mxu0 %v6606
    %7512 = vmatpush2.bf16.msra.mxu0 %v6605
    %7513 = vmatprep.subr.bf16.mxu0 %v6574
    %7514 = vmatpush2.bf16.msra.mxu0 %v6573
    %7515 = vmatprep.subr.bf16.mxu0 %v6542
    %7516 = vmatpush2.bf16.msra.mxu0 %v6541
    %7517 = vmatprep.subr.bf16.mxu0 %v6510
    %7518 = vmatpush2.bf16.msra.mxu0 %v6509
    %7519 = vmatprep.subr.bf16.mxu0 %v6478
    %7520 = vmatpush2.bf16.msra.mxu0 %v6477
    %7521 = vmatprep.subr.bf16.mxu0 %v6446
    %7522 = vmatpush2.bf16.msra.mxu0 %v6445
    %7523 = vmatprep.subr.bf16.mxu0 %v6414
    %7524 = vmatpush2.bf16.msra.mxu0 %v6413
    %7525 = vmatprep.mubr.bf16.mxu0 %v3924
    %7526 = vmatmul.mubr.bf16.gmra.mxu0 %v3923
    %v7527 = vpop.f32.mrf.mxu0
    %v7528 = vadd.f32 %v4512, %v7527
    %v7529 = vpop.f32.mrf.mxu0
    %v7530 = vadd.f32 %v4516, %v7529
    %v7531 = vpop.f32.mrf.mxu0
    %v7532 = vpop.f32.mrf.mxu0
    %7533 = vdwg.mxu0
    %7534 = vmatprep.subr.bf16.mxu0 %v6384
    %7535 = vmatpush1.bf16.msra.mxu0 %v6383
    %7536 = vmatprep.subr.bf16.mxu0 %v6352
    %7537 = vmatpush1.bf16.msra.mxu0 %v6351
    %7538 = vmatprep.subr.bf16.mxu0 %v6320
    %7539 = vmatpush1.bf16.msra.mxu0 %v6319
    %7540 = vmatprep.subr.bf16.mxu0 %v6288
    %7541 = vmatpush1.bf16.msra.mxu0 %v6287
    %7542 = vmatprep.subr.bf16.mxu0 %v6256
    %7543 = vmatpush1.bf16.msra.mxu0 %v6255
    %7544 = vmatprep.subr.bf16.mxu0 %v6224
    %7545 = vmatpush1.bf16.msra.mxu0 %v6223
    %7546 = vmatprep.subr.bf16.mxu0 %v6192
    %7547 = vmatpush1.bf16.msra.mxu0 %v6191
    %7548 = vmatprep.subr.bf16.mxu0 %v6160
    %7549 = vmatpush1.bf16.msra.mxu0 %v6159
    %7550 = vmatprep.subr.bf16.mxu0 %v6640
    %7551 = vmatpush2.bf16.msra.mxu0 %v6639
    %7552 = vmatprep.subr.bf16.mxu0 %v6608
    %7553 = vmatpush2.bf16.msra.mxu0 %v6607
    %7554 = vmatprep.subr.bf16.mxu0 %v6576
    %7555 = vmatpush2.bf16.msra.mxu0 %v6575
    %7556 = vmatprep.subr.bf16.mxu0 %v6544
    %7557 = vmatpush2.bf16.msra.mxu0 %v6543
    %7558 = vmatprep.subr.bf16.mxu0 %v6512
    %7559 = vmatpush2.bf16.msra.mxu0 %v6511
    %7560 = vmatprep.subr.bf16.mxu0 %v6480
    %7561 = vmatpush2.bf16.msra.mxu0 %v6479
    %7562 = vmatprep.subr.bf16.mxu0 %v6448
    %7563 = vmatpush2.bf16.msra.mxu0 %v6447
    %7564 = vmatprep.subr.bf16.mxu0 %v6416
    %7565 = vmatpush2.bf16.msra.mxu0 %v6415
    %7566 = vmatprep.mubr.bf16.mxu0 %v3924
    %7567 = vmatmul.mubr.bf16.gmra.mxu0 %v3923
    %v7568 = vpop.f32.mrf.mxu0
    %v7569 = vadd.f32 %v4520, %v7568
    %v7570 = vpop.f32.mrf.mxu0
    %v7571 = vadd.f32 %v4524, %v7570
    %v7572 = vpop.f32.mrf.mxu0
    %v7573 = vpop.f32.mrf.mxu0
    %7574 = vdwg.mxu0
    %7575 = vmatprep.subr.bf16.mxu0 %v6386
    %7576 = vmatpush1.bf16.msra.mxu0 %v6385
    %7577 = vmatprep.subr.bf16.mxu0 %v6354
    %7578 = vmatpush1.bf16.msra.mxu0 %v6353
    %7579 = vmatprep.subr.bf16.mxu0 %v6322
    %7580 = vmatpush1.bf16.msra.mxu0 %v6321
    %7581 = vmatprep.subr.bf16.mxu0 %v6290
    %7582 = vmatpush1.bf16.msra.mxu0 %v6289
    %7583 = vmatprep.subr.bf16.mxu0 %v6258
    %7584 = vmatpush1.bf16.msra.mxu0 %v6257
    %7585 = vmatprep.subr.bf16.mxu0 %v6226
    %7586 = vmatpush1.bf16.msra.mxu0 %v6225
    %7587 = vmatprep.subr.bf16.mxu0 %v6194
    %7588 = vmatpush1.bf16.msra.mxu0 %v6193
    %7589 = vmatprep.subr.bf16.mxu0 %v6162
    %7590 = vmatpush1.bf16.msra.mxu0 %v6161
    %7591 = vmatprep.subr.bf16.mxu0 %v6642
    %7592 = vmatpush2.bf16.msra.mxu0 %v6641
    %7593 = vmatprep.subr.bf16.mxu0 %v6610
    %7594 = vmatpush2.bf16.msra.mxu0 %v6609
    %7595 = vmatprep.subr.bf16.mxu0 %v6578
    %7596 = vmatpush2.bf16.msra.mxu0 %v6577
    %7597 = vmatprep.subr.bf16.mxu0 %v6546
    %7598 = vmatpush2.bf16.msra.mxu0 %v6545
    %7599 = vmatprep.subr.bf16.mxu0 %v6514
    %7600 = vmatpush2.bf16.msra.mxu0 %v6513
    %7601 = vmatprep.subr.bf16.mxu0 %v6482
    %7602 = vmatpush2.bf16.msra.mxu0 %v6481
    %7603 = vmatprep.subr.bf16.mxu0 %v6450
    %7604 = vmatpush2.bf16.msra.mxu0 %v6449
    %7605 = vmatprep.subr.bf16.mxu0 %v6418
    %7606 = vmatpush2.bf16.msra.mxu0 %v6417
    %7607 = vmatprep.mubr.bf16.mxu0 %v3924
    %7608 = vmatmul.mubr.bf16.gmra.mxu0 %v3923
    %v7609 = vpop.f32.mrf.mxu0
    %v7610 = vadd.f32 %v4528, %v7609
    %v7611 = vpop.f32.mrf.mxu0
    %v7612 = vadd.f32 %v4532, %v7611
    %v7613 = vpop.f32.mrf.mxu0
    %v7614 = vpop.f32.mrf.mxu0
    %7615 = vdwg.mxu0
    %7616 = vmatprep.subr.bf16.mxu0 %v6388
    %7617 = vmatpush1.bf16.msra.mxu0 %v6387
    %7618 = vmatprep.subr.bf16.mxu0 %v6356
    %7619 = vmatpush1.bf16.msra.mxu0 %v6355
    %7620 = vmatprep.subr.bf16.mxu0 %v6324
    %7621 = vmatpush1.bf16.msra.mxu0 %v6323
    %7622 = vmatprep.subr.bf16.mxu0 %v6292
    %7623 = vmatpush1.bf16.msra.mxu0 %v6291
    %7624 = vmatprep.subr.bf16.mxu0 %v6260
    %7625 = vmatpush1.bf16.msra.mxu0 %v6259
    %7626 = vmatprep.subr.bf16.mxu0 %v6228
    %7627 = vmatpush1.bf16.msra.mxu0 %v6227
    %7628 = vmatprep.subr.bf16.mxu0 %v6196
    %7629 = vmatpush1.bf16.msra.mxu0 %v6195
    %7630 = vmatprep.subr.bf16.mxu0 %v6164
    %7631 = vmatpush1.bf16.msra.mxu0 %v6163
    %7632 = vmatprep.subr.bf16.mxu0 %v6644
    %7633 = vmatpush2.bf16.msra.mxu0 %v6643
    %7634 = vmatprep.subr.bf16.mxu0 %v6612
    %7635 = vmatpush2.bf16.msra.mxu0 %v6611
    %7636 = vmatprep.subr.bf16.mxu0 %v6580
    %7637 = vmatpush2.bf16.msra.mxu0 %v6579
    %7638 = vmatprep.subr.bf16.mxu0 %v6548
    %7639 = vmatpush2.bf16.msra.mxu0 %v6547
    %7640 = vmatprep.subr.bf16.mxu0 %v6516
    %7641 = vmatpush2.bf16.msra.mxu0 %v6515
    %7642 = vmatprep.subr.bf16.mxu0 %v6484
    %7643 = vmatpush2.bf16.msra.mxu0 %v6483
    %7644 = vmatprep.subr.bf16.mxu0 %v6452
    %7645 = vmatpush2.bf16.msra.mxu0 %v6451
    %7646 = vmatprep.subr.bf16.mxu0 %v6420
    %7647 = vmatpush2.bf16.msra.mxu0 %v6419
    %7648 = vmatprep.mubr.bf16.mxu0 %v3924
    %7649 = vmatmul.mubr.bf16.gmra.mxu0 %v3923
    %v7650 = vpop.f32.mrf.mxu0
    %v7651 = vadd.f32 %v4536, %v7650
    %v7652 = vpop.f32.mrf.mxu0
    %v7653 = vadd.f32 %v4540, %v7652
    %v7654 = vpop.f32.mrf.mxu0
    %v7655 = vpop.f32.mrf.mxu0
    %7656 = vdwg.mxu0
    %7657 = vmatprep.subr.bf16.mxu0 %v6390
    %7658 = vmatpush1.bf16.msra.mxu0 %v6389
    %7659 = vmatprep.subr.bf16.mxu0 %v6358
    %7660 = vmatpush1.bf16.msra.mxu0 %v6357
    %7661 = vmatprep.subr.bf16.mxu0 %v6326
    %7662 = vmatpush1.bf16.msra.mxu0 %v6325
    %7663 = vmatprep.subr.bf16.mxu0 %v6294
    %7664 = vmatpush1.bf16.msra.mxu0 %v6293
    %7665 = vmatprep.subr.bf16.mxu0 %v6262
    %7666 = vmatpush1.bf16.msra.mxu0 %v6261
    %7667 = vmatprep.subr.bf16.mxu0 %v6230
    %7668 = vmatpush1.bf16.msra.mxu0 %v6229
    %7669 = vmatprep.subr.bf16.mxu0 %v6198
    %7670 = vmatpush1.bf16.msra.mxu0 %v6197
    %7671 = vmatprep.subr.bf16.mxu0 %v6166
    %7672 = vmatpush1.bf16.msra.mxu0 %v6165
    %7673 = vmatprep.subr.bf16.mxu0 %v6646
    %7674 = vmatpush2.bf16.msra.mxu0 %v6645
    %7675 = vmatprep.subr.bf16.mxu0 %v6614
    %7676 = vmatpush2.bf16.msra.mxu0 %v6613
    %7677 = vmatprep.subr.bf16.mxu0 %v6582
    %7678 = vmatpush2.bf16.msra.mxu0 %v6581
    %7679 = vmatprep.subr.bf16.mxu0 %v6550
    %7680 = vmatpush2.bf16.msra.mxu0 %v6549
    %7681 = vmatprep.subr.bf16.mxu0 %v6518
    %7682 = vmatpush2.bf16.msra.mxu0 %v6517
    %7683 = vmatprep.subr.bf16.mxu0 %v6486
    %7684 = vmatpush2.bf16.msra.mxu0 %v6485
    %7685 = vmatprep.subr.bf16.mxu0 %v6454
    %7686 = vmatpush2.bf16.msra.mxu0 %v6453
    %7687 = vmatprep.subr.bf16.mxu0 %v6422
    %7688 = vmatpush2.bf16.msra.mxu0 %v6421
    %7689 = vmatprep.mubr.bf16.mxu0 %v3924
    %7690 = vmatmul.mubr.bf16.gmra.mxu0 %v3923
    %v7691 = vpop.f32.mrf.mxu0
    %v7692 = vadd.f32 %v4544, %v7691
    %v7693 = vpop.f32.mrf.mxu0
    %v7694 = vadd.f32 %v4548, %v7693
    %v7695 = vpop.f32.mrf.mxu0
    %v7696 = vpop.f32.mrf.mxu0
    %7697 = vdwg.mxu0
    %7698 = vmatprep.subr.bf16.mxu0 %v6392
    %7699 = vmatpush1.bf16.msra.mxu0 %v6391
    %7700 = vmatprep.subr.bf16.mxu0 %v6360
    %7701 = vmatpush1.bf16.msra.mxu0 %v6359
    %7702 = vmatprep.subr.bf16.mxu0 %v6328
    %7703 = vmatpush1.bf16.msra.mxu0 %v6327
    %7704 = vmatprep.subr.bf16.mxu0 %v6296
    %7705 = vmatpush1.bf16.msra.mxu0 %v6295
    %7706 = vmatprep.subr.bf16.mxu0 %v6264
    %7707 = vmatpush1.bf16.msra.mxu0 %v6263
    %7708 = vmatprep.subr.bf16.mxu0 %v6232
    %7709 = vmatpush1.bf16.msra.mxu0 %v6231
    %7710 = vmatprep.subr.bf16.mxu0 %v6200
    %7711 = vmatpush1.bf16.msra.mxu0 %v6199
    %7712 = vmatprep.subr.bf16.mxu0 %v6168
    %7713 = vmatpush1.bf16.msra.mxu0 %v6167
    %7714 = vmatprep.subr.bf16.mxu0 %v6648
    %7715 = vmatpush2.bf16.msra.mxu0 %v6647
    %7716 = vmatprep.subr.bf16.mxu0 %v6616
    %7717 = vmatpush2.bf16.msra.mxu0 %v6615
    %7718 = vmatprep.subr.bf16.mxu0 %v6584
    %7719 = vmatpush2.bf16.msra.mxu0 %v6583
    %7720 = vmatprep.subr.bf16.mxu0 %v6552
    %7721 = vmatpush2.bf16.msra.mxu0 %v6551
    %7722 = vmatprep.subr.bf16.mxu0 %v6520
    %7723 = vmatpush2.bf16.msra.mxu0 %v6519
    %7724 = vmatprep.subr.bf16.mxu0 %v6488
    %7725 = vmatpush2.bf16.msra.mxu0 %v6487
    %7726 = vmatprep.subr.bf16.mxu0 %v6456
    %7727 = vmatpush2.bf16.msra.mxu0 %v6455
    %7728 = vmatprep.subr.bf16.mxu0 %v6424
    %7729 = vmatpush2.bf16.msra.mxu0 %v6423
    %7730 = vmatprep.mubr.bf16.mxu0 %v3924
    %7731 = vmatmul.mubr.bf16.gmra.mxu0 %v3923
    %v7732 = vpop.f32.mrf.mxu0
    %v7733 = vadd.f32 %v4552, %v7732
    %v7734 = vpop.f32.mrf.mxu0
    %v7735 = vadd.f32 %v4556, %v7734
    %v7736 = vpop.f32.mrf.mxu0
    %v7737 = vpop.f32.mrf.mxu0
    %7738 = vdwg.mxu0
    %7739 = vmatprep.subr.bf16.mxu0 %v6394
    %7740 = vmatpush1.bf16.msra.mxu0 %v6393
    %7741 = vmatprep.subr.bf16.mxu0 %v6362
    %7742 = vmatpush1.bf16.msra.mxu0 %v6361
    %7743 = vmatprep.subr.bf16.mxu0 %v6330
    %7744 = vmatpush1.bf16.msra.mxu0 %v6329
    %7745 = vmatprep.subr.bf16.mxu0 %v6298
    %7746 = vmatpush1.bf16.msra.mxu0 %v6297
    %7747 = vmatprep.subr.bf16.mxu0 %v6266
    %7748 = vmatpush1.bf16.msra.mxu0 %v6265
    %7749 = vmatprep.subr.bf16.mxu0 %v6234
    %7750 = vmatpush1.bf16.msra.mxu0 %v6233
    %7751 = vmatprep.subr.bf16.mxu0 %v6202
    %7752 = vmatpush1.bf16.msra.mxu0 %v6201
    %7753 = vmatprep.subr.bf16.mxu0 %v6170
    %7754 = vmatpush1.bf16.msra.mxu0 %v6169
    %7755 = vmatprep.subr.bf16.mxu0 %v6650
    %7756 = vmatpush2.bf16.msra.mxu0 %v6649
    %7757 = vmatprep.subr.bf16.mxu0 %v6618
    %7758 = vmatpush2.bf16.msra.mxu0 %v6617
    %7759 = vmatprep.subr.bf16.mxu0 %v6586
    %7760 = vmatpush2.bf16.msra.mxu0 %v6585
    %7761 = vmatprep.subr.bf16.mxu0 %v6554
    %7762 = vmatpush2.bf16.msra.mxu0 %v6553
    %7763 = vmatprep.subr.bf16.mxu0 %v6522
    %7764 = vmatpush2.bf16.msra.mxu0 %v6521
    %7765 = vmatprep.subr.bf16.mxu0 %v6490
    %7766 = vmatpush2.bf16.msra.mxu0 %v6489
    %7767 = vmatprep.subr.bf16.mxu0 %v6458
    %7768 = vmatpush2.bf16.msra.mxu0 %v6457
    %7769 = vmatprep.subr.bf16.mxu0 %v6426
    %7770 = vmatpush2.bf16.msra.mxu0 %v6425
    %7771 = vmatprep.mubr.bf16.mxu0 %v3924
    %7772 = vmatmul.mubr.bf16.gmra.mxu0 %v3923
    %v7773 = vpop.f32.mrf.mxu0
    %v7774 = vadd.f32 %v4560, %v7773
    %v7775 = vpop.f32.mrf.mxu0
    %v7776 = vadd.f32 %v4564, %v7775
    %v7777 = vpop.f32.mrf.mxu0
    %v7778 = vpop.f32.mrf.mxu0
    %7779 = vdwg.mxu0
    %7780 = vmatprep.subr.bf16.mxu0 %v6396
    %7781 = vmatpush1.bf16.msra.mxu0 %v6395
    %7782 = vmatprep.subr.bf16.mxu0 %v6364
    %7783 = vmatpush1.bf16.msra.mxu0 %v6363
    %7784 = vmatprep.subr.bf16.mxu0 %v6332
    %7785 = vmatpush1.bf16.msra.mxu0 %v6331
    %7786 = vmatprep.subr.bf16.mxu0 %v6300
    %7787 = vmatpush1.bf16.msra.mxu0 %v6299
    %7788 = vmatprep.subr.bf16.mxu0 %v6268
    %7789 = vmatpush1.bf16.msra.mxu0 %v6267
    %7790 = vmatprep.subr.bf16.mxu0 %v6236
    %7791 = vmatpush1.bf16.msra.mxu0 %v6235
    %7792 = vmatprep.subr.bf16.mxu0 %v6204
    %7793 = vmatpush1.bf16.msra.mxu0 %v6203
    %7794 = vmatprep.subr.bf16.mxu0 %v6172
    %7795 = vmatpush1.bf16.msra.mxu0 %v6171
    %7796 = vmatprep.subr.bf16.mxu0 %v6652
    %7797 = vmatpush2.bf16.msra.mxu0 %v6651
    %7798 = vmatprep.subr.bf16.mxu0 %v6620
    %7799 = vmatpush2.bf16.msra.mxu0 %v6619
    %7800 = vmatprep.subr.bf16.mxu0 %v6588
    %7801 = vmatpush2.bf16.msra.mxu0 %v6587
    %7802 = vmatprep.subr.bf16.mxu0 %v6556
    %7803 = vmatpush2.bf16.msra.mxu0 %v6555
    %7804 = vmatprep.subr.bf16.mxu0 %v6524
    %7805 = vmatpush2.bf16.msra.mxu0 %v6523
    %7806 = vmatprep.subr.bf16.mxu0 %v6492
    %7807 = vmatpush2.bf16.msra.mxu0 %v6491
    %7808 = vmatprep.subr.bf16.mxu0 %v6460
    %7809 = vmatpush2.bf16.msra.mxu0 %v6459
    %7810 = vmatprep.subr.bf16.mxu0 %v6428
    %7811 = vmatpush2.bf16.msra.mxu0 %v6427
    %7812 = vmatprep.mubr.bf16.mxu0 %v3924
    %7813 = vmatmul.mubr.bf16.gmra.mxu0 %v3923
    %v7814 = vpop.f32.mrf.mxu0
    %v7815 = vadd.f32 %v4568, %v7814
    %v7816 = vpop.f32.mrf.mxu0
    %v7817 = vadd.f32 %v4572, %v7816
    %v7818 = vpop.f32.mrf.mxu0
    %v7819 = vpop.f32.mrf.mxu0
    %7820 = vdwg.mxu0
    %v7821 = vld [vmem:[#allocation31] sm:$0xff]
    %v7822 = vld [vmem:[#allocation31 + $0x8] sm:$0xff]
    %v7823 = vld [vmem:[#allocation31 + $0x10] sm:$0xff]
    %v7824 = vld [vmem:[#allocation31 + $0x18] sm:$0xff]
    %v7829 = vlaneseq
    %v7830 = vshrl.u32 %v7829, 7
    %v7831 = vsub.s32 0, %v7830
    %v7832 = vrot.slane %v7821, %v7831
    %v7833 = vlaneseq
    %v7834 = vshrl.u32 %v7833, 7
    %v7835 = vsub.s32 1, %v7834
    %v7836 = vrot.slane %v7821, %v7835
    %v7837 = vlaneseq
    %v7838 = vshrl.u32 %v7837, 7
    %v7839 = vsub.s32 2, %v7838
    %v7840 = vrot.slane %v7821, %v7839
    %v7841 = vlaneseq
    %v7842 = vshrl.u32 %v7841, 7
    %v7843 = vsub.s32 3, %v7842
    %v7844 = vrot.slane %v7821, %v7843
    %v7845 = vlaneseq
    %v7846 = vshrl.u32 %v7845, 7
    %v7847 = vsub.s32 4, %v7846
    %v7848 = vrot.slane %v7821, %v7847
    %v7849 = vlaneseq
    %v7850 = vshrl.u32 %v7849, 7
    %v7851 = vsub.s32 5, %v7850
    %v7852 = vrot.slane %v7821, %v7851
    %v7853 = vlaneseq
    %v7854 = vshrl.u32 %v7853, 7
    %v7855 = vsub.s32 6, %v7854
    %v7856 = vrot.slane %v7821, %v7855
    %v7857 = vlaneseq
    %v7858 = vshrl.u32 %v7857, 7
    %v7859 = vsub.s32 7, %v7858
    %v7860 = vrot.slane %v7821, %v7859
    %v7861 = vlaneseq
    %v7862 = vshrl.u32 %v7861, 7
    %v7863 = vsub.s32 0, %v7862
    %v7864 = vrot.slane %v7822, %v7863
    %v7865 = vlaneseq
    %v7866 = vshrl.u32 %v7865, 7
    %v7867 = vsub.s32 1, %v7866
    %v7868 = vrot.slane %v7822, %v7867
    %v7869 = vlaneseq
    %v7870 = vshrl.u32 %v7869, 7
    %v7871 = vsub.s32 2, %v7870
    %v7872 = vrot.slane %v7822, %v7871
    %v7873 = vlaneseq
    %v7874 = vshrl.u32 %v7873, 7
    %v7875 = vsub.s32 3, %v7874
    %v7876 = vrot.slane %v7822, %v7875
    %v7877 = vlaneseq
    %v7878 = vshrl.u32 %v7877, 7
    %v7879 = vsub.s32 4, %v7878
    %v7880 = vrot.slane %v7822, %v7879
    %v7881 = vlaneseq
    %v7882 = vshrl.u32 %v7881, 7
    %v7883 = vsub.s32 5, %v7882
    %v7884 = vrot.slane %v7822, %v7883
    %v7885 = vlaneseq
    %v7886 = vshrl.u32 %v7885, 7
    %v7887 = vsub.s32 6, %v7886
    %v7888 = vrot.slane %v7822, %v7887
    %v7889 = vlaneseq
    %v7890 = vshrl.u32 %v7889, 7
    %v7891 = vsub.s32 7, %v7890
    %v7892 = vrot.slane %v7822, %v7891
    %v7893 = vlaneseq
    %v7894 = vshrl.u32 %v7893, 7
    %v7895 = vsub.s32 0, %v7894
    %v7896 = vrot.slane %v7823, %v7895
    %v7897 = vlaneseq
    %v7898 = vshrl.u32 %v7897, 7
    %v7899 = vsub.s32 1, %v7898
    %v7900 = vrot.slane %v7823, %v7899
    %v7901 = vlaneseq
    %v7902 = vshrl.u32 %v7901, 7
    %v7903 = vsub.s32 2, %v7902
    %v7904 = vrot.slane %v7823, %v7903
    %v7905 = vlaneseq
    %v7906 = vshrl.u32 %v7905, 7
    %v7907 = vsub.s32 3, %v7906
    %v7908 = vrot.slane %v7823, %v7907
    %v7909 = vlaneseq
    %v7910 = vshrl.u32 %v7909, 7
    %v7911 = vsub.s32 4, %v7910
    %v7912 = vrot.slane %v7823, %v7911
    %v7913 = vlaneseq
    %v7914 = vshrl.u32 %v7913, 7
    %v7915 = vsub.s32 5, %v7914
    %v7916 = vrot.slane %v7823, %v7915
    %v7917 = vlaneseq
    %v7918 = vshrl.u32 %v7917, 7
    %v7919 = vsub.s32 6, %v7918
    %v7920 = vrot.slane %v7823, %v7919
    %v7921 = vlaneseq
    %v7922 = vshrl.u32 %v7921, 7
    %v7923 = vsub.s32 7, %v7922
    %v7924 = vrot.slane %v7823, %v7923
    %v7925 = vlaneseq
    %v7926 = vshrl.u32 %v7925, 7
    %v7927 = vsub.s32 0, %v7926
    %v7928 = vrot.slane %v7824, %v7927
    %v7929 = vlaneseq
    %v7930 = vshrl.u32 %v7929, 7
    %v7931 = vsub.s32 1, %v7930
    %v7932 = vrot.slane %v7824, %v7931
    %v7933 = vlaneseq
    %v7934 = vshrl.u32 %v7933, 7
    %v7935 = vsub.s32 2, %v7934
    %v7936 = vrot.slane %v7824, %v7935
    %v7937 = vlaneseq
    %v7938 = vshrl.u32 %v7937, 7
    %v7939 = vsub.s32 3, %v7938
    %v7940 = vrot.slane %v7824, %v7939
    %v7941 = vlaneseq
    %v7942 = vshrl.u32 %v7941, 7
    %v7943 = vsub.s32 4, %v7942
    %v7944 = vrot.slane %v7824, %v7943
    %v7945 = vlaneseq
    %v7946 = vshrl.u32 %v7945, 7
    %v7947 = vsub.s32 5, %v7946
    %v7948 = vrot.slane %v7824, %v7947
    %v7949 = vlaneseq
    %v7950 = vshrl.u32 %v7949, 7
    %v7951 = vsub.s32 6, %v7950
    %v7952 = vrot.slane %v7824, %v7951
    %v7953 = vlaneseq
    %v7954 = vshrl.u32 %v7953, 7
    %v7955 = vsub.s32 7, %v7954
    %v7956 = vrot.slane %v7824, %v7955
    %v7989 = vadd.f32 %v7200, %v7832
    %v7990 = vadd.f32 %v7202, %v7836
    %v7991 = vadd.f32 %v7241, %v7840
    %v7992 = vadd.f32 %v7243, %v7844
    %v7993 = vadd.f32 %v7282, %v7848
    %v7994 = vadd.f32 %v7284, %v7852
    %v7995 = vadd.f32 %v7323, %v7856
    %v7996 = vadd.f32 %v7325, %v7860
    %v7997 = vadd.f32 %v7364, %v7864
    %v7998 = vadd.f32 %v7366, %v7868
    %v7999 = vadd.f32 %v7405, %v7872
    %v8000 = vadd.f32 %v7407, %v7876
    %v8001 = vadd.f32 %v7446, %v7880
    %v8002 = vadd.f32 %v7448, %v7884
    %v8003 = vadd.f32 %v7487, %v7888
    %v8004 = vadd.f32 %v7489, %v7892
    %v8005 = vadd.f32 %v7528, %v7896
    %v8006 = vadd.f32 %v7530, %v7900
    %v8007 = vadd.f32 %v7569, %v7904
    %v8008 = vadd.f32 %v7571, %v7908
    %v8009 = vadd.f32 %v7610, %v7912
    %v8010 = vadd.f32 %v7612, %v7916
    %v8011 = vadd.f32 %v7651, %v7920
    %v8012 = vadd.f32 %v7653, %v7924
    %v8013 = vadd.f32 %v7692, %v7928
    %v8014 = vadd.f32 %v7694, %v7932
    %v8015 = vadd.f32 %v7733, %v7936
    %v8016 = vadd.f32 %v7735, %v7940
    %v8017 = vadd.f32 %v7774, %v7944
    %v8018 = vadd.f32 %v7776, %v7948
    %v8019 = vadd.f32 %v7815, %v7952
    %v8020 = vadd.f32 %v7817, %v7956
    %v8053 = vcombine.low %v7989, %v7990
    %v8054 = vcombine.low %v7991, %v7992
    %v8056 = vunpack.c.l.s4 1983009808
    %v8057 = vunpack.c.0.s8 %v8056
    %v8058 = vlaneseq
    %v8059 = vshrl.u32 %v8058, 7
    %v8060 = vsub.s32 %v8057, %v8059
    %v8061 = vrot.slane %v8053, %v8060
    %v8063 = vunpack.c.l.s4 1983009808
    %v8064 = vunpack.c.0.s8 %v8063
    %v8065 = vlaneseq
    %v8066 = vshrl.u32 %v8065, 7
    %v8067 = vsub.s32 %v8064, %v8066
    %v8068 = vrot.slane %v8054, %v8067
    %v8069 = vcombine.low %v8061, %v8068
    %v8070 = vcombine.low %v7993, %v7994
    %v8071 = vcombine.low %v7995, %v7996
    %v8073 = vunpack.c.l.s4 1983009808
    %v8074 = vunpack.c.0.s8 %v8073
    %v8075 = vlaneseq
    %v8076 = vshrl.u32 %v8075, 7
    %v8077 = vsub.s32 %v8074, %v8076
    %v8078 = vrot.slane %v8070, %v8077
    %v8080 = vunpack.c.l.s4 1983009808
    %v8081 = vunpack.c.0.s8 %v8080
    %v8082 = vlaneseq
    %v8083 = vshrl.u32 %v8082, 7
    %v8084 = vsub.s32 %v8081, %v8083
    %v8085 = vrot.slane %v8071, %v8084
    %v8086 = vcombine.low %v8078, %v8085
    %v8087 = vcombine.low %v7997, %v7998
    %v8088 = vcombine.low %v7999, %v8000
    %v8090 = vunpack.c.l.s4 1983009808
    %v8091 = vunpack.c.0.s8 %v8090
    %v8092 = vlaneseq
    %v8093 = vshrl.u32 %v8092, 7
    %v8094 = vsub.s32 %v8091, %v8093
    %v8095 = vrot.slane %v8087, %v8094
    %v8097 = vunpack.c.l.s4 1983009808
    %v8098 = vunpack.c.0.s8 %v8097
    %v8099 = vlaneseq
    %v8100 = vshrl.u32 %v8099, 7
    %v8101 = vsub.s32 %v8098, %v8100
    %v8102 = vrot.slane %v8088, %v8101
    %v8103 = vcombine.low %v8095, %v8102
    %v8104 = vcombine.low %v8001, %v8002
    %v8105 = vcombine.low %v8003, %v8004
    %v8107 = vunpack.c.l.s4 1983009808
    %v8108 = vunpack.c.0.s8 %v8107
    %v8109 = vlaneseq
    %v8110 = vshrl.u32 %v8109, 7
    %v8111 = vsub.s32 %v8108, %v8110
    %v8112 = vrot.slane %v8104, %v8111
    %v8114 = vunpack.c.l.s4 1983009808
    %v8115 = vunpack.c.0.s8 %v8114
    %v8116 = vlaneseq
    %v8117 = vshrl.u32 %v8116, 7
    %v8118 = vsub.s32 %v8115, %v8117
    %v8119 = vrot.slane %v8105, %v8118
    %v8120 = vcombine.low %v8112, %v8119
    %v8121 = vcombine.low %v8005, %v8006
    %v8122 = vcombine.low %v8007, %v8008
    %v8124 = vunpack.c.l.s4 1983009808
    %v8125 = vunpack.c.0.s8 %v8124
    %v8126 = vlaneseq
    %v8127 = vshrl.u32 %v8126, 7
    %v8128 = vsub.s32 %v8125, %v8127
    %v8129 = vrot.slane %v8121, %v8128
    %v8131 = vunpack.c.l.s4 1983009808
    %v8132 = vunpack.c.0.s8 %v8131
    %v8133 = vlaneseq
    %v8134 = vshrl.u32 %v8133, 7
    %v8135 = vsub.s32 %v8132, %v8134
    %v8136 = vrot.slane %v8122, %v8135
    %v8137 = vcombine.low %v8129, %v8136
    %v8138 = vcombine.low %v8009, %v8010
    %v8139 = vcombine.low %v8011, %v8012
    %v8141 = vunpack.c.l.s4 1983009808
    %v8142 = vunpack.c.0.s8 %v8141
    %v8143 = vlaneseq
    %v8144 = vshrl.u32 %v8143, 7
    %v8145 = vsub.s32 %v8142, %v8144
    %v8146 = vrot.slane %v8138, %v8145
    %v8148 = vunpack.c.l.s4 1983009808
    %v8149 = vunpack.c.0.s8 %v8148
    %v8150 = vlaneseq
    %v8151 = vshrl.u32 %v8150, 7
    %v8152 = vsub.s32 %v8149, %v8151
    %v8153 = vrot.slane %v8139, %v8152
    %v8154 = vcombine.low %v8146, %v8153
    %v8155 = vcombine.low %v8013, %v8014
    %v8156 = vcombine.low %v8015, %v8016
    %v8158 = vunpack.c.l.s4 1983009808
    %v8159 = vunpack.c.0.s8 %v8158
    %v8160 = vlaneseq
    %v8161 = vshrl.u32 %v8160, 7
    %v8162 = vsub.s32 %v8159, %v8161
    %v8163 = vrot.slane %v8155, %v8162
    %v8165 = vunpack.c.l.s4 1983009808
    %v8166 = vunpack.c.0.s8 %v8165
    %v8167 = vlaneseq
    %v8168 = vshrl.u32 %v8167, 7
    %v8169 = vsub.s32 %v8166, %v8168
    %v8170 = vrot.slane %v8156, %v8169
    %v8171 = vcombine.low %v8163, %v8170
    %v8172 = vcombine.low %v8017, %v8018
    %v8173 = vcombine.low %v8019, %v8020
    %v8175 = vunpack.c.l.s4 1983009808
    %v8176 = vunpack.c.0.s8 %v8175
    %v8177 = vlaneseq
    %v8178 = vshrl.u32 %v8177, 7
    %v8179 = vsub.s32 %v8176, %v8178
    %v8180 = vrot.slane %v8172, %v8179
    %v8182 = vunpack.c.l.s4 1983009808
    %v8183 = vunpack.c.0.s8 %v8182
    %v8184 = vlaneseq
    %v8185 = vshrl.u32 %v8184, 7
    %v8186 = vsub.s32 %v8183, %v8185
    %v8187 = vrot.slane %v8173, %v8186
    %v8188 = vcombine.low %v8180, %v8187
    %8197 = vst [vmem:[#allocation32] sm:$0xff] %v8069
    %8198 = vst [vmem:[#allocation32 + $0x8] sm:$0xff] %v8086
    %8199 = vst [vmem:[#allocation32 + $0x10] sm:$0xff] %v8103
    %8200 = vst [vmem:[#allocation32 + $0x18] sm:$0xff] %v8120
    %8201 = vst [vmem:[#allocation32 + $0x20] sm:$0xff] %v8137
    %8202 = vst [vmem:[#allocation32 + $0x28] sm:$0xff] %v8154
    %8203 = vst [vmem:[#allocation32 + $0x30] sm:$0xff] %v8171
    %8204 = vst [vmem:[#allocation32 + $0x38] sm:$0xff] %v8188
    // Predicated region
    $region154: #{tpu_custom_call.1} parent=1 // pred_check
      _
    $region155: #{tpu_custom_call.1} parent=1 // pred_check_branch
      %8206 = sbr.rel (0) target = $region157
    $region156: #{tpu_custom_call.1} parent=1 // pred_region
      %s8208 = ssub.s32 1024, 1024
      %8209 = vsyncadd [#allocation4], %s8208
      %s8211 = sshll.u32 [#allocation32], 4
      %s8212 = int_to_ptr.vmem [resolvable:$true] %s8211
      %8214 = dma.vmem_to_hbm [thread:$0]  %s8212, 1024, %s19, [#allocation4]
    $region157: #{tpu_custom_call.1} parent=1 // pred_fallthru
      _
    // Predicated region
    $region158: #{tpu_custom_call.1} parent=1 // pred_check
      _
    $region159: #{tpu_custom_call.1} parent=1 // pred_check_branch
      %8216 = sbr.rel (0) target = $region161
    $region160: #{tpu_custom_call.1} parent=1 // pred_region
      %8217 = dma.done [#allocation4], 1024
    $region161: #{tpu_custom_call.1} parent=1 // pred_fallthru
      _
    %8218 = vsyncpa [#allocation3], 1
    %8219 = vsyncpa [#allocation6], 1
    %8220 = vsyncpa [#allocation9], 1
    %8221 = vsyncpa [#allocation12], 1
    %8222 = vsyncpa [#allocation15], 1
    %8223 = vsyncpa [#allocation18], 1
    %8224 = vsyncpa [#allocation21], 1
    %8225 = vsyncpa [#allocation24], 1
    %8226 = vsyncpa [#allocation27], 1
    %8227 = vsyncpa [#allocation30], 1
    %8228 = vsyncpa [#allocation4], 1

</llo_original>
